<compile_context>
chip_gen: v7x
topology: tpu7x:2x2x1
jax: 0.10.0
libtpu: 0.0.40
codegen_flags: <defaults>
</compile_context>

<pallas_src>
import jax
import jax.numpy as jnp
from jax import lax
from jax.experimental import pallas as pl
from jax.experimental.pallas import tpu as pltpu

# ---------------- configuration (small, structure-preserving) ----------------
VOCAB = 100
HIDDEN = 128                 # stands in for 768 (lane-dense: multiple of 128)
N_HEADS = 4
HEAD_DIM = HIDDEN // N_HEADS
FFN = 256
N_LAYERS = 2
MAX_POS = 64
CHUNK = 8                    # stands in for chunk_size = 512
TOTAL_SEQ = 16               # 2 chunks -> cls_hs has shape (B, 2*HIDDEN)
N_CHUNKS = TOTAL_SEQ // CHUNK
BATCH = 4
SAMPLES_PER_BLOCK = 4        # BC = BATCH*N_CHUNKS = 8 -> grid = 2 (even: both v7x TCs)
TOKENS_PER_BLOCK = SAMPLES_PER_BLOCK * CHUNK   # matmul M dimension per grid step
FC1_IN = N_CHUNKS * HIDDEN   # derived (was hard-coded 2*HIDDEN)
FC1_OUT = 128                # stands in for 512
N_CLASSES = 2
LN_EPS = 1e-12

_VMEM = pl.BlockSpec(memory_space=pltpu.MemorySpace.VMEM)


def _full_spec(shape):
    """Whole-array block (resident across the grid; constant block index)."""
    idx = (0,) * len(shape)
    return pl.BlockSpec(shape, lambda i, _idx=idx: _idx)


# ------------------------- in-kernel math helpers ------------------------------
def _mxu(a, b):
    """MXU matmul: bf16 operands (no-op cast if already bf16), f32 accumulation."""
    return jnp.dot(a.astype(jnp.bfloat16), b.astype(jnp.bfloat16),
                   preferred_element_type=jnp.float32)


def _layer_norm(y, g, b):
    mean = jnp.mean(y, axis=-1, keepdims=True)
    var = jnp.mean(jnp.square(y - mean), axis=-1, keepdims=True)
    return (y - mean) * jax.lax.rsqrt(var + LN_EPS) * g + b


def _gelu(y):
    # TODO(synk): tanh-approx GELU; BERT uses exact erf GELU (small numeric delta).
    return 0.5 * y * (1.0 + jnp.tanh(0.7978845608028654 *
                                     (y + 0.044715 * y * y * y)))


# ------------------------------ Pallas kernels --------------------------------
def _encoder_kernel(x_ref, mask_ref, emb_g_ref, emb_b_ref,
                    wqkv_ref, bqkv_ref, wo_ref, bo_ref,
                    ln1_g_ref, ln1_b_ref, w1_ref, b1_ref, w2_ref, b2_ref,
                    ln2_g_ref, ln2_b_ref, pool_w_ref, pool_b_ref,
                    out_ref):
    """Fused mini-BERT encoder + pooler for SAMPLES_PER_BLOCK (batch, chunk) samples."""
    M = TOKENS_PER_BLOCK
    # token-flattened activations: (SPB, CHUNK, H) -> (M, H); f32 for LN statistics
    x = x_ref[...].astype(jnp.float32).reshape(M, HIDDEN)
    # additive attention bias, shared across layers & heads -> hoisted once
    bias = (mask_ref[...].astype(jnp.float32) - 1.0) * 1e9      # (SPB, 1, S)
    scale = 1.0 / (HEAD_DIM ** 0.5)

    # embedding layernorm
    x = _layer_norm(x, emb_g_ref[...], emb_b_ref[...])

    # short fixed trip count -> unrolled, static weight indices
    for l in range(N_LAYERS):
        # --- self-attention: packed QKV projection, one lane-dense MXU pass on M tokens
        qkv = _mxu(x, wqkv_ref[l]) + bqkv_ref[l]                # (M, 3H)
        ctx_heads = []
        for h in range(N_HEADS):
            lo = h * HEAD_DIM
            hi = lo + HEAD_DIM
            # row-split reshape only (no lane movement): per-sample attention blocks
            qh = qkv[:, lo:hi].reshape(SAMPLES_PER_BLOCK, CHUNK, HEAD_DIM)
            kh = qkv[:, HIDDEN + lo:HIDDEN + hi].reshape(
                SAMPLES_PER_BLOCK, CHUNK, HEAD_DIM)
            vh = qkv[:, 2 * HIDDEN + lo:2 * HIDDEN + hi].reshape(
                SAMPLES_PER_BLOCK, CHUNK, HEAD_DIM)
            # scores batched over the sample axis: (SPB, S, S)
            s = lax.dot_general(qh.astype(jnp.bfloat16), kh.astype(jnp.bfloat16),
                                (((2,), (2,)), ((0,), (0,))),
                                preferred_element_type=jnp.float32)
            s = s * scale + bias
            s = s - jnp.max(s, axis=-1, keepdims=True)
            p = jnp.exp(s)
            p = p * pl.reciprocal(jnp.sum(p, axis=-1, keepdims=True), approx=True)
            ctx = lax.dot_general(p.astype(jnp.bfloat16), vh.astype(jnp.bfloat16),
                                  (((2,), (1,)), ((0,), (0,))),
                                  preferred_element_type=jnp.float32)  # (SPB, S, dH)
            ctx_heads.append(ctx.reshape(M, HEAD_DIM))
        # lane concat (XLU) then ONE K=128 output projection instead of 4 K=32 matmuls
        ctx_all = jnp.concatenate(ctx_heads, axis=-1)            # (M, H)
        attn = _mxu(ctx_all, wo_ref[l]) + bo_ref[l]
        x = _layer_norm(attn + x, ln1_g_ref[l], ln1_b_ref[l])

        # --- feed-forward
        hmid = _gelu(_mxu(x, w1_ref[l]) + b1_ref[l])             # (M, FFN)
        hout = _mxu(hmid, w2_ref[l]) + b2_ref[l]                 # (M, H)
        x = _layer_norm(hout + x, ln2_g_ref[l], ln2_b_ref[l])

    # --- pooler: [CLS] (row 0 of each sample) -> dense -> tanh
    x3 = x.reshape(SAMPLES_PER_BLOCK, CHUNK, HIDDEN)
    cls = x3[:, 0:1, :].reshape(SAMPLES_PER_BLOCK, HIDDEN)
    pooled = jnp.tanh(_mxu(cls, pool_w_ref[...]) + pool_b_ref[...])
    out_ref[...] = pooled.reshape(SAMPLES_PER_BLOCK, 1, HIDDEN)


def _head_kernel(x_ref, w1_ref, b1_ref, w2_ref, b2_ref, o_ref):
    # fc1 -> ReLU -> dropout(p=0.2, inference => identity) -> fc2 -> log_softmax(dim=-1)
    h = _mxu(x_ref[...], w1_ref[...]) + b1_ref[...]
    h = jnp.maximum(h, 0.0)
    # TODO(synk): nn.Dropout(0.2) modeled as identity (inference); no RNG dropout mask.
    logits = _mxu(h, w2_ref[...]) + b2_ref[...]
    z = logits - jnp.max(logits, axis=-1, keepdims=True)
    # (B, 2) output -> masked vst; negligible, launch-overhead-bound toy head.
    o_ref[...] = z - jnp.log(jnp.sum(jnp.exp(z), axis=-1, keepdims=True))


# ------------------------------ pallas_call wrappers ---------------------------
def run_encoder(params, x_emb, mask3):
    """x_emb: (BC, S, H) bf16 embeddings; mask3: (BC, 1, S) f32. Returns (BC, 1, H) f32."""
    BC = x_emb.shape[0]
    assert BC % SAMPLES_PER_BLOCK == 0, (BC, SAMPLES_PER_BLOCK)
    grid = (BC // SAMPLES_PER_BLOCK,)
    in_specs = [
        pl.BlockSpec((SAMPLES_PER_BLOCK, CHUNK, HIDDEN), lambda i: (i, 0, 0)),  # x
        pl.BlockSpec((SAMPLES_PER_BLOCK, 1, CHUNK), lambda i: (i, 0, 0)),       # mask
        _full_spec((1, HIDDEN)),                                 # emb_ln_g
        _full_spec((1, HIDDEN)),                                 # emb_ln_b
        _full_spec((N_LAYERS, HIDDEN, 3 * HIDDEN)),              # wqkv  (bf16)
        _full_spec((N_LAYERS, 1, 3 * HIDDEN)),                   # bqkv
        _full_spec((N_LAYERS, HIDDEN, HIDDEN)),                  # wo    (bf16)
        _full_spec((N_LAYERS, 1, HIDDEN)),                       # bo
        _full_spec((N_LAYERS, 1, HIDDEN)),                       # ln1_g
        _full_spec((N_LAYERS, 1, HIDDEN)),                       # ln1_b
        _full_spec((N_LAYERS, HIDDEN, FFN)),                     # w1    (bf16)
        _full_spec((N_LAYERS, 1, FFN)),                          # b1
        _full_spec((N_LAYERS, FFN, HIDDEN)),                     # w2    (bf16)
        _full_spec((N_LAYERS, 1, HIDDEN)),                       # b2
        _full_spec((N_LAYERS, 1, HIDDEN)),                       # ln2_g
        _full_spec((N_LAYERS, 1, HIDDEN)),                       # ln2_b
        _full_spec((HIDDEN, HIDDEN)),                            # pool_w (bf16)
        _full_spec((1, HIDDEN)),                                 # pool_b
    ]
    return pl.pallas_call(
        _encoder_kernel,
        out_shape=jax.ShapeDtypeStruct((BC, 1, HIDDEN), jnp.float32),
        grid=grid,
        in_specs=in_specs,
        out_specs=pl.BlockSpec((SAMPLES_PER_BLOCK, 1, HIDDEN), lambda i: (i, 0, 0)),
        compiler_params=pltpu.CompilerParams(
            dimension_semantics=("parallel",),
            # bf16 weights (~0.6 MiB stacked) x 2 buffers + activations: far under limit.
            vmem_limit_bytes=32 * 1024 * 1024),
    )(x_emb, mask3,
      params["emb_ln_g"], params["emb_ln_b"],
      params["wqkv"], params["bqkv"], params["wo"], params["bo"],
      params["ln1_g"], params["ln1_b"], params["w1"], params["b1"],
      params["w2"], params["b2"], params["ln2_g"], params["ln2_b"],
      params["pool_w"], params["pool_b"])


def classifier_head(cls_hs, w1, b1, w2, b2):
    B = cls_hs.shape[0]
    return pl.pallas_call(
        _head_kernel,
        out_shape=jax.ShapeDtypeStruct((B, N_CLASSES), jnp.float32),
        in_specs=[_VMEM] * 5,
        out_specs=_VMEM,
    )(cls_hs, w1, b1, w2, b2)


# ------------------------------ parameters ------------------------------------
def init_params(key):
    keys = iter(jax.random.split(key, 32))

    def w(shape, dtype=jnp.float32):
        return (0.02 * jax.random.normal(next(keys), shape, dtype=jnp.float32)).astype(dtype)

    def ones(shape):
        return jnp.ones(shape, jnp.float32)

    def zeros(shape):
        return jnp.zeros(shape, jnp.float32)

    bf16 = jnp.bfloat16
    return {
        # embedding tables stay f32 (wrapper-side gather); activations cast to bf16 below
        "tok_emb": w((VOCAB, HIDDEN)),
        "pos_emb": w((MAX_POS, HIDDEN)),
        "type_emb": w((2, HIDDEN)),
        "emb_ln_g": ones((1, HIDDEN)), "emb_ln_b": zeros((1, HIDDEN)),
        # stacked per-layer matmul weights stored as bf16 (halves DMA + resident VMEM)
        "wqkv": w((N_LAYERS, HIDDEN, 3 * HIDDEN), bf16), "bqkv": zeros((N_LAYERS, 1, 3 * HIDDEN)),
        "wo": w((N_LAYERS, HIDDEN, HIDDEN), bf16), "bo": zeros((N_LAYERS, 1, HIDDEN)),
        "ln1_g": ones((N_LAYERS, 1, HIDDEN)), "ln1_b": zeros((N_LAYERS, 1, HIDDEN)),
        "w1": w((N_LAYERS, HIDDEN, FFN), bf16), "b1": zeros((N_LAYERS, 1, FFN)),
        "w2": w((N_LAYERS, FFN, HIDDEN), bf16), "b2": zeros((N_LAYERS, 1, HIDDEN)),
        "ln2_g": ones((N_LAYERS, 1, HIDDEN)), "ln2_b": zeros((N_LAYERS, 1, HIDDEN)),
        "pool_w": w((HIDDEN, HIDDEN), bf16), "pool_b": zeros((1, HIDDEN)),
        "fc1_w": w((FC1_IN, FC1_OUT), bf16), "fc1_b": zeros((1, FC1_OUT)),
        "fc2_w": w((FC1_OUT, N_CLASSES), bf16), "fc2_b": zeros((1, N_CLASSES)),
    }


# ------------------------------ model forward ----------------------------------
def bert_arch_forward(params, sent_id, mask):
    """Same semantics as BERT_Arch.forward: per-chunk BERT pooler outputs are
    concatenated along dim=1, then fc1 -> ReLU -> dropout(id) -> fc2 -> log_softmax.
    Chunks are independent (positions restart per chunk, as in the reference loop),
    so the chunk loop is folded into the batch dimension."""
    B, total = sent_id.shape
    assert total % CHUNK == 0, (total, CHUNK)
    n_chunks = total // CHUNK
    assert n_chunks == N_CHUNKS, (n_chunks, N_CHUNKS)
    BC = B * n_chunks

    ids = sent_id.reshape(BC, CHUNK)
    mask3 = mask.astype(jnp.float32).reshape(BC, 1, CHUNK)

    # embeddings (gather is glue; normalization runs inside the fused kernel)
    x_emb = (params["tok_emb"][ids]
             + params["pos_emb"][:CHUNK][None, :, :]
             + params["type_emb"][0][None, None, :]).astype(jnp.bfloat16)

    pooled = run_encoder(params, x_emb, mask3)                 # (BC, 1, HIDDEN)
    cls_hs = pooled.reshape(B, n_chunks * HIDDEN)              # concat along dim=1

    return classifier_head(cls_hs, params["fc1_w"], params["fc1_b"],
                           params["fc2_w"], params["fc2_b"])


# ------------------------------------ main --------------------------------------
if __name__ == "__main__":
    key = jax.random.PRNGKey(0)
    k_param, k_ids = jax.random.split(key)
    params = init_params(k_param)

    sent_id = jax.random.randint(k_ids, (BATCH, TOTAL_SEQ), 0, VOCAB, dtype=jnp.int32)
    mask = jnp.ones((BATCH, TOTAL_SEQ), dtype=jnp.float32)
    mask = mask.at[:, TOTAL_SEQ - 2:].set(0.0)   # exercise the attention-mask path

    fwd = jax.jit(bert_arch_forward)
    out = jax.block_until_ready(fwd(params, sent_id, mask))

    assert out.shape == (BATCH, N_CLASSES), out.shape
    assert bool(jnp.all(jnp.isfinite(out)))
    # log_softmax rows should exponentiate-and-sum to ~1
    assert bool(jnp.allclose(jnp.sum(jnp.exp(out), axis=-1), 1.0, atol=1e-5))
    print("KERNEL_OK")
</pallas_src>

<mosaic_0001>
module attributes {stable_mosaic.version = 11 : i64} {
  func.func @_head_kernel(%arg0: memref<4x256xf32, #tpu.memory_space<vmem>>, %arg1: memref<256x128xbf16, #tpu.memory_space<vmem>>, %arg2: memref<1x128xf32, #tpu.memory_space<vmem>>, %arg3: memref<128x2xbf16, #tpu.memory_space<vmem>>, %arg4: memref<1x2xf32, #tpu.memory_space<vmem>>, %arg5: memref<4x2xf32, #tpu.memory_space<vmem>>) attributes {dimension_semantics = [], scalar_prefetch = 0 : i64, scratch_operands = 0 : i64, tpu.core_type = #tpu.core_type<tc>} {
    %c0 = arith.constant 0 : index
    %c0_0 = arith.constant 0 : index
    %0 = vector.load %arg0[%c0, %c0_0] : memref<4x256xf32, #tpu.memory_space<vmem>>, vector<4x256xf32>
    %c0_1 = arith.constant 0 : index
    %c0_2 = arith.constant 0 : index
    %1 = vector.load %arg1[%c0_1, %c0_2] : memref<256x128xbf16, #tpu.memory_space<vmem>>, vector<256x128xbf16>
    %2 = arith.truncf %0 : vector<4x256xf32> to vector<4x256xbf16>
    %cst = arith.constant dense<0.000000e+00> : vector<4x128xf32>
    %3 = tpu.matmul %2, %1, %cst {dimension_numbers = #tpu.dot_dimension_numbers<[1], [0], [0], [1], [0, 0, 1, 1], [], []>} : vector<4x256xbf16>, vector<256x128xbf16>, vector<4x128xf32> -> vector<4x128xf32>
    %c0_3 = arith.constant 0 : index
    %c0_4 = arith.constant 0 : index
    %4 = vector.load %arg2[%c0_3, %c0_4] : memref<1x128xf32, #tpu.memory_space<vmem>>, vector<1x128xf32>
    %5 = vector.broadcast %4 : vector<1x128xf32> to vector<4x128xf32>
    %6 = arith.addf %3, %5 : vector<4x128xf32>
    %cst_5 = arith.constant 0.000000e+00 : f32
    %7 = vector.broadcast %cst_5 : f32 to vector<4x128xf32>
    %8 = arith.maximumf %6, %7 : vector<4x128xf32>
    %c0_6 = arith.constant 0 : index
    %c0_7 = arith.constant 0 : index
    %9 = vector.load %arg3[%c0_6, %c0_7] : memref<128x2xbf16, #tpu.memory_space<vmem>>, vector<128x2xbf16>
    %10 = arith.truncf %8 : vector<4x128xf32> to vector<4x128xbf16>
    %cst_8 = arith.constant dense<0.000000e+00> : vector<4x2xf32>
    %11 = tpu.matmul %10, %9, %cst_8 {dimension_numbers = #tpu.dot_dimension_numbers<[1], [0], [0], [1], [0, 0, 1, 1], [], []>} : vector<4x128xbf16>, vector<128x2xbf16>, vector<4x2xf32> -> vector<4x2xf32>
    %c0_9 = arith.constant 0 : index
    %c0_10 = arith.constant 0 : index
    %12 = vector.load %arg4[%c0_9, %c0_10] : memref<1x2xf32, #tpu.memory_space<vmem>>, vector<1x2xf32>
    %13 = vector.broadcast %12 : vector<1x2xf32> to vector<4x2xf32>
    %14 = arith.addf %11, %13 : vector<4x2xf32>
    %cst_11 = arith.constant dense<0xFF800000> : vector<4xf32>
    %15 = vector.multi_reduction <maximumf>, %14, %cst_11 [1] : vector<4x2xf32> to vector<4xf32>
    %16 = vector.shape_cast %15 : vector<4xf32> to vector<4x1xf32>
    %17 = vector.broadcast %16 : vector<4x1xf32> to vector<4x2xf32>
    %18 = arith.subf %14, %17 : vector<4x2xf32>
    %19 = math.exp %18 : vector<4x2xf32>
    %cst_12 = arith.constant dense<0.000000e+00> : vector<4xf32>
    %20 = vector.multi_reduction <add>, %19, %cst_12 [1] : vector<4x2xf32> to vector<4xf32>
    %21 = vector.shape_cast %20 : vector<4xf32> to vector<4x1xf32>
    %22 = math.log %21 : vector<4x1xf32>
    %23 = vector.broadcast %22 : vector<4x1xf32> to vector<4x2xf32>
    %24 = arith.subf %18, %23 : vector<4x2xf32>
    %c0_13 = arith.constant 0 : index
    %c0_14 = arith.constant 0 : index
    %25 = vector.load %arg5[%c0_13, %c0_14] : memref<4x2xf32, #tpu.memory_space<vmem>>, vector<4x2xf32>
    tpu.vector_store %arg5[%c0_13, %c0_14], %24 {strides = array<i32>} : memref<4x2xf32, #tpu.memory_space<vmem>>, vector<4x2xf32>,
    return
  }
}

module attributes {stable_mosaic.version = 11 : i64} {
  func.func @_encoder_kernel(%arg0: i32, %arg1: memref<4x8x128xbf16, #tpu.memory_space<vmem>>, %arg2: memref<4x1x8xf32, #tpu.memory_space<vmem>>, %arg3: memref<1x128xf32, #tpu.memory_space<vmem>>, %arg4: memref<1x128xf32, #tpu.memory_space<vmem>>, %arg5: memref<2x128x384xbf16, #tpu.memory_space<vmem>>, %arg6: memref<2x1x384xf32, #tpu.memory_space<vmem>>, %arg7: memref<2x128x128xbf16, #tpu.memory_space<vmem>>, %arg8: memref<2x1x128xf32, #tpu.memory_space<vmem>>, %arg9: memref<2x1x128xf32, #tpu.memory_space<vmem>>, %arg10: memref<2x1x128xf32, #tpu.memory_space<vmem>>, %arg11: memref<2x128x256xbf16, #tpu.memory_space<vmem>>, %arg12: memref<2x1x256xf32, #tpu.memory_space<vmem>>, %arg13: memref<2x256x128xbf16, #tpu.memory_space<vmem>>, %arg14: memref<2x1x128xf32, #tpu.memory_space<vmem>>, %arg15: memref<2x1x128xf32, #tpu.memory_space<vmem>>, %arg16: memref<2x1x128xf32, #tpu.memory_space<vmem>>, %arg17: memref<128x128xbf16, #tpu.memory_space<vmem>>, %arg18: memref<1x128xf32, #tpu.memory_space<vmem>>, %arg19: memref<4x1x128xf32, #tpu.memory_space<vmem>>) attributes {dimension_semantics = [#tpu.dimension_semantics<parallel>], iteration_bounds = array<i64: 2>, scalar_prefetch = 0 : i64, scratch_operands = 0 : i64, tpu.core_type = #tpu.core_type<tc>, window_params = [{transform_indices = @transform_0, window_bounds = array<i64: 4, 8, 128>}, {transform_indices = @transform_1, window_bounds = array<i64: 4, 1, 8>}, {pipeline_mode = #tpu.pipeline_mode<synchronous>, transform_indices = @transform_2, window_bounds = array<i64: 1, 128>}, {pipeline_mode = #tpu.pipeline_mode<synchronous>, transform_indices = @transform_3, window_bounds = array<i64: 1, 128>}, {pipeline_mode = #tpu.pipeline_mode<synchronous>, transform_indices = @transform_4, window_bounds = array<i64: 2, 128, 384>}, {pipeline_mode = #tpu.pipeline_mode<synchronous>, transform_indices = @transform_5, window_bounds = array<i64: 2, 1, 384>}, {pipeline_mode = #tpu.pipeline_mode<synchronous>, transform_indices = @transform_6, window_bounds = array<i64: 2, 128, 128>}, {pipeline_mode = #tpu.pipeline_mode<synchronous>, transform_indices = @transform_7, window_bounds = array<i64: 2, 1, 128>}, {pipeline_mode = #tpu.pipeline_mode<synchronous>, transform_indices = @transform_8, window_bounds = array<i64: 2, 1, 128>}, {pipeline_mode = #tpu.pipeline_mode<synchronous>, transform_indices = @transform_9, window_bounds = array<i64: 2, 1, 128>}, {pipeline_mode = #tpu.pipeline_mode<synchronous>, transform_indices = @transform_10, window_bounds = array<i64: 2, 128, 256>}, {pipeline_mode = #tpu.pipeline_mode<synchronous>, transform_indices = @transform_11, window_bounds = array<i64: 2, 1, 256>}, {pipeline_mode = #tpu.pipeline_mode<synchronous>, transform_indices = @transform_12, window_bounds = array<i64: 2, 256, 128>}, {pipeline_mode = #tpu.pipeline_mode<synchronous>, transform_indices = @transform_13, window_bounds = array<i64: 2, 1, 128>}, {pipeline_mode = #tpu.pipeline_mode<synchronous>, transform_indices = @transform_14, window_bounds = array<i64: 2, 1, 128>}, {pipeline_mode = #tpu.pipeline_mode<synchronous>, transform_indices = @transform_15, window_bounds = array<i64: 2, 1, 128>}, {pipeline_mode = #tpu.pipeline_mode<synchronous>, transform_indices = @transform_16, window_bounds = array<i64: 128, 128>}, {pipeline_mode = #tpu.pipeline_mode<synchronous>, transform_indices = @transform_17, window_bounds = array<i64: 1, 128>}, {transform_indices = @transform_18, window_bounds = array<i64: 4, 1, 128>}]} {
    %c0 = arith.constant 0 : index
    %c0_0 = arith.constant 0 : index
    %c0_1 = arith.constant 0 : index
    %0 = vector.load %arg1[%c0, %c0_0, %c0_1] : memref<4x8x128xbf16, #tpu.memory_space<vmem>>, vector<4x8x128xbf16>
    %1 = arith.extf %0 : vector<4x8x128xbf16> to vector<4x8x128xf32>
    %2 = vector.shape_cast %1 : vector<4x8x128xf32> to vector<32x128xf32>
    %c0_2 = arith.constant 0 : index
    %c0_3 = arith.constant 0 : index
    %c0_4 = arith.constant 0 : index
    %3 = vector.load %arg2[%c0_2, %c0_3, %c0_4] : memref<4x1x8xf32, #tpu.memory_space<vmem>>, vector<4x1x8xf32>
    %cst = arith.constant 1.000000e+00 : f32
    %4 = vector.broadcast %cst : f32 to vector<4x1x8xf32>
    %5 = arith.subf %3, %4 : vector<4x1x8xf32>
    %cst_5 = arith.constant 1.000000e+09 : f32
    %6 = vector.broadcast %cst_5 : f32 to vector<4x1x8xf32>
    %7 = arith.mulf %5, %6 : vector<4x1x8xf32>
    %c0_6 = arith.constant 0 : index
    %c0_7 = arith.constant 0 : index
    %8 = vector.load %arg3[%c0_6, %c0_7] : memref<1x128xf32, #tpu.memory_space<vmem>>, vector<1x128xf32>
    %c0_8 = arith.constant 0 : index
    %c0_9 = arith.constant 0 : index
    %9 = vector.load %arg4[%c0_8, %c0_9] : memref<1x128xf32, #tpu.memory_space<vmem>>, vector<1x128xf32>
    %cst_10 = arith.constant dense<0.000000e+00> : vector<32xf32>
    %10 = vector.multi_reduction <add>, %2, %cst_10 [1] : vector<32x128xf32> to vector<32xf32>
    %11 = vector.shape_cast %10 : vector<32xf32> to vector<32x1xf32>
    %cst_11 = arith.constant 1.280000e+02 : f32
    %12 = vector.broadcast %cst_11 : f32 to vector<32x1xf32>
    %13 = arith.divf %11, %12 : vector<32x1xf32>
    %14 = vector.broadcast %13 : vector<32x1xf32> to vector<32x128xf32>
    %15 = arith.subf %2, %14 : vector<32x128xf32>
    %16 = arith.mulf %15, %15 : vector<32x128xf32>
    %cst_12 = arith.constant dense<0.000000e+00> : vector<32xf32>
    %17 = vector.multi_reduction <add>, %16, %cst_12 [1] : vector<32x128xf32> to vector<32xf32>
    %18 = vector.shape_cast %17 : vector<32xf32> to vector<32x1xf32>
    %cst_13 = arith.constant 1.280000e+02 : f32
    %19 = vector.broadcast %cst_13 : f32 to vector<32x1xf32>
    %20 = arith.divf %18, %19 : vector<32x1xf32>
    %21 = vector.broadcast %13 : vector<32x1xf32> to vector<32x128xf32>
    %22 = arith.subf %2, %21 : vector<32x128xf32>
    %cst_14 = arith.constant 9.99999996E-13 : f32
    %23 = vector.broadcast %cst_14 : f32 to vector<32x1xf32>
    %24 = arith.addf %20, %23 : vector<32x1xf32>
    %25 = math.rsqrt %24 : vector<32x1xf32>
    %26 = vector.broadcast %25 : vector<32x1xf32> to vector<32x128xf32>
    %27 = arith.mulf %22, %26 : vector<32x128xf32>
    %28 = vector.broadcast %8 : vector<1x128xf32> to vector<32x128xf32>
    %29 = arith.mulf %27, %28 : vector<32x128xf32>
    %30 = vector.broadcast %9 : vector<1x128xf32> to vector<32x128xf32>
    %31 = arith.addf %29, %30 : vector<32x128xf32>
    %c0_15 = arith.constant 0 : index
    %c0_16 = arith.constant 0 : index
    %c0_17 = arith.constant 0 : index
    %32 = vector.load %arg5[%c0_15, %c0_16, %c0_17] : memref<2x128x384xbf16, #tpu.memory_space<vmem>>, vector<1x128x384xbf16>
    %33 = vector.shape_cast %32 : vector<1x128x384xbf16> to vector<128x384xbf16>
    %34 = arith.truncf %31 : vector<32x128xf32> to vector<32x128xbf16>
    %cst_18 = arith.constant dense<0.000000e+00> : vector<32x384xf32>
    %35 = tpu.matmul %34, %33, %cst_18 {dimension_numbers = #tpu.dot_dimension_numbers<[1], [0], [0], [1], [0, 0, 1, 1], [], []>} : vector<32x128xbf16>, vector<128x384xbf16>, vector<32x384xf32> -> vector<32x384xf32>
    %c0_19 = arith.constant 0 : index
    %c0_20 = arith.constant 0 : index
    %c0_21 = arith.constant 0 : index
    %36 = vector.load %arg6[%c0_19, %c0_20, %c0_21] : memref<2x1x384xf32, #tpu.memory_space<vmem>>, vector<1x1x384xf32>
    %37 = vector.shape_cast %36 : vector<1x1x384xf32> to vector<1x384xf32>
    %38 = vector.broadcast %37 : vector<1x384xf32> to vector<32x384xf32>
    %39 = arith.addf %35, %38 : vector<32x384xf32>
    %40 = vector.extract_strided_slice %39 {offsets = [0, 0], sizes = [32, 32], strides = [1, 1]} : vector<32x384xf32> to vector<32x32xf32>
    %41 = vector.shape_cast %40 : vector<32x32xf32> to vector<4x8x32xf32>
    %42 = vector.extract_strided_slice %39 {offsets = [0, 128], sizes = [32, 32], strides = [1, 1]} : vector<32x384xf32> to vector<32x32xf32>
    %43 = vector.shape_cast %42 : vector<32x32xf32> to vector<4x8x32xf32>
    %44 = vector.extract_strided_slice %39 {offsets = [0, 256], sizes = [32, 32], strides = [1, 1]} : vector<32x384xf32> to vector<32x32xf32>
    %45 = vector.shape_cast %44 : vector<32x32xf32> to vector<4x8x32xf32>
    %46 = arith.truncf %41 : vector<4x8x32xf32> to vector<4x8x32xbf16>
    %47 = arith.truncf %43 : vector<4x8x32xf32> to vector<4x8x32xbf16>
    %cst_22 = arith.constant dense<0.000000e+00> : vector<4x8x8xf32>
    %48 = tpu.matmul %46, %47, %cst_22 {dimension_numbers = #tpu.dot_dimension_numbers<[2], [2], [1], [1], [0, 0, 0, 1, 1, 1], [0], [0]>} : vector<4x8x32xbf16>, vector<4x8x32xbf16>, vector<4x8x8xf32> -> vector<4x8x8xf32>
    %cst_23 = arith.constant 0.176776692 : f32
    %49 = vector.broadcast %cst_23 : f32 to vector<4x8x8xf32>
    %50 = arith.mulf %48, %49 : vector<4x8x8xf32>
    %51 = vector.broadcast %7 : vector<4x1x8xf32> to vector<4x8x8xf32>
    %52 = arith.addf %50, %51 : vector<4x8x8xf32>
    %cst_24 = arith.constant dense<0xFF800000> : vector<4x8xf32>
    %53 = vector.multi_reduction <maximumf>, %52, %cst_24 [2] : vector<4x8x8xf32> to vector<4x8xf32>
    %54 = vector.shape_cast %53 : vector<4x8xf32> to vector<4x8x1xf32>
    %55 = vector.broadcast %54 : vector<4x8x1xf32> to vector<4x8x8xf32>
    %56 = arith.subf %52, %55 : vector<4x8x8xf32>
    %57 = math.exp %56 : vector<4x8x8xf32>
    %cst_25 = arith.constant dense<0.000000e+00> : vector<4x8xf32>
    %58 = vector.multi_reduction <add>, %57, %cst_25 [2] : vector<4x8x8xf32> to vector<4x8xf32>
    %59 = vector.shape_cast %58 : vector<4x8xf32> to vector<4x8x1xf32>
    %60 = tpu.reciprocal %59 {approx = true} : vector<4x8x1xf32> -> vector<4x8x1xf32>
    %61 = vector.broadcast %60 : vector<4x8x1xf32> to vector<4x8x8xf32>
    %62 = arith.mulf %57, %61 : vector<4x8x8xf32>
    %63 = arith.truncf %62 : vector<4x8x8xf32> to vector<4x8x8xbf16>
    %64 = arith.truncf %45 : vector<4x8x32xf32> to vector<4x8x32xbf16>
    %cst_26 = arith.constant dense<0.000000e+00> : vector<4x8x32xf32>
    %65 = tpu.matmul %63, %64, %cst_26 {dimension_numbers = #tpu.dot_dimension_numbers<[2], [1], [1], [2], [0, 0, 0, 1, 1, 2], [0], [0]>} : vector<4x8x8xbf16>, vector<4x8x32xbf16>, vector<4x8x32xf32> -> vector<4x8x32xf32>
    %66 = vector.shape_cast %65 : vector<4x8x32xf32> to vector<32x32xf32>
    %67 = vector.extract_strided_slice %39 {offsets = [0, 32], sizes = [32, 32], strides = [1, 1]} : vector<32x384xf32> to vector<32x32xf32>
    %68 = vector.shape_cast %67 : vector<32x32xf32> to vector<4x8x32xf32>
    %69 = vector.extract_strided_slice %39 {offsets = [0, 160], sizes = [32, 32], strides = [1, 1]} : vector<32x384xf32> to vector<32x32xf32>
    %70 = vector.shape_cast %69 : vector<32x32xf32> to vector<4x8x32xf32>
    %71 = vector.extract_strided_slice %39 {offsets = [0, 288], sizes = [32, 32], strides = [1, 1]} : vector<32x384xf32> to vector<32x32xf32>
    %72 = vector.shape_cast %71 : vector<32x32xf32> to vector<4x8x32xf32>
    %73 = arith.truncf %68 : vector<4x8x32xf32> to vector<4x8x32xbf16>
    %74 = arith.truncf %70 : vector<4x8x32xf32> to vector<4x8x32xbf16>
    %cst_27 = arith.constant dense<0.000000e+00> : vector<4x8x8xf32>
    %75 = tpu.matmul %73, %74, %cst_27 {dimension_numbers = #tpu.dot_dimension_numbers<[2], [2], [1], [1], [0, 0, 0, 1, 1, 1], [0], [0]>} : vector<4x8x32xbf16>, vector<4x8x32xbf16>, vector<4x8x8xf32> -> vector<4x8x8xf32>
    %cst_28 = arith.constant 0.176776692 : f32
    %76 = vector.broadcast %cst_28 : f32 to vector<4x8x8xf32>
    %77 = arith.mulf %75, %76 : vector<4x8x8xf32>
    %78 = vector.broadcast %7 : vector<4x1x8xf32> to vector<4x8x8xf32>
    %79 = arith.addf %77, %78 : vector<4x8x8xf32>
    %cst_29 = arith.constant dense<0xFF800000> : vector<4x8xf32>
    %80 = vector.multi_reduction <maximumf>, %79, %cst_29 [2] : vector<4x8x8xf32> to vector<4x8xf32>
    %81 = vector.shape_cast %80 : vector<4x8xf32> to vector<4x8x1xf32>
    %82 = vector.broadcast %81 : vector<4x8x1xf32> to vector<4x8x8xf32>
    %83 = arith.subf %79, %82 : vector<4x8x8xf32>
    %84 = math.exp %83 : vector<4x8x8xf32>
    %cst_30 = arith.constant dense<0.000000e+00> : vector<4x8xf32>
    %85 = vector.multi_reduction <add>, %84, %cst_30 [2] : vector<4x8x8xf32> to vector<4x8xf32>
    %86 = vector.shape_cast %85 : vector<4x8xf32> to vector<4x8x1xf32>
    %87 = tpu.reciprocal %86 {approx = true} : vector<4x8x1xf32> -> vector<4x8x1xf32>
    %88 = vector.broadcast %87 : vector<4x8x1xf32> to vector<4x8x8xf32>
    %89 = arith.mulf %84, %88 : vector<4x8x8xf32>
    %90 = arith.truncf %89 : vector<4x8x8xf32> to vector<4x8x8xbf16>
    %91 = arith.truncf %72 : vector<4x8x32xf32> to vector<4x8x32xbf16>
    %cst_31 = arith.constant dense<0.000000e+00> : vector<4x8x32xf32>
    %92 = tpu.matmul %90, %91, %cst_31 {dimension_numbers = #tpu.dot_dimension_numbers<[2], [1], [1], [2], [0, 0, 0, 1, 1, 2], [0], [0]>} : vector<4x8x8xbf16>, vector<4x8x32xbf16>, vector<4x8x32xf32> -> vector<4x8x32xf32>
    %93 = vector.shape_cast %92 : vector<4x8x32xf32> to vector<32x32xf32>
    %94 = vector.extract_strided_slice %39 {offsets = [0, 64], sizes = [32, 32], strides = [1, 1]} : vector<32x384xf32> to vector<32x32xf32>
    %95 = vector.shape_cast %94 : vector<32x32xf32> to vector<4x8x32xf32>
    %96 = vector.extract_strided_slice %39 {offsets = [0, 192], sizes = [32, 32], strides = [1, 1]} : vector<32x384xf32> to vector<32x32xf32>
    %97 = vector.shape_cast %96 : vector<32x32xf32> to vector<4x8x32xf32>
    %98 = vector.extract_strided_slice %39 {offsets = [0, 320], sizes = [32, 32], strides = [1, 1]} : vector<32x384xf32> to vector<32x32xf32>
    %99 = vector.shape_cast %98 : vector<32x32xf32> to vector<4x8x32xf32>
    %100 = arith.truncf %95 : vector<4x8x32xf32> to vector<4x8x32xbf16>
    %101 = arith.truncf %97 : vector<4x8x32xf32> to vector<4x8x32xbf16>
    %cst_32 = arith.constant dense<0.000000e+00> : vector<4x8x8xf32>
    %102 = tpu.matmul %100, %101, %cst_32 {dimension_numbers = #tpu.dot_dimension_numbers<[2], [2], [1], [1], [0, 0, 0, 1, 1, 1], [0], [0]>} : vector<4x8x32xbf16>, vector<4x8x32xbf16>, vector<4x8x8xf32> -> vector<4x8x8xf32>
    %cst_33 = arith.constant 0.176776692 : f32
    %103 = vector.broadcast %cst_33 : f32 to vector<4x8x8xf32>
    %104 = arith.mulf %102, %103 : vector<4x8x8xf32>
    %105 = vector.broadcast %7 : vector<4x1x8xf32> to vector<4x8x8xf32>
    %106 = arith.addf %104, %105 : vector<4x8x8xf32>
    %cst_34 = arith.constant dense<0xFF800000> : vector<4x8xf32>
    %107 = vector.multi_reduction <maximumf>, %106, %cst_34 [2] : vector<4x8x8xf32> to vector<4x8xf32>
    %108 = vector.shape_cast %107 : vector<4x8xf32> to vector<4x8x1xf32>
    %109 = vector.broadcast %108 : vector<4x8x1xf32> to vector<4x8x8xf32>
    %110 = arith.subf %106, %109 : vector<4x8x8xf32>
    %111 = math.exp %110 : vector<4x8x8xf32>
    %cst_35 = arith.constant dense<0.000000e+00> : vector<4x8xf32>
    %112 = vector.multi_reduction <add>, %111, %cst_35 [2] : vector<4x8x8xf32> to vector<4x8xf32>
    %113 = vector.shape_cast %112 : vector<4x8xf32> to vector<4x8x1xf32>
    %114 = tpu.reciprocal %113 {approx = true} : vector<4x8x1xf32> -> vector<4x8x1xf32>
    %115 = vector.broadcast %114 : vector<4x8x1xf32> to vector<4x8x8xf32>
    %116 = arith.mulf %111, %115 : vector<4x8x8xf32>
    %117 = arith.truncf %116 : vector<4x8x8xf32> to vector<4x8x8xbf16>
    %118 = arith.truncf %99 : vector<4x8x32xf32> to vector<4x8x32xbf16>
    %cst_36 = arith.constant dense<0.000000e+00> : vector<4x8x32xf32>
    %119 = tpu.matmul %117, %118, %cst_36 {dimension_numbers = #tpu.dot_dimension_numbers<[2], [1], [1], [2], [0, 0, 0, 1, 1, 2], [0], [0]>} : vector<4x8x8xbf16>, vector<4x8x32xbf16>, vector<4x8x32xf32> -> vector<4x8x32xf32>
    %120 = vector.shape_cast %119 : vector<4x8x32xf32> to vector<32x32xf32>
    %121 = vector.extract_strided_slice %39 {offsets = [0, 96], sizes = [32, 32], strides = [1, 1]} : vector<32x384xf32> to vector<32x32xf32>
    %122 = vector.shape_cast %121 : vector<32x32xf32> to vector<4x8x32xf32>
    %123 = vector.extract_strided_slice %39 {offsets = [0, 224], sizes = [32, 32], strides = [1, 1]} : vector<32x384xf32> to vector<32x32xf32>
    %124 = vector.shape_cast %123 : vector<32x32xf32> to vector<4x8x32xf32>
    %125 = vector.extract_strided_slice %39 {offsets = [0, 352], sizes = [32, 32], strides = [1, 1]} : vector<32x384xf32> to vector<32x32xf32>
    %126 = vector.shape_cast %125 : vector<32x32xf32> to vector<4x8x32xf32>
    %127 = arith.truncf %122 : vector<4x8x32xf32> to vector<4x8x32xbf16>
    %128 = arith.truncf %124 : vector<4x8x32xf32> to vector<4x8x32xbf16>
    %cst_37 = arith.constant dense<0.000000e+00> : vector<4x8x8xf32>
    %129 = tpu.matmul %127, %128, %cst_37 {dimension_numbers = #tpu.dot_dimension_numbers<[2], [2], [1], [1], [0, 0, 0, 1, 1, 1], [0], [0]>} : vector<4x8x32xbf16>, vector<4x8x32xbf16>, vector<4x8x8xf32> -> vector<4x8x8xf32>
    %cst_38 = arith.constant 0.176776692 : f32
    %130 = vector.broadcast %cst_38 : f32 to vector<4x8x8xf32>
    %131 = arith.mulf %129, %130 : vector<4x8x8xf32>
    %132 = vector.broadcast %7 : vector<4x1x8xf32> to vector<4x8x8xf32>
    %133 = arith.addf %131, %132 : vector<4x8x8xf32>
    %cst_39 = arith.constant dense<0xFF800000> : vector<4x8xf32>
    %134 = vector.multi_reduction <maximumf>, %133, %cst_39 [2] : vector<4x8x8xf32> to vector<4x8xf32>
    %135 = vector.shape_cast %134 : vector<4x8xf32> to vector<4x8x1xf32>
    %136 = vector.broadcast %135 : vector<4x8x1xf32> to vector<4x8x8xf32>
    %137 = arith.subf %133, %136 : vector<4x8x8xf32>
    %138 = math.exp %137 : vector<4x8x8xf32>
    %cst_40 = arith.constant dense<0.000000e+00> : vector<4x8xf32>
    %139 = vector.multi_reduction <add>, %138, %cst_40 [2] : vector<4x8x8xf32> to vector<4x8xf32>
    %140 = vector.shape_cast %139 : vector<4x8xf32> to vector<4x8x1xf32>
    %141 = tpu.reciprocal %140 {approx = true} : vector<4x8x1xf32> -> vector<4x8x1xf32>
    %142 = vector.broadcast %141 : vector<4x8x1xf32> to vector<4x8x8xf32>
    %143 = arith.mulf %138, %142 : vector<4x8x8xf32>
    %144 = arith.truncf %143 : vector<4x8x8xf32> to vector<4x8x8xbf16>
    %145 = arith.truncf %126 : vector<4x8x32xf32> to vector<4x8x32xbf16>
    %cst_41 = arith.constant dense<0.000000e+00> : vector<4x8x32xf32>
    %146 = tpu.matmul %144, %145, %cst_41 {dimension_numbers = #tpu.dot_dimension_numbers<[2], [1], [1], [2], [0, 0, 0, 1, 1, 2], [0], [0]>} : vector<4x8x8xbf16>, vector<4x8x32xbf16>, vector<4x8x32xf32> -> vector<4x8x32xf32>
    %147 = vector.shape_cast %146 : vector<4x8x32xf32> to vector<32x32xf32>
    %148 = tpu.concatenate %66, %93, %120, %147 in 1 : vector<32x32xf32>, vector<32x32xf32>, vector<32x32xf32>, vector<32x32xf32> -> vector<32x128xf32>
    %c0_42 = arith.constant 0 : index
    %c0_43 = arith.constant 0 : index
    %c0_44 = arith.constant 0 : index
    %149 = vector.load %arg7[%c0_42, %c0_43, %c0_44] : memref<2x128x128xbf16, #tpu.memory_space<vmem>>, vector<1x128x128xbf16>
    %150 = vector.shape_cast %149 : vector<1x128x128xbf16> to vector<128x128xbf16>
    %151 = arith.truncf %148 : vector<32x128xf32> to vector<32x128xbf16>
    %cst_45 = arith.constant dense<0.000000e+00> : vector<32x128xf32>
    %152 = tpu.matmul %151, %150, %cst_45 {dimension_numbers = #tpu.dot_dimension_numbers<[1], [0], [0], [1], [0, 0, 1, 1], [], []>} : vector<32x128xbf16>, vector<128x128xbf16>, vector<32x128xf32> -> vector<32x128xf32>
    %c0_46 = arith.constant 0 : index
    %c0_47 = arith.constant 0 : index
    %c0_48 = arith.constant 0 : index
    %153 = vector.load %arg8[%c0_46, %c0_47, %c0_48] : memref<2x1x128xf32, #tpu.memory_space<vmem>>, vector<1x1x128xf32>
    %154 = vector.shape_cast %153 : vector<1x1x128xf32> to vector<1x128xf32>
    %155 = vector.broadcast %154 : vector<1x128xf32> to vector<32x128xf32>
    %156 = arith.addf %152, %155 : vector<32x128xf32>
    %157 = arith.addf %156, %31 : vector<32x128xf32>
    %c0_49 = arith.constant 0 : index
    %c0_50 = arith.constant 0 : index
    %c0_51 = arith.constant 0 : index
    %158 = vector.load %arg9[%c0_49, %c0_50, %c0_51] : memref<2x1x128xf32, #tpu.memory_space<vmem>>, vector<1x1x128xf32>
    %159 = vector.shape_cast %158 : vector<1x1x128xf32> to vector<1x128xf32>
    %c0_52 = arith.constant 0 : index
    %c0_53 = arith.constant 0 : index
    %c0_54 = arith.constant 0 : index
    %160 = vector.load %arg10[%c0_52, %c0_53, %c0_54] : memref<2x1x128xf32, #tpu.memory_space<vmem>>, vector<1x1x128xf32>
    %161 = vector.shape_cast %160 : vector<1x1x128xf32> to vector<1x128xf32>
    %cst_55 = arith.constant dense<0.000000e+00> : vector<32xf32>
    %162 = vector.multi_reduction <add>, %157, %cst_55 [1] : vector<32x128xf32> to vector<32xf32>
    %163 = vector.shape_cast %162 : vector<32xf32> to vector<32x1xf32>
    %cst_56 = arith.constant 1.280000e+02 : f32
    %164 = vector.broadcast %cst_56 : f32 to vector<32x1xf32>
    %165 = arith.divf %163, %164 : vector<32x1xf32>
    %166 = vector.broadcast %165 : vector<32x1xf32> to vector<32x128xf32>
    %167 = arith.subf %157, %166 : vector<32x128xf32>
    %168 = arith.mulf %167, %167 : vector<32x128xf32>
    %cst_57 = arith.constant dense<0.000000e+00> : vector<32xf32>
    %169 = vector.multi_reduction <add>, %168, %cst_57 [1] : vector<32x128xf32> to vector<32xf32>
    %170 = vector.shape_cast %169 : vector<32xf32> to vector<32x1xf32>
    %cst_58 = arith.constant 1.280000e+02 : f32
    %171 = vector.broadcast %cst_58 : f32 to vector<32x1xf32>
    %172 = arith.divf %170, %171 : vector<32x1xf32>
    %173 = vector.broadcast %165 : vector<32x1xf32> to vector<32x128xf32>
    %174 = arith.subf %157, %173 : vector<32x128xf32>
    %cst_59 = arith.constant 9.99999996E-13 : f32
    %175 = vector.broadcast %cst_59 : f32 to vector<32x1xf32>
    %176 = arith.addf %172, %175 : vector<32x1xf32>
    %177 = math.rsqrt %176 : vector<32x1xf32>
    %178 = vector.broadcast %177 : vector<32x1xf32> to vector<32x128xf32>
    %179 = arith.mulf %174, %178 : vector<32x128xf32>
    %180 = vector.broadcast %159 : vector<1x128xf32> to vector<32x128xf32>
    %181 = arith.mulf %179, %180 : vector<32x128xf32>
    %182 = vector.broadcast %161 : vector<1x128xf32> to vector<32x128xf32>
    %183 = arith.addf %181, %182 : vector<32x128xf32>
    %c0_60 = arith.constant 0 : index
    %c0_61 = arith.constant 0 : index
    %c0_62 = arith.constant 0 : index
    %184 = vector.load %arg11[%c0_60, %c0_61, %c0_62] : memref<2x128x256xbf16, #tpu.memory_space<vmem>>, vector<1x128x256xbf16>
    %185 = vector.shape_cast %184 : vector<1x128x256xbf16> to vector<128x256xbf16>
    %186 = arith.truncf %183 : vector<32x128xf32> to vector<32x128xbf16>
    %cst_63 = arith.constant dense<0.000000e+00> : vector<32x256xf32>
    %187 = tpu.matmul %186, %185, %cst_63 {dimension_numbers = #tpu.dot_dimension_numbers<[1], [0], [0], [1], [0, 0, 1, 1], [], []>} : vector<32x128xbf16>, vector<128x256xbf16>, vector<32x256xf32> -> vector<32x256xf32>
    %c0_64 = arith.constant 0 : index
    %c0_65 = arith.constant 0 : index
    %c0_66 = arith.constant 0 : index
    %188 = vector.load %arg12[%c0_64, %c0_65, %c0_66] : memref<2x1x256xf32, #tpu.memory_space<vmem>>, vector<1x1x256xf32>
    %189 = vector.shape_cast %188 : vector<1x1x256xf32> to vector<1x256xf32>
    %190 = vector.broadcast %189 : vector<1x256xf32> to vector<32x256xf32>
    %191 = arith.addf %187, %190 : vector<32x256xf32>
    %cst_67 = arith.constant 5.000000e-01 : f32
    %192 = vector.broadcast %cst_67 : f32 to vector<32x256xf32>
    %193 = arith.mulf %192, %191 : vector<32x256xf32>
    %cst_68 = arith.constant 4.471500e-02 : f32
    %194 = vector.broadcast %cst_68 : f32 to vector<32x256xf32>
    %195 = arith.mulf %194, %191 : vector<32x256xf32>
    %196 = arith.mulf %195, %191 : vector<32x256xf32>
    %197 = arith.mulf %196, %191 : vector<32x256xf32>
    %198 = arith.addf %191, %197 : vector<32x256xf32>
    %cst_69 = arith.constant 0.797884583 : f32
    %199 = vector.broadcast %cst_69 : f32 to vector<32x256xf32>
    %200 = arith.mulf %199, %198 : vector<32x256xf32>
    %201 = math.tanh %200 : vector<32x256xf32>
    %cst_70 = arith.constant 1.000000e+00 : f32
    %202 = vector.broadcast %cst_70 : f32 to vector<32x256xf32>
    %203 = arith.addf %202, %201 : vector<32x256xf32>
    %204 = arith.mulf %193, %203 : vector<32x256xf32>
    %c0_71 = arith.constant 0 : index
    %c0_72 = arith.constant 0 : index
    %c0_73 = arith.constant 0 : index
    %205 = vector.load %arg13[%c0_71, %c0_72, %c0_73] : memref<2x256x128xbf16, #tpu.memory_space<vmem>>, vector<1x256x128xbf16>
    %206 = vector.shape_cast %205 : vector<1x256x128xbf16> to vector<256x128xbf16>
    %207 = arith.truncf %204 : vector<32x256xf32> to vector<32x256xbf16>
    %cst_74 = arith.constant dense<0.000000e+00> : vector<32x128xf32>
    %208 = tpu.matmul %207, %206, %cst_74 {dimension_numbers = #tpu.dot_dimension_numbers<[1], [0], [0], [1], [0, 0, 1, 1], [], []>} : vector<32x256xbf16>, vector<256x128xbf16>, vector<32x128xf32> -> vector<32x128xf32>
    %c0_75 = arith.constant 0 : index
    %c0_76 = arith.constant 0 : index
    %c0_77 = arith.constant 0 : index
    %209 = vector.load %arg14[%c0_75, %c0_76, %c0_77] : memref<2x1x128xf32, #tpu.memory_space<vmem>>, vector<1x1x128xf32>
    %210 = vector.shape_cast %209 : vector<1x1x128xf32> to vector<1x128xf32>
    %211 = vector.broadcast %210 : vector<1x128xf32> to vector<32x128xf32>
    %212 = arith.addf %208, %211 : vector<32x128xf32>
    %213 = arith.addf %212, %183 : vector<32x128xf32>
    %c0_78 = arith.constant 0 : index
    %c0_79 = arith.constant 0 : index
    %c0_80 = arith.constant 0 : index
    %214 = vector.load %arg15[%c0_78, %c0_79, %c0_80] : memref<2x1x128xf32, #tpu.memory_space<vmem>>, vector<1x1x128xf32>
    %215 = vector.shape_cast %214 : vector<1x1x128xf32> to vector<1x128xf32>
    %c0_81 = arith.constant 0 : index
    %c0_82 = arith.constant 0 : index
    %c0_83 = arith.constant 0 : index
    %216 = vector.load %arg16[%c0_81, %c0_82, %c0_83] : memref<2x1x128xf32, #tpu.memory_space<vmem>>, vector<1x1x128xf32>
    %217 = vector.shape_cast %216 : vector<1x1x128xf32> to vector<1x128xf32>
    %cst_84 = arith.constant dense<0.000000e+00> : vector<32xf32>
    %218 = vector.multi_reduction <add>, %213, %cst_84 [1] : vector<32x128xf32> to vector<32xf32>
    %219 = vector.shape_cast %218 : vector<32xf32> to vector<32x1xf32>
    %cst_85 = arith.constant 1.280000e+02 : f32
    %220 = vector.broadcast %cst_85 : f32 to vector<32x1xf32>
    %221 = arith.divf %219, %220 : vector<32x1xf32>
    %222 = vector.broadcast %221 : vector<32x1xf32> to vector<32x128xf32>
    %223 = arith.subf %213, %222 : vector<32x128xf32>
    %224 = arith.mulf %223, %223 : vector<32x128xf32>
    %cst_86 = arith.constant dense<0.000000e+00> : vector<32xf32>
    %225 = vector.multi_reduction <add>, %224, %cst_86 [1] : vector<32x128xf32> to vector<32xf32>
    %226 = vector.shape_cast %225 : vector<32xf32> to vector<32x1xf32>
    %cst_87 = arith.constant 1.280000e+02 : f32
    %227 = vector.broadcast %cst_87 : f32 to vector<32x1xf32>
    %228 = arith.divf %226, %227 : vector<32x1xf32>
    %229 = vector.broadcast %221 : vector<32x1xf32> to vector<32x128xf32>
    %230 = arith.subf %213, %229 : vector<32x128xf32>
    %cst_88 = arith.constant 9.99999996E-13 : f32
    %231 = vector.broadcast %cst_88 : f32 to vector<32x1xf32>
    %232 = arith.addf %228, %231 : vector<32x1xf32>
    %233 = math.rsqrt %232 : vector<32x1xf32>
    %234 = vector.broadcast %233 : vector<32x1xf32> to vector<32x128xf32>
    %235 = arith.mulf %230, %234 : vector<32x128xf32>
    %236 = vector.broadcast %215 : vector<1x128xf32> to vector<32x128xf32>
    %237 = arith.mulf %235, %236 : vector<32x128xf32>
    %238 = vector.broadcast %217 : vector<1x128xf32> to vector<32x128xf32>
    %239 = arith.addf %237, %238 : vector<32x128xf32>
    %c1 = arith.constant 1 : index
    %c0_89 = arith.constant 0 : index
    %c0_90 = arith.constant 0 : index
    %240 = vector.load %arg5[%c1, %c0_89, %c0_90] : memref<2x128x384xbf16, #tpu.memory_space<vmem>>, vector<1x128x384xbf16>
    %241 = vector.shape_cast %240 : vector<1x128x384xbf16> to vector<128x384xbf16>
    %242 = arith.truncf %239 : vector<32x128xf32> to vector<32x128xbf16>
    %cst_91 = arith.constant dense<0.000000e+00> : vector<32x384xf32>
    %243 = tpu.matmul %242, %241, %cst_91 {dimension_numbers = #tpu.dot_dimension_numbers<[1], [0], [0], [1], [0, 0, 1, 1], [], []>} : vector<32x128xbf16>, vector<128x384xbf16>, vector<32x384xf32> -> vector<32x384xf32>
    %c1_92 = arith.constant 1 : index
    %c0_93 = arith.constant 0 : index
    %c0_94 = arith.constant 0 : index
    %244 = vector.load %arg6[%c1_92, %c0_93, %c0_94] : memref<2x1x384xf32, #tpu.memory_space<vmem>>, vector<1x1x384xf32>
    %245 = vector.shape_cast %244 : vector<1x1x384xf32> to vector<1x384xf32>
    %246 = vector.broadcast %245 : vector<1x384xf32> to vector<32x384xf32>
    %247 = arith.addf %243, %246 : vector<32x384xf32>
    %248 = vector.extract_strided_slice %247 {offsets = [0, 0], sizes = [32, 32], strides = [1, 1]} : vector<32x384xf32> to vector<32x32xf32>
    %249 = vector.shape_cast %248 : vector<32x32xf32> to vector<4x8x32xf32>
    %250 = vector.extract_strided_slice %247 {offsets = [0, 128], sizes = [32, 32], strides = [1, 1]} : vector<32x384xf32> to vector<32x32xf32>
    %251 = vector.shape_cast %250 : vector<32x32xf32> to vector<4x8x32xf32>
    %252 = vector.extract_strided_slice %247 {offsets = [0, 256], sizes = [32, 32], strides = [1, 1]} : vector<32x384xf32> to vector<32x32xf32>
    %253 = vector.shape_cast %252 : vector<32x32xf32> to vector<4x8x32xf32>
    %254 = arith.truncf %249 : vector<4x8x32xf32> to vector<4x8x32xbf16>
    %255 = arith.truncf %251 : vector<4x8x32xf32> to vector<4x8x32xbf16>
    %cst_95 = arith.constant dense<0.000000e+00> : vector<4x8x8xf32>
    %256 = tpu.matmul %254, %255, %cst_95 {dimension_numbers = #tpu.dot_dimension_numbers<[2], [2], [1], [1], [0, 0, 0, 1, 1, 1], [0], [0]>} : vector<4x8x32xbf16>, vector<4x8x32xbf16>, vector<4x8x8xf32> -> vector<4x8x8xf32>
    %cst_96 = arith.constant 0.176776692 : f32
    %257 = vector.broadcast %cst_96 : f32 to vector<4x8x8xf32>
    %258 = arith.mulf %256, %257 : vector<4x8x8xf32>
    %259 = vector.broadcast %7 : vector<4x1x8xf32> to vector<4x8x8xf32>
    %260 = arith.addf %258, %259 : vector<4x8x8xf32>
    %cst_97 = arith.constant dense<0xFF800000> : vector<4x8xf32>
    %261 = vector.multi_reduction <maximumf>, %260, %cst_97 [2] : vector<4x8x8xf32> to vector<4x8xf32>
    %262 = vector.shape_cast %261 : vector<4x8xf32> to vector<4x8x1xf32>
    %263 = vector.broadcast %262 : vector<4x8x1xf32> to vector<4x8x8xf32>
    %264 = arith.subf %260, %263 : vector<4x8x8xf32>
    %265 = math.exp %264 : vector<4x8x8xf32>
    %cst_98 = arith.constant dense<0.000000e+00> : vector<4x8xf32>
    %266 = vector.multi_reduction <add>, %265, %cst_98 [2] : vector<4x8x8xf32> to vector<4x8xf32>
    %267 = vector.shape_cast %266 : vector<4x8xf32> to vector<4x8x1xf32>
    %268 = tpu.reciprocal %267 {approx = true} : vector<4x8x1xf32> -> vector<4x8x1xf32>
    %269 = vector.broadcast %268 : vector<4x8x1xf32> to vector<4x8x8xf32>
    %270 = arith.mulf %265, %269 : vector<4x8x8xf32>
    %271 = arith.truncf %270 : vector<4x8x8xf32> to vector<4x8x8xbf16>
    %272 = arith.truncf %253 : vector<4x8x32xf32> to vector<4x8x32xbf16>
    %cst_99 = arith.constant dense<0.000000e+00> : vector<4x8x32xf32>
    %273 = tpu.matmul %271, %272, %cst_99 {dimension_numbers = #tpu.dot_dimension_numbers<[2], [1], [1], [2], [0, 0, 0, 1, 1, 2], [0], [0]>} : vector<4x8x8xbf16>, vector<4x8x32xbf16>, vector<4x8x32xf32> -> vector<4x8x32xf32>
    %274 = vector.shape_cast %273 : vector<4x8x32xf32> to vector<32x32xf32>
    %275 = vector.extract_strided_slice %247 {offsets = [0, 32], sizes = [32, 32], strides = [1, 1]} : vector<32x384xf32> to vector<32x32xf32>
    %276 = vector.shape_cast %275 : vector<32x32xf32> to vector<4x8x32xf32>
    %277 = vector.extract_strided_slice %247 {offsets = [0, 160], sizes = [32, 32], strides = [1, 1]} : vector<32x384xf32> to vector<32x32xf32>
    %278 = vector.shape_cast %277 : vector<32x32xf32> to vector<4x8x32xf32>
    %279 = vector.extract_strided_slice %247 {offsets = [0, 288], sizes = [32, 32], strides = [1, 1]} : vector<32x384xf32> to vector<32x32xf32>
    %280 = vector.shape_cast %279 : vector<32x32xf32> to vector<4x8x32xf32>
    %281 = arith.truncf %276 : vector<4x8x32xf32> to vector<4x8x32xbf16>
    %282 = arith.truncf %278 : vector<4x8x32xf32> to vector<4x8x32xbf16>
    %cst_100 = arith.constant dense<0.000000e+00> : vector<4x8x8xf32>
    %283 = tpu.matmul %281, %282, %cst_100 {dimension_numbers = #tpu.dot_dimension_numbers<[2], [2], [1], [1], [0, 0, 0, 1, 1, 1], [0], [0]>} : vector<4x8x32xbf16>, vector<4x8x32xbf16>, vector<4x8x8xf32> -> vector<4x8x8xf32>
    %cst_101 = arith.constant 0.176776692 : f32
    %284 = vector.broadcast %cst_101 : f32 to vector<4x8x8xf32>
    %285 = arith.mulf %283, %284 : vector<4x8x8xf32>
    %286 = vector.broadcast %7 : vector<4x1x8xf32> to vector<4x8x8xf32>
    %287 = arith.addf %285, %286 : vector<4x8x8xf32>
    %cst_102 = arith.constant dense<0xFF800000> : vector<4x8xf32>
    %288 = vector.multi_reduction <maximumf>, %287, %cst_102 [2] : vector<4x8x8xf32> to vector<4x8xf32>
    %289 = vector.shape_cast %288 : vector<4x8xf32> to vector<4x8x1xf32>
    %290 = vector.broadcast %289 : vector<4x8x1xf32> to vector<4x8x8xf32>
    %291 = arith.subf %287, %290 : vector<4x8x8xf32>
    %292 = math.exp %291 : vector<4x8x8xf32>
    %cst_103 = arith.constant dense<0.000000e+00> : vector<4x8xf32>
    %293 = vector.multi_reduction <add>, %292, %cst_103 [2] : vector<4x8x8xf32> to vector<4x8xf32>
    %294 = vector.shape_cast %293 : vector<4x8xf32> to vector<4x8x1xf32>
    %295 = tpu.reciprocal %294 {approx = true} : vector<4x8x1xf32> -> vector<4x8x1xf32>
    %296 = vector.broadcast %295 : vector<4x8x1xf32> to vector<4x8x8xf32>
    %297 = arith.mulf %292, %296 : vector<4x8x8xf32>
    %298 = arith.truncf %297 : vector<4x8x8xf32> to vector<4x8x8xbf16>
    %299 = arith.truncf %280 : vector<4x8x32xf32> to vector<4x8x32xbf16>
    %cst_104 = arith.constant dense<0.000000e+00> : vector<4x8x32xf32>
    %300 = tpu.matmul %298, %299, %cst_104 {dimension_numbers = #tpu.dot_dimension_numbers<[2], [1], [1], [2], [0, 0, 0, 1, 1, 2], [0], [0]>} : vector<4x8x8xbf16>, vector<4x8x32xbf16>, vector<4x8x32xf32> -> vector<4x8x32xf32>
    %301 = vector.shape_cast %300 : vector<4x8x32xf32> to vector<32x32xf32>
    %302 = vector.extract_strided_slice %247 {offsets = [0, 64], sizes = [32, 32], strides = [1, 1]} : vector<32x384xf32> to vector<32x32xf32>
    %303 = vector.shape_cast %302 : vector<32x32xf32> to vector<4x8x32xf32>
    %304 = vector.extract_strided_slice %247 {offsets = [0, 192], sizes = [32, 32], strides = [1, 1]} : vector<32x384xf32> to vector<32x32xf32>
    %305 = vector.shape_cast %304 : vector<32x32xf32> to vector<4x8x32xf32>
    %306 = vector.extract_strided_slice %247 {offsets = [0, 320], sizes = [32, 32], strides = [1, 1]} : vector<32x384xf32> to vector<32x32xf32>
    %307 = vector.shape_cast %306 : vector<32x32xf32> to vector<4x8x32xf32>
    %308 = arith.truncf %303 : vector<4x8x32xf32> to vector<4x8x32xbf16>
    %309 = arith.truncf %305 : vector<4x8x32xf32> to vector<4x8x32xbf16>
    %cst_105 = arith.constant dense<0.000000e+00> : vector<4x8x8xf32>
    %310 = tpu.matmul %308, %309, %cst_105 {dimension_numbers = #tpu.dot_dimension_numbers<[2], [2], [1], [1], [0, 0, 0, 1, 1, 1], [0], [0]>} : vector<4x8x32xbf16>, vector<4x8x32xbf16>, vector<4x8x8xf32> -> vector<4x8x8xf32>
    %cst_106 = arith.constant 0.176776692 : f32
    %311 = vector.broadcast %cst_106 : f32 to vector<4x8x8xf32>
    %312 = arith.mulf %310, %311 : vector<4x8x8xf32>
    %313 = vector.broadcast %7 : vector<4x1x8xf32> to vector<4x8x8xf32>
    %314 = arith.addf %312, %313 : vector<4x8x8xf32>
    %cst_107 = arith.constant dense<0xFF800000> : vector<4x8xf32>
    %315 = vector.multi_reduction <maximumf>, %314, %cst_107 [2] : vector<4x8x8xf32> to vector<4x8xf32>
    %316 = vector.shape_cast %315 : vector<4x8xf32> to vector<4x8x1xf32>
    %317 = vector.broadcast %316 : vector<4x8x1xf32> to vector<4x8x8xf32>
    %318 = arith.subf %314, %317 : vector<4x8x8xf32>
    %319 = math.exp %318 : vector<4x8x8xf32>
    %cst_108 = arith.constant dense<0.000000e+00> : vector<4x8xf32>
    %320 = vector.multi_reduction <add>, %319, %cst_108 [2] : vector<4x8x8xf32> to vector<4x8xf32>
    %321 = vector.shape_cast %320 : vector<4x8xf32> to vector<4x8x1xf32>
    %322 = tpu.reciprocal %321 {approx = true} : vector<4x8x1xf32> -> vector<4x8x1xf32>
    %323 = vector.broadcast %322 : vector<4x8x1xf32> to vector<4x8x8xf32>
    %324 = arith.mulf %319, %323 : vector<4x8x8xf32>
    %325 = arith.truncf %324 : vector<4x8x8xf32> to vector<4x8x8xbf16>
    %326 = arith.truncf %307 : vector<4x8x32xf32> to vector<4x8x32xbf16>
    %cst_109 = arith.constant dense<0.000000e+00> : vector<4x8x32xf32>
    %327 = tpu.matmul %325, %326, %cst_109 {dimension_numbers = #tpu.dot_dimension_numbers<[2], [1], [1], [2], [0, 0, 0, 1, 1, 2], [0], [0]>} : vector<4x8x8xbf16>, vector<4x8x32xbf16>, vector<4x8x32xf32> -> vector<4x8x32xf32>
    %328 = vector.shape_cast %327 : vector<4x8x32xf32> to vector<32x32xf32>
    %329 = vector.extract_strided_slice %247 {offsets = [0, 96], sizes = [32, 32], strides = [1, 1]} : vector<32x384xf32> to vector<32x32xf32>
    %330 = vector.shape_cast %329 : vector<32x32xf32> to vector<4x8x32xf32>
    %331 = vector.extract_strided_slice %247 {offsets = [0, 224], sizes = [32, 32], strides = [1, 1]} : vector<32x384xf32> to vector<32x32xf32>
    %332 = vector.shape_cast %331 : vector<32x32xf32> to vector<4x8x32xf32>
    %333 = vector.extract_strided_slice %247 {offsets = [0, 352], sizes = [32, 32], strides = [1, 1]} : vector<32x384xf32> to vector<32x32xf32>
    %334 = vector.shape_cast %333 : vector<32x32xf32> to vector<4x8x32xf32>
    %335 = arith.truncf %330 : vector<4x8x32xf32> to vector<4x8x32xbf16>
    %336 = arith.truncf %332 : vector<4x8x32xf32> to vector<4x8x32xbf16>
    %cst_110 = arith.constant dense<0.000000e+00> : vector<4x8x8xf32>
    %337 = tpu.matmul %335, %336, %cst_110 {dimension_numbers = #tpu.dot_dimension_numbers<[2], [2], [1], [1], [0, 0, 0, 1, 1, 1], [0], [0]>} : vector<4x8x32xbf16>, vector<4x8x32xbf16>, vector<4x8x8xf32> -> vector<4x8x8xf32>
    %cst_111 = arith.constant 0.176776692 : f32
    %338 = vector.broadcast %cst_111 : f32 to vector<4x8x8xf32>
    %339 = arith.mulf %337, %338 : vector<4x8x8xf32>
    %340 = vector.broadcast %7 : vector<4x1x8xf32> to vector<4x8x8xf32>
    %341 = arith.addf %339, %340 : vector<4x8x8xf32>
    %cst_112 = arith.constant dense<0xFF800000> : vector<4x8xf32>
    %342 = vector.multi_reduction <maximumf>, %341, %cst_112 [2] : vector<4x8x8xf32> to vector<4x8xf32>
    %343 = vector.shape_cast %342 : vector<4x8xf32> to vector<4x8x1xf32>
    %344 = vector.broadcast %343 : vector<4x8x1xf32> to vector<4x8x8xf32>
    %345 = arith.subf %341, %344 : vector<4x8x8xf32>
    %346 = math.exp %345 : vector<4x8x8xf32>
    %cst_113 = arith.constant dense<0.000000e+00> : vector<4x8xf32>
    %347 = vector.multi_reduction <add>, %346, %cst_113 [2] : vector<4x8x8xf32> to vector<4x8xf32>
    %348 = vector.shape_cast %347 : vector<4x8xf32> to vector<4x8x1xf32>
    %349 = tpu.reciprocal %348 {approx = true} : vector<4x8x1xf32> -> vector<4x8x1xf32>
    %350 = vector.broadcast %349 : vector<4x8x1xf32> to vector<4x8x8xf32>
    %351 = arith.mulf %346, %350 : vector<4x8x8xf32>
    %352 = arith.truncf %351 : vector<4x8x8xf32> to vector<4x8x8xbf16>
    %353 = arith.truncf %334 : vector<4x8x32xf32> to vector<4x8x32xbf16>
    %cst_114 = arith.constant dense<0.000000e+00> : vector<4x8x32xf32>
    %354 = tpu.matmul %352, %353, %cst_114 {dimension_numbers = #tpu.dot_dimension_numbers<[2], [1], [1], [2], [0, 0, 0, 1, 1, 2], [0], [0]>} : vector<4x8x8xbf16>, vector<4x8x32xbf16>, vector<4x8x32xf32> -> vector<4x8x32xf32>
    %355 = vector.shape_cast %354 : vector<4x8x32xf32> to vector<32x32xf32>
    %356 = tpu.concatenate %274, %301, %328, %355 in 1 : vector<32x32xf32>, vector<32x32xf32>, vector<32x32xf32>, vector<32x32xf32> -> vector<32x128xf32>
    %c1_115 = arith.constant 1 : index
    %c0_116 = arith.constant 0 : index
    %c0_117 = arith.constant 0 : index
    %357 = vector.load %arg7[%c1_115, %c0_116, %c0_117] : memref<2x128x128xbf16, #tpu.memory_space<vmem>>, vector<1x128x128xbf16>
    %358 = vector.shape_cast %357 : vector<1x128x128xbf16> to vector<128x128xbf16>
    %359 = arith.truncf %356 : vector<32x128xf32> to vector<32x128xbf16>
    %cst_118 = arith.constant dense<0.000000e+00> : vector<32x128xf32>
    %360 = tpu.matmul %359, %358, %cst_118 {dimension_numbers = #tpu.dot_dimension_numbers<[1], [0], [0], [1], [0, 0, 1, 1], [], []>} : vector<32x128xbf16>, vector<128x128xbf16>, vector<32x128xf32> -> vector<32x128xf32>
    %c1_119 = arith.constant 1 : index
    %c0_120 = arith.constant 0 : index
    %c0_121 = arith.constant 0 : index
    %361 = vector.load %arg8[%c1_119, %c0_120, %c0_121] : memref<2x1x128xf32, #tpu.memory_space<vmem>>, vector<1x1x128xf32>
    %362 = vector.shape_cast %361 : vector<1x1x128xf32> to vector<1x128xf32>
    %363 = vector.broadcast %362 : vector<1x128xf32> to vector<32x128xf32>
    %364 = arith.addf %360, %363 : vector<32x128xf32>
    %365 = arith.addf %364, %239 : vector<32x128xf32>
    %c1_122 = arith.constant 1 : index
    %c0_123 = arith.constant 0 : index
    %c0_124 = arith.constant 0 : index
    %366 = vector.load %arg9[%c1_122, %c0_123, %c0_124] : memref<2x1x128xf32, #tpu.memory_space<vmem>>, vector<1x1x128xf32>
    %367 = vector.shape_cast %366 : vector<1x1x128xf32> to vector<1x128xf32>
    %c1_125 = arith.constant 1 : index
    %c0_126 = arith.constant 0 : index
    %c0_127 = arith.constant 0 : index
    %368 = vector.load %arg10[%c1_125, %c0_126, %c0_127] : memref<2x1x128xf32, #tpu.memory_space<vmem>>, vector<1x1x128xf32>
    %369 = vector.shape_cast %368 : vector<1x1x128xf32> to vector<1x128xf32>
    %cst_128 = arith.constant dense<0.000000e+00> : vector<32xf32>
    %370 = vector.multi_reduction <add>, %365, %cst_128 [1] : vector<32x128xf32> to vector<32xf32>
    %371 = vector.shape_cast %370 : vector<32xf32> to vector<32x1xf32>
    %cst_129 = arith.constant 1.280000e+02 : f32
    %372 = vector.broadcast %cst_129 : f32 to vector<32x1xf32>
    %373 = arith.divf %371, %372 : vector<32x1xf32>
    %374 = vector.broadcast %373 : vector<32x1xf32> to vector<32x128xf32>
    %375 = arith.subf %365, %374 : vector<32x128xf32>
    %376 = arith.mulf %375, %375 : vector<32x128xf32>
    %cst_130 = arith.constant dense<0.000000e+00> : vector<32xf32>
    %377 = vector.multi_reduction <add>, %376, %cst_130 [1] : vector<32x128xf32> to vector<32xf32>
    %378 = vector.shape_cast %377 : vector<32xf32> to vector<32x1xf32>
    %cst_131 = arith.constant 1.280000e+02 : f32
    %379 = vector.broadcast %cst_131 : f32 to vector<32x1xf32>
    %380 = arith.divf %378, %379 : vector<32x1xf32>
    %381 = vector.broadcast %373 : vector<32x1xf32> to vector<32x128xf32>
    %382 = arith.subf %365, %381 : vector<32x128xf32>
    %cst_132 = arith.constant 9.99999996E-13 : f32
    %383 = vector.broadcast %cst_132 : f32 to vector<32x1xf32>
    %384 = arith.addf %380, %383 : vector<32x1xf32>
    %385 = math.rsqrt %384 : vector<32x1xf32>
    %386 = vector.broadcast %385 : vector<32x1xf32> to vector<32x128xf32>
    %387 = arith.mulf %382, %386 : vector<32x128xf32>
    %388 = vector.broadcast %367 : vector<1x128xf32> to vector<32x128xf32>
    %389 = arith.mulf %387, %388 : vector<32x128xf32>
    %390 = vector.broadcast %369 : vector<1x128xf32> to vector<32x128xf32>
    %391 = arith.addf %389, %390 : vector<32x128xf32>
    %c1_133 = arith.constant 1 : index
    %c0_134 = arith.constant 0 : index
    %c0_135 = arith.constant 0 : index
    %392 = vector.load %arg11[%c1_133, %c0_134, %c0_135] : memref<2x128x256xbf16, #tpu.memory_space<vmem>>, vector<1x128x256xbf16>
    %393 = vector.shape_cast %392 : vector<1x128x256xbf16> to vector<128x256xbf16>
    %394 = arith.truncf %391 : vector<32x128xf32> to vector<32x128xbf16>
    %cst_136 = arith.constant dense<0.000000e+00> : vector<32x256xf32>
    %395 = tpu.matmul %394, %393, %cst_136 {dimension_numbers = #tpu.dot_dimension_numbers<[1], [0], [0], [1], [0, 0, 1, 1], [], []>} : vector<32x128xbf16>, vector<128x256xbf16>, vector<32x256xf32> -> vector<32x256xf32>
    %c1_137 = arith.constant 1 : index
    %c0_138 = arith.constant 0 : index
    %c0_139 = arith.constant 0 : index
    %396 = vector.load %arg12[%c1_137, %c0_138, %c0_139] : memref<2x1x256xf32, #tpu.memory_space<vmem>>, vector<1x1x256xf32>
    %397 = vector.shape_cast %396 : vector<1x1x256xf32> to vector<1x256xf32>
    %398 = vector.broadcast %397 : vector<1x256xf32> to vector<32x256xf32>
    %399 = arith.addf %395, %398 : vector<32x256xf32>
    %cst_140 = arith.constant 5.000000e-01 : f32
    %400 = vector.broadcast %cst_140 : f32 to vector<32x256xf32>
    %401 = arith.mulf %400, %399 : vector<32x256xf32>
    %cst_141 = arith.constant 4.471500e-02 : f32
    %402 = vector.broadcast %cst_141 : f32 to vector<32x256xf32>
    %403 = arith.mulf %402, %399 : vector<32x256xf32>
    %404 = arith.mulf %403, %399 : vector<32x256xf32>
    %405 = arith.mulf %404, %399 : vector<32x256xf32>
    %406 = arith.addf %399, %405 : vector<32x256xf32>
    %cst_142 = arith.constant 0.797884583 : f32
    %407 = vector.broadcast %cst_142 : f32 to vector<32x256xf32>
    %408 = arith.mulf %407, %406 : vector<32x256xf32>
    %409 = math.tanh %408 : vector<32x256xf32>
    %cst_143 = arith.constant 1.000000e+00 : f32
    %410 = vector.broadcast %cst_143 : f32 to vector<32x256xf32>
    %411 = arith.addf %410, %409 : vector<32x256xf32>
    %412 = arith.mulf %401, %411 : vector<32x256xf32>
    %c1_144 = arith.constant 1 : index
    %c0_145 = arith.constant 0 : index
    %c0_146 = arith.constant 0 : index
    %413 = vector.load %arg13[%c1_144, %c0_145, %c0_146] : memref<2x256x128xbf16, #tpu.memory_space<vmem>>, vector<1x256x128xbf16>
    %414 = vector.shape_cast %413 : vector<1x256x128xbf16> to vector<256x128xbf16>
    %415 = arith.truncf %412 : vector<32x256xf32> to vector<32x256xbf16>
    %cst_147 = arith.constant dense<0.000000e+00> : vector<32x128xf32>
    %416 = tpu.matmul %415, %414, %cst_147 {dimension_numbers = #tpu.dot_dimension_numbers<[1], [0], [0], [1], [0, 0, 1, 1], [], []>} : vector<32x256xbf16>, vector<256x128xbf16>, vector<32x128xf32> -> vector<32x128xf32>
    %c1_148 = arith.constant 1 : index
    %c0_149 = arith.constant 0 : index
    %c0_150 = arith.constant 0 : index
    %417 = vector.load %arg14[%c1_148, %c0_149, %c0_150] : memref<2x1x128xf32, #tpu.memory_space<vmem>>, vector<1x1x128xf32>
    %418 = vector.shape_cast %417 : vector<1x1x128xf32> to vector<1x128xf32>
    %419 = vector.broadcast %418 : vector<1x128xf32> to vector<32x128xf32>
    %420 = arith.addf %416, %419 : vector<32x128xf32>
    %421 = arith.addf %420, %391 : vector<32x128xf32>
    %c1_151 = arith.constant 1 : index
    %c0_152 = arith.constant 0 : index
    %c0_153 = arith.constant 0 : index
    %422 = vector.load %arg15[%c1_151, %c0_152, %c0_153] : memref<2x1x128xf32, #tpu.memory_space<vmem>>, vector<1x1x128xf32>
    %423 = vector.shape_cast %422 : vector<1x1x128xf32> to vector<1x128xf32>
    %c1_154 = arith.constant 1 : index
    %c0_155 = arith.constant 0 : index
    %c0_156 = arith.constant 0 : index
    %424 = vector.load %arg16[%c1_154, %c0_155, %c0_156] : memref<2x1x128xf32, #tpu.memory_space<vmem>>, vector<1x1x128xf32>
    %425 = vector.shape_cast %424 : vector<1x1x128xf32> to vector<1x128xf32>
    %cst_157 = arith.constant dense<0.000000e+00> : vector<32xf32>
    %426 = vector.multi_reduction <add>, %421, %cst_157 [1] : vector<32x128xf32> to vector<32xf32>
    %427 = vector.shape_cast %426 : vector<32xf32> to vector<32x1xf32>
    %cst_158 = arith.constant 1.280000e+02 : f32
    %428 = vector.broadcast %cst_158 : f32 to vector<32x1xf32>
    %429 = arith.divf %427, %428 : vector<32x1xf32>
    %430 = vector.broadcast %429 : vector<32x1xf32> to vector<32x128xf32>
    %431 = arith.subf %421, %430 : vector<32x128xf32>
    %432 = arith.mulf %431, %431 : vector<32x128xf32>
    %cst_159 = arith.constant dense<0.000000e+00> : vector<32xf32>
    %433 = vector.multi_reduction <add>, %432, %cst_159 [1] : vector<32x128xf32> to vector<32xf32>
    %434 = vector.shape_cast %433 : vector<32xf32> to vector<32x1xf32>
    %cst_160 = arith.constant 1.280000e+02 : f32
    %435 = vector.broadcast %cst_160 : f32 to vector<32x1xf32>
    %436 = arith.divf %434, %435 : vector<32x1xf32>
    %437 = vector.broadcast %429 : vector<32x1xf32> to vector<32x128xf32>
    %438 = arith.subf %421, %437 : vector<32x128xf32>
    %cst_161 = arith.constant 9.99999996E-13 : f32
    %439 = vector.broadcast %cst_161 : f32 to vector<32x1xf32>
    %440 = arith.addf %436, %439 : vector<32x1xf32>
    %441 = math.rsqrt %440 : vector<32x1xf32>
    %442 = vector.broadcast %441 : vector<32x1xf32> to vector<32x128xf32>
    %443 = arith.mulf %438, %442 : vector<32x128xf32>
    %444 = vector.broadcast %423 : vector<1x128xf32> to vector<32x128xf32>
    %445 = arith.mulf %443, %444 : vector<32x128xf32>
    %446 = vector.broadcast %425 : vector<1x128xf32> to vector<32x128xf32>
    %447 = arith.addf %445, %446 : vector<32x128xf32>
    %448 = vector.shape_cast %447 : vector<32x128xf32> to vector<4x8x128xf32>
    %449 = vector.extract_strided_slice %448 {offsets = [0, 0, 0], sizes = [4, 1, 128], strides = [1, 1, 1]} : vector<4x8x128xf32> to vector<4x1x128xf32>
    %450 = vector.shape_cast %449 : vector<4x1x128xf32> to vector<4x128xf32>
    %c0_162 = arith.constant 0 : index
    %c0_163 = arith.constant 0 : index
    %451 = vector.load %arg17[%c0_162, %c0_163] : memref<128x128xbf16, #tpu.memory_space<vmem>>, vector<128x128xbf16>
    %452 = arith.truncf %450 : vector<4x128xf32> to vector<4x128xbf16>
    %cst_164 = arith.constant dense<0.000000e+00> : vector<4x128xf32>
    %453 = tpu.matmul %452, %451, %cst_164 {dimension_numbers = #tpu.dot_dimension_numbers<[1], [0], [0], [1], [0, 0, 1, 1], [], []>} : vector<4x128xbf16>, vector<128x128xbf16>, vector<4x128xf32> -> vector<4x128xf32>
    %c0_165 = arith.constant 0 : index
    %c0_166 = arith.constant 0 : index
    %454 = vector.load %arg18[%c0_165, %c0_166] : memref<1x128xf32, #tpu.memory_space<vmem>>, vector<1x128xf32>
    %455 = vector.broadcast %454 : vector<1x128xf32> to vector<4x128xf32>
    %456 = arith.addf %453, %455 : vector<4x128xf32>
    %457 = math.tanh %456 : vector<4x128xf32>
    %458 = vector.shape_cast %457 : vector<4x128xf32> to vector<4x1x128xf32>
    %c0_167 = arith.constant 0 : index
    %c0_168 = arith.constant 0 : index
    %c0_169 = arith.constant 0 : index
    %459 = vector.load %arg19[%c0_167, %c0_168, %c0_169] : memref<4x1x128xf32, #tpu.memory_space<vmem>>, vector<4x1x128xf32>
    tpu.vector_store %arg19[%c0_167, %c0_168, %c0_169], %458 {strides = array<i32>} : memref<4x1x128xf32, #tpu.memory_space<vmem>>, vector<4x1x128xf32>,
    return
  }
  func.func @transform_0(%arg0: i32) -> (i32, i32, i32) {
    %c0_i32 = arith.constant 0 : i32
    %c0_i32_0 = arith.constant 0 : i32
    %c0_i32_1 = arith.constant 0 : i32
    return %arg0, %c0_i32, %c0_i32_0 : i32, i32, i32
  }
  func.func @transform_1(%arg0: i32) -> (i32, i32, i32) {
    %c0_i32 = arith.constant 0 : i32
    %c0_i32_0 = arith.constant 0 : i32
    %c0_i32_1 = arith.constant 0 : i32
    return %arg0, %c0_i32, %c0_i32_0 : i32, i32, i32
  }
  func.func @transform_2(%arg0: i32) -> (i32, i32) {
    %c0_i32 = arith.constant 0 : i32
    %c0_i32_0 = arith.constant 0 : i32
    %c0_i32_1 = arith.constant 0 : i32
    return %c0_i32, %c0_i32_0 : i32, i32
  }
  func.func @transform_3(%arg0: i32) -> (i32, i32) {
    %c0_i32 = arith.constant 0 : i32
    %c0_i32_0 = arith.constant 0 : i32
    %c0_i32_1 = arith.constant 0 : i32
    return %c0_i32, %c0_i32_0 : i32, i32
  }
  func.func @transform_4(%arg0: i32) -> (i32, i32, i32) {
    %c0_i32 = arith.constant 0 : i32
    %c0_i32_0 = arith.constant 0 : i32
    %c0_i32_1 = arith.constant 0 : i32
    %c0_i32_2 = arith.constant 0 : i32
    return %c0_i32, %c0_i32_0, %c0_i32_1 : i32, i32, i32
  }
  func.func @transform_5(%arg0: i32) -> (i32, i32, i32) {
    %c0_i32 = arith.constant 0 : i32
    %c0_i32_0 = arith.constant 0 : i32
    %c0_i32_1 = arith.constant 0 : i32
    %c0_i32_2 = arith.constant 0 : i32
    return %c0_i32, %c0_i32_0, %c0_i32_1 : i32, i32, i32
  }
  func.func @transform_6(%arg0: i32) -> (i32, i32, i32) {
    %c0_i32 = arith.constant 0 : i32
    %c0_i32_0 = arith.constant 0 : i32
    %c0_i32_1 = arith.constant 0 : i32
    %c0_i32_2 = arith.constant 0 : i32
    return %c0_i32, %c0_i32_0, %c0_i32_1 : i32, i32, i32
  }
  func.func @transform_7(%arg0: i32) -> (i32, i32, i32) {
    %c0_i32 = arith.constant 0 : i32
    %c0_i32_0 = arith.constant 0 : i32
    %c0_i32_1 = arith.constant 0 : i32
    %c0_i32_2 = arith.constant 0 : i32
    return %c0_i32, %c0_i32_0, %c0_i32_1 : i32, i32, i32
  }
  func.func @transform_8(%arg0: i32) -> (i32, i32, i32) {
    %c0_i32 = arith.constant 0 : i32
    %c0_i32_0 = arith.constant 0 : i32
    %c0_i32_1 = arith.constant 0 : i32
    %c0_i32_2 = arith.constant 0 : i32
    return %c0_i32, %c0_i32_0, %c0_i32_1 : i32, i32, i32
  }
  func.func @transform_9(%arg0: i32) -> (i32, i32, i32) {
    %c0_i32 = arith.constant 0 : i32
    %c0_i32_0 = arith.constant 0 : i32
    %c0_i32_1 = arith.constant 0 : i32
    %c0_i32_2 = arith.constant 0 : i32
    return %c0_i32, %c0_i32_0, %c0_i32_1 : i32, i32, i32
  }
  func.func @transform_10(%arg0: i32) -> (i32, i32, i32) {
    %c0_i32 = arith.constant 0 : i32
    %c0_i32_0 = arith.constant 0 : i32
    %c0_i32_1 = arith.constant 0 : i32
    %c0_i32_2 = arith.constant 0 : i32
    return %c0_i32, %c0_i32_0, %c0_i32_1 : i32, i32, i32
  }
  func.func @transform_11(%arg0: i32) -> (i32, i32, i32) {
    %c0_i32 = arith.constant 0 : i32
    %c0_i32_0 = arith.constant 0 : i32
    %c0_i32_1 = arith.constant 0 : i32
    %c0_i32_2 = arith.constant 0 : i32
    return %c0_i32, %c0_i32_0, %c0_i32_1 : i32, i32, i32
  }
  func.func @transform_12(%arg0: i32) -> (i32, i32, i32) {
    %c0_i32 = arith.constant 0 : i32
    %c0_i32_0 = arith.constant 0 : i32
    %c0_i32_1 = arith.constant 0 : i32
    %c0_i32_2 = arith.constant 0 : i32
    return %c0_i32, %c0_i32_0, %c0_i32_1 : i32, i32, i32
  }
  func.func @transform_13(%arg0: i32) -> (i32, i32, i32) {
    %c0_i32 = arith.constant 0 : i32
    %c0_i32_0 = arith.constant 0 : i32
    %c0_i32_1 = arith.constant 0 : i32
    %c0_i32_2 = arith.constant 0 : i32
    return %c0_i32, %c0_i32_0, %c0_i32_1 : i32, i32, i32
  }
  func.func @transform_14(%arg0: i32) -> (i32, i32, i32) {
    %c0_i32 = arith.constant 0 : i32
    %c0_i32_0 = arith.constant 0 : i32
    %c0_i32_1 = arith.constant 0 : i32
    %c0_i32_2 = arith.constant 0 : i32
    return %c0_i32, %c0_i32_0, %c0_i32_1 : i32, i32, i32
  }
  func.func @transform_15(%arg0: i32) -> (i32, i32, i32) {
    %c0_i32 = arith.constant 0 : i32
    %c0_i32_0 = arith.constant 0 : i32
    %c0_i32_1 = arith.constant 0 : i32
    %c0_i32_2 = arith.constant 0 : i32
    return %c0_i32, %c0_i32_0, %c0_i32_1 : i32, i32, i32
  }
  func.func @transform_16(%arg0: i32) -> (i32, i32) {
    %c0_i32 = arith.constant 0 : i32
    %c0_i32_0 = arith.constant 0 : i32
    %c0_i32_1 = arith.constant 0 : i32
    return %c0_i32, %c0_i32_0 : i32, i32
  }
  func.func @transform_17(%arg0: i32) -> (i32, i32) {
    %c0_i32 = arith.constant 0 : i32
    %c0_i32_0 = arith.constant 0 : i32
    %c0_i32_1 = arith.constant 0 : i32
    return %c0_i32, %c0_i32_0 : i32, i32
  }
  func.func @transform_18(%arg0: i32) -> (i32, i32, i32) {
    %c0_i32 = arith.constant 0 : i32
    %c0_i32_0 = arith.constant 0 : i32
    %c0_i32_1 = arith.constant 0 : i32
    return %arg0, %c0_i32, %c0_i32_0 : i32, i32, i32
  }
}

</mosaic_0001>

<llo_original>
// kernel: bert_arch_forward.3
$region0: #{bert_arch_forward.3}
  #allocation0 [shape = 'u32[]', space=smem, size = 0x4, offset = 0x4, fixed_abs, tag = 'smem constant byte address 0x4 - core index']
  #allocation1 [shape = 'u32[144,128]{1,0:T(1,128)}', space=vmem, size = 0x12000, scoped, tag = 'internal scratch']
  %s0 = inlined_call_operand.vmem [shape: f32[4,256], index: 0, kind: input, shape index: {}]
  %s1 = inlined_call_operand.vmem [shape: bf16[256,128], index: 1, kind: input, shape index: {}]
  %s2 = inlined_call_operand.vmem [shape: f32[1,128], index: 2, kind: input, shape index: {}]
  %s3 = inlined_call_operand.vmem [shape: bf16[128,2], index: 3, kind: input, shape index: {}]
  %s4 = inlined_call_operand.vmem [shape: f32[1,2], index: 4, kind: input, shape index: {}]
  %s5 = inlined_call_operand.vmem [shape: f32[4,2], index: 5, kind: output, shape index: {}]
  %s6 = sld [smem:[#allocation0]]
  $region30: #{bert_arch_forward.3} parent=0
    _
  %s8 = ssub.s32 1, %s6
  %s9 = scalar_select 0, %s8, %s6
  // Predicated region
  $region2: #{bert_arch_forward.3} parent=0 // pred_check
    _
  $region3: #{bert_arch_forward.3} parent=0 // pred_check_branch
    %11 = sbr.rel (0) target = $region5
  $region4: #{bert_arch_forward.3} parent=0 // pred_region
    _
  $region5: #{bert_arch_forward.3} parent=0 // pred_fallthru
    _
  // Predicated region
  $region6: #{bert_arch_forward.3} parent=0 // pred_check
    _
  $region7: #{bert_arch_forward.3} parent=0 // pred_check_branch
    %13 = sbr.rel (0) target = $region9
  $region8: #{bert_arch_forward.3} parent=0 // pred_region
    _
  $region9: #{bert_arch_forward.3} parent=0 // pred_fallthru
    _
  // Predicated region
  $region10: #{bert_arch_forward.3} parent=0 // pred_check
    _
  $region11: #{bert_arch_forward.3} parent=0 // pred_check_branch
    %15 = sbr.rel (0) target = $region13
  $region12: #{bert_arch_forward.3} parent=0 // pred_region
    _
  $region13: #{bert_arch_forward.3} parent=0 // pred_fallthru
    _
  // Predicated region
  $region14: #{bert_arch_forward.3} parent=0 // pred_check
    _
  $region15: #{bert_arch_forward.3} parent=0 // pred_check_branch
    %17 = sbr.rel (0) target = $region17
  $region16: #{bert_arch_forward.3} parent=0 // pred_region
    _
  $region17: #{bert_arch_forward.3} parent=0 // pred_fallthru
    _
  // Predicated region
  $region18: #{bert_arch_forward.3} parent=0 // pred_check
    _
  $region19: #{bert_arch_forward.3} parent=0 // pred_check_branch
    %19 = sbr.rel (0) target = $region21
  $region20: #{bert_arch_forward.3} parent=0 // pred_region
    _
  $region21: #{bert_arch_forward.3} parent=0 // pred_fallthru
    _
  %v21 = vld [vmem:[%s0] sm:$0xff]
  %v22 = vld [vmem:[%s1] sm:$0xf]
  %v23 = vld [vmem:[%s1 + $0x4] sm:$0xf]
  %v24 = vld [vmem:[%s1 + $0x8] sm:$0xf]
  %v25 = vld [vmem:[%s1 + $0xc] sm:$0xf]
  %v26 = vld [vmem:[%s1 + $0x10] sm:$0xf]
  %v27 = vld [vmem:[%s1 + $0x14] sm:$0xf]
  %v28 = vld [vmem:[%s1 + $0x18] sm:$0xf]
  %v29 = vld [vmem:[%s1 + $0x1c] sm:$0xf]
  %v30 = vld [vmem:[%s1 + $0x20] sm:$0xf]
  %v31 = vld [vmem:[%s1 + $0x24] sm:$0xf]
  %v32 = vld [vmem:[%s1 + $0x28] sm:$0xf]
  %v33 = vld [vmem:[%s1 + $0x2c] sm:$0xf]
  %v34 = vld [vmem:[%s1 + $0x30] sm:$0xf]
  %v35 = vld [vmem:[%s1 + $0x34] sm:$0xf]
  %v36 = vld [vmem:[%s1 + $0x38] sm:$0xf]
  %v37 = vld [vmem:[%s1 + $0x3c] sm:$0xf]
  %v38 = vld [vmem:[%s1 + $0x40] sm:$0xf]
  %v39 = vld [vmem:[%s1 + $0x44] sm:$0xf]
  %v40 = vld [vmem:[%s1 + $0x48] sm:$0xf]
  %v41 = vld [vmem:[%s1 + $0x4c] sm:$0xf]
  %v42 = vld [vmem:[%s1 + $0x50] sm:$0xf]
  %v43 = vld [vmem:[%s1 + $0x54] sm:$0xf]
  %v44 = vld [vmem:[%s1 + $0x58] sm:$0xf]
  %v45 = vld [vmem:[%s1 + $0x5c] sm:$0xf]
  %v46 = vld [vmem:[%s1 + $0x60] sm:$0xf]
  %v47 = vld [vmem:[%s1 + $0x64] sm:$0xf]
  %v48 = vld [vmem:[%s1 + $0x68] sm:$0xf]
  %v49 = vld [vmem:[%s1 + $0x6c] sm:$0xf]
  %v50 = vld [vmem:[%s1 + $0x70] sm:$0xf]
  %v51 = vld [vmem:[%s1 + $0x74] sm:$0xf]
  %v52 = vld [vmem:[%s1 + $0x78] sm:$0xf]
  %v53 = vld [vmem:[%s1 + $0x7c] sm:$0xf]
  %v55 = vcombine.high %v21, %v21
  %v57 = vpack.c.bf16 %v21, %v21
  %v58 = vpack.c.bf16 %v55, %v55
  %v59 = vld [vmem:[%s2] sm:$0x1]
  %v61 = vlaneseq
  %v62 = vshrl.u32 %v61, 7
  %v63 = vsub.s32 0, %v62
  %v64 = vrot.slane %v59, %v63
  %v98 = vunpack.c.l.b16 %v22
  %v99 = vunpack.c.l.b16 %v23
  %v100 = vunpack.c.l.b16 %v24
  %v101 = vunpack.c.l.b16 %v25
  %v102 = vunpack.c.l.b16 %v26
  %v103 = vunpack.c.l.b16 %v27
  %v104 = vunpack.c.l.b16 %v28
  %v105 = vunpack.c.l.b16 %v29
  %v106 = vunpack.c.l.b16 %v30
  %v107 = vunpack.c.l.b16 %v31
  %v108 = vunpack.c.l.b16 %v32
  %v109 = vunpack.c.l.b16 %v33
  %v110 = vunpack.c.l.b16 %v34
  %v111 = vunpack.c.l.b16 %v35
  %v112 = vunpack.c.l.b16 %v36
  %v113 = vunpack.c.l.b16 %v37
  %v114 = vunpack.c.l.b16 %v38
  %v115 = vunpack.c.l.b16 %v39
  %v116 = vunpack.c.l.b16 %v40
  %v117 = vunpack.c.l.b16 %v41
  %v118 = vunpack.c.l.b16 %v42
  %v119 = vunpack.c.l.b16 %v43
  %v120 = vunpack.c.l.b16 %v44
  %v121 = vunpack.c.l.b16 %v45
  %v122 = vunpack.c.l.b16 %v46
  %v123 = vunpack.c.l.b16 %v47
  %v124 = vunpack.c.l.b16 %v48
  %v125 = vunpack.c.l.b16 %v49
  %v126 = vunpack.c.l.b16 %v50
  %v127 = vunpack.c.l.b16 %v51
  %v128 = vunpack.c.l.b16 %v52
  %v129 = vunpack.c.l.b16 %v53
  %v130 = vpack.c.b16 %v99, %v98
  %v131 = vpack.c.b16 %v101, %v100
  %v132 = vpack.c.b16 %v103, %v102
  %v133 = vpack.c.b16 %v105, %v104
  %v134 = vpack.c.b16 %v107, %v106
  %v135 = vpack.c.b16 %v109, %v108
  %v136 = vpack.c.b16 %v111, %v110
  %v137 = vpack.c.b16 %v113, %v112
  %v138 = vpack.c.b16 %v115, %v114
  %v139 = vpack.c.b16 %v117, %v116
  %v140 = vpack.c.b16 %v119, %v118
  %v141 = vpack.c.b16 %v121, %v120
  %v142 = vpack.c.b16 %v123, %v122
  %v143 = vpack.c.b16 %v125, %v124
  %v144 = vpack.c.b16 %v127, %v126
  %v145 = vpack.c.b16 %v129, %v128
  %162 = vmatprep.subr.bf16.mxu0 0
  %163 = vmatpush1.bf16.msra.mxu0 %v130
  %164 = vmatprep.subr.bf16.mxu0 0
  %165 = vmatpush1.bf16.msra.mxu0 %v131
  %166 = vmatprep.subr.bf16.mxu0 0
  %167 = vmatpush1.bf16.msra.mxu0 %v132
  %168 = vmatprep.subr.bf16.mxu0 0
  %169 = vmatpush1.bf16.msra.mxu0 %v133
  %170 = vmatprep.subr.bf16.mxu0 0
  %171 = vmatpush1.bf16.msra.mxu0 %v134
  %172 = vmatprep.subr.bf16.mxu0 0
  %173 = vmatpush1.bf16.msra.mxu0 %v135
  %174 = vmatprep.subr.bf16.mxu0 0
  %175 = vmatpush1.bf16.msra.mxu0 %v136
  %176 = vmatprep.subr.bf16.mxu0 0
  %177 = vmatpush1.bf16.msra.mxu0 %v137
  %178 = vmatprep.subr.bf16.mxu0 0
  %179 = vmatpush1.bf16.msra.mxu0 %v138
  %180 = vmatprep.subr.bf16.mxu0 0
  %181 = vmatpush1.bf16.msra.mxu0 %v139
  %182 = vmatprep.subr.bf16.mxu0 0
  %183 = vmatpush1.bf16.msra.mxu0 %v140
  %184 = vmatprep.subr.bf16.mxu0 0
  %185 = vmatpush1.bf16.msra.mxu0 %v141
  %186 = vmatprep.subr.bf16.mxu0 0
  %187 = vmatpush1.bf16.msra.mxu0 %v142
  %188 = vmatprep.subr.bf16.mxu0 0
  %189 = vmatpush1.bf16.msra.mxu0 %v143
  %190 = vmatprep.subr.bf16.mxu0 0
  %191 = vmatpush1.bf16.msra.mxu0 %v144
  %192 = vmatprep.subr.bf16.mxu0 0
  %193 = vmatpush1.bf16.msra.mxu0 %v145
  %194 = vmatprep.mubr.bf16.mxu0 %v58
  %195 = vmatmul.mubr.bf16.gmra.mrb[0].mxu0 %v57
  %v196 = vpop.f32.mrb[0].mxu0
  %v197 = vadd.f32 %v64, %v196
  %v198 = vpop.f32.mrb[0].mxu0
  %v199 = vpop.f32.mrb[0].mxu0
  %v200 = vpop.f32.mrb[0].mxu0
  %201 = vdwg.mxu0
  %v202 = vmax.f32 %v197, 0.0
  %v203 = vld [vmem:[%s3] sm:$0xf]
  %v204 = vld [vmem:[%s3 + $0x4] sm:$0xf]
  %v205 = vld [vmem:[%s3 + $0x8] sm:$0xf]
  %v206 = vld [vmem:[%s3 + $0xc] sm:$0xf]
  %v207 = vld [vmem:[%s3 + $0x10] sm:$0xf]
  %v208 = vld [vmem:[%s3 + $0x14] sm:$0xf]
  %v209 = vld [vmem:[%s3 + $0x18] sm:$0xf]
  %v210 = vld [vmem:[%s3 + $0x1c] sm:$0xf]
  %v211 = vld [vmem:[%s3 + $0x20] sm:$0xf]
  %v212 = vld [vmem:[%s3 + $0x24] sm:$0xf]
  %v213 = vld [vmem:[%s3 + $0x28] sm:$0xf]
  %v214 = vld [vmem:[%s3 + $0x2c] sm:$0xf]
  %v215 = vld [vmem:[%s3 + $0x30] sm:$0xf]
  %v216 = vld [vmem:[%s3 + $0x34] sm:$0xf]
  %v217 = vld [vmem:[%s3 + $0x38] sm:$0xf]
  %v218 = vld [vmem:[%s3 + $0x3c] sm:$0xf]
  %v219 = vpack.c.bf16 %v202, %v202
  %v220 = vld [vmem:[%s4] sm:$0x1]
  %v222 = vlaneseq
  %v223 = vshrl.u32 %v222, 7
  %v224 = vsub.s32 0, %v223
  %v225 = vrot.slane %v220, %v224
  %v243 = vunpack.c.l.b16 %v203
  %v244 = vunpack.c.l.b16 %v204
  %v245 = vunpack.c.l.b16 %v205
  %v246 = vunpack.c.l.b16 %v206
  %v247 = vunpack.c.l.b16 %v207
  %v248 = vunpack.c.l.b16 %v208
  %v249 = vunpack.c.l.b16 %v209
  %v250 = vunpack.c.l.b16 %v210
  %v251 = vunpack.c.l.b16 %v211
  %v252 = vunpack.c.l.b16 %v212
  %v253 = vunpack.c.l.b16 %v213
  %v254 = vunpack.c.l.b16 %v214
  %v255 = vunpack.c.l.b16 %v215
  %v256 = vunpack.c.l.b16 %v216
  %v257 = vunpack.c.l.b16 %v217
  %v258 = vunpack.c.l.b16 %v218
  %v259 = vpack.c.b16 %v244, %v243
  %v260 = vpack.c.b16 %v246, %v245
  %v261 = vpack.c.b16 %v248, %v247
  %v262 = vpack.c.b16 %v250, %v249
  %v263 = vpack.c.b16 %v252, %v251
  %v264 = vpack.c.b16 %v254, %v253
  %v265 = vpack.c.b16 %v256, %v255
  %v266 = vpack.c.b16 %v258, %v257
  %275 = vmatprep.subr.bf16.mxu0 0
  %276 = vmatpush1.bf16.msra.mxu0 %v259
  %277 = vmatprep.subr.bf16.mxu0 0
  %278 = vmatpush1.bf16.msra.mxu0 %v260
  %279 = vmatprep.subr.bf16.mxu0 0
  %280 = vmatpush1.bf16.msra.mxu0 %v261
  %281 = vmatprep.subr.bf16.mxu0 0
  %282 = vmatpush1.bf16.msra.mxu0 %v262
  %283 = vmatprep.subr.bf16.mxu0 0
  %284 = vmatpush1.bf16.msra.mxu0 %v263
  %285 = vmatprep.subr.bf16.mxu0 0
  %286 = vmatpush1.bf16.msra.mxu0 %v264
  %287 = vmatprep.subr.bf16.mxu0 0
  %288 = vmatpush1.bf16.msra.mxu0 %v265
  %289 = vmatprep.subr.bf16.mxu0 0
  %290 = vmatpush1.bf16.msra.mxu0 %v266
  %291 = vmatprep.subr.bf16.mxu0 0
  %292 = vmatpush1.bf16.msra.mxu0 0
  %293 = vmatprep.subr.bf16.mxu0 0
  %294 = vmatpush1.bf16.msra.mxu0 0
  %295 = vmatprep.subr.bf16.mxu0 0
  %296 = vmatpush1.bf16.msra.mxu0 0
  %297 = vmatprep.subr.bf16.mxu0 0
  %298 = vmatpush1.bf16.msra.mxu0 0
  %299 = vmatprep.subr.bf16.mxu0 0
  %300 = vmatpush1.bf16.msra.mxu0 0
  %301 = vmatprep.subr.bf16.mxu0 0
  %302 = vmatpush1.bf16.msra.mxu0 0
  %303 = vmatprep.subr.bf16.mxu0 0
  %304 = vmatpush1.bf16.msra.mxu0 0
  %305 = vmatprep.subr.bf16.mxu0 0
  %306 = vmatpush1.bf16.msra.mxu0 0
  %307 = vmatprep.mubr.bf16.mxu0 0
  %308 = vmatmul.mubr.bf16.gmra.mrb[0].mxu0 %v219
  %v309 = vpop.f32.mrb[0].mxu0
  %v310 = vadd.f32 %v225, %v309
  %v311 = vpop.f32.mrb[0].mxu0
  %v312 = vpop.f32.mrb[0].mxu0
  %v313 = vpop.f32.mrb[0].mxu0
  %314 = vdwg.mxu0
  %vm315 = vcmask 11264
  %v316 = vsel %vm315, %v310, -inf
  %317 = vmax.xlane.f32.xlu0 %v316
  %v318 = vpop.xlane.xlu0 %317
  %v319 = vsub.f32 %v310, %v318
  %v320 = vmul.f32 %v319, 1.442695
  %v321 = vpow.pop %v320
  %v322 = vsel %vm315, %v321, 0.0
  %323 = vadd.xlane.f32.xlu0 %v322
  %v324 = vpop.xlane.xlu0 %323
  %v325 = vlog2.pop %v324
  %v326 = vmul.f32 %v325, 0.6931472
  %v327 = vsub.f32 %v319, %v326
  %328 = vst.msk [vmem:[%s5] sm:$0xf] %vm315, %v327
  // Predicated region
  $region22: #{bert_arch_forward.3} parent=0 // pred_check
    _
  $region23: #{bert_arch_forward.3} parent=0 // pred_check_branch
    %330 = sbr.rel (0) target = $region25
  $region24: #{bert_arch_forward.3} parent=0 // pred_region
    _
  $region25: #{bert_arch_forward.3} parent=0 // pred_fallthru
    _
  // Predicated region
  $region26: #{bert_arch_forward.3} parent=0 // pred_check
    _
  $region27: #{bert_arch_forward.3} parent=0 // pred_check_branch
    %332 = sbr.rel (0) target = $region29
  $region28: #{bert_arch_forward.3} parent=0 // pred_region
    _
  $region29: #{bert_arch_forward.3} parent=0 // pred_fallthru
    _

// kernel: bert_arch_forward.2
$region0: #{bert_arch_forward.2}
  #allocation0 [shape = 'u32[]', space=smem, size = 0x4, offset = 0x4, fixed_abs, tag = 'smem constant byte address 0x4 - core index']
  #allocation1 [shape = 'u32[144,128]{1,0:T(1,128)}', space=vmem, size = 0x12000, scoped, tag = 'internal scratch']
  %s0 = inlined_call_operand.vmem [shape: bf16[8,8,128], index: 0, kind: input, shape index: {}]
  %s1 = inlined_call_operand.vmem [shape: f32[8,1,8], index: 1, kind: input, shape index: {}]
  %s2 = inlined_call_operand.vmem [shape: f32[1,128], index: 2, kind: input, shape index: {}]
  %s3 = inlined_call_operand.vmem [shape: f32[1,128], index: 3, kind: input, shape index: {}]
  %s4 = inlined_call_operand.vmem [shape: bf16[2,128,384], index: 4, kind: input, shape index: {}]
  %s5 = inlined_call_operand.vmem [shape: f32[2,1,384], index: 5, kind: input, shape index: {}]
  %s6 = inlined_call_operand.vmem [shape: bf16[2,128,128], index: 6, kind: input, shape index: {}]
  %s7 = inlined_call_operand.vmem [shape: f32[2,1,128], index: 7, kind: input, shape index: {}]
  %s8 = inlined_call_operand.vmem [shape: f32[2,1,128], index: 8, kind: input, shape index: {}]
  %s9 = inlined_call_operand.vmem [shape: f32[2,1,128], index: 9, kind: input, shape index: {}]
  %s10 = inlined_call_operand.vmem [shape: bf16[2,128,256], index: 10, kind: input, shape index: {}]
  %s11 = inlined_call_operand.vmem [shape: f32[2,1,256], index: 11, kind: input, shape index: {}]
  %s12 = inlined_call_operand.hbm [shape: bf16[2,256,128], index: 12, kind: input, shape index: {}]
  %s13 = inlined_call_operand.vmem [shape: f32[2,1,128], index: 13, kind: input, shape index: {}]
  %s14 = inlined_call_operand.vmem [shape: f32[2,1,128], index: 14, kind: input, shape index: {}]
  %s15 = inlined_call_operand.hbm [shape: f32[2,1,128], index: 15, kind: input, shape index: {}]
  %s16 = inlined_call_operand.hbm [shape: bf16[128,128], index: 16, kind: input, shape index: {}]
  %s17 = inlined_call_operand.hbm [shape: f32[1,128], index: 17, kind: input, shape index: {}]
  %s18 = inlined_call_operand.vmem [shape: f32[8,1,128], index: 18, kind: output, shape index: {}]
  %s19 = sld [smem:[#allocation0]]
  $region121: #{bert_arch_forward.2} parent=0
    _
  %s21 = ssub.s32 1, %s19
  %s22 = scalar_select 0, %s21, %s19
  $region1: #{bert_arch_forward.2} parent=0
    #allocation2 [shape = 'u8[131072]{0}', space=vmem, size = 0x20000, scoped, tag = 'input window, operand 12, single buffered']
    #allocation3 [shape = 's32[2]{0}', space=sflag, size = 0x8, scoped, tag = 'scoped memory for bert_arch_forward.2']
    #allocation4 [shape = 'u8[1024]{0}', space=vmem, size = 0x400, scoped, tag = 'input window, operand 15, single buffered']
    #allocation5 [shape = 's32[1]{0}', space=sflag, size = 0x4, scoped, tag = 'scoped memory for bert_arch_forward.2']
    #allocation6 [shape = 'u8[32768]{0}', space=vmem, size = 0x8000, scoped, tag = 'input window, operand 16, single buffered']
    #allocation7 [shape = 'u8[512]{0}', space=vmem, size = 0x400, scoped, tag = 'input window, operand 17, single buffered']
    #allocation8 [shape = 's32[1]{0}', space=sflag, size = 0x4, scoped, tag = 'scoped memory for bert_arch_forward.2']
    %23 = vsyncpa [#allocation3], 0
    %24 = vsyncpa [#allocation5], 0
    %25 = vsyncpa [#allocation8], 0
    loop: start=0, step=1, limit=4
    $region2: #{bert_arch_forward.2} parent=1 // loop_pre_header
      _
    $region3: #{bert_arch_forward.2} parent=1 // loop_header
      %s27 = sphi 0, %s31
      %p28 = scmp.ge.s32.totalorder %s27, 4
      %s37 = sphi 0, %s39
      %s40 = sphi 0, %s37
      %s41 = sphi 0, %s40
      %s57 = sphi 0, %s41
      %s63 = sphi 0, %s65
      %s66 = sphi 0, %s63
      %s67 = sphi 0, %s66
      %s83 = sphi 0, %s67
      %s87 = sphi 0, %s87
      %s89 = sphi 0, %s87
      %s90 = sphi 0, %s89
      %s104 = sphi 0, %s90
      %s108 = sphi 0, %s108
      %s110 = sphi 0, %s108
      %s111 = sphi 0, %s110
      %s125 = sphi 0, %s111
      %s129 = sphi 0, %s129
      %s131 = sphi 0, %s129
      %s132 = sphi 0, %s131
      %s146 = sphi 0, %s132
      %s150 = sphi 0, %s150
      %s152 = sphi 0, %s150
      %s153 = sphi 0, %s152
      %s167 = sphi 0, %s153
      %s171 = sphi 0, %s171
      %s173 = sphi 0, %s171
      %s174 = sphi 0, %s173
      %s188 = sphi 0, %s174
      %s192 = sphi 0, %s192
      %s194 = sphi 0, %s192
      %s195 = sphi 0, %s194
      %s209 = sphi 0, %s195
      %s213 = sphi 0, %s213
      %s215 = sphi 0, %s213
      %s216 = sphi 0, %s215
      %s230 = sphi 0, %s216
      %s234 = sphi 0, %s234
      %s236 = sphi 0, %s234
      %s237 = sphi 0, %s236
      %s251 = sphi 0, %s237
      %s255 = sphi 0, %s255
      %s257 = sphi 0, %s255
      %s258 = sphi 0, %s257
      %s272 = sphi 0, %s258
      %s276 = sphi 0, %s276
      %s278 = sphi 0, %s276
      %s279 = sphi 0, %s278
      %s293 = sphi 0, %s279
      %s297 = sphi 0, %s297
      %s299 = sphi 0, %s297
      %s300 = sphi 0, %s299
      %s314 = sphi 0, %s300
      %s318 = sphi 0, %s318
      %s320 = sphi 0, %s318
      %s321 = sphi 0, %s320
      %s335 = sphi 0, %s321
      %s339 = sphi 0, %s339
      %s341 = sphi 0, %s339
      %s342 = sphi 0, %s341
      %s356 = sphi 0, %s342
      %s360 = sphi 0, %s360
      %s362 = sphi 0, %s360
      %s363 = sphi 0, %s362
      %s377 = sphi 0, %s363
      %s381 = sphi 0, %s381
      %s383 = sphi 0, %s381
      %s384 = sphi 0, %s383
      %s398 = sphi 0, %s384
      %s402 = sphi 0, %s402
      %s404 = sphi 0, %s402
      %s405 = sphi 0, %s404
      %s419 = sphi 0, %s405
      %s425 = sphi 0, %s427
      %s428 = sphi 0, %s425
      %s429 = sphi 0, %s428
      %s445 = sphi 0, %s429
    $region4: #{bert_arch_forward.2} parent=1 // loop_header_branch
      %30 = sbr.rel (%p28) target = $region8
    $region5: #{bert_arch_forward.2} parent=1 // loop_body
      %s32 = ssub.s32 %s27, 1
      %s33 = ssub.s32 %s27, 2
      %s34 = sadd.s32 %s27, 1
      %s35 = ssub.s32 %s27, %s34
      %p36 = scmp.eq.s32.totalorder %s35, 0
      %s38 = sadd.s32 %s37, 1
      %s39 = scalar_select %p36, %s37, %s38
      %p42 = pneg %p36
      %p43 = scmp.eq.s32.totalorder %s27, 1
      %p44 = por %p42, %p43
      %p45 = scmp.ne.s32.totalorder %s37, %s40
      %p46 = scmp.eq.s32.totalorder %s27, 0
      %p47 = por %p45, %p46
      %p48 = scmp.ne.s32.totalorder %s37, %s40
      %p49 = scmp.eq.s32.totalorder %s32, 1
      %p50 = por %p48, %p49
      %p51 = scmp.ne.s32.totalorder %s40, %s41
      %p52 = scmp.eq.s32.totalorder %s32, 0
      %p53 = por %p51, %p52
      %p54 = scmp.ne.s32.totalorder %s40, %s41
      %p55 = scmp.eq.s32.totalorder %s33, 1
      %p56 = por %p54, %p55
      %p58 = scmp.ne.s32.totalorder %s41, %s57
      %p59 = scmp.eq.s32.totalorder %s33, 0
      %p60 = por %p58, %p59
      %s61 = ssub.s32 %s27, %s34
      %p62 = scmp.eq.s32.totalorder %s61, 0
      %s64 = sadd.s32 %s63, 1
      %s65 = scalar_select %p62, %s63, %s64
      %p68 = pneg %p62
      %p69 = scmp.eq.s32.totalorder %s27, 1
      %p70 = por %p68, %p69
      %p71 = scmp.ne.s32.totalorder %s63, %s66
      %p72 = scmp.eq.s32.totalorder %s27, 0
      %p73 = por %p71, %p72
      %p74 = scmp.ne.s32.totalorder %s63, %s66
      %p75 = scmp.eq.s32.totalorder %s32, 1
      %p76 = por %p74, %p75
      %p77 = scmp.ne.s32.totalorder %s66, %s67
      %p78 = scmp.eq.s32.totalorder %s32, 0
      %p79 = por %p77, %p78
      %p80 = scmp.ne.s32.totalorder %s66, %s67
      %p81 = scmp.eq.s32.totalorder %s33, 1
      %p82 = por %p80, %p81
      %p84 = scmp.ne.s32.totalorder %s67, %s83
      %p85 = scmp.eq.s32.totalorder %s33, 0
      %p86 = por %p84, %p85
      %s88 = sadd.s32 %s87, 1
      %p91 = scmp.eq.s32.totalorder %s27, 1
      %p92 = scmp.ne.s32.totalorder %s87, %s89
      %p93 = scmp.eq.s32.totalorder %s27, 0
      %p94 = por %p92, %p93
      %p95 = scmp.ne.s32.totalorder %s87, %s89
      %p96 = scmp.eq.s32.totalorder %s32, 1
      %p97 = por %p95, %p96
      %p98 = scmp.ne.s32.totalorder %s89, %s90
      %p99 = scmp.eq.s32.totalorder %s32, 0
      %p100 = por %p98, %p99
      %p101 = scmp.ne.s32.totalorder %s89, %s90
      %p102 = scmp.eq.s32.totalorder %s33, 1
      %p103 = por %p101, %p102
      %p105 = scmp.ne.s32.totalorder %s90, %s104
      %p106 = scmp.eq.s32.totalorder %s33, 0
      %p107 = por %p105, %p106
      %s109 = sadd.s32 %s108, 1
      %p112 = scmp.eq.s32.totalorder %s27, 1
      %p113 = scmp.ne.s32.totalorder %s108, %s110
      %p114 = scmp.eq.s32.totalorder %s27, 0
      %p115 = por %p113, %p114
      %p116 = scmp.ne.s32.totalorder %s108, %s110
      %p117 = scmp.eq.s32.totalorder %s32, 1
      %p118 = por %p116, %p117
      %p119 = scmp.ne.s32.totalorder %s110, %s111
      %p120 = scmp.eq.s32.totalorder %s32, 0
      %p121 = por %p119, %p120
      %p122 = scmp.ne.s32.totalorder %s110, %s111
      %p123 = scmp.eq.s32.totalorder %s33, 1
      %p124 = por %p122, %p123
      %p126 = scmp.ne.s32.totalorder %s111, %s125
      %p127 = scmp.eq.s32.totalorder %s33, 0
      %p128 = por %p126, %p127
      %s130 = sadd.s32 %s129, 1
      %p133 = scmp.eq.s32.totalorder %s27, 1
      %p134 = scmp.ne.s32.totalorder %s129, %s131
      %p135 = scmp.eq.s32.totalorder %s27, 0
      %p136 = por %p134, %p135
      %p137 = scmp.ne.s32.totalorder %s129, %s131
      %p138 = scmp.eq.s32.totalorder %s32, 1
      %p139 = por %p137, %p138
      %p140 = scmp.ne.s32.totalorder %s131, %s132
      %p141 = scmp.eq.s32.totalorder %s32, 0
      %p142 = por %p140, %p141
      %p143 = scmp.ne.s32.totalorder %s131, %s132
      %p144 = scmp.eq.s32.totalorder %s33, 1
      %p145 = por %p143, %p144
      %p147 = scmp.ne.s32.totalorder %s132, %s146
      %p148 = scmp.eq.s32.totalorder %s33, 0
      %p149 = por %p147, %p148
      %s151 = sadd.s32 %s150, 1
      %p154 = scmp.eq.s32.totalorder %s27, 1
      %p155 = scmp.ne.s32.totalorder %s150, %s152
      %p156 = scmp.eq.s32.totalorder %s27, 0
      %p157 = por %p155, %p156
      %p158 = scmp.ne.s32.totalorder %s150, %s152
      %p159 = scmp.eq.s32.totalorder %s32, 1
      %p160 = por %p158, %p159
      %p161 = scmp.ne.s32.totalorder %s152, %s153
      %p162 = scmp.eq.s32.totalorder %s32, 0
      %p163 = por %p161, %p162
      %p164 = scmp.ne.s32.totalorder %s152, %s153
      %p165 = scmp.eq.s32.totalorder %s33, 1
      %p166 = por %p164, %p165
      %p168 = scmp.ne.s32.totalorder %s153, %s167
      %p169 = scmp.eq.s32.totalorder %s33, 0
      %p170 = por %p168, %p169
      %s172 = sadd.s32 %s171, 1
      %p175 = scmp.eq.s32.totalorder %s27, 1
      %p176 = scmp.ne.s32.totalorder %s171, %s173
      %p177 = scmp.eq.s32.totalorder %s27, 0
      %p178 = por %p176, %p177
      %p179 = scmp.ne.s32.totalorder %s171, %s173
      %p180 = scmp.eq.s32.totalorder %s32, 1
      %p181 = por %p179, %p180
      %p182 = scmp.ne.s32.totalorder %s173, %s174
      %p183 = scmp.eq.s32.totalorder %s32, 0
      %p184 = por %p182, %p183
      %p185 = scmp.ne.s32.totalorder %s173, %s174
      %p186 = scmp.eq.s32.totalorder %s33, 1
      %p187 = por %p185, %p186
      %p189 = scmp.ne.s32.totalorder %s174, %s188
      %p190 = scmp.eq.s32.totalorder %s33, 0
      %p191 = por %p189, %p190
      %s193 = sadd.s32 %s192, 1
      %p196 = scmp.eq.s32.totalorder %s27, 1
      %p197 = scmp.ne.s32.totalorder %s192, %s194
      %p198 = scmp.eq.s32.totalorder %s27, 0
      %p199 = por %p197, %p198
      %p200 = scmp.ne.s32.totalorder %s192, %s194
      %p201 = scmp.eq.s32.totalorder %s32, 1
      %p202 = por %p200, %p201
      %p203 = scmp.ne.s32.totalorder %s194, %s195
      %p204 = scmp.eq.s32.totalorder %s32, 0
      %p205 = por %p203, %p204
      %p206 = scmp.ne.s32.totalorder %s194, %s195
      %p207 = scmp.eq.s32.totalorder %s33, 1
      %p208 = por %p206, %p207
      %p210 = scmp.ne.s32.totalorder %s195, %s209
      %p211 = scmp.eq.s32.totalorder %s33, 0
      %p212 = por %p210, %p211
      %s214 = sadd.s32 %s213, 1
      %p217 = scmp.eq.s32.totalorder %s27, 1
      %p218 = scmp.ne.s32.totalorder %s213, %s215
      %p219 = scmp.eq.s32.totalorder %s27, 0
      %p220 = por %p218, %p219
      %p221 = scmp.ne.s32.totalorder %s213, %s215
      %p222 = scmp.eq.s32.totalorder %s32, 1
      %p223 = por %p221, %p222
      %p224 = scmp.ne.s32.totalorder %s215, %s216
      %p225 = scmp.eq.s32.totalorder %s32, 0
      %p226 = por %p224, %p225
      %p227 = scmp.ne.s32.totalorder %s215, %s216
      %p228 = scmp.eq.s32.totalorder %s33, 1
      %p229 = por %p227, %p228
      %p231 = scmp.ne.s32.totalorder %s216, %s230
      %p232 = scmp.eq.s32.totalorder %s33, 0
      %p233 = por %p231, %p232
      %s235 = sadd.s32 %s234, 1
      %p238 = scmp.eq.s32.totalorder %s27, 1
      %p239 = scmp.ne.s32.totalorder %s234, %s236
      %p240 = scmp.eq.s32.totalorder %s27, 0
      %p241 = por %p239, %p240
      %p242 = scmp.ne.s32.totalorder %s234, %s236
      %p243 = scmp.eq.s32.totalorder %s32, 1
      %p244 = por %p242, %p243
      %p245 = scmp.ne.s32.totalorder %s236, %s237
      %p246 = scmp.eq.s32.totalorder %s32, 0
      %p247 = por %p245, %p246
      %p248 = scmp.ne.s32.totalorder %s236, %s237
      %p249 = scmp.eq.s32.totalorder %s33, 1
      %p250 = por %p248, %p249
      %p252 = scmp.ne.s32.totalorder %s237, %s251
      %p253 = scmp.eq.s32.totalorder %s33, 0
      %p254 = por %p252, %p253
      %s256 = sadd.s32 %s255, 1
      %p259 = scmp.eq.s32.totalorder %s27, 1
      %p260 = scmp.ne.s32.totalorder %s255, %s257
      %p261 = scmp.eq.s32.totalorder %s27, 0
      %p262 = por %p260, %p261
      %p263 = scmp.ne.s32.totalorder %s255, %s257
      %p264 = scmp.eq.s32.totalorder %s32, 1
      %p265 = por %p263, %p264
      %p266 = scmp.ne.s32.totalorder %s257, %s258
      %p267 = scmp.eq.s32.totalorder %s32, 0
      %p268 = por %p266, %p267
      %p269 = scmp.ne.s32.totalorder %s257, %s258
      %p270 = scmp.eq.s32.totalorder %s33, 1
      %p271 = por %p269, %p270
      %p273 = scmp.ne.s32.totalorder %s258, %s272
      %p274 = scmp.eq.s32.totalorder %s33, 0
      %p275 = por %p273, %p274
      %s277 = sadd.s32 %s276, 1
      %p280 = scmp.eq.s32.totalorder %s27, 1
      %p281 = scmp.ne.s32.totalorder %s276, %s278
      %p282 = scmp.eq.s32.totalorder %s27, 0
      %p283 = por %p281, %p282
      %p284 = scmp.ne.s32.totalorder %s276, %s278
      %p285 = scmp.eq.s32.totalorder %s32, 1
      %p286 = por %p284, %p285
      %p287 = scmp.ne.s32.totalorder %s278, %s279
      %p288 = scmp.eq.s32.totalorder %s32, 0
      %p289 = por %p287, %p288
      %p290 = scmp.ne.s32.totalorder %s278, %s279
      %p291 = scmp.eq.s32.totalorder %s33, 1
      %p292 = por %p290, %p291
      %p294 = scmp.ne.s32.totalorder %s279, %s293
      %p295 = scmp.eq.s32.totalorder %s33, 0
      %p296 = por %p294, %p295
      %s298 = sadd.s32 %s297, 1
      %p301 = scmp.eq.s32.totalorder %s27, 1
      %p302 = scmp.ne.s32.totalorder %s297, %s299
      %p303 = scmp.eq.s32.totalorder %s27, 0
      %p304 = por %p302, %p303
      %p305 = scmp.ne.s32.totalorder %s297, %s299
      %p306 = scmp.eq.s32.totalorder %s32, 1
      %p307 = por %p305, %p306
      %p308 = scmp.ne.s32.totalorder %s299, %s300
      %p309 = scmp.eq.s32.totalorder %s32, 0
      %p310 = por %p308, %p309
      %p311 = scmp.ne.s32.totalorder %s299, %s300
      %p312 = scmp.eq.s32.totalorder %s33, 1
      %p313 = por %p311, %p312
      %p315 = scmp.ne.s32.totalorder %s300, %s314
      %p316 = scmp.eq.s32.totalorder %s33, 0
      %p317 = por %p315, %p316
      %s319 = sadd.s32 %s318, 1
      %p322 = scmp.eq.s32.totalorder %s27, 1
      %p323 = scmp.ne.s32.totalorder %s318, %s320
      %p324 = scmp.eq.s32.totalorder %s27, 0
      %p325 = por %p323, %p324
      %p326 = scmp.ne.s32.totalorder %s318, %s320
      %p327 = scmp.eq.s32.totalorder %s32, 1
      %p328 = por %p326, %p327
      %p329 = scmp.ne.s32.totalorder %s320, %s321
      %p330 = scmp.eq.s32.totalorder %s32, 0
      %p331 = por %p329, %p330
      %p332 = scmp.ne.s32.totalorder %s320, %s321
      %p333 = scmp.eq.s32.totalorder %s33, 1
      %p334 = por %p332, %p333
      %p336 = scmp.ne.s32.totalorder %s321, %s335
      %p337 = scmp.eq.s32.totalorder %s33, 0
      %p338 = por %p336, %p337
      %s340 = sadd.s32 %s339, 1
      %p343 = scmp.eq.s32.totalorder %s27, 1
      %p344 = scmp.ne.s32.totalorder %s339, %s341
      %p345 = scmp.eq.s32.totalorder %s27, 0
      %p346 = por %p344, %p345
      %p347 = scmp.ne.s32.totalorder %s339, %s341
      %p348 = scmp.eq.s32.totalorder %s32, 1
      %p349 = por %p347, %p348
      %p350 = scmp.ne.s32.totalorder %s341, %s342
      %p351 = scmp.eq.s32.totalorder %s32, 0
      %p352 = por %p350, %p351
      %p353 = scmp.ne.s32.totalorder %s341, %s342
      %p354 = scmp.eq.s32.totalorder %s33, 1
      %p355 = por %p353, %p354
      %p357 = scmp.ne.s32.totalorder %s342, %s356
      %p358 = scmp.eq.s32.totalorder %s33, 0
      %p359 = por %p357, %p358
      %s361 = sadd.s32 %s360, 1
      %p364 = scmp.eq.s32.totalorder %s27, 1
      %p365 = scmp.ne.s32.totalorder %s360, %s362
      %p366 = scmp.eq.s32.totalorder %s27, 0
      %p367 = por %p365, %p366
      %p368 = scmp.ne.s32.totalorder %s360, %s362
      %p369 = scmp.eq.s32.totalorder %s32, 1
      %p370 = por %p368, %p369
      %p371 = scmp.ne.s32.totalorder %s362, %s363
      %p372 = scmp.eq.s32.totalorder %s32, 0
      %p373 = por %p371, %p372
      %p374 = scmp.ne.s32.totalorder %s362, %s363
      %p375 = scmp.eq.s32.totalorder %s33, 1
      %p376 = por %p374, %p375
      %p378 = scmp.ne.s32.totalorder %s363, %s377
      %p379 = scmp.eq.s32.totalorder %s33, 0
      %p380 = por %p378, %p379
      %s382 = sadd.s32 %s381, 1
      %p385 = scmp.eq.s32.totalorder %s27, 1
      %p386 = scmp.ne.s32.totalorder %s381, %s383
      %p387 = scmp.eq.s32.totalorder %s27, 0
      %p388 = por %p386, %p387
      %p389 = scmp.ne.s32.totalorder %s381, %s383
      %p390 = scmp.eq.s32.totalorder %s32, 1
      %p391 = por %p389, %p390
      %p392 = scmp.ne.s32.totalorder %s383, %s384
      %p393 = scmp.eq.s32.totalorder %s32, 0
      %p394 = por %p392, %p393
      %p395 = scmp.ne.s32.totalorder %s383, %s384
      %p396 = scmp.eq.s32.totalorder %s33, 1
      %p397 = por %p395, %p396
      %p399 = scmp.ne.s32.totalorder %s384, %s398
      %p400 = scmp.eq.s32.totalorder %s33, 0
      %p401 = por %p399, %p400
      %s403 = sadd.s32 %s402, 1
      %p406 = scmp.eq.s32.totalorder %s27, 1
      %p407 = scmp.ne.s32.totalorder %s402, %s404
      %p408 = scmp.eq.s32.totalorder %s27, 0
      %p409 = por %p407, %p408
      %p410 = scmp.ne.s32.totalorder %s402, %s404
      %p411 = scmp.eq.s32.totalorder %s32, 1
      %p412 = por %p410, %p411
      %p413 = scmp.ne.s32.totalorder %s404, %s405
      %p414 = scmp.eq.s32.totalorder %s32, 0
      %p415 = por %p413, %p414
      %p416 = scmp.ne.s32.totalorder %s404, %s405
      %p417 = scmp.eq.s32.totalorder %s33, 1
      %p418 = por %p416, %p417
      %p420 = scmp.ne.s32.totalorder %s405, %s419
      %p421 = scmp.eq.s32.totalorder %s33, 0
      %p422 = por %p420, %p421
      %s423 = ssub.s32 %s27, %s34
      %p424 = scmp.eq.s32.totalorder %s423, 0
      %s426 = sadd.s32 %s425, 1
      %s427 = scalar_select %p424, %s425, %s426
      %p430 = pneg %p424
      %p431 = scmp.eq.s32.totalorder %s27, 1
      %p432 = por %p430, %p431
      %p433 = scmp.ne.s32.totalorder %s425, %s428
      %p434 = scmp.eq.s32.totalorder %s27, 0
      %p435 = por %p433, %p434
      %p436 = scmp.ne.s32.totalorder %s425, %s428
      %p437 = scmp.eq.s32.totalorder %s32, 1
      %p438 = por %p436, %p437
      %p439 = scmp.ne.s32.totalorder %s428, %s429
      %p440 = scmp.eq.s32.totalorder %s32, 0
      %p441 = por %p439, %p440
      %p442 = scmp.ne.s32.totalorder %s428, %s429
      %p443 = scmp.eq.s32.totalorder %s33, 1
      %p444 = por %p442, %p443
      %p446 = scmp.ne.s32.totalorder %s429, %s445
      %p447 = scmp.eq.s32.totalorder %s33, 0
      %p448 = por %p446, %p447
      %p449 = scmp.le.s32.totalorder 1, %s27
      %p450 = scmp.lt.s32.totalorder %s27, 3
      %p451 = pnand %p449, %p450
      %p452 = pneg %p451
      // Predicated region
      $region9: #{bert_arch_forward.2} parent=5 // pred_check
        _
      $region10: #{bert_arch_forward.2} parent=5 // pred_check_branch
        %454 = sbr.rel (%p451) target = $region12
      $region11: #{bert_arch_forward.2} parent=5 // pred_region
        %s455 = ssub.s32 %s27, 1
        // Predicated region
        $region13: #{bert_arch_forward.2} parent=11 // pred_check
          %p456 = pneg %p100
        $region14: #{bert_arch_forward.2} parent=11 // pred_check_branch
          %458 = sbr.rel (%p456) target = $region16
        $region15: #{bert_arch_forward.2} parent=11 // pred_region
          _
        $region16: #{bert_arch_forward.2} parent=11 // pred_fallthru
          _
        // Predicated region
        $region17: #{bert_arch_forward.2} parent=11 // pred_check
          %p459 = pneg %p121
        $region18: #{bert_arch_forward.2} parent=11 // pred_check_branch
          %461 = sbr.rel (%p459) target = $region20
        $region19: #{bert_arch_forward.2} parent=11 // pred_region
          _
        $region20: #{bert_arch_forward.2} parent=11 // pred_fallthru
          _
        // Predicated region
        $region21: #{bert_arch_forward.2} parent=11 // pred_check
          %p462 = pneg %p142
        $region22: #{bert_arch_forward.2} parent=11 // pred_check_branch
          %464 = sbr.rel (%p462) target = $region24
        $region23: #{bert_arch_forward.2} parent=11 // pred_region
          _
        $region24: #{bert_arch_forward.2} parent=11 // pred_fallthru
          _
        // Predicated region
        $region25: #{bert_arch_forward.2} parent=11 // pred_check
          %p465 = pneg %p163
        $region26: #{bert_arch_forward.2} parent=11 // pred_check_branch
          %467 = sbr.rel (%p465) target = $region28
        $region27: #{bert_arch_forward.2} parent=11 // pred_region
          _
        $region28: #{bert_arch_forward.2} parent=11 // pred_fallthru
          _
        // Predicated region
        $region29: #{bert_arch_forward.2} parent=11 // pred_check
          %p468 = pneg %p184
        $region30: #{bert_arch_forward.2} parent=11 // pred_check_branch
          %470 = sbr.rel (%p468) target = $region32
        $region31: #{bert_arch_forward.2} parent=11 // pred_region
          _
        $region32: #{bert_arch_forward.2} parent=11 // pred_fallthru
          _
        // Predicated region
        $region33: #{bert_arch_forward.2} parent=11 // pred_check
          %p471 = pneg %p205
        $region34: #{bert_arch_forward.2} parent=11 // pred_check_branch
          %473 = sbr.rel (%p471) target = $region36
        $region35: #{bert_arch_forward.2} parent=11 // pred_region
          _
        $region36: #{bert_arch_forward.2} parent=11 // pred_fallthru
          _
        // Predicated region
        $region37: #{bert_arch_forward.2} parent=11 // pred_check
          %p474 = pneg %p226
        $region38: #{bert_arch_forward.2} parent=11 // pred_check_branch
          %476 = sbr.rel (%p474) target = $region40
        $region39: #{bert_arch_forward.2} parent=11 // pred_region
          _
        $region40: #{bert_arch_forward.2} parent=11 // pred_fallthru
          _
        // Predicated region
        $region41: #{bert_arch_forward.2} parent=11 // pred_check
          %p477 = pneg %p247
        $region42: #{bert_arch_forward.2} parent=11 // pred_check_branch
          %479 = sbr.rel (%p477) target = $region44
        $region43: #{bert_arch_forward.2} parent=11 // pred_region
          _
        $region44: #{bert_arch_forward.2} parent=11 // pred_fallthru
          _
        // Predicated region
        $region45: #{bert_arch_forward.2} parent=11 // pred_check
          %p480 = pneg %p268
        $region46: #{bert_arch_forward.2} parent=11 // pred_check_branch
          %482 = sbr.rel (%p480) target = $region48
        $region47: #{bert_arch_forward.2} parent=11 // pred_region
          _
        $region48: #{bert_arch_forward.2} parent=11 // pred_fallthru
          _
        // Predicated region
        $region49: #{bert_arch_forward.2} parent=11 // pred_check
          %p483 = pneg %p289
        $region50: #{bert_arch_forward.2} parent=11 // pred_check_branch
          %485 = sbr.rel (%p483) target = $region52
        $region51: #{bert_arch_forward.2} parent=11 // pred_region
          _
        $region52: #{bert_arch_forward.2} parent=11 // pred_fallthru
          _
        // Predicated region
        $region53: #{bert_arch_forward.2} parent=11 // pred_check
          %p486 = pneg %p310
        $region54: #{bert_arch_forward.2} parent=11 // pred_check_branch
          %488 = sbr.rel (%p486) target = $region56
        $region55: #{bert_arch_forward.2} parent=11 // pred_region
          %s490 = ssub.s32 4096, 4096
          %491 = vsyncadd [#allocation3], %s490
          %s492 = sshll.u32 [#allocation2], 4
          %s493 = int_to_ptr.vmem [resolvable:$true] %s492
          %498 = dma.hbm_to_vmem [thread:$0]  %s12, 4096, %s493, [#allocation3], 64, 64, 4
        $region56: #{bert_arch_forward.2} parent=11 // pred_fallthru
          _
        // Predicated region
        $region57: #{bert_arch_forward.2} parent=11 // pred_check
          %p499 = pneg %p331
        $region58: #{bert_arch_forward.2} parent=11 // pred_check_branch
          %501 = sbr.rel (%p499) target = $region60
        $region59: #{bert_arch_forward.2} parent=11 // pred_region
          _
        $region60: #{bert_arch_forward.2} parent=11 // pred_fallthru
          _
        // Predicated region
        $region61: #{bert_arch_forward.2} parent=11 // pred_check
          %p502 = pneg %p352
        $region62: #{bert_arch_forward.2} parent=11 // pred_check_branch
          %504 = sbr.rel (%p502) target = $region64
        $region63: #{bert_arch_forward.2} parent=11 // pred_region
          _
        $region64: #{bert_arch_forward.2} parent=11 // pred_fallthru
          _
        // Predicated region
        $region65: #{bert_arch_forward.2} parent=11 // pred_check
          %p505 = pneg %p373
        $region66: #{bert_arch_forward.2} parent=11 // pred_check_branch
          %507 = sbr.rel (%p505) target = $region68
        $region67: #{bert_arch_forward.2} parent=11 // pred_region
          %s509 = ssub.s32 32, 32
          %510 = vsyncadd [#allocation5], %s509
          %s511 = sshll.u32 [#allocation4], 4
          %s512 = int_to_ptr.vmem [resolvable:$true] %s511
          %517 = dma.hbm_to_vmem [thread:$0]  %s15, 32, %s512, [#allocation5], 16, 16, 1
        $region68: #{bert_arch_forward.2} parent=11 // pred_fallthru
          _
        // Predicated region
        $region69: #{bert_arch_forward.2} parent=11 // pred_check
          %p518 = pneg %p394
        $region70: #{bert_arch_forward.2} parent=11 // pred_check_branch
          %520 = sbr.rel (%p518) target = $region72
        $region71: #{bert_arch_forward.2} parent=11 // pred_region
          %s522 = ssub.s32 1024, 1024
          %523 = vsyncadd [#allocation5], %s522
          %s524 = sshll.u32 [#allocation6], 4
          %s525 = int_to_ptr.vmem [resolvable:$true] %s524
          %530 = dma.hbm_to_vmem [thread:$0]  %s16, 1024, %s525, [#allocation5], 64, 64, 4
        $region72: #{bert_arch_forward.2} parent=11 // pred_fallthru
          _
        // Predicated region
        $region73: #{bert_arch_forward.2} parent=11 // pred_check
          %p531 = pneg %p415
        $region74: #{bert_arch_forward.2} parent=11 // pred_check_branch
          %533 = sbr.rel (%p531) target = $region76
        $region75: #{bert_arch_forward.2} parent=11 // pred_region
          %s535 = ssub.s32 16, 16
          %536 = vsyncadd [#allocation8], %s535
          %s538 = sshll.u32 [#allocation7], 4
          %s539 = int_to_ptr.vmem [resolvable:$true] %s538
          %541 = dma.hbm_to_vmem [thread:$0]  %s17, 16, %s539, [#allocation8]
        $region76: #{bert_arch_forward.2} parent=11 // pred_fallthru
          _
      $region12: #{bert_arch_forward.2} parent=5 // pred_fallthru
        _
      %p542 = scmp.lt.s32.totalorder %s27, 2
      // Predicated region
      $region77: #{bert_arch_forward.2} parent=5 // pred_check
        %p543 = pneg %p542
      $region78: #{bert_arch_forward.2} parent=5 // pred_check_branch
        %545 = sbr.rel (%p543) target = $region80
      $region79: #{bert_arch_forward.2} parent=5 // pred_region
        // Predicated region
        $region81: #{bert_arch_forward.2} parent=79 // pred_check
          %p546 = pneg %p47
        $region82: #{bert_arch_forward.2} parent=79 // pred_check_branch
          %548 = sbr.rel (%p546) target = $region84
        $region83: #{bert_arch_forward.2} parent=79 // pred_region
          %s549 = smul.u32 4, %s27
          %p550 = scmp.lt.s32.totalorder %s549, 7
          %s551 = scalar_select %p550, %s549, 7
          %s552 = smul.addr %s551, 4
          %s553 = scalar_lea.vmem %s0, %s552
          %s554 = smul.u32 4, %s27
        $region84: #{bert_arch_forward.2} parent=79 // pred_fallthru
          _
        // Predicated region
        $region85: #{bert_arch_forward.2} parent=79 // pred_check
          %p555 = pneg %p73
        $region86: #{bert_arch_forward.2} parent=79 // pred_check_branch
          %557 = sbr.rel (%p555) target = $region88
        $region87: #{bert_arch_forward.2} parent=79 // pred_region
          %s558 = smul.u32 4, %s27
          %p559 = scmp.lt.s32.totalorder %s558, 7
          %s560 = scalar_select %p559, %s558, 7
          %s561 = scalar_lea.vmem %s1, %s560
          %s562 = smul.u32 4, %s27
        $region88: #{bert_arch_forward.2} parent=79 // pred_fallthru
          _
      $region80: #{bert_arch_forward.2} parent=5 // pred_fallthru
        _
      %p563 = scmp.le.s32.totalorder 1, %s27
      %p564 = scmp.lt.s32.totalorder %s27, 3
      %p565 = pnand %p563, %p564
      %p566 = pneg %p565
      // Predicated region
      $region89: #{bert_arch_forward.2} parent=5 // pred_check
        _
      $region90: #{bert_arch_forward.2} parent=5 // pred_check_branch
        %568 = sbr.rel (%p565) target = $region92
      $region91: #{bert_arch_forward.2} parent=5 // pred_region
        %s569 = ssub.s32 %s27, 1
        // Predicated region
        $region93: #{bert_arch_forward.2} parent=91 // pred_check
          %p570 = pneg %p310
        $region94: #{bert_arch_forward.2} parent=91 // pred_check_branch
          %572 = sbr.rel (%p570) target = $region96
        $region95: #{bert_arch_forward.2} parent=91 // pred_region
          %573 = dma.done [#allocation3], 4096
        $region96: #{bert_arch_forward.2} parent=91 // pred_fallthru
          _
        // Predicated region
        $region97: #{bert_arch_forward.2} parent=91 // pred_check
          %p574 = pneg %p373
        $region98: #{bert_arch_forward.2} parent=91 // pred_check_branch
          %576 = sbr.rel (%p574) target = $region100
        $region99: #{bert_arch_forward.2} parent=91 // pred_region
          %577 = dma.done [#allocation5], 32
        $region100: #{bert_arch_forward.2} parent=91 // pred_fallthru
          _
        // Predicated region
        $region101: #{bert_arch_forward.2} parent=91 // pred_check
          %p578 = pneg %p394
        $region102: #{bert_arch_forward.2} parent=91 // pred_check_branch
          %580 = sbr.rel (%p578) target = $region104
        $region103: #{bert_arch_forward.2} parent=91 // pred_region
          %581 = dma.done [#allocation5], 1024
        $region104: #{bert_arch_forward.2} parent=91 // pred_fallthru
          _
        // Predicated region
        $region105: #{bert_arch_forward.2} parent=91 // pred_check
          %p582 = pneg %p415
        $region106: #{bert_arch_forward.2} parent=91 // pred_check_branch
          %584 = sbr.rel (%p582) target = $region108
        $region107: #{bert_arch_forward.2} parent=91 // pred_region
          %585 = dma.done [#allocation8], 16
        $region108: #{bert_arch_forward.2} parent=91 // pred_fallthru
          _
        %s586 = smul.u32 4, %s32
        %p587 = scmp.lt.s32.totalorder %s586, 7
        %s588 = scalar_select %p587, %s586, 7
        %s589 = smul.addr %s588, 4
        %s590 = scalar_lea.vmem %s0, %s589
        %p591 = pneg %p53
        %p592 = pneg %p50
        %s593 = smul.u32 4, %s32
        %p594 = scmp.lt.s32.totalorder %s593, 7
        %s595 = scalar_select %p594, %s593, 7
        %s596 = scalar_lea.vmem %s1, %s595
        %p597 = pneg %p79
        %p598 = pneg %p76
        %p599 = pneg %p100
        %p600 = pneg %p97
        %p601 = pneg %p121
        %p602 = pneg %p118
        %p603 = pneg %p142
        %p604 = pneg %p139
        %p605 = pneg %p163
        %p606 = pneg %p160
        %p607 = pneg %p184
        %p608 = pneg %p181
        %p609 = pneg %p205
        %p610 = pneg %p202
        %p611 = pneg %p226
        %p612 = pneg %p223
        %p613 = pneg %p247
        %p614 = pneg %p244
        %p615 = pneg %p268
        %p616 = pneg %p265
        %p617 = pneg %p289
        %p618 = pneg %p286
        %p619 = pneg %p310
        %p620 = pneg %p307
        %p621 = pneg %p331
        %p622 = pneg %p328
        %p623 = pneg %p352
        %p624 = pneg %p349
        %p625 = pneg %p373
        %p626 = pneg %p370
        %p627 = pneg %p394
        %p628 = pneg %p391
        %p629 = pneg %p415
        %p630 = pneg %p412
        %p631 = pneg %p441
        %p632 = pneg %p438
        %s633 = smul.u32 4, %s32
        %p634 = scmp.lt.s32.totalorder %s633, 7
        %s635 = scalar_select %p634, %s633, 7
        %s636 = scalar_lea.vmem %s18, %s635
        %s637 = smul.u32 4, %s32
        %p638 = scmp.lt.s32.totalorder %s637, 7
        %s639 = scalar_select %p638, %s637, 7
        %s640 = smul.addr %s639, 4
        %s641 = scalar_lea.vmem %s0, %s640
        %s642 = smul.u32 4, %s32
        %s643 = smul.u32 4, %s32
        %p644 = scmp.lt.s32.totalorder %s643, 7
        %s645 = scalar_select %p644, %s643, 7
        %s646 = scalar_lea.vmem %s1, %s645
        %s647 = smul.u32 4, %s32
        %s648 = smul.u32 4, %s32
        %p649 = scmp.lt.s32.totalorder %s648, 7
        %s650 = scalar_select %p649, %s648, 7
        %s651 = scalar_lea.vmem %s18, %s650
        %s652 = smul.u32 4, %s32
        %v654 = vld [vmem:[%s641] sm:$0xf]
        %v655 = vld [vmem:[%s641 + $0x4] sm:$0xf]
        %v656 = vld [vmem:[%s641 + $0x8] sm:$0xf]
        %v657 = vld [vmem:[%s641 + $0xc] sm:$0xf]
        %v658 = vunpack.c.l.bf16 %v654
        %v659 = vunpack.c.l.bf16 %v655
        %v660 = vunpack.c.l.bf16 %v656
        %v661 = vunpack.c.l.bf16 %v657
        %v662 = vld [vmem:[%s646] sm:$0x1]
        %v663 = vld [vmem:[%s646 + $0x1] sm:$0x1]
        %v664 = vld [vmem:[%s646 + $0x2] sm:$0x1]
        %v665 = vld [vmem:[%s646 + $0x3] sm:$0x1]
        %v666 = vsub.f32 %v662, 1.0
        %v667 = vsub.f32 %v663, 1.0
        %v668 = vsub.f32 %v664, 1.0
        %v669 = vsub.f32 %v665, 1.0
        %v670 = vmul.f32 %v666, 1e+09
        %v671 = vmul.f32 %v667, 1e+09
        %v672 = vmul.f32 %v668, 1e+09
        %v673 = vmul.f32 %v669, 1e+09
        %v674 = vld [vmem:[%s2] sm:$0x1]
        %v675 = vld [vmem:[%s3] sm:$0x1]
        %676 = vadd.xlane.f32.xlu0 %v658
        %v677 = vpop.xlane.xlu0 %676
        %678 = vadd.xlane.f32.xlu0 %v659
        %v679 = vpop.xlane.xlu0 %678
        %680 = vadd.xlane.f32.xlu0 %v660
        %v681 = vpop.xlane.xlu0 %680
        %682 = vadd.xlane.f32.xlu0 %v661
        %v683 = vpop.xlane.xlu0 %682
        %v684 = vrcp.pop 128.0
        %v685 = vmul.f32 %v677, %v684
        %v686 = vmul.f32 %v679, %v684
        %v687 = vmul.f32 %v681, %v684
        %v688 = vmul.f32 %v683, %v684
        %v689 = vsub.f32 %v658, %v685
        %v690 = vsub.f32 %v659, %v686
        %v691 = vsub.f32 %v660, %v687
        %v692 = vsub.f32 %v661, %v688
        %v693 = vmul.f32 %v689, %v689
        %v694 = vmul.f32 %v690, %v690
        %v695 = vmul.f32 %v691, %v691
        %v696 = vmul.f32 %v692, %v692
        %697 = vadd.xlane.f32.xlu0 %v693
        %v698 = vpop.xlane.xlu0 %697
        %699 = vadd.xlane.f32.xlu0 %v694
        %v700 = vpop.xlane.xlu0 %699
        %701 = vadd.xlane.f32.xlu0 %v695
        %v702 = vpop.xlane.xlu0 %701
        %703 = vadd.xlane.f32.xlu0 %v696
        %v704 = vpop.xlane.xlu0 %703
        %v705 = vmul.f32 %v698, %v684
        %v706 = vmul.f32 %v700, %v684
        %v707 = vmul.f32 %v702, %v684
        %v708 = vmul.f32 %v704, %v684
        %v709 = vadd.f32 %v705, 1e-12
        %v710 = vadd.f32 %v706, 1e-12
        %v711 = vadd.f32 %v707, 1e-12
        %v712 = vadd.f32 %v708, 1e-12
        %v713 = vrsqrt.pop %v709
        %v714 = vrsqrt.pop %v710
        %v715 = vrsqrt.pop %v711
        %v716 = vrsqrt.pop %v712
        %v717 = vmul.f32 %v689, %v713
        %v718 = vmul.f32 %v690, %v714
        %v719 = vmul.f32 %v691, %v715
        %v720 = vmul.f32 %v692, %v716
        %v722 = vlaneseq
        %v723 = vshrl.u32 %v722, 7
        %v724 = vsub.s32 0, %v723
        %v725 = vrot.slane %v674, %v724
        %v727 = vmul.f32 %v717, %v725
        %v728 = vmul.f32 %v718, %v725
        %v729 = vmul.f32 %v719, %v725
        %v730 = vmul.f32 %v720, %v725
        %v732 = vlaneseq
        %v733 = vshrl.u32 %v732, 7
        %v734 = vsub.s32 0, %v733
        %v735 = vrot.slane %v675, %v734
        %v737 = vadd.f32 %v727, %v735
        %v738 = vadd.f32 %v728, %v735
        %v739 = vadd.f32 %v729, %v735
        %v740 = vadd.f32 %v730, %v735
        %v741 = vld [vmem:[%s4] sm:$0xff]
        %v742 = vld [vmem:[%s4 + $0x8] sm:$0xf]
        %v743 = vld [vmem:[%s4 + $0xc] sm:$0xff]
        %v744 = vld [vmem:[%s4 + $0x14] sm:$0xf]
        %v745 = vld [vmem:[%s4 + $0x18] sm:$0xff]
        %v746 = vld [vmem:[%s4 + $0x20] sm:$0xf]
        %v747 = vld [vmem:[%s4 + $0x24] sm:$0xff]
        %v748 = vld [vmem:[%s4 + $0x2c] sm:$0xf]
        %v749 = vld [vmem:[%s4 + $0x30] sm:$0xff]
        %v750 = vld [vmem:[%s4 + $0x38] sm:$0xf]
        %v751 = vld [vmem:[%s4 + $0x3c] sm:$0xff]
        %v752 = vld [vmem:[%s4 + $0x44] sm:$0xf]
        %v753 = vld [vmem:[%s4 + $0x48] sm:$0xff]
        %v754 = vld [vmem:[%s4 + $0x50] sm:$0xf]
        %v755 = vld [vmem:[%s4 + $0x54] sm:$0xff]
        %v756 = vld [vmem:[%s4 + $0x5c] sm:$0xf]
        %v757 = vld [vmem:[%s4 + $0x60] sm:$0xff]
        %v758 = vld [vmem:[%s4 + $0x68] sm:$0xf]
        %v759 = vld [vmem:[%s4 + $0x6c] sm:$0xff]
        %v760 = vld [vmem:[%s4 + $0x74] sm:$0xf]
        %v761 = vld [vmem:[%s4 + $0x78] sm:$0xff]
        %v762 = vld [vmem:[%s4 + $0x80] sm:$0xf]
        %v763 = vld [vmem:[%s4 + $0x84] sm:$0xff]
        %v764 = vld [vmem:[%s4 + $0x8c] sm:$0xf]
        %v765 = vld [vmem:[%s4 + $0x90] sm:$0xff]
        %v766 = vld [vmem:[%s4 + $0x98] sm:$0xf]
        %v767 = vld [vmem:[%s4 + $0x9c] sm:$0xff]
        %v768 = vld [vmem:[%s4 + $0xa4] sm:$0xf]
        %v769 = vld [vmem:[%s4 + $0xa8] sm:$0xff]
        %v770 = vld [vmem:[%s4 + $0xb0] sm:$0xf]
        %v771 = vld [vmem:[%s4 + $0xb4] sm:$0xff]
        %v772 = vld [vmem:[%s4 + $0xbc] sm:$0xf]
        %v773 = vpack.c.bf16 %v738, %v737
        %v774 = vpack.c.bf16 %v740, %v739
        %v775 = vld [vmem:[%s5] sm:$0x7]
        %v777 = vlaneseq
        %v778 = vshrl.u32 %v777, 7
        %v779 = vsub.s32 0, %v778
        %v780 = vrot.slane %v775, %v779
        %v781 = vlaneseq
        %v782 = vshrl.u32 %v781, 7
        %v783 = vsub.s32 1, %v782
        %v784 = vrot.slane %v775, %v783
        %v785 = vlaneseq
        %v786 = vshrl.u32 %v785, 7
        %v787 = vsub.s32 2, %v786
        %v788 = vrot.slane %v775, %v787
        %v824 = vunpack.c.l.b16 %v741
        %v825 = vunpack.c.h.b16 %v741
        %v826 = vunpack.c.l.b16 %v742
        %v827 = vunpack.c.l.b16 %v743
        %v828 = vunpack.c.h.b16 %v743
        %v829 = vunpack.c.l.b16 %v744
        %v830 = vunpack.c.l.b16 %v745
        %v831 = vunpack.c.h.b16 %v745
        %v832 = vunpack.c.l.b16 %v746
        %v833 = vunpack.c.l.b16 %v747
        %v834 = vunpack.c.h.b16 %v747
        %v835 = vunpack.c.l.b16 %v748
        %v836 = vunpack.c.l.b16 %v749
        %v837 = vunpack.c.h.b16 %v749
        %v838 = vunpack.c.l.b16 %v750
        %v839 = vunpack.c.l.b16 %v751
        %v840 = vunpack.c.h.b16 %v751
        %v841 = vunpack.c.l.b16 %v752
        %v842 = vunpack.c.l.b16 %v753
        %v843 = vunpack.c.h.b16 %v753
        %v844 = vunpack.c.l.b16 %v754
        %v845 = vunpack.c.l.b16 %v755
        %v846 = vunpack.c.h.b16 %v755
        %v847 = vunpack.c.l.b16 %v756
        %v848 = vunpack.c.l.b16 %v757
        %v849 = vunpack.c.h.b16 %v757
        %v850 = vunpack.c.l.b16 %v758
        %v851 = vunpack.c.l.b16 %v759
        %v852 = vunpack.c.h.b16 %v759
        %v853 = vunpack.c.l.b16 %v760
        %v854 = vunpack.c.l.b16 %v761
        %v855 = vunpack.c.h.b16 %v761
        %v856 = vunpack.c.l.b16 %v762
        %v857 = vunpack.c.l.b16 %v763
        %v858 = vunpack.c.h.b16 %v763
        %v859 = vunpack.c.l.b16 %v764
        %v860 = vunpack.c.l.b16 %v765
        %v861 = vunpack.c.h.b16 %v765
        %v862 = vunpack.c.l.b16 %v766
        %v863 = vunpack.c.l.b16 %v767
        %v864 = vunpack.c.h.b16 %v767
        %v865 = vunpack.c.l.b16 %v768
        %v866 = vunpack.c.l.b16 %v769
        %v867 = vunpack.c.h.b16 %v769
        %v868 = vunpack.c.l.b16 %v770
        %v869 = vunpack.c.l.b16 %v771
        %v870 = vunpack.c.h.b16 %v771
        %v871 = vunpack.c.l.b16 %v772
        %v872 = vpack.c.b16 %v827, %v824
        %v873 = vpack.c.b16 %v828, %v825
        %v874 = vpack.c.b16 %v829, %v826
        %v875 = vpack.c.b16 %v833, %v830
        %v876 = vpack.c.b16 %v834, %v831
        %v877 = vpack.c.b16 %v835, %v832
        %v878 = vpack.c.b16 %v839, %v836
        %v879 = vpack.c.b16 %v840, %v837
        %v880 = vpack.c.b16 %v841, %v838
        %v881 = vpack.c.b16 %v845, %v842
        %v882 = vpack.c.b16 %v846, %v843
        %v883 = vpack.c.b16 %v847, %v844
        %v884 = vpack.c.b16 %v851, %v848
        %v885 = vpack.c.b16 %v852, %v849
        %v886 = vpack.c.b16 %v853, %v850
        %v887 = vpack.c.b16 %v857, %v854
        %v888 = vpack.c.b16 %v858, %v855
        %v889 = vpack.c.b16 %v859, %v856
        %v890 = vpack.c.b16 %v863, %v860
        %v891 = vpack.c.b16 %v864, %v861
        %v892 = vpack.c.b16 %v865, %v862
        %v893 = vpack.c.b16 %v869, %v866
        %v894 = vpack.c.b16 %v870, %v867
        %v895 = vpack.c.b16 %v871, %v868
        %920 = vmatprep.subr.bf16.mxu0 %v873
        %921 = vmatpush1.bf16.msra.mxu0 %v872
        %922 = vmatprep.subr.bf16.mxu0 %v876
        %923 = vmatpush1.bf16.msra.mxu0 %v875
        %924 = vmatprep.subr.bf16.mxu0 %v879
        %925 = vmatpush1.bf16.msra.mxu0 %v878
        %926 = vmatprep.subr.bf16.mxu0 %v882
        %927 = vmatpush1.bf16.msra.mxu0 %v881
        %928 = vmatprep.subr.bf16.mxu0 %v885
        %929 = vmatpush1.bf16.msra.mxu0 %v884
        %930 = vmatprep.subr.bf16.mxu0 %v888
        %931 = vmatpush1.bf16.msra.mxu0 %v887
        %932 = vmatprep.subr.bf16.mxu0 %v891
        %933 = vmatpush1.bf16.msra.mxu0 %v890
        %934 = vmatprep.subr.bf16.mxu0 %v894
        %935 = vmatpush1.bf16.msra.mxu0 %v893
        %936 = vmatprep.subr.bf16.mxu0 0
        %937 = vmatpush1.bf16.msra.mxu0 0
        %938 = vmatprep.subr.bf16.mxu0 0
        %939 = vmatpush1.bf16.msra.mxu0 0
        %940 = vmatprep.subr.bf16.mxu0 0
        %941 = vmatpush1.bf16.msra.mxu0 0
        %942 = vmatprep.subr.bf16.mxu0 0
        %943 = vmatpush1.bf16.msra.mxu0 0
        %944 = vmatprep.subr.bf16.mxu0 0
        %945 = vmatpush1.bf16.msra.mxu0 0
        %946 = vmatprep.subr.bf16.mxu0 0
        %947 = vmatpush1.bf16.msra.mxu0 0
        %948 = vmatprep.subr.bf16.mxu0 0
        %949 = vmatpush1.bf16.msra.mxu0 0
        %950 = vmatprep.subr.bf16.mxu0 0
        %951 = vmatpush1.bf16.msra.mxu0 0
        %952 = vmatprep.mubr.bf16.mxu0 0
        %953 = vmatmul.mubr.bf16.gmra.mrb[0].mxu0 %v773
        %v954 = vpop.f32.mrb[0].mxu0
        %v955 = vadd.f32 %v780, %v954
        %v956 = vpop.f32.mrb[0].mxu0
        %v957 = vadd.f32 %v784, %v956
        %v958 = vpop.f32.mrb[0].mxu0
        %v959 = vadd.f32 %v780, %v958
        %v960 = vpop.f32.mrb[0].mxu0
        %v961 = vadd.f32 %v784, %v960
        %962 = vmatprep.mubr.bf16.mxu0 0
        %963 = vmatmul.mubr.bf16.gmra.mrb[0].mxu0 %v774
        %v964 = vpop.f32.mrb[0].mxu0
        %v965 = vadd.f32 %v780, %v964
        %v966 = vpop.f32.mrb[0].mxu0
        %v967 = vadd.f32 %v784, %v966
        %v968 = vpop.f32.mrb[0].mxu0
        %v969 = vadd.f32 %v780, %v968
        %v970 = vpop.f32.mrb[0].mxu0
        %v971 = vadd.f32 %v784, %v970
        %972 = vdwg.mxu0
        %973 = vmatprep.subr.bf16.mxu0 0
        %974 = vmatpush1.bf16.msra.mxu0 %v874
        %975 = vmatprep.subr.bf16.mxu0 0
        %976 = vmatpush1.bf16.msra.mxu0 %v877
        %977 = vmatprep.subr.bf16.mxu0 0
        %978 = vmatpush1.bf16.msra.mxu0 %v880
        %979 = vmatprep.subr.bf16.mxu0 0
        %980 = vmatpush1.bf16.msra.mxu0 %v883
        %981 = vmatprep.subr.bf16.mxu0 0
        %982 = vmatpush1.bf16.msra.mxu0 %v886
        %983 = vmatprep.subr.bf16.mxu0 0
        %984 = vmatpush1.bf16.msra.mxu0 %v889
        %985 = vmatprep.subr.bf16.mxu0 0
        %986 = vmatpush1.bf16.msra.mxu0 %v892
        %987 = vmatprep.subr.bf16.mxu0 0
        %988 = vmatpush1.bf16.msra.mxu0 %v895
        %989 = vmatprep.subr.bf16.mxu0 0
        %990 = vmatpush1.bf16.msra.mxu0 0
        %991 = vmatprep.subr.bf16.mxu0 0
        %992 = vmatpush1.bf16.msra.mxu0 0
        %993 = vmatprep.subr.bf16.mxu0 0
        %994 = vmatpush1.bf16.msra.mxu0 0
        %995 = vmatprep.subr.bf16.mxu0 0
        %996 = vmatpush1.bf16.msra.mxu0 0
        %997 = vmatprep.subr.bf16.mxu0 0
        %998 = vmatpush1.bf16.msra.mxu0 0
        %999 = vmatprep.subr.bf16.mxu0 0
        %1000 = vmatpush1.bf16.msra.mxu0 0
        %1001 = vmatprep.subr.bf16.mxu0 0
        %1002 = vmatpush1.bf16.msra.mxu0 0
        %1003 = vmatprep.subr.bf16.mxu0 0
        %1004 = vmatpush1.bf16.msra.mxu0 0
        %1005 = vmatprep.mubr.bf16.mxu0 0
        %1006 = vmatmul.mubr.bf16.gmra.mrb[0].mxu0 %v773
        %v1007 = vpop.f32.mrb[0].mxu0
        %v1008 = vadd.f32 %v788, %v1007
        %v1009 = vpop.f32.mrb[0].mxu0
        %v1010 = vpop.f32.mrb[0].mxu0
        %v1011 = vadd.f32 %v788, %v1010
        %v1012 = vpop.f32.mrb[0].mxu0
        %1013 = vmatprep.mubr.bf16.mxu0 0
        %1014 = vmatmul.mubr.bf16.gmra.mrb[0].mxu0 %v774
        %v1015 = vpop.f32.mrb[0].mxu0
        %v1016 = vadd.f32 %v788, %v1015
        %v1017 = vpop.f32.mrb[0].mxu0
        %v1018 = vpop.f32.mrb[0].mxu0
        %v1019 = vadd.f32 %v788, %v1018
        %v1020 = vpop.f32.mrb[0].mxu0
        %1021 = vdwg.mxu0
        %v1022 = vpack.c.bf16 %v955, %v955
        %v1023 = vpack.c.bf16 %v959, %v959
        %v1024 = vpack.c.bf16 %v965, %v965
        %v1025 = vpack.c.bf16 %v969, %v969
        %v1026 = vpack.c.bf16 %v957, %v957
        %v1027 = vpack.c.bf16 %v961, %v961
        %v1028 = vpack.c.bf16 %v967, %v967
        %v1029 = vpack.c.bf16 %v971, %v971
        %vm1030 = vcmask 261120
        %v1032 = vsel %vm1030, %v1022, 0
        %v1035 = vsel %vm1030, %v1026, 0
        %1037 = vmatprep.subr.bf16.mxu0 0
        %1038 = vmatpush1.bf16.xpose.msra.mxu0 %v1035
        %1039 = vmatprep.subr.bf16.mxu0 0
        %1040 = vmatpush1.bf16.xpose.msra.mxu0 0
        %1041 = vmatprep.subr.bf16.mxu0 0
        %1042 = vmatpush1.bf16.xpose.msra.mxu0 0
        %1043 = vmatprep.subr.bf16.mxu0 0
        %1044 = vmatpush1.bf16.xpose.msra.mxu0 0
        %1045 = vmatprep.subr.bf16.mxu0 0
        %1046 = vmatpush1.bf16.xpose.msra.mxu0 0
        %1047 = vmatprep.subr.bf16.mxu0 0
        %1048 = vmatpush1.bf16.xpose.msra.mxu0 0
        %1049 = vmatprep.subr.bf16.mxu0 0
        %1050 = vmatpush1.bf16.xpose.msra.mxu0 0
        %1051 = vmatprep.subr.bf16.mxu0 0
        %1052 = vmatpush1.bf16.xpose.msra.mxu0 0
        %1053 = vmatprep.subr.bf16.mxu0 0
        %1054 = vmatpush1.bf16.xpose.msra.mxu0 0
        %1055 = vmatprep.subr.bf16.mxu0 0
        %1056 = vmatpush1.bf16.xpose.msra.mxu0 0
        %1057 = vmatprep.subr.bf16.mxu0 0
        %1058 = vmatpush1.bf16.xpose.msra.mxu0 0
        %1059 = vmatprep.subr.bf16.mxu0 0
        %1060 = vmatpush1.bf16.xpose.msra.mxu0 0
        %1061 = vmatprep.subr.bf16.mxu0 0
        %1062 = vmatpush1.bf16.xpose.msra.mxu0 0
        %1063 = vmatprep.subr.bf16.mxu0 0
        %1064 = vmatpush1.bf16.xpose.msra.mxu0 0
        %1065 = vmatprep.subr.bf16.mxu0 0
        %1066 = vmatpush1.bf16.xpose.msra.mxu0 0
        %1067 = vmatprep.subr.bf16.mxu0 0
        %1068 = vmatpush1.bf16.xpose.msra.mxu0 0
        %1069 = vmatprep.mubr.bf16.mxu0 0
        %1070 = vmatmul.mubr.bf16.gmra.mrb[0].mxu0 %v1032
        %v1071 = vpop.f32.mrb[0].mxu0
        %v1072 = vadd.f32 0.0, %v1071
        %v1073 = vpop.f32.mrb[0].mxu0
        %v1074 = vpop.f32.mrb[0].mxu0
        %v1075 = vpop.f32.mrb[0].mxu0
        %1076 = vdwg.mxu0
        %v1078 = vsel %vm1030, %v1023, 0
        %v1081 = vsel %vm1030, %v1027, 0
        %1083 = vmatprep.subr.bf16.mxu0 0
        %1084 = vmatpush1.bf16.xpose.msra.mxu0 %v1081
        %1085 = vmatprep.subr.bf16.mxu0 0
        %1086 = vmatpush1.bf16.xpose.msra.mxu0 0
        %1087 = vmatprep.subr.bf16.mxu0 0
        %1088 = vmatpush1.bf16.xpose.msra.mxu0 0
        %1089 = vmatprep.subr.bf16.mxu0 0
        %1090 = vmatpush1.bf16.xpose.msra.mxu0 0
        %1091 = vmatprep.subr.bf16.mxu0 0
        %1092 = vmatpush1.bf16.xpose.msra.mxu0 0
        %1093 = vmatprep.subr.bf16.mxu0 0
        %1094 = vmatpush1.bf16.xpose.msra.mxu0 0
        %1095 = vmatprep.subr.bf16.mxu0 0
        %1096 = vmatpush1.bf16.xpose.msra.mxu0 0
        %1097 = vmatprep.subr.bf16.mxu0 0
        %1098 = vmatpush1.bf16.xpose.msra.mxu0 0
        %1099 = vmatprep.subr.bf16.mxu0 0
        %1100 = vmatpush1.bf16.xpose.msra.mxu0 0
        %1101 = vmatprep.subr.bf16.mxu0 0
        %1102 = vmatpush1.bf16.xpose.msra.mxu0 0
        %1103 = vmatprep.subr.bf16.mxu0 0
        %1104 = vmatpush1.bf16.xpose.msra.mxu0 0
        %1105 = vmatprep.subr.bf16.mxu0 0
        %1106 = vmatpush1.bf16.xpose.msra.mxu0 0
        %1107 = vmatprep.subr.bf16.mxu0 0
        %1108 = vmatpush1.bf16.xpose.msra.mxu0 0
        %1109 = vmatprep.subr.bf16.mxu0 0
        %1110 = vmatpush1.bf16.xpose.msra.mxu0 0
        %1111 = vmatprep.subr.bf16.mxu0 0
        %1112 = vmatpush1.bf16.xpose.msra.mxu0 0
        %1113 = vmatprep.subr.bf16.mxu0 0
        %1114 = vmatpush1.bf16.xpose.msra.mxu0 0
        %1115 = vmatprep.mubr.bf16.mxu0 0
        %1116 = vmatmul.mubr.bf16.gmra.mrb[0].mxu0 %v1078
        %v1117 = vpop.f32.mrb[0].mxu0
        %v1118 = vadd.f32 0.0, %v1117
        %v1119 = vpop.f32.mrb[0].mxu0
        %v1120 = vpop.f32.mrb[0].mxu0
        %v1121 = vpop.f32.mrb[0].mxu0
        %1122 = vdwg.mxu0
        %v1124 = vsel %vm1030, %v1024, 0
        %v1127 = vsel %vm1030, %v1028, 0
        %1129 = vmatprep.subr.bf16.mxu0 0
        %1130 = vmatpush1.bf16.xpose.msra.mxu0 %v1127
        %1131 = vmatprep.subr.bf16.mxu0 0
        %1132 = vmatpush1.bf16.xpose.msra.mxu0 0
        %1133 = vmatprep.subr.bf16.mxu0 0
        %1134 = vmatpush1.bf16.xpose.msra.mxu0 0
        %1135 = vmatprep.subr.bf16.mxu0 0
        %1136 = vmatpush1.bf16.xpose.msra.mxu0 0
        %1137 = vmatprep.subr.bf16.mxu0 0
        %1138 = vmatpush1.bf16.xpose.msra.mxu0 0
        %1139 = vmatprep.subr.bf16.mxu0 0
        %1140 = vmatpush1.bf16.xpose.msra.mxu0 0
        %1141 = vmatprep.subr.bf16.mxu0 0
        %1142 = vmatpush1.bf16.xpose.msra.mxu0 0
        %1143 = vmatprep.subr.bf16.mxu0 0
        %1144 = vmatpush1.bf16.xpose.msra.mxu0 0
        %1145 = vmatprep.subr.bf16.mxu0 0
        %1146 = vmatpush1.bf16.xpose.msra.mxu0 0
        %1147 = vmatprep.subr.bf16.mxu0 0
        %1148 = vmatpush1.bf16.xpose.msra.mxu0 0
        %1149 = vmatprep.subr.bf16.mxu0 0
        %1150 = vmatpush1.bf16.xpose.msra.mxu0 0
        %1151 = vmatprep.subr.bf16.mxu0 0
        %1152 = vmatpush1.bf16.xpose.msra.mxu0 0
        %1153 = vmatprep.subr.bf16.mxu0 0
        %1154 = vmatpush1.bf16.xpose.msra.mxu0 0
        %1155 = vmatprep.subr.bf16.mxu0 0
        %1156 = vmatpush1.bf16.xpose.msra.mxu0 0
        %1157 = vmatprep.subr.bf16.mxu0 0
        %1158 = vmatpush1.bf16.xpose.msra.mxu0 0
        %1159 = vmatprep.subr.bf16.mxu0 0
        %1160 = vmatpush1.bf16.xpose.msra.mxu0 0
        %1161 = vmatprep.mubr.bf16.mxu0 0
        %1162 = vmatmul.mubr.bf16.gmra.mrb[0].mxu0 %v1124
        %v1163 = vpop.f32.mrb[0].mxu0
        %v1164 = vadd.f32 0.0, %v1163
        %v1165 = vpop.f32.mrb[0].mxu0
        %v1166 = vpop.f32.mrb[0].mxu0
        %v1167 = vpop.f32.mrb[0].mxu0
        %1168 = vdwg.mxu0
        %v1170 = vsel %vm1030, %v1025, 0
        %v1173 = vsel %vm1030, %v1029, 0
        %1175 = vmatprep.subr.bf16.mxu0 0
        %1176 = vmatpush1.bf16.xpose.msra.mxu0 %v1173
        %1177 = vmatprep.subr.bf16.mxu0 0
        %1178 = vmatpush1.bf16.xpose.msra.mxu0 0
        %1179 = vmatprep.subr.bf16.mxu0 0
        %1180 = vmatpush1.bf16.xpose.msra.mxu0 0
        %1181 = vmatprep.subr.bf16.mxu0 0
        %1182 = vmatpush1.bf16.xpose.msra.mxu0 0
        %1183 = vmatprep.subr.bf16.mxu0 0
        %1184 = vmatpush1.bf16.xpose.msra.mxu0 0
        %1185 = vmatprep.subr.bf16.mxu0 0
        %1186 = vmatpush1.bf16.xpose.msra.mxu0 0
        %1187 = vmatprep.subr.bf16.mxu0 0
        %1188 = vmatpush1.bf16.xpose.msra.mxu0 0
        %1189 = vmatprep.subr.bf16.mxu0 0
        %1190 = vmatpush1.bf16.xpose.msra.mxu0 0
        %1191 = vmatprep.subr.bf16.mxu0 0
        %1192 = vmatpush1.bf16.xpose.msra.mxu0 0
        %1193 = vmatprep.subr.bf16.mxu0 0
        %1194 = vmatpush1.bf16.xpose.msra.mxu0 0
        %1195 = vmatprep.subr.bf16.mxu0 0
        %1196 = vmatpush1.bf16.xpose.msra.mxu0 0
        %1197 = vmatprep.subr.bf16.mxu0 0
        %1198 = vmatpush1.bf16.xpose.msra.mxu0 0
        %1199 = vmatprep.subr.bf16.mxu0 0
        %1200 = vmatpush1.bf16.xpose.msra.mxu0 0
        %1201 = vmatprep.subr.bf16.mxu0 0
        %1202 = vmatpush1.bf16.xpose.msra.mxu0 0
        %1203 = vmatprep.subr.bf16.mxu0 0
        %1204 = vmatpush1.bf16.xpose.msra.mxu0 0
        %1205 = vmatprep.subr.bf16.mxu0 0
        %1206 = vmatpush1.bf16.xpose.msra.mxu0 0
        %1207 = vmatprep.mubr.bf16.mxu0 0
        %1208 = vmatmul.mubr.bf16.gmra.mrb[0].mxu0 %v1170
        %v1209 = vpop.f32.mrb[0].mxu0
        %v1210 = vadd.f32 0.0, %v1209
        %v1211 = vpop.f32.mrb[0].mxu0
        %v1212 = vpop.f32.mrb[0].mxu0
        %v1213 = vpop.f32.mrb[0].mxu0
        %1214 = vdwg.mxu0
        %v1215 = vmul.f32 %v1072, 0.17677669
        %v1216 = vmul.f32 %v1118, 0.17677669
        %v1217 = vmul.f32 %v1164, 0.17677669
        %v1218 = vmul.f32 %v1210, 0.17677669
        %v1223 = vlaneseq
        %v1224 = vshrl.u32 %v1223, 7
        %v1225 = vsub.s32 0, %v1224
        %v1226 = vrot.slane %v670, %v1225
        %v1227 = vlaneseq
        %v1228 = vshrl.u32 %v1227, 7
        %v1229 = vsub.s32 0, %v1228
        %v1230 = vrot.slane %v671, %v1229
        %v1231 = vlaneseq
        %v1232 = vshrl.u32 %v1231, 7
        %v1233 = vsub.s32 0, %v1232
        %v1234 = vrot.slane %v672, %v1233
        %v1235 = vlaneseq
        %v1236 = vshrl.u32 %v1235, 7
        %v1237 = vsub.s32 0, %v1236
        %v1238 = vrot.slane %v673, %v1237
        %v1243 = vadd.f32 %v1215, %v1226
        %v1244 = vadd.f32 %v1216, %v1230
        %v1245 = vadd.f32 %v1217, %v1234
        %v1246 = vadd.f32 %v1218, %v1238
        %vm1247 = vcmask 64512
        %v1248 = vsel %vm1247, %v1243, -inf
        %1249 = vmax.xlane.f32.xlu0 %v1248
        %v1250 = vpop.xlane.xlu0 %1249
        %v1251 = vsel %vm1247, %v1244, -inf
        %1252 = vmax.xlane.f32.xlu0 %v1251
        %v1253 = vpop.xlane.xlu0 %1252
        %v1254 = vsel %vm1247, %v1245, -inf
        %1255 = vmax.xlane.f32.xlu0 %v1254
        %v1256 = vpop.xlane.xlu0 %1255
        %v1257 = vsel %vm1247, %v1246, -inf
        %1258 = vmax.xlane.f32.xlu0 %v1257
        %v1259 = vpop.xlane.xlu0 %1258
        %v1260 = vsub.f32 %v1243, %v1250
        %v1261 = vsub.f32 %v1244, %v1253
        %v1262 = vsub.f32 %v1245, %v1256
        %v1263 = vsub.f32 %v1246, %v1259
        %v1264 = vmul.f32 %v1260, 1.442695
        %v1265 = vpow.pop %v1264
        %v1266 = vmul.f32 %v1261, 1.442695
        %v1267 = vpow.pop %v1266
        %v1268 = vmul.f32 %v1262, 1.442695
        %v1269 = vpow.pop %v1268
        %v1270 = vmul.f32 %v1263, 1.442695
        %v1271 = vpow.pop %v1270
        %v1272 = vsel %vm1247, %v1265, 0.0
        %1273 = vadd.xlane.f32.xlu0 %v1272
        %v1274 = vpop.xlane.xlu0 %1273
        %v1275 = vsel %vm1247, %v1267, 0.0
        %1276 = vadd.xlane.f32.xlu0 %v1275
        %v1277 = vpop.xlane.xlu0 %1276
        %v1278 = vsel %vm1247, %v1269, 0.0
        %1279 = vadd.xlane.f32.xlu0 %v1278
        %v1280 = vpop.xlane.xlu0 %1279
        %v1281 = vsel %vm1247, %v1271, 0.0
        %1282 = vadd.xlane.f32.xlu0 %v1281
        %v1283 = vpop.xlane.xlu0 %1282
        %v1284 = vrcp.pop %v1274
        %v1285 = vrcp.pop %v1277
        %v1286 = vrcp.pop %v1280
        %v1287 = vrcp.pop %v1283
        %v1288 = vmul.f32 %v1265, %v1284
        %v1289 = vmul.f32 %v1267, %v1285
        %v1290 = vmul.f32 %v1269, %v1286
        %v1291 = vmul.f32 %v1271, %v1287
        %v1292 = vpack.c.bf16 %v1288, %v1288
        %v1293 = vpack.c.bf16 %v1289, %v1289
        %v1294 = vpack.c.bf16 %v1290, %v1290
        %v1295 = vpack.c.bf16 %v1291, %v1291
        %v1296 = vpack.c.bf16 %v1008, %v1008
        %v1297 = vpack.c.bf16 %v1011, %v1011
        %v1298 = vpack.c.bf16 %v1016, %v1016
        %v1299 = vpack.c.bf16 %v1019, %v1019
        %v1301 = vsel %vm1247, %v1292, 0
        %vm1303 = vcmask 1043456
        %v1305 = vsel %vm1303, %v1296, 0
        %1307 = vmatprep.subr.bf16.mxu0 0
        %1308 = vmatpush1.bf16.msra.mxu0 %v1305
        %1309 = vmatprep.subr.bf16.mxu0 0
        %1310 = vmatpush1.bf16.msra.mxu0 0
        %1311 = vmatprep.subr.bf16.mxu0 0
        %1312 = vmatpush1.bf16.msra.mxu0 0
        %1313 = vmatprep.subr.bf16.mxu0 0
        %1314 = vmatpush1.bf16.msra.mxu0 0
        %1315 = vmatprep.subr.bf16.mxu0 0
        %1316 = vmatpush1.bf16.msra.mxu0 0
        %1317 = vmatprep.subr.bf16.mxu0 0
        %1318 = vmatpush1.bf16.msra.mxu0 0
        %1319 = vmatprep.subr.bf16.mxu0 0
        %1320 = vmatpush1.bf16.msra.mxu0 0
        %1321 = vmatprep.subr.bf16.mxu0 0
        %1322 = vmatpush1.bf16.msra.mxu0 0
        %1323 = vmatprep.subr.bf16.mxu0 0
        %1324 = vmatpush1.bf16.msra.mxu0 0
        %1325 = vmatprep.subr.bf16.mxu0 0
        %1326 = vmatpush1.bf16.msra.mxu0 0
        %1327 = vmatprep.subr.bf16.mxu0 0
        %1328 = vmatpush1.bf16.msra.mxu0 0
        %1329 = vmatprep.subr.bf16.mxu0 0
        %1330 = vmatpush1.bf16.msra.mxu0 0
        %1331 = vmatprep.subr.bf16.mxu0 0
        %1332 = vmatpush1.bf16.msra.mxu0 0
        %1333 = vmatprep.subr.bf16.mxu0 0
        %1334 = vmatpush1.bf16.msra.mxu0 0
        %1335 = vmatprep.subr.bf16.mxu0 0
        %1336 = vmatpush1.bf16.msra.mxu0 0
        %1337 = vmatprep.subr.bf16.mxu0 0
        %1338 = vmatpush1.bf16.msra.mxu0 0
        %1339 = vmatprep.mubr.bf16.mxu0 0
        %1340 = vmatmul.mubr.bf16.gmra.mrb[0].mxu0 %v1301
        %v1341 = vpop.f32.mrb[0].mxu0
        %v1342 = vadd.f32 0.0, %v1341
        %v1343 = vpop.f32.mrb[0].mxu0
        %v1344 = vpop.f32.mrb[0].mxu0
        %v1345 = vpop.f32.mrb[0].mxu0
        %1346 = vdwg.mxu0
        %v1348 = vsel %vm1247, %v1293, 0
        %v1351 = vsel %vm1303, %v1297, 0
        %1353 = vmatprep.subr.bf16.mxu0 0
        %1354 = vmatpush1.bf16.msra.mxu0 %v1351
        %1355 = vmatprep.subr.bf16.mxu0 0
        %1356 = vmatpush1.bf16.msra.mxu0 0
        %1357 = vmatprep.subr.bf16.mxu0 0
        %1358 = vmatpush1.bf16.msra.mxu0 0
        %1359 = vmatprep.subr.bf16.mxu0 0
        %1360 = vmatpush1.bf16.msra.mxu0 0
        %1361 = vmatprep.subr.bf16.mxu0 0
        %1362 = vmatpush1.bf16.msra.mxu0 0
        %1363 = vmatprep.subr.bf16.mxu0 0
        %1364 = vmatpush1.bf16.msra.mxu0 0
        %1365 = vmatprep.subr.bf16.mxu0 0
        %1366 = vmatpush1.bf16.msra.mxu0 0
        %1367 = vmatprep.subr.bf16.mxu0 0
        %1368 = vmatpush1.bf16.msra.mxu0 0
        %1369 = vmatprep.subr.bf16.mxu0 0
        %1370 = vmatpush1.bf16.msra.mxu0 0
        %1371 = vmatprep.subr.bf16.mxu0 0
        %1372 = vmatpush1.bf16.msra.mxu0 0
        %1373 = vmatprep.subr.bf16.mxu0 0
        %1374 = vmatpush1.bf16.msra.mxu0 0
        %1375 = vmatprep.subr.bf16.mxu0 0
        %1376 = vmatpush1.bf16.msra.mxu0 0
        %1377 = vmatprep.subr.bf16.mxu0 0
        %1378 = vmatpush1.bf16.msra.mxu0 0
        %1379 = vmatprep.subr.bf16.mxu0 0
        %1380 = vmatpush1.bf16.msra.mxu0 0
        %1381 = vmatprep.subr.bf16.mxu0 0
        %1382 = vmatpush1.bf16.msra.mxu0 0
        %1383 = vmatprep.subr.bf16.mxu0 0
        %1384 = vmatpush1.bf16.msra.mxu0 0
        %1385 = vmatprep.mubr.bf16.mxu0 0
        %1386 = vmatmul.mubr.bf16.gmra.mrb[0].mxu0 %v1348
        %v1387 = vpop.f32.mrb[0].mxu0
        %v1388 = vadd.f32 0.0, %v1387
        %v1389 = vpop.f32.mrb[0].mxu0
        %v1390 = vpop.f32.mrb[0].mxu0
        %v1391 = vpop.f32.mrb[0].mxu0
        %1392 = vdwg.mxu0
        %v1394 = vsel %vm1247, %v1294, 0
        %v1397 = vsel %vm1303, %v1298, 0
        %1399 = vmatprep.subr.bf16.mxu0 0
        %1400 = vmatpush1.bf16.msra.mxu0 %v1397
        %1401 = vmatprep.subr.bf16.mxu0 0
        %1402 = vmatpush1.bf16.msra.mxu0 0
        %1403 = vmatprep.subr.bf16.mxu0 0
        %1404 = vmatpush1.bf16.msra.mxu0 0
        %1405 = vmatprep.subr.bf16.mxu0 0
        %1406 = vmatpush1.bf16.msra.mxu0 0
        %1407 = vmatprep.subr.bf16.mxu0 0
        %1408 = vmatpush1.bf16.msra.mxu0 0
        %1409 = vmatprep.subr.bf16.mxu0 0
        %1410 = vmatpush1.bf16.msra.mxu0 0
        %1411 = vmatprep.subr.bf16.mxu0 0
        %1412 = vmatpush1.bf16.msra.mxu0 0
        %1413 = vmatprep.subr.bf16.mxu0 0
        %1414 = vmatpush1.bf16.msra.mxu0 0
        %1415 = vmatprep.subr.bf16.mxu0 0
        %1416 = vmatpush1.bf16.msra.mxu0 0
        %1417 = vmatprep.subr.bf16.mxu0 0
        %1418 = vmatpush1.bf16.msra.mxu0 0
        %1419 = vmatprep.subr.bf16.mxu0 0
        %1420 = vmatpush1.bf16.msra.mxu0 0
        %1421 = vmatprep.subr.bf16.mxu0 0
        %1422 = vmatpush1.bf16.msra.mxu0 0
        %1423 = vmatprep.subr.bf16.mxu0 0
        %1424 = vmatpush1.bf16.msra.mxu0 0
        %1425 = vmatprep.subr.bf16.mxu0 0
        %1426 = vmatpush1.bf16.msra.mxu0 0
        %1427 = vmatprep.subr.bf16.mxu0 0
        %1428 = vmatpush1.bf16.msra.mxu0 0
        %1429 = vmatprep.subr.bf16.mxu0 0
        %1430 = vmatpush1.bf16.msra.mxu0 0
        %1431 = vmatprep.mubr.bf16.mxu0 0
        %1432 = vmatmul.mubr.bf16.gmra.mrb[0].mxu0 %v1394
        %v1433 = vpop.f32.mrb[0].mxu0
        %v1434 = vadd.f32 0.0, %v1433
        %v1435 = vpop.f32.mrb[0].mxu0
        %v1436 = vpop.f32.mrb[0].mxu0
        %v1437 = vpop.f32.mrb[0].mxu0
        %1438 = vdwg.mxu0
        %v1440 = vsel %vm1247, %v1295, 0
        %v1443 = vsel %vm1303, %v1299, 0
        %1445 = vmatprep.subr.bf16.mxu0 0
        %1446 = vmatpush1.bf16.msra.mxu0 %v1443
        %1447 = vmatprep.subr.bf16.mxu0 0
        %1448 = vmatpush1.bf16.msra.mxu0 0
        %1449 = vmatprep.subr.bf16.mxu0 0
        %1450 = vmatpush1.bf16.msra.mxu0 0
        %1451 = vmatprep.subr.bf16.mxu0 0
        %1452 = vmatpush1.bf16.msra.mxu0 0
        %1453 = vmatprep.subr.bf16.mxu0 0
        %1454 = vmatpush1.bf16.msra.mxu0 0
        %1455 = vmatprep.subr.bf16.mxu0 0
        %1456 = vmatpush1.bf16.msra.mxu0 0
        %1457 = vmatprep.subr.bf16.mxu0 0
        %1458 = vmatpush1.bf16.msra.mxu0 0
        %1459 = vmatprep.subr.bf16.mxu0 0
        %1460 = vmatpush1.bf16.msra.mxu0 0
        %1461 = vmatprep.subr.bf16.mxu0 0
        %1462 = vmatpush1.bf16.msra.mxu0 0
        %1463 = vmatprep.subr.bf16.mxu0 0
        %1464 = vmatpush1.bf16.msra.mxu0 0
        %1465 = vmatprep.subr.bf16.mxu0 0
        %1466 = vmatpush1.bf16.msra.mxu0 0
        %1467 = vmatprep.subr.bf16.mxu0 0
        %1468 = vmatpush1.bf16.msra.mxu0 0
        %1469 = vmatprep.subr.bf16.mxu0 0
        %1470 = vmatpush1.bf16.msra.mxu0 0
        %1471 = vmatprep.subr.bf16.mxu0 0
        %1472 = vmatpush1.bf16.msra.mxu0 0
        %1473 = vmatprep.subr.bf16.mxu0 0
        %1474 = vmatpush1.bf16.msra.mxu0 0
        %1475 = vmatprep.subr.bf16.mxu0 0
        %1476 = vmatpush1.bf16.msra.mxu0 0
        %1477 = vmatprep.mubr.bf16.mxu0 0
        %1478 = vmatmul.mubr.bf16.gmra.mrb[0].mxu0 %v1440
        %v1479 = vpop.f32.mrb[0].mxu0
        %v1480 = vadd.f32 0.0, %v1479
        %v1481 = vpop.f32.mrb[0].mxu0
        %v1482 = vpop.f32.mrb[0].mxu0
        %v1483 = vpop.f32.mrb[0].mxu0
        %1484 = vdwg.mxu0
        %1486 = vrot.lane.b32.xlu0 %v1022, 96
        %v1487 = vpop.permute.xlu0 %1486
        %1489 = vrot.lane.b32.xlu0 %v1026, 96
        %v1490 = vpop.permute.xlu0 %1489
        %v1492 = vsel %vm1030, %v1487, 0
        %v1495 = vsel %vm1030, %v1490, 0
        %1497 = vmatprep.subr.bf16.mxu0 0
        %1498 = vmatpush1.bf16.xpose.msra.mxu0 %v1495
        %1499 = vmatprep.subr.bf16.mxu0 0
        %1500 = vmatpush1.bf16.xpose.msra.mxu0 0
        %1501 = vmatprep.subr.bf16.mxu0 0
        %1502 = vmatpush1.bf16.xpose.msra.mxu0 0
        %1503 = vmatprep.subr.bf16.mxu0 0
        %1504 = vmatpush1.bf16.xpose.msra.mxu0 0
        %1505 = vmatprep.subr.bf16.mxu0 0
        %1506 = vmatpush1.bf16.xpose.msra.mxu0 0
        %1507 = vmatprep.subr.bf16.mxu0 0
        %1508 = vmatpush1.bf16.xpose.msra.mxu0 0
        %1509 = vmatprep.subr.bf16.mxu0 0
        %1510 = vmatpush1.bf16.xpose.msra.mxu0 0
        %1511 = vmatprep.subr.bf16.mxu0 0
        %1512 = vmatpush1.bf16.xpose.msra.mxu0 0
        %1513 = vmatprep.subr.bf16.mxu0 0
        %1514 = vmatpush1.bf16.xpose.msra.mxu0 0
        %1515 = vmatprep.subr.bf16.mxu0 0
        %1516 = vmatpush1.bf16.xpose.msra.mxu0 0
        %1517 = vmatprep.subr.bf16.mxu0 0
        %1518 = vmatpush1.bf16.xpose.msra.mxu0 0
        %1519 = vmatprep.subr.bf16.mxu0 0
        %1520 = vmatpush1.bf16.xpose.msra.mxu0 0
        %1521 = vmatprep.subr.bf16.mxu0 0
        %1522 = vmatpush1.bf16.xpose.msra.mxu0 0
        %1523 = vmatprep.subr.bf16.mxu0 0
        %1524 = vmatpush1.bf16.xpose.msra.mxu0 0
        %1525 = vmatprep.subr.bf16.mxu0 0
        %1526 = vmatpush1.bf16.xpose.msra.mxu0 0
        %1527 = vmatprep.subr.bf16.mxu0 0
        %1528 = vmatpush1.bf16.xpose.msra.mxu0 0
        %1529 = vmatprep.mubr.bf16.mxu0 0
        %1530 = vmatmul.mubr.bf16.gmra.mrb[0].mxu0 %v1492
        %v1531 = vpop.f32.mrb[0].mxu0
        %v1532 = vadd.f32 0.0, %v1531
        %v1533 = vpop.f32.mrb[0].mxu0
        %v1534 = vpop.f32.mrb[0].mxu0
        %v1535 = vpop.f32.mrb[0].mxu0
        %1536 = vdwg.mxu0
        %1538 = vrot.lane.b32.xlu0 %v1023, 96
        %v1539 = vpop.permute.xlu0 %1538
        %1541 = vrot.lane.b32.xlu0 %v1027, 96
        %v1542 = vpop.permute.xlu0 %1541
        %v1544 = vsel %vm1030, %v1539, 0
        %v1547 = vsel %vm1030, %v1542, 0
        %1549 = vmatprep.subr.bf16.mxu0 0
        %1550 = vmatpush1.bf16.xpose.msra.mxu0 %v1547
        %1551 = vmatprep.subr.bf16.mxu0 0
        %1552 = vmatpush1.bf16.xpose.msra.mxu0 0
        %1553 = vmatprep.subr.bf16.mxu0 0
        %1554 = vmatpush1.bf16.xpose.msra.mxu0 0
        %1555 = vmatprep.subr.bf16.mxu0 0
        %1556 = vmatpush1.bf16.xpose.msra.mxu0 0
        %1557 = vmatprep.subr.bf16.mxu0 0
        %1558 = vmatpush1.bf16.xpose.msra.mxu0 0
        %1559 = vmatprep.subr.bf16.mxu0 0
        %1560 = vmatpush1.bf16.xpose.msra.mxu0 0
        %1561 = vmatprep.subr.bf16.mxu0 0
        %1562 = vmatpush1.bf16.xpose.msra.mxu0 0
        %1563 = vmatprep.subr.bf16.mxu0 0
        %1564 = vmatpush1.bf16.xpose.msra.mxu0 0
        %1565 = vmatprep.subr.bf16.mxu0 0
        %1566 = vmatpush1.bf16.xpose.msra.mxu0 0
        %1567 = vmatprep.subr.bf16.mxu0 0
        %1568 = vmatpush1.bf16.xpose.msra.mxu0 0
        %1569 = vmatprep.subr.bf16.mxu0 0
        %1570 = vmatpush1.bf16.xpose.msra.mxu0 0
        %1571 = vmatprep.subr.bf16.mxu0 0
        %1572 = vmatpush1.bf16.xpose.msra.mxu0 0
        %1573 = vmatprep.subr.bf16.mxu0 0
        %1574 = vmatpush1.bf16.xpose.msra.mxu0 0
        %1575 = vmatprep.subr.bf16.mxu0 0
        %1576 = vmatpush1.bf16.xpose.msra.mxu0 0
        %1577 = vmatprep.subr.bf16.mxu0 0
        %1578 = vmatpush1.bf16.xpose.msra.mxu0 0
        %1579 = vmatprep.subr.bf16.mxu0 0
        %1580 = vmatpush1.bf16.xpose.msra.mxu0 0
        %1581 = vmatprep.mubr.bf16.mxu0 0
        %1582 = vmatmul.mubr.bf16.gmra.mrb[0].mxu0 %v1544
        %v1583 = vpop.f32.mrb[0].mxu0
        %v1584 = vadd.f32 0.0, %v1583
        %v1585 = vpop.f32.mrb[0].mxu0
        %v1586 = vpop.f32.mrb[0].mxu0
        %v1587 = vpop.f32.mrb[0].mxu0
        %1588 = vdwg.mxu0
        %1590 = vrot.lane.b32.xlu0 %v1024, 96
        %v1591 = vpop.permute.xlu0 %1590
        %1593 = vrot.lane.b32.xlu0 %v1028, 96
        %v1594 = vpop.permute.xlu0 %1593
        %v1596 = vsel %vm1030, %v1591, 0
        %v1599 = vsel %vm1030, %v1594, 0
        %1601 = vmatprep.subr.bf16.mxu0 0
        %1602 = vmatpush1.bf16.xpose.msra.mxu0 %v1599
        %1603 = vmatprep.subr.bf16.mxu0 0
        %1604 = vmatpush1.bf16.xpose.msra.mxu0 0
        %1605 = vmatprep.subr.bf16.mxu0 0
        %1606 = vmatpush1.bf16.xpose.msra.mxu0 0
        %1607 = vmatprep.subr.bf16.mxu0 0
        %1608 = vmatpush1.bf16.xpose.msra.mxu0 0
        %1609 = vmatprep.subr.bf16.mxu0 0
        %1610 = vmatpush1.bf16.xpose.msra.mxu0 0
        %1611 = vmatprep.subr.bf16.mxu0 0
        %1612 = vmatpush1.bf16.xpose.msra.mxu0 0
        %1613 = vmatprep.subr.bf16.mxu0 0
        %1614 = vmatpush1.bf16.xpose.msra.mxu0 0
        %1615 = vmatprep.subr.bf16.mxu0 0
        %1616 = vmatpush1.bf16.xpose.msra.mxu0 0
        %1617 = vmatprep.subr.bf16.mxu0 0
        %1618 = vmatpush1.bf16.xpose.msra.mxu0 0
        %1619 = vmatprep.subr.bf16.mxu0 0
        %1620 = vmatpush1.bf16.xpose.msra.mxu0 0
        %1621 = vmatprep.subr.bf16.mxu0 0
        %1622 = vmatpush1.bf16.xpose.msra.mxu0 0
        %1623 = vmatprep.subr.bf16.mxu0 0
        %1624 = vmatpush1.bf16.xpose.msra.mxu0 0
        %1625 = vmatprep.subr.bf16.mxu0 0
        %1626 = vmatpush1.bf16.xpose.msra.mxu0 0
        %1627 = vmatprep.subr.bf16.mxu0 0
        %1628 = vmatpush1.bf16.xpose.msra.mxu0 0
        %1629 = vmatprep.subr.bf16.mxu0 0
        %1630 = vmatpush1.bf16.xpose.msra.mxu0 0
        %1631 = vmatprep.subr.bf16.mxu0 0
        %1632 = vmatpush1.bf16.xpose.msra.mxu0 0
        %1633 = vmatprep.mubr.bf16.mxu0 0
        %1634 = vmatmul.mubr.bf16.gmra.mrb[0].mxu0 %v1596
        %v1635 = vpop.f32.mrb[0].mxu0
        %v1636 = vadd.f32 0.0, %v1635
        %v1637 = vpop.f32.mrb[0].mxu0
        %v1638 = vpop.f32.mrb[0].mxu0
        %v1639 = vpop.f32.mrb[0].mxu0
        %1640 = vdwg.mxu0
        %1642 = vrot.lane.b32.xlu0 %v1025, 96
        %v1643 = vpop.permute.xlu0 %1642
        %1645 = vrot.lane.b32.xlu0 %v1029, 96
        %v1646 = vpop.permute.xlu0 %1645
        %v1648 = vsel %vm1030, %v1643, 0
        %v1651 = vsel %vm1030, %v1646, 0
        %1653 = vmatprep.subr.bf16.mxu0 0
        %1654 = vmatpush1.bf16.xpose.msra.mxu0 %v1651
        %1655 = vmatprep.subr.bf16.mxu0 0
        %1656 = vmatpush1.bf16.xpose.msra.mxu0 0
        %1657 = vmatprep.subr.bf16.mxu0 0
        %1658 = vmatpush1.bf16.xpose.msra.mxu0 0
        %1659 = vmatprep.subr.bf16.mxu0 0
        %1660 = vmatpush1.bf16.xpose.msra.mxu0 0
        %1661 = vmatprep.subr.bf16.mxu0 0
        %1662 = vmatpush1.bf16.xpose.msra.mxu0 0
        %1663 = vmatprep.subr.bf16.mxu0 0
        %1664 = vmatpush1.bf16.xpose.msra.mxu0 0
        %1665 = vmatprep.subr.bf16.mxu0 0
        %1666 = vmatpush1.bf16.xpose.msra.mxu0 0
        %1667 = vmatprep.subr.bf16.mxu0 0
        %1668 = vmatpush1.bf16.xpose.msra.mxu0 0
        %1669 = vmatprep.subr.bf16.mxu0 0
        %1670 = vmatpush1.bf16.xpose.msra.mxu0 0
        %1671 = vmatprep.subr.bf16.mxu0 0
        %1672 = vmatpush1.bf16.xpose.msra.mxu0 0
        %1673 = vmatprep.subr.bf16.mxu0 0
        %1674 = vmatpush1.bf16.xpose.msra.mxu0 0
        %1675 = vmatprep.subr.bf16.mxu0 0
        %1676 = vmatpush1.bf16.xpose.msra.mxu0 0
        %1677 = vmatprep.subr.bf16.mxu0 0
        %1678 = vmatpush1.bf16.xpose.msra.mxu0 0
        %1679 = vmatprep.subr.bf16.mxu0 0
        %1680 = vmatpush1.bf16.xpose.msra.mxu0 0
        %1681 = vmatprep.subr.bf16.mxu0 0
        %1682 = vmatpush1.bf16.xpose.msra.mxu0 0
        %1683 = vmatprep.subr.bf16.mxu0 0
        %1684 = vmatpush1.bf16.xpose.msra.mxu0 0
        %1685 = vmatprep.mubr.bf16.mxu0 0
        %1686 = vmatmul.mubr.bf16.gmra.mrb[0].mxu0 %v1648
        %v1687 = vpop.f32.mrb[0].mxu0
        %v1688 = vadd.f32 0.0, %v1687
        %v1689 = vpop.f32.mrb[0].mxu0
        %v1690 = vpop.f32.mrb[0].mxu0
        %v1691 = vpop.f32.mrb[0].mxu0
        %1692 = vdwg.mxu0
        %v1693 = vmul.f32 %v1532, 0.17677669
        %v1694 = vmul.f32 %v1584, 0.17677669
        %v1695 = vmul.f32 %v1636, 0.17677669
        %v1696 = vmul.f32 %v1688, 0.17677669
        %v1697 = vadd.f32 %v1693, %v1226
        %v1698 = vadd.f32 %v1694, %v1230
        %v1699 = vadd.f32 %v1695, %v1234
        %v1700 = vadd.f32 %v1696, %v1238
        %v1701 = vsel %vm1247, %v1697, -inf
        %1702 = vmax.xlane.f32.xlu0 %v1701
        %v1703 = vpop.xlane.xlu0 %1702
        %v1704 = vsel %vm1247, %v1698, -inf
        %1705 = vmax.xlane.f32.xlu0 %v1704
        %v1706 = vpop.xlane.xlu0 %1705
        %v1707 = vsel %vm1247, %v1699, -inf
        %1708 = vmax.xlane.f32.xlu0 %v1707
        %v1709 = vpop.xlane.xlu0 %1708
        %v1710 = vsel %vm1247, %v1700, -inf
        %1711 = vmax.xlane.f32.xlu0 %v1710
        %v1712 = vpop.xlane.xlu0 %1711
        %v1713 = vsub.f32 %v1697, %v1703
        %v1714 = vsub.f32 %v1698, %v1706
        %v1715 = vsub.f32 %v1699, %v1709
        %v1716 = vsub.f32 %v1700, %v1712
        %v1717 = vmul.f32 %v1713, 1.442695
        %v1718 = vpow.pop %v1717
        %v1719 = vmul.f32 %v1714, 1.442695
        %v1720 = vpow.pop %v1719
        %v1721 = vmul.f32 %v1715, 1.442695
        %v1722 = vpow.pop %v1721
        %v1723 = vmul.f32 %v1716, 1.442695
        %v1724 = vpow.pop %v1723
        %v1725 = vsel %vm1247, %v1718, 0.0
        %1726 = vadd.xlane.f32.xlu0 %v1725
        %v1727 = vpop.xlane.xlu0 %1726
        %v1728 = vsel %vm1247, %v1720, 0.0
        %1729 = vadd.xlane.f32.xlu0 %v1728
        %v1730 = vpop.xlane.xlu0 %1729
        %v1731 = vsel %vm1247, %v1722, 0.0
        %1732 = vadd.xlane.f32.xlu0 %v1731
        %v1733 = vpop.xlane.xlu0 %1732
        %v1734 = vsel %vm1247, %v1724, 0.0
        %1735 = vadd.xlane.f32.xlu0 %v1734
        %v1736 = vpop.xlane.xlu0 %1735
        %v1737 = vrcp.pop %v1727
        %v1738 = vrcp.pop %v1730
        %v1739 = vrcp.pop %v1733
        %v1740 = vrcp.pop %v1736
        %v1741 = vmul.f32 %v1718, %v1737
        %v1742 = vmul.f32 %v1720, %v1738
        %v1743 = vmul.f32 %v1722, %v1739
        %v1744 = vmul.f32 %v1724, %v1740
        %v1745 = vpack.c.bf16 %v1741, %v1741
        %v1746 = vpack.c.bf16 %v1742, %v1742
        %v1747 = vpack.c.bf16 %v1743, %v1743
        %v1748 = vpack.c.bf16 %v1744, %v1744
        %1750 = vrot.lane.b32.xlu0 %v1296, 96
        %v1751 = vpop.permute.xlu0 %1750
        %v1753 = vsel %vm1247, %v1745, 0
        %v1756 = vsel %vm1303, %v1751, 0
        %1758 = vmatprep.subr.bf16.mxu0 0
        %1759 = vmatpush1.bf16.msra.mxu0 %v1756
        %1760 = vmatprep.subr.bf16.mxu0 0
        %1761 = vmatpush1.bf16.msra.mxu0 0
        %1762 = vmatprep.subr.bf16.mxu0 0
        %1763 = vmatpush1.bf16.msra.mxu0 0
        %1764 = vmatprep.subr.bf16.mxu0 0
        %1765 = vmatpush1.bf16.msra.mxu0 0
        %1766 = vmatprep.subr.bf16.mxu0 0
        %1767 = vmatpush1.bf16.msra.mxu0 0
        %1768 = vmatprep.subr.bf16.mxu0 0
        %1769 = vmatpush1.bf16.msra.mxu0 0
        %1770 = vmatprep.subr.bf16.mxu0 0
        %1771 = vmatpush1.bf16.msra.mxu0 0
        %1772 = vmatprep.subr.bf16.mxu0 0
        %1773 = vmatpush1.bf16.msra.mxu0 0
        %1774 = vmatprep.subr.bf16.mxu0 0
        %1775 = vmatpush1.bf16.msra.mxu0 0
        %1776 = vmatprep.subr.bf16.mxu0 0
        %1777 = vmatpush1.bf16.msra.mxu0 0
        %1778 = vmatprep.subr.bf16.mxu0 0
        %1779 = vmatpush1.bf16.msra.mxu0 0
        %1780 = vmatprep.subr.bf16.mxu0 0
        %1781 = vmatpush1.bf16.msra.mxu0 0
        %1782 = vmatprep.subr.bf16.mxu0 0
        %1783 = vmatpush1.bf16.msra.mxu0 0
        %1784 = vmatprep.subr.bf16.mxu0 0
        %1785 = vmatpush1.bf16.msra.mxu0 0
        %1786 = vmatprep.subr.bf16.mxu0 0
        %1787 = vmatpush1.bf16.msra.mxu0 0
        %1788 = vmatprep.subr.bf16.mxu0 0
        %1789 = vmatpush1.bf16.msra.mxu0 0
        %1790 = vmatprep.mubr.bf16.mxu0 0
        %1791 = vmatmul.mubr.bf16.gmra.mrb[0].mxu0 %v1753
        %v1792 = vpop.f32.mrb[0].mxu0
        %v1793 = vadd.f32 0.0, %v1792
        %v1794 = vpop.f32.mrb[0].mxu0
        %v1795 = vpop.f32.mrb[0].mxu0
        %v1796 = vpop.f32.mrb[0].mxu0
        %1797 = vdwg.mxu0
        %1799 = vrot.lane.b32.xlu0 %v1297, 96
        %v1800 = vpop.permute.xlu0 %1799
        %v1802 = vsel %vm1247, %v1746, 0
        %v1805 = vsel %vm1303, %v1800, 0
        %1807 = vmatprep.subr.bf16.mxu0 0
        %1808 = vmatpush1.bf16.msra.mxu0 %v1805
        %1809 = vmatprep.subr.bf16.mxu0 0
        %1810 = vmatpush1.bf16.msra.mxu0 0
        %1811 = vmatprep.subr.bf16.mxu0 0
        %1812 = vmatpush1.bf16.msra.mxu0 0
        %1813 = vmatprep.subr.bf16.mxu0 0
        %1814 = vmatpush1.bf16.msra.mxu0 0
        %1815 = vmatprep.subr.bf16.mxu0 0
        %1816 = vmatpush1.bf16.msra.mxu0 0
        %1817 = vmatprep.subr.bf16.mxu0 0
        %1818 = vmatpush1.bf16.msra.mxu0 0
        %1819 = vmatprep.subr.bf16.mxu0 0
        %1820 = vmatpush1.bf16.msra.mxu0 0
        %1821 = vmatprep.subr.bf16.mxu0 0
        %1822 = vmatpush1.bf16.msra.mxu0 0
        %1823 = vmatprep.subr.bf16.mxu0 0
        %1824 = vmatpush1.bf16.msra.mxu0 0
        %1825 = vmatprep.subr.bf16.mxu0 0
        %1826 = vmatpush1.bf16.msra.mxu0 0
        %1827 = vmatprep.subr.bf16.mxu0 0
        %1828 = vmatpush1.bf16.msra.mxu0 0
        %1829 = vmatprep.subr.bf16.mxu0 0
        %1830 = vmatpush1.bf16.msra.mxu0 0
        %1831 = vmatprep.subr.bf16.mxu0 0
        %1832 = vmatpush1.bf16.msra.mxu0 0
        %1833 = vmatprep.subr.bf16.mxu0 0
        %1834 = vmatpush1.bf16.msra.mxu0 0
        %1835 = vmatprep.subr.bf16.mxu0 0
        %1836 = vmatpush1.bf16.msra.mxu0 0
        %1837 = vmatprep.subr.bf16.mxu0 0
        %1838 = vmatpush1.bf16.msra.mxu0 0
        %1839 = vmatprep.mubr.bf16.mxu0 0
        %1840 = vmatmul.mubr.bf16.gmra.mrb[0].mxu0 %v1802
        %v1841 = vpop.f32.mrb[0].mxu0
        %v1842 = vadd.f32 0.0, %v1841
        %v1843 = vpop.f32.mrb[0].mxu0
        %v1844 = vpop.f32.mrb[0].mxu0
        %v1845 = vpop.f32.mrb[0].mxu0
        %1846 = vdwg.mxu0
        %1848 = vrot.lane.b32.xlu0 %v1298, 96
        %v1849 = vpop.permute.xlu0 %1848
        %v1851 = vsel %vm1247, %v1747, 0
        %v1854 = vsel %vm1303, %v1849, 0
        %1856 = vmatprep.subr.bf16.mxu0 0
        %1857 = vmatpush1.bf16.msra.mxu0 %v1854
        %1858 = vmatprep.subr.bf16.mxu0 0
        %1859 = vmatpush1.bf16.msra.mxu0 0
        %1860 = vmatprep.subr.bf16.mxu0 0
        %1861 = vmatpush1.bf16.msra.mxu0 0
        %1862 = vmatprep.subr.bf16.mxu0 0
        %1863 = vmatpush1.bf16.msra.mxu0 0
        %1864 = vmatprep.subr.bf16.mxu0 0
        %1865 = vmatpush1.bf16.msra.mxu0 0
        %1866 = vmatprep.subr.bf16.mxu0 0
        %1867 = vmatpush1.bf16.msra.mxu0 0
        %1868 = vmatprep.subr.bf16.mxu0 0
        %1869 = vmatpush1.bf16.msra.mxu0 0
        %1870 = vmatprep.subr.bf16.mxu0 0
        %1871 = vmatpush1.bf16.msra.mxu0 0
        %1872 = vmatprep.subr.bf16.mxu0 0
        %1873 = vmatpush1.bf16.msra.mxu0 0
        %1874 = vmatprep.subr.bf16.mxu0 0
        %1875 = vmatpush1.bf16.msra.mxu0 0
        %1876 = vmatprep.subr.bf16.mxu0 0
        %1877 = vmatpush1.bf16.msra.mxu0 0
        %1878 = vmatprep.subr.bf16.mxu0 0
        %1879 = vmatpush1.bf16.msra.mxu0 0
        %1880 = vmatprep.subr.bf16.mxu0 0
        %1881 = vmatpush1.bf16.msra.mxu0 0
        %1882 = vmatprep.subr.bf16.mxu0 0
        %1883 = vmatpush1.bf16.msra.mxu0 0
        %1884 = vmatprep.subr.bf16.mxu0 0
        %1885 = vmatpush1.bf16.msra.mxu0 0
        %1886 = vmatprep.subr.bf16.mxu0 0
        %1887 = vmatpush1.bf16.msra.mxu0 0
        %1888 = vmatprep.mubr.bf16.mxu0 0
        %1889 = vmatmul.mubr.bf16.gmra.mrb[0].mxu0 %v1851
        %v1890 = vpop.f32.mrb[0].mxu0
        %v1891 = vadd.f32 0.0, %v1890
        %v1892 = vpop.f32.mrb[0].mxu0
        %v1893 = vpop.f32.mrb[0].mxu0
        %v1894 = vpop.f32.mrb[0].mxu0
        %1895 = vdwg.mxu0
        %1897 = vrot.lane.b32.xlu0 %v1299, 96
        %v1898 = vpop.permute.xlu0 %1897
        %v1900 = vsel %vm1247, %v1748, 0
        %v1903 = vsel %vm1303, %v1898, 0
        %1905 = vmatprep.subr.bf16.mxu0 0
        %1906 = vmatpush1.bf16.msra.mxu0 %v1903
        %1907 = vmatprep.subr.bf16.mxu0 0
        %1908 = vmatpush1.bf16.msra.mxu0 0
        %1909 = vmatprep.subr.bf16.mxu0 0
        %1910 = vmatpush1.bf16.msra.mxu0 0
        %1911 = vmatprep.subr.bf16.mxu0 0
        %1912 = vmatpush1.bf16.msra.mxu0 0
        %1913 = vmatprep.subr.bf16.mxu0 0
        %1914 = vmatpush1.bf16.msra.mxu0 0
        %1915 = vmatprep.subr.bf16.mxu0 0
        %1916 = vmatpush1.bf16.msra.mxu0 0
        %1917 = vmatprep.subr.bf16.mxu0 0
        %1918 = vmatpush1.bf16.msra.mxu0 0
        %1919 = vmatprep.subr.bf16.mxu0 0
        %1920 = vmatpush1.bf16.msra.mxu0 0
        %1921 = vmatprep.subr.bf16.mxu0 0
        %1922 = vmatpush1.bf16.msra.mxu0 0
        %1923 = vmatprep.subr.bf16.mxu0 0
        %1924 = vmatpush1.bf16.msra.mxu0 0
        %1925 = vmatprep.subr.bf16.mxu0 0
        %1926 = vmatpush1.bf16.msra.mxu0 0
        %1927 = vmatprep.subr.bf16.mxu0 0
        %1928 = vmatpush1.bf16.msra.mxu0 0
        %1929 = vmatprep.subr.bf16.mxu0 0
        %1930 = vmatpush1.bf16.msra.mxu0 0
        %1931 = vmatprep.subr.bf16.mxu0 0
        %1932 = vmatpush1.bf16.msra.mxu0 0
        %1933 = vmatprep.subr.bf16.mxu0 0
        %1934 = vmatpush1.bf16.msra.mxu0 0
        %1935 = vmatprep.subr.bf16.mxu0 0
        %1936 = vmatpush1.bf16.msra.mxu0 0
        %1937 = vmatprep.mubr.bf16.mxu0 0
        %1938 = vmatmul.mubr.bf16.gmra.mrb[0].mxu0 %v1900
        %v1939 = vpop.f32.mrb[0].mxu0
        %v1940 = vadd.f32 0.0, %v1939
        %v1941 = vpop.f32.mrb[0].mxu0
        %v1942 = vpop.f32.mrb[0].mxu0
        %v1943 = vpop.f32.mrb[0].mxu0
        %1944 = vdwg.mxu0
        %1945 = vrot.lane.b32.xlu0 %v1022, 64
        %v1946 = vpop.permute.xlu0 %1945
        %1947 = vrot.lane.b32.xlu0 %v1026, 64
        %v1948 = vpop.permute.xlu0 %1947
        %v1950 = vsel %vm1030, %v1946, 0
        %v1953 = vsel %vm1030, %v1948, 0
        %1955 = vmatprep.subr.bf16.mxu0 0
        %1956 = vmatpush1.bf16.xpose.msra.mxu0 %v1953
        %1957 = vmatprep.subr.bf16.mxu0 0
        %1958 = vmatpush1.bf16.xpose.msra.mxu0 0
        %1959 = vmatprep.subr.bf16.mxu0 0
        %1960 = vmatpush1.bf16.xpose.msra.mxu0 0
        %1961 = vmatprep.subr.bf16.mxu0 0
        %1962 = vmatpush1.bf16.xpose.msra.mxu0 0
        %1963 = vmatprep.subr.bf16.mxu0 0
        %1964 = vmatpush1.bf16.xpose.msra.mxu0 0
        %1965 = vmatprep.subr.bf16.mxu0 0
        %1966 = vmatpush1.bf16.xpose.msra.mxu0 0
        %1967 = vmatprep.subr.bf16.mxu0 0
        %1968 = vmatpush1.bf16.xpose.msra.mxu0 0
        %1969 = vmatprep.subr.bf16.mxu0 0
        %1970 = vmatpush1.bf16.xpose.msra.mxu0 0
        %1971 = vmatprep.subr.bf16.mxu0 0
        %1972 = vmatpush1.bf16.xpose.msra.mxu0 0
        %1973 = vmatprep.subr.bf16.mxu0 0
        %1974 = vmatpush1.bf16.xpose.msra.mxu0 0
        %1975 = vmatprep.subr.bf16.mxu0 0
        %1976 = vmatpush1.bf16.xpose.msra.mxu0 0
        %1977 = vmatprep.subr.bf16.mxu0 0
        %1978 = vmatpush1.bf16.xpose.msra.mxu0 0
        %1979 = vmatprep.subr.bf16.mxu0 0
        %1980 = vmatpush1.bf16.xpose.msra.mxu0 0
        %1981 = vmatprep.subr.bf16.mxu0 0
        %1982 = vmatpush1.bf16.xpose.msra.mxu0 0
        %1983 = vmatprep.subr.bf16.mxu0 0
        %1984 = vmatpush1.bf16.xpose.msra.mxu0 0
        %1985 = vmatprep.subr.bf16.mxu0 0
        %1986 = vmatpush1.bf16.xpose.msra.mxu0 0
        %1987 = vmatprep.mubr.bf16.mxu0 0
        %1988 = vmatmul.mubr.bf16.gmra.mrb[0].mxu0 %v1950
        %v1989 = vpop.f32.mrb[0].mxu0
        %v1990 = vadd.f32 0.0, %v1989
        %v1991 = vpop.f32.mrb[0].mxu0
        %v1992 = vpop.f32.mrb[0].mxu0
        %v1993 = vpop.f32.mrb[0].mxu0
        %1994 = vdwg.mxu0
        %1995 = vrot.lane.b32.xlu0 %v1023, 64
        %v1996 = vpop.permute.xlu0 %1995
        %1997 = vrot.lane.b32.xlu0 %v1027, 64
        %v1998 = vpop.permute.xlu0 %1997
        %v2000 = vsel %vm1030, %v1996, 0
        %v2003 = vsel %vm1030, %v1998, 0
        %2005 = vmatprep.subr.bf16.mxu0 0
        %2006 = vmatpush1.bf16.xpose.msra.mxu0 %v2003
        %2007 = vmatprep.subr.bf16.mxu0 0
        %2008 = vmatpush1.bf16.xpose.msra.mxu0 0
        %2009 = vmatprep.subr.bf16.mxu0 0
        %2010 = vmatpush1.bf16.xpose.msra.mxu0 0
        %2011 = vmatprep.subr.bf16.mxu0 0
        %2012 = vmatpush1.bf16.xpose.msra.mxu0 0
        %2013 = vmatprep.subr.bf16.mxu0 0
        %2014 = vmatpush1.bf16.xpose.msra.mxu0 0
        %2015 = vmatprep.subr.bf16.mxu0 0
        %2016 = vmatpush1.bf16.xpose.msra.mxu0 0
        %2017 = vmatprep.subr.bf16.mxu0 0
        %2018 = vmatpush1.bf16.xpose.msra.mxu0 0
        %2019 = vmatprep.subr.bf16.mxu0 0
        %2020 = vmatpush1.bf16.xpose.msra.mxu0 0
        %2021 = vmatprep.subr.bf16.mxu0 0
        %2022 = vmatpush1.bf16.xpose.msra.mxu0 0
        %2023 = vmatprep.subr.bf16.mxu0 0
        %2024 = vmatpush1.bf16.xpose.msra.mxu0 0
        %2025 = vmatprep.subr.bf16.mxu0 0
        %2026 = vmatpush1.bf16.xpose.msra.mxu0 0
        %2027 = vmatprep.subr.bf16.mxu0 0
        %2028 = vmatpush1.bf16.xpose.msra.mxu0 0
        %2029 = vmatprep.subr.bf16.mxu0 0
        %2030 = vmatpush1.bf16.xpose.msra.mxu0 0
        %2031 = vmatprep.subr.bf16.mxu0 0
        %2032 = vmatpush1.bf16.xpose.msra.mxu0 0
        %2033 = vmatprep.subr.bf16.mxu0 0
        %2034 = vmatpush1.bf16.xpose.msra.mxu0 0
        %2035 = vmatprep.subr.bf16.mxu0 0
        %2036 = vmatpush1.bf16.xpose.msra.mxu0 0
        %2037 = vmatprep.mubr.bf16.mxu0 0
        %2038 = vmatmul.mubr.bf16.gmra.mrb[0].mxu0 %v2000
        %v2039 = vpop.f32.mrb[0].mxu0
        %v2040 = vadd.f32 0.0, %v2039
        %v2041 = vpop.f32.mrb[0].mxu0
        %v2042 = vpop.f32.mrb[0].mxu0
        %v2043 = vpop.f32.mrb[0].mxu0
        %2044 = vdwg.mxu0
        %2045 = vrot.lane.b32.xlu0 %v1024, 64
        %v2046 = vpop.permute.xlu0 %2045
        %2047 = vrot.lane.b32.xlu0 %v1028, 64
        %v2048 = vpop.permute.xlu0 %2047
        %v2050 = vsel %vm1030, %v2046, 0
        %v2053 = vsel %vm1030, %v2048, 0
        %2055 = vmatprep.subr.bf16.mxu0 0
        %2056 = vmatpush1.bf16.xpose.msra.mxu0 %v2053
        %2057 = vmatprep.subr.bf16.mxu0 0
        %2058 = vmatpush1.bf16.xpose.msra.mxu0 0
        %2059 = vmatprep.subr.bf16.mxu0 0
        %2060 = vmatpush1.bf16.xpose.msra.mxu0 0
        %2061 = vmatprep.subr.bf16.mxu0 0
        %2062 = vmatpush1.bf16.xpose.msra.mxu0 0
        %2063 = vmatprep.subr.bf16.mxu0 0
        %2064 = vmatpush1.bf16.xpose.msra.mxu0 0
        %2065 = vmatprep.subr.bf16.mxu0 0
        %2066 = vmatpush1.bf16.xpose.msra.mxu0 0
        %2067 = vmatprep.subr.bf16.mxu0 0
        %2068 = vmatpush1.bf16.xpose.msra.mxu0 0
        %2069 = vmatprep.subr.bf16.mxu0 0
        %2070 = vmatpush1.bf16.xpose.msra.mxu0 0
        %2071 = vmatprep.subr.bf16.mxu0 0
        %2072 = vmatpush1.bf16.xpose.msra.mxu0 0
        %2073 = vmatprep.subr.bf16.mxu0 0
        %2074 = vmatpush1.bf16.xpose.msra.mxu0 0
        %2075 = vmatprep.subr.bf16.mxu0 0
        %2076 = vmatpush1.bf16.xpose.msra.mxu0 0
        %2077 = vmatprep.subr.bf16.mxu0 0
        %2078 = vmatpush1.bf16.xpose.msra.mxu0 0
        %2079 = vmatprep.subr.bf16.mxu0 0
        %2080 = vmatpush1.bf16.xpose.msra.mxu0 0
        %2081 = vmatprep.subr.bf16.mxu0 0
        %2082 = vmatpush1.bf16.xpose.msra.mxu0 0
        %2083 = vmatprep.subr.bf16.mxu0 0
        %2084 = vmatpush1.bf16.xpose.msra.mxu0 0
        %2085 = vmatprep.subr.bf16.mxu0 0
        %2086 = vmatpush1.bf16.xpose.msra.mxu0 0
        %2087 = vmatprep.mubr.bf16.mxu0 0
        %2088 = vmatmul.mubr.bf16.gmra.mrb[0].mxu0 %v2050
        %v2089 = vpop.f32.mrb[0].mxu0
        %v2090 = vadd.f32 0.0, %v2089
        %v2091 = vpop.f32.mrb[0].mxu0
        %v2092 = vpop.f32.mrb[0].mxu0
        %v2093 = vpop.f32.mrb[0].mxu0
        %2094 = vdwg.mxu0
        %2095 = vrot.lane.b32.xlu0 %v1025, 64
        %v2096 = vpop.permute.xlu0 %2095
        %2097 = vrot.lane.b32.xlu0 %v1029, 64
        %v2098 = vpop.permute.xlu0 %2097
        %v2100 = vsel %vm1030, %v2096, 0
        %v2103 = vsel %vm1030, %v2098, 0
        %2105 = vmatprep.subr.bf16.mxu0 0
        %2106 = vmatpush1.bf16.xpose.msra.mxu0 %v2103
        %2107 = vmatprep.subr.bf16.mxu0 0
        %2108 = vmatpush1.bf16.xpose.msra.mxu0 0
        %2109 = vmatprep.subr.bf16.mxu0 0
        %2110 = vmatpush1.bf16.xpose.msra.mxu0 0
        %2111 = vmatprep.subr.bf16.mxu0 0
        %2112 = vmatpush1.bf16.xpose.msra.mxu0 0
        %2113 = vmatprep.subr.bf16.mxu0 0
        %2114 = vmatpush1.bf16.xpose.msra.mxu0 0
        %2115 = vmatprep.subr.bf16.mxu0 0
        %2116 = vmatpush1.bf16.xpose.msra.mxu0 0
        %2117 = vmatprep.subr.bf16.mxu0 0
        %2118 = vmatpush1.bf16.xpose.msra.mxu0 0
        %2119 = vmatprep.subr.bf16.mxu0 0
        %2120 = vmatpush1.bf16.xpose.msra.mxu0 0
        %2121 = vmatprep.subr.bf16.mxu0 0
        %2122 = vmatpush1.bf16.xpose.msra.mxu0 0
        %2123 = vmatprep.subr.bf16.mxu0 0
        %2124 = vmatpush1.bf16.xpose.msra.mxu0 0
        %2125 = vmatprep.subr.bf16.mxu0 0
        %2126 = vmatpush1.bf16.xpose.msra.mxu0 0
        %2127 = vmatprep.subr.bf16.mxu0 0
        %2128 = vmatpush1.bf16.xpose.msra.mxu0 0
        %2129 = vmatprep.subr.bf16.mxu0 0
        %2130 = vmatpush1.bf16.xpose.msra.mxu0 0
        %2131 = vmatprep.subr.bf16.mxu0 0
        %2132 = vmatpush1.bf16.xpose.msra.mxu0 0
        %2133 = vmatprep.subr.bf16.mxu0 0
        %2134 = vmatpush1.bf16.xpose.msra.mxu0 0
        %2135 = vmatprep.subr.bf16.mxu0 0
        %2136 = vmatpush1.bf16.xpose.msra.mxu0 0
        %2137 = vmatprep.mubr.bf16.mxu0 0
        %2138 = vmatmul.mubr.bf16.gmra.mrb[0].mxu0 %v2100
        %v2139 = vpop.f32.mrb[0].mxu0
        %v2140 = vadd.f32 0.0, %v2139
        %v2141 = vpop.f32.mrb[0].mxu0
        %v2142 = vpop.f32.mrb[0].mxu0
        %v2143 = vpop.f32.mrb[0].mxu0
        %2144 = vdwg.mxu0
        %v2145 = vmul.f32 %v1990, 0.17677669
        %v2146 = vmul.f32 %v2040, 0.17677669
        %v2147 = vmul.f32 %v2090, 0.17677669
        %v2148 = vmul.f32 %v2140, 0.17677669
        %v2149 = vadd.f32 %v2145, %v1226
        %v2150 = vadd.f32 %v2146, %v1230
        %v2151 = vadd.f32 %v2147, %v1234
        %v2152 = vadd.f32 %v2148, %v1238
        %v2153 = vsel %vm1247, %v2149, -inf
        %2154 = vmax.xlane.f32.xlu0 %v2153
        %v2155 = vpop.xlane.xlu0 %2154
        %v2156 = vsel %vm1247, %v2150, -inf
        %2157 = vmax.xlane.f32.xlu0 %v2156
        %v2158 = vpop.xlane.xlu0 %2157
        %v2159 = vsel %vm1247, %v2151, -inf
        %2160 = vmax.xlane.f32.xlu0 %v2159
        %v2161 = vpop.xlane.xlu0 %2160
        %v2162 = vsel %vm1247, %v2152, -inf
        %2163 = vmax.xlane.f32.xlu0 %v2162
        %v2164 = vpop.xlane.xlu0 %2163
        %v2165 = vsub.f32 %v2149, %v2155
        %v2166 = vsub.f32 %v2150, %v2158
        %v2167 = vsub.f32 %v2151, %v2161
        %v2168 = vsub.f32 %v2152, %v2164
        %v2169 = vmul.f32 %v2165, 1.442695
        %v2170 = vpow.pop %v2169
        %v2171 = vmul.f32 %v2166, 1.442695
        %v2172 = vpow.pop %v2171
        %v2173 = vmul.f32 %v2167, 1.442695
        %v2174 = vpow.pop %v2173
        %v2175 = vmul.f32 %v2168, 1.442695
        %v2176 = vpow.pop %v2175
        %v2177 = vsel %vm1247, %v2170, 0.0
        %2178 = vadd.xlane.f32.xlu0 %v2177
        %v2179 = vpop.xlane.xlu0 %2178
        %v2180 = vsel %vm1247, %v2172, 0.0
        %2181 = vadd.xlane.f32.xlu0 %v2180
        %v2182 = vpop.xlane.xlu0 %2181
        %v2183 = vsel %vm1247, %v2174, 0.0
        %2184 = vadd.xlane.f32.xlu0 %v2183
        %v2185 = vpop.xlane.xlu0 %2184
        %v2186 = vsel %vm1247, %v2176, 0.0
        %2187 = vadd.xlane.f32.xlu0 %v2186
        %v2188 = vpop.xlane.xlu0 %2187
        %v2189 = vrcp.pop %v2179
        %v2190 = vrcp.pop %v2182
        %v2191 = vrcp.pop %v2185
        %v2192 = vrcp.pop %v2188
        %v2193 = vmul.f32 %v2170, %v2189
        %v2194 = vmul.f32 %v2172, %v2190
        %v2195 = vmul.f32 %v2174, %v2191
        %v2196 = vmul.f32 %v2176, %v2192
        %v2197 = vpack.c.bf16 %v2193, %v2193
        %v2198 = vpack.c.bf16 %v2194, %v2194
        %v2199 = vpack.c.bf16 %v2195, %v2195
        %v2200 = vpack.c.bf16 %v2196, %v2196
        %2201 = vrot.lane.b32.xlu0 %v1296, 64
        %v2202 = vpop.permute.xlu0 %2201
        %v2204 = vsel %vm1247, %v2197, 0
        %v2207 = vsel %vm1303, %v2202, 0
        %2209 = vmatprep.subr.bf16.mxu0 0
        %2210 = vmatpush1.bf16.msra.mxu0 %v2207
        %2211 = vmatprep.subr.bf16.mxu0 0
        %2212 = vmatpush1.bf16.msra.mxu0 0
        %2213 = vmatprep.subr.bf16.mxu0 0
        %2214 = vmatpush1.bf16.msra.mxu0 0
        %2215 = vmatprep.subr.bf16.mxu0 0
        %2216 = vmatpush1.bf16.msra.mxu0 0
        %2217 = vmatprep.subr.bf16.mxu0 0
        %2218 = vmatpush1.bf16.msra.mxu0 0
        %2219 = vmatprep.subr.bf16.mxu0 0
        %2220 = vmatpush1.bf16.msra.mxu0 0
        %2221 = vmatprep.subr.bf16.mxu0 0
        %2222 = vmatpush1.bf16.msra.mxu0 0
        %2223 = vmatprep.subr.bf16.mxu0 0
        %2224 = vmatpush1.bf16.msra.mxu0 0
        %2225 = vmatprep.subr.bf16.mxu0 0
        %2226 = vmatpush1.bf16.msra.mxu0 0
        %2227 = vmatprep.subr.bf16.mxu0 0
        %2228 = vmatpush1.bf16.msra.mxu0 0
        %2229 = vmatprep.subr.bf16.mxu0 0
        %2230 = vmatpush1.bf16.msra.mxu0 0
        %2231 = vmatprep.subr.bf16.mxu0 0
        %2232 = vmatpush1.bf16.msra.mxu0 0
        %2233 = vmatprep.subr.bf16.mxu0 0
        %2234 = vmatpush1.bf16.msra.mxu0 0
        %2235 = vmatprep.subr.bf16.mxu0 0
        %2236 = vmatpush1.bf16.msra.mxu0 0
        %2237 = vmatprep.subr.bf16.mxu0 0
        %2238 = vmatpush1.bf16.msra.mxu0 0
        %2239 = vmatprep.subr.bf16.mxu0 0
        %2240 = vmatpush1.bf16.msra.mxu0 0
        %2241 = vmatprep.mubr.bf16.mxu0 0
        %2242 = vmatmul.mubr.bf16.gmra.mrb[0].mxu0 %v2204
        %v2243 = vpop.f32.mrb[0].mxu0
        %v2244 = vadd.f32 0.0, %v2243
        %v2245 = vpop.f32.mrb[0].mxu0
        %v2246 = vpop.f32.mrb[0].mxu0
        %v2247 = vpop.f32.mrb[0].mxu0
        %2248 = vdwg.mxu0
        %2249 = vrot.lane.b32.xlu0 %v1297, 64
        %v2250 = vpop.permute.xlu0 %2249
        %v2252 = vsel %vm1247, %v2198, 0
        %v2255 = vsel %vm1303, %v2250, 0
        %2257 = vmatprep.subr.bf16.mxu0 0
        %2258 = vmatpush1.bf16.msra.mxu0 %v2255
        %2259 = vmatprep.subr.bf16.mxu0 0
        %2260 = vmatpush1.bf16.msra.mxu0 0
        %2261 = vmatprep.subr.bf16.mxu0 0
        %2262 = vmatpush1.bf16.msra.mxu0 0
        %2263 = vmatprep.subr.bf16.mxu0 0
        %2264 = vmatpush1.bf16.msra.mxu0 0
        %2265 = vmatprep.subr.bf16.mxu0 0
        %2266 = vmatpush1.bf16.msra.mxu0 0
        %2267 = vmatprep.subr.bf16.mxu0 0
        %2268 = vmatpush1.bf16.msra.mxu0 0
        %2269 = vmatprep.subr.bf16.mxu0 0
        %2270 = vmatpush1.bf16.msra.mxu0 0
        %2271 = vmatprep.subr.bf16.mxu0 0
        %2272 = vmatpush1.bf16.msra.mxu0 0
        %2273 = vmatprep.subr.bf16.mxu0 0
        %2274 = vmatpush1.bf16.msra.mxu0 0
        %2275 = vmatprep.subr.bf16.mxu0 0
        %2276 = vmatpush1.bf16.msra.mxu0 0
        %2277 = vmatprep.subr.bf16.mxu0 0
        %2278 = vmatpush1.bf16.msra.mxu0 0
        %2279 = vmatprep.subr.bf16.mxu0 0
        %2280 = vmatpush1.bf16.msra.mxu0 0
        %2281 = vmatprep.subr.bf16.mxu0 0
        %2282 = vmatpush1.bf16.msra.mxu0 0
        %2283 = vmatprep.subr.bf16.mxu0 0
        %2284 = vmatpush1.bf16.msra.mxu0 0
        %2285 = vmatprep.subr.bf16.mxu0 0
        %2286 = vmatpush1.bf16.msra.mxu0 0
        %2287 = vmatprep.subr.bf16.mxu0 0
        %2288 = vmatpush1.bf16.msra.mxu0 0
        %2289 = vmatprep.mubr.bf16.mxu0 0
        %2290 = vmatmul.mubr.bf16.gmra.mrb[0].mxu0 %v2252
        %v2291 = vpop.f32.mrb[0].mxu0
        %v2292 = vadd.f32 0.0, %v2291
        %v2293 = vpop.f32.mrb[0].mxu0
        %v2294 = vpop.f32.mrb[0].mxu0
        %v2295 = vpop.f32.mrb[0].mxu0
        %2296 = vdwg.mxu0
        %2297 = vrot.lane.b32.xlu0 %v1298, 64
        %v2298 = vpop.permute.xlu0 %2297
        %v2300 = vsel %vm1247, %v2199, 0
        %v2303 = vsel %vm1303, %v2298, 0
        %2305 = vmatprep.subr.bf16.mxu0 0
        %2306 = vmatpush1.bf16.msra.mxu0 %v2303
        %2307 = vmatprep.subr.bf16.mxu0 0
        %2308 = vmatpush1.bf16.msra.mxu0 0
        %2309 = vmatprep.subr.bf16.mxu0 0
        %2310 = vmatpush1.bf16.msra.mxu0 0
        %2311 = vmatprep.subr.bf16.mxu0 0
        %2312 = vmatpush1.bf16.msra.mxu0 0
        %2313 = vmatprep.subr.bf16.mxu0 0
        %2314 = vmatpush1.bf16.msra.mxu0 0
        %2315 = vmatprep.subr.bf16.mxu0 0
        %2316 = vmatpush1.bf16.msra.mxu0 0
        %2317 = vmatprep.subr.bf16.mxu0 0
        %2318 = vmatpush1.bf16.msra.mxu0 0
        %2319 = vmatprep.subr.bf16.mxu0 0
        %2320 = vmatpush1.bf16.msra.mxu0 0
        %2321 = vmatprep.subr.bf16.mxu0 0
        %2322 = vmatpush1.bf16.msra.mxu0 0
        %2323 = vmatprep.subr.bf16.mxu0 0
        %2324 = vmatpush1.bf16.msra.mxu0 0
        %2325 = vmatprep.subr.bf16.mxu0 0
        %2326 = vmatpush1.bf16.msra.mxu0 0
        %2327 = vmatprep.subr.bf16.mxu0 0
        %2328 = vmatpush1.bf16.msra.mxu0 0
        %2329 = vmatprep.subr.bf16.mxu0 0
        %2330 = vmatpush1.bf16.msra.mxu0 0
        %2331 = vmatprep.subr.bf16.mxu0 0
        %2332 = vmatpush1.bf16.msra.mxu0 0
        %2333 = vmatprep.subr.bf16.mxu0 0
        %2334 = vmatpush1.bf16.msra.mxu0 0
        %2335 = vmatprep.subr.bf16.mxu0 0
        %2336 = vmatpush1.bf16.msra.mxu0 0
        %2337 = vmatprep.mubr.bf16.mxu0 0
        %2338 = vmatmul.mubr.bf16.gmra.mrb[0].mxu0 %v2300
        %v2339 = vpop.f32.mrb[0].mxu0
        %v2340 = vadd.f32 0.0, %v2339
        %v2341 = vpop.f32.mrb[0].mxu0
        %v2342 = vpop.f32.mrb[0].mxu0
        %v2343 = vpop.f32.mrb[0].mxu0
        %2344 = vdwg.mxu0
        %2345 = vrot.lane.b32.xlu0 %v1299, 64
        %v2346 = vpop.permute.xlu0 %2345
        %v2348 = vsel %vm1247, %v2200, 0
        %v2351 = vsel %vm1303, %v2346, 0
        %2353 = vmatprep.subr.bf16.mxu0 0
        %2354 = vmatpush1.bf16.msra.mxu0 %v2351
        %2355 = vmatprep.subr.bf16.mxu0 0
        %2356 = vmatpush1.bf16.msra.mxu0 0
        %2357 = vmatprep.subr.bf16.mxu0 0
        %2358 = vmatpush1.bf16.msra.mxu0 0
        %2359 = vmatprep.subr.bf16.mxu0 0
        %2360 = vmatpush1.bf16.msra.mxu0 0
        %2361 = vmatprep.subr.bf16.mxu0 0
        %2362 = vmatpush1.bf16.msra.mxu0 0
        %2363 = vmatprep.subr.bf16.mxu0 0
        %2364 = vmatpush1.bf16.msra.mxu0 0
        %2365 = vmatprep.subr.bf16.mxu0 0
        %2366 = vmatpush1.bf16.msra.mxu0 0
        %2367 = vmatprep.subr.bf16.mxu0 0
        %2368 = vmatpush1.bf16.msra.mxu0 0
        %2369 = vmatprep.subr.bf16.mxu0 0
        %2370 = vmatpush1.bf16.msra.mxu0 0
        %2371 = vmatprep.subr.bf16.mxu0 0
        %2372 = vmatpush1.bf16.msra.mxu0 0
        %2373 = vmatprep.subr.bf16.mxu0 0
        %2374 = vmatpush1.bf16.msra.mxu0 0
        %2375 = vmatprep.subr.bf16.mxu0 0
        %2376 = vmatpush1.bf16.msra.mxu0 0
        %2377 = vmatprep.subr.bf16.mxu0 0
        %2378 = vmatpush1.bf16.msra.mxu0 0
        %2379 = vmatprep.subr.bf16.mxu0 0
        %2380 = vmatpush1.bf16.msra.mxu0 0
        %2381 = vmatprep.subr.bf16.mxu0 0
        %2382 = vmatpush1.bf16.msra.mxu0 0
        %2383 = vmatprep.subr.bf16.mxu0 0
        %2384 = vmatpush1.bf16.msra.mxu0 0
        %2385 = vmatprep.mubr.bf16.mxu0 0
        %2386 = vmatmul.mubr.bf16.gmra.mrb[0].mxu0 %v2348
        %v2387 = vpop.f32.mrb[0].mxu0
        %v2388 = vadd.f32 0.0, %v2387
        %v2389 = vpop.f32.mrb[0].mxu0
        %v2390 = vpop.f32.mrb[0].mxu0
        %v2391 = vpop.f32.mrb[0].mxu0
        %2392 = vdwg.mxu0
        %2393 = vrot.lane.b32.xlu0 %v1022, 32
        %v2394 = vpop.permute.xlu0 %2393
        %2395 = vrot.lane.b32.xlu0 %v1026, 32
        %v2396 = vpop.permute.xlu0 %2395
        %v2398 = vsel %vm1030, %v2394, 0
        %v2401 = vsel %vm1030, %v2396, 0
        %2403 = vmatprep.subr.bf16.mxu0 0
        %2404 = vmatpush1.bf16.xpose.msra.mxu0 %v2401
        %2405 = vmatprep.subr.bf16.mxu0 0
        %2406 = vmatpush1.bf16.xpose.msra.mxu0 0
        %2407 = vmatprep.subr.bf16.mxu0 0
        %2408 = vmatpush1.bf16.xpose.msra.mxu0 0
        %2409 = vmatprep.subr.bf16.mxu0 0
        %2410 = vmatpush1.bf16.xpose.msra.mxu0 0
        %2411 = vmatprep.subr.bf16.mxu0 0
        %2412 = vmatpush1.bf16.xpose.msra.mxu0 0
        %2413 = vmatprep.subr.bf16.mxu0 0
        %2414 = vmatpush1.bf16.xpose.msra.mxu0 0
        %2415 = vmatprep.subr.bf16.mxu0 0
        %2416 = vmatpush1.bf16.xpose.msra.mxu0 0
        %2417 = vmatprep.subr.bf16.mxu0 0
        %2418 = vmatpush1.bf16.xpose.msra.mxu0 0
        %2419 = vmatprep.subr.bf16.mxu0 0
        %2420 = vmatpush1.bf16.xpose.msra.mxu0 0
        %2421 = vmatprep.subr.bf16.mxu0 0
        %2422 = vmatpush1.bf16.xpose.msra.mxu0 0
        %2423 = vmatprep.subr.bf16.mxu0 0
        %2424 = vmatpush1.bf16.xpose.msra.mxu0 0
        %2425 = vmatprep.subr.bf16.mxu0 0
        %2426 = vmatpush1.bf16.xpose.msra.mxu0 0
        %2427 = vmatprep.subr.bf16.mxu0 0
        %2428 = vmatpush1.bf16.xpose.msra.mxu0 0
        %2429 = vmatprep.subr.bf16.mxu0 0
        %2430 = vmatpush1.bf16.xpose.msra.mxu0 0
        %2431 = vmatprep.subr.bf16.mxu0 0
        %2432 = vmatpush1.bf16.xpose.msra.mxu0 0
        %2433 = vmatprep.subr.bf16.mxu0 0
        %2434 = vmatpush1.bf16.xpose.msra.mxu0 0
        %2435 = vmatprep.mubr.bf16.mxu0 0
        %2436 = vmatmul.mubr.bf16.gmra.mrb[0].mxu0 %v2398
        %v2437 = vpop.f32.mrb[0].mxu0
        %v2438 = vadd.f32 0.0, %v2437
        %v2439 = vpop.f32.mrb[0].mxu0
        %v2440 = vpop.f32.mrb[0].mxu0
        %v2441 = vpop.f32.mrb[0].mxu0
        %2442 = vdwg.mxu0
        %2443 = vrot.lane.b32.xlu0 %v1023, 32
        %v2444 = vpop.permute.xlu0 %2443
        %2445 = vrot.lane.b32.xlu0 %v1027, 32
        %v2446 = vpop.permute.xlu0 %2445
        %v2448 = vsel %vm1030, %v2444, 0
        %v2451 = vsel %vm1030, %v2446, 0
        %2453 = vmatprep.subr.bf16.mxu0 0
        %2454 = vmatpush1.bf16.xpose.msra.mxu0 %v2451
        %2455 = vmatprep.subr.bf16.mxu0 0
        %2456 = vmatpush1.bf16.xpose.msra.mxu0 0
        %2457 = vmatprep.subr.bf16.mxu0 0
        %2458 = vmatpush1.bf16.xpose.msra.mxu0 0
        %2459 = vmatprep.subr.bf16.mxu0 0
        %2460 = vmatpush1.bf16.xpose.msra.mxu0 0
        %2461 = vmatprep.subr.bf16.mxu0 0
        %2462 = vmatpush1.bf16.xpose.msra.mxu0 0
        %2463 = vmatprep.subr.bf16.mxu0 0
        %2464 = vmatpush1.bf16.xpose.msra.mxu0 0
        %2465 = vmatprep.subr.bf16.mxu0 0
        %2466 = vmatpush1.bf16.xpose.msra.mxu0 0
        %2467 = vmatprep.subr.bf16.mxu0 0
        %2468 = vmatpush1.bf16.xpose.msra.mxu0 0
        %2469 = vmatprep.subr.bf16.mxu0 0
        %2470 = vmatpush1.bf16.xpose.msra.mxu0 0
        %2471 = vmatprep.subr.bf16.mxu0 0
        %2472 = vmatpush1.bf16.xpose.msra.mxu0 0
        %2473 = vmatprep.subr.bf16.mxu0 0
        %2474 = vmatpush1.bf16.xpose.msra.mxu0 0
        %2475 = vmatprep.subr.bf16.mxu0 0
        %2476 = vmatpush1.bf16.xpose.msra.mxu0 0
        %2477 = vmatprep.subr.bf16.mxu0 0
        %2478 = vmatpush1.bf16.xpose.msra.mxu0 0
        %2479 = vmatprep.subr.bf16.mxu0 0
        %2480 = vmatpush1.bf16.xpose.msra.mxu0 0
        %2481 = vmatprep.subr.bf16.mxu0 0
        %2482 = vmatpush1.bf16.xpose.msra.mxu0 0
        %2483 = vmatprep.subr.bf16.mxu0 0
        %2484 = vmatpush1.bf16.xpose.msra.mxu0 0
        %2485 = vmatprep.mubr.bf16.mxu0 0
        %2486 = vmatmul.mubr.bf16.gmra.mrb[0].mxu0 %v2448
        %v2487 = vpop.f32.mrb[0].mxu0
        %v2488 = vadd.f32 0.0, %v2487
        %v2489 = vpop.f32.mrb[0].mxu0
        %v2490 = vpop.f32.mrb[0].mxu0
        %v2491 = vpop.f32.mrb[0].mxu0
        %2492 = vdwg.mxu0
        %2493 = vrot.lane.b32.xlu0 %v1024, 32
        %v2494 = vpop.permute.xlu0 %2493
        %2495 = vrot.lane.b32.xlu0 %v1028, 32
        %v2496 = vpop.permute.xlu0 %2495
        %v2498 = vsel %vm1030, %v2494, 0
        %v2501 = vsel %vm1030, %v2496, 0
        %2503 = vmatprep.subr.bf16.mxu0 0
        %2504 = vmatpush1.bf16.xpose.msra.mxu0 %v2501
        %2505 = vmatprep.subr.bf16.mxu0 0
        %2506 = vmatpush1.bf16.xpose.msra.mxu0 0
        %2507 = vmatprep.subr.bf16.mxu0 0
        %2508 = vmatpush1.bf16.xpose.msra.mxu0 0
        %2509 = vmatprep.subr.bf16.mxu0 0
        %2510 = vmatpush1.bf16.xpose.msra.mxu0 0
        %2511 = vmatprep.subr.bf16.mxu0 0
        %2512 = vmatpush1.bf16.xpose.msra.mxu0 0
        %2513 = vmatprep.subr.bf16.mxu0 0
        %2514 = vmatpush1.bf16.xpose.msra.mxu0 0
        %2515 = vmatprep.subr.bf16.mxu0 0
        %2516 = vmatpush1.bf16.xpose.msra.mxu0 0
        %2517 = vmatprep.subr.bf16.mxu0 0
        %2518 = vmatpush1.bf16.xpose.msra.mxu0 0
        %2519 = vmatprep.subr.bf16.mxu0 0
        %2520 = vmatpush1.bf16.xpose.msra.mxu0 0
        %2521 = vmatprep.subr.bf16.mxu0 0
        %2522 = vmatpush1.bf16.xpose.msra.mxu0 0
        %2523 = vmatprep.subr.bf16.mxu0 0
        %2524 = vmatpush1.bf16.xpose.msra.mxu0 0
        %2525 = vmatprep.subr.bf16.mxu0 0
        %2526 = vmatpush1.bf16.xpose.msra.mxu0 0
        %2527 = vmatprep.subr.bf16.mxu0 0
        %2528 = vmatpush1.bf16.xpose.msra.mxu0 0
        %2529 = vmatprep.subr.bf16.mxu0 0
        %2530 = vmatpush1.bf16.xpose.msra.mxu0 0
        %2531 = vmatprep.subr.bf16.mxu0 0
        %2532 = vmatpush1.bf16.xpose.msra.mxu0 0
        %2533 = vmatprep.subr.bf16.mxu0 0
        %2534 = vmatpush1.bf16.xpose.msra.mxu0 0
        %2535 = vmatprep.mubr.bf16.mxu0 0
        %2536 = vmatmul.mubr.bf16.gmra.mrb[0].mxu0 %v2498
        %v2537 = vpop.f32.mrb[0].mxu0
        %v2538 = vadd.f32 0.0, %v2537
        %v2539 = vpop.f32.mrb[0].mxu0
        %v2540 = vpop.f32.mrb[0].mxu0
        %v2541 = vpop.f32.mrb[0].mxu0
        %2542 = vdwg.mxu0
        %2543 = vrot.lane.b32.xlu0 %v1025, 32
        %v2544 = vpop.permute.xlu0 %2543
        %2545 = vrot.lane.b32.xlu0 %v1029, 32
        %v2546 = vpop.permute.xlu0 %2545
        %v2548 = vsel %vm1030, %v2544, 0
        %v2551 = vsel %vm1030, %v2546, 0
        %2553 = vmatprep.subr.bf16.mxu0 0
        %2554 = vmatpush1.bf16.xpose.msra.mxu0 %v2551
        %2555 = vmatprep.subr.bf16.mxu0 0
        %2556 = vmatpush1.bf16.xpose.msra.mxu0 0
        %2557 = vmatprep.subr.bf16.mxu0 0
        %2558 = vmatpush1.bf16.xpose.msra.mxu0 0
        %2559 = vmatprep.subr.bf16.mxu0 0
        %2560 = vmatpush1.bf16.xpose.msra.mxu0 0
        %2561 = vmatprep.subr.bf16.mxu0 0
        %2562 = vmatpush1.bf16.xpose.msra.mxu0 0
        %2563 = vmatprep.subr.bf16.mxu0 0
        %2564 = vmatpush1.bf16.xpose.msra.mxu0 0
        %2565 = vmatprep.subr.bf16.mxu0 0
        %2566 = vmatpush1.bf16.xpose.msra.mxu0 0
        %2567 = vmatprep.subr.bf16.mxu0 0
        %2568 = vmatpush1.bf16.xpose.msra.mxu0 0
        %2569 = vmatprep.subr.bf16.mxu0 0
        %2570 = vmatpush1.bf16.xpose.msra.mxu0 0
        %2571 = vmatprep.subr.bf16.mxu0 0
        %2572 = vmatpush1.bf16.xpose.msra.mxu0 0
        %2573 = vmatprep.subr.bf16.mxu0 0
        %2574 = vmatpush1.bf16.xpose.msra.mxu0 0
        %2575 = vmatprep.subr.bf16.mxu0 0
        %2576 = vmatpush1.bf16.xpose.msra.mxu0 0
        %2577 = vmatprep.subr.bf16.mxu0 0
        %2578 = vmatpush1.bf16.xpose.msra.mxu0 0
        %2579 = vmatprep.subr.bf16.mxu0 0
        %2580 = vmatpush1.bf16.xpose.msra.mxu0 0
        %2581 = vmatprep.subr.bf16.mxu0 0
        %2582 = vmatpush1.bf16.xpose.msra.mxu0 0
        %2583 = vmatprep.subr.bf16.mxu0 0
        %2584 = vmatpush1.bf16.xpose.msra.mxu0 0
        %2585 = vmatprep.mubr.bf16.mxu0 0
        %2586 = vmatmul.mubr.bf16.gmra.mrb[0].mxu0 %v2548
        %v2587 = vpop.f32.mrb[0].mxu0
        %v2588 = vadd.f32 0.0, %v2587
        %v2589 = vpop.f32.mrb[0].mxu0
        %v2590 = vpop.f32.mrb[0].mxu0
        %v2591 = vpop.f32.mrb[0].mxu0
        %2592 = vdwg.mxu0
        %v2593 = vmul.f32 %v2438, 0.17677669
        %v2594 = vmul.f32 %v2488, 0.17677669
        %v2595 = vmul.f32 %v2538, 0.17677669
        %v2596 = vmul.f32 %v2588, 0.17677669
        %v2597 = vadd.f32 %v2593, %v1226
        %v2598 = vadd.f32 %v2594, %v1230
        %v2599 = vadd.f32 %v2595, %v1234
        %v2600 = vadd.f32 %v2596, %v1238
        %v2601 = vsel %vm1247, %v2597, -inf
        %2602 = vmax.xlane.f32.xlu0 %v2601
        %v2603 = vpop.xlane.xlu0 %2602
        %v2604 = vsel %vm1247, %v2598, -inf
        %2605 = vmax.xlane.f32.xlu0 %v2604
        %v2606 = vpop.xlane.xlu0 %2605
        %v2607 = vsel %vm1247, %v2599, -inf
        %2608 = vmax.xlane.f32.xlu0 %v2607
        %v2609 = vpop.xlane.xlu0 %2608
        %v2610 = vsel %vm1247, %v2600, -inf
        %2611 = vmax.xlane.f32.xlu0 %v2610
        %v2612 = vpop.xlane.xlu0 %2611
        %v2613 = vsub.f32 %v2597, %v2603
        %v2614 = vsub.f32 %v2598, %v2606
        %v2615 = vsub.f32 %v2599, %v2609
        %v2616 = vsub.f32 %v2600, %v2612
        %v2617 = vmul.f32 %v2613, 1.442695
        %v2618 = vpow.pop %v2617
        %v2619 = vmul.f32 %v2614, 1.442695
        %v2620 = vpow.pop %v2619
        %v2621 = vmul.f32 %v2615, 1.442695
        %v2622 = vpow.pop %v2621
        %v2623 = vmul.f32 %v2616, 1.442695
        %v2624 = vpow.pop %v2623
        %v2625 = vsel %vm1247, %v2618, 0.0
        %2626 = vadd.xlane.f32.xlu0 %v2625
        %v2627 = vpop.xlane.xlu0 %2626
        %v2628 = vsel %vm1247, %v2620, 0.0
        %2629 = vadd.xlane.f32.xlu0 %v2628
        %v2630 = vpop.xlane.xlu0 %2629
        %v2631 = vsel %vm1247, %v2622, 0.0
        %2632 = vadd.xlane.f32.xlu0 %v2631
        %v2633 = vpop.xlane.xlu0 %2632
        %v2634 = vsel %vm1247, %v2624, 0.0
        %2635 = vadd.xlane.f32.xlu0 %v2634
        %v2636 = vpop.xlane.xlu0 %2635
        %v2637 = vrcp.pop %v2627
        %v2638 = vrcp.pop %v2630
        %v2639 = vrcp.pop %v2633
        %v2640 = vrcp.pop %v2636
        %v2641 = vmul.f32 %v2618, %v2637
        %v2642 = vmul.f32 %v2620, %v2638
        %v2643 = vmul.f32 %v2622, %v2639
        %v2644 = vmul.f32 %v2624, %v2640
        %v2645 = vpack.c.bf16 %v2641, %v2641
        %v2646 = vpack.c.bf16 %v2642, %v2642
        %v2647 = vpack.c.bf16 %v2643, %v2643
        %v2648 = vpack.c.bf16 %v2644, %v2644
        %2649 = vrot.lane.b32.xlu0 %v1296, 32
        %v2650 = vpop.permute.xlu0 %2649
        %v2652 = vsel %vm1247, %v2645, 0
        %v2655 = vsel %vm1303, %v2650, 0
        %2657 = vmatprep.subr.bf16.mxu0 0
        %2658 = vmatpush1.bf16.msra.mxu0 %v2655
        %2659 = vmatprep.subr.bf16.mxu0 0
        %2660 = vmatpush1.bf16.msra.mxu0 0
        %2661 = vmatprep.subr.bf16.mxu0 0
        %2662 = vmatpush1.bf16.msra.mxu0 0
        %2663 = vmatprep.subr.bf16.mxu0 0
        %2664 = vmatpush1.bf16.msra.mxu0 0
        %2665 = vmatprep.subr.bf16.mxu0 0
        %2666 = vmatpush1.bf16.msra.mxu0 0
        %2667 = vmatprep.subr.bf16.mxu0 0
        %2668 = vmatpush1.bf16.msra.mxu0 0
        %2669 = vmatprep.subr.bf16.mxu0 0
        %2670 = vmatpush1.bf16.msra.mxu0 0
        %2671 = vmatprep.subr.bf16.mxu0 0
        %2672 = vmatpush1.bf16.msra.mxu0 0
        %2673 = vmatprep.subr.bf16.mxu0 0
        %2674 = vmatpush1.bf16.msra.mxu0 0
        %2675 = vmatprep.subr.bf16.mxu0 0
        %2676 = vmatpush1.bf16.msra.mxu0 0
        %2677 = vmatprep.subr.bf16.mxu0 0
        %2678 = vmatpush1.bf16.msra.mxu0 0
        %2679 = vmatprep.subr.bf16.mxu0 0
        %2680 = vmatpush1.bf16.msra.mxu0 0
        %2681 = vmatprep.subr.bf16.mxu0 0
        %2682 = vmatpush1.bf16.msra.mxu0 0
        %2683 = vmatprep.subr.bf16.mxu0 0
        %2684 = vmatpush1.bf16.msra.mxu0 0
        %2685 = vmatprep.subr.bf16.mxu0 0
        %2686 = vmatpush1.bf16.msra.mxu0 0
        %2687 = vmatprep.subr.bf16.mxu0 0
        %2688 = vmatpush1.bf16.msra.mxu0 0
        %2689 = vmatprep.mubr.bf16.mxu0 0
        %2690 = vmatmul.mubr.bf16.gmra.mrb[0].mxu0 %v2652
        %v2691 = vpop.f32.mrb[0].mxu0
        %v2692 = vadd.f32 0.0, %v2691
        %v2693 = vpop.f32.mrb[0].mxu0
        %v2694 = vpop.f32.mrb[0].mxu0
        %v2695 = vpop.f32.mrb[0].mxu0
        %2696 = vdwg.mxu0
        %2697 = vrot.lane.b32.xlu0 %v1297, 32
        %v2698 = vpop.permute.xlu0 %2697
        %v2700 = vsel %vm1247, %v2646, 0
        %v2703 = vsel %vm1303, %v2698, 0
        %2705 = vmatprep.subr.bf16.mxu0 0
        %2706 = vmatpush1.bf16.msra.mxu0 %v2703
        %2707 = vmatprep.subr.bf16.mxu0 0
        %2708 = vmatpush1.bf16.msra.mxu0 0
        %2709 = vmatprep.subr.bf16.mxu0 0
        %2710 = vmatpush1.bf16.msra.mxu0 0
        %2711 = vmatprep.subr.bf16.mxu0 0
        %2712 = vmatpush1.bf16.msra.mxu0 0
        %2713 = vmatprep.subr.bf16.mxu0 0
        %2714 = vmatpush1.bf16.msra.mxu0 0
        %2715 = vmatprep.subr.bf16.mxu0 0
        %2716 = vmatpush1.bf16.msra.mxu0 0
        %2717 = vmatprep.subr.bf16.mxu0 0
        %2718 = vmatpush1.bf16.msra.mxu0 0
        %2719 = vmatprep.subr.bf16.mxu0 0
        %2720 = vmatpush1.bf16.msra.mxu0 0
        %2721 = vmatprep.subr.bf16.mxu0 0
        %2722 = vmatpush1.bf16.msra.mxu0 0
        %2723 = vmatprep.subr.bf16.mxu0 0
        %2724 = vmatpush1.bf16.msra.mxu0 0
        %2725 = vmatprep.subr.bf16.mxu0 0
        %2726 = vmatpush1.bf16.msra.mxu0 0
        %2727 = vmatprep.subr.bf16.mxu0 0
        %2728 = vmatpush1.bf16.msra.mxu0 0
        %2729 = vmatprep.subr.bf16.mxu0 0
        %2730 = vmatpush1.bf16.msra.mxu0 0
        %2731 = vmatprep.subr.bf16.mxu0 0
        %2732 = vmatpush1.bf16.msra.mxu0 0
        %2733 = vmatprep.subr.bf16.mxu0 0
        %2734 = vmatpush1.bf16.msra.mxu0 0
        %2735 = vmatprep.subr.bf16.mxu0 0
        %2736 = vmatpush1.bf16.msra.mxu0 0
        %2737 = vmatprep.mubr.bf16.mxu0 0
        %2738 = vmatmul.mubr.bf16.gmra.mrb[0].mxu0 %v2700
        %v2739 = vpop.f32.mrb[0].mxu0
        %v2740 = vadd.f32 0.0, %v2739
        %v2741 = vpop.f32.mrb[0].mxu0
        %v2742 = vpop.f32.mrb[0].mxu0
        %v2743 = vpop.f32.mrb[0].mxu0
        %2744 = vdwg.mxu0
        %2745 = vrot.lane.b32.xlu0 %v1298, 32
        %v2746 = vpop.permute.xlu0 %2745
        %v2748 = vsel %vm1247, %v2647, 0
        %v2751 = vsel %vm1303, %v2746, 0
        %2753 = vmatprep.subr.bf16.mxu0 0
        %2754 = vmatpush1.bf16.msra.mxu0 %v2751
        %2755 = vmatprep.subr.bf16.mxu0 0
        %2756 = vmatpush1.bf16.msra.mxu0 0
        %2757 = vmatprep.subr.bf16.mxu0 0
        %2758 = vmatpush1.bf16.msra.mxu0 0
        %2759 = vmatprep.subr.bf16.mxu0 0
        %2760 = vmatpush1.bf16.msra.mxu0 0
        %2761 = vmatprep.subr.bf16.mxu0 0
        %2762 = vmatpush1.bf16.msra.mxu0 0
        %2763 = vmatprep.subr.bf16.mxu0 0
        %2764 = vmatpush1.bf16.msra.mxu0 0
        %2765 = vmatprep.subr.bf16.mxu0 0
        %2766 = vmatpush1.bf16.msra.mxu0 0
        %2767 = vmatprep.subr.bf16.mxu0 0
        %2768 = vmatpush1.bf16.msra.mxu0 0
        %2769 = vmatprep.subr.bf16.mxu0 0
        %2770 = vmatpush1.bf16.msra.mxu0 0
        %2771 = vmatprep.subr.bf16.mxu0 0
        %2772 = vmatpush1.bf16.msra.mxu0 0
        %2773 = vmatprep.subr.bf16.mxu0 0
        %2774 = vmatpush1.bf16.msra.mxu0 0
        %2775 = vmatprep.subr.bf16.mxu0 0
        %2776 = vmatpush1.bf16.msra.mxu0 0
        %2777 = vmatprep.subr.bf16.mxu0 0
        %2778 = vmatpush1.bf16.msra.mxu0 0
        %2779 = vmatprep.subr.bf16.mxu0 0
        %2780 = vmatpush1.bf16.msra.mxu0 0
        %2781 = vmatprep.subr.bf16.mxu0 0
        %2782 = vmatpush1.bf16.msra.mxu0 0
        %2783 = vmatprep.subr.bf16.mxu0 0
        %2784 = vmatpush1.bf16.msra.mxu0 0
        %2785 = vmatprep.mubr.bf16.mxu0 0
        %2786 = vmatmul.mubr.bf16.gmra.mrb[0].mxu0 %v2748
        %v2787 = vpop.f32.mrb[0].mxu0
        %v2788 = vadd.f32 0.0, %v2787
        %v2789 = vpop.f32.mrb[0].mxu0
        %v2790 = vpop.f32.mrb[0].mxu0
        %v2791 = vpop.f32.mrb[0].mxu0
        %2792 = vdwg.mxu0
        %2793 = vrot.lane.b32.xlu0 %v1299, 32
        %v2794 = vpop.permute.xlu0 %2793
        %v2796 = vsel %vm1247, %v2648, 0
        %v2799 = vsel %vm1303, %v2794, 0
        %2801 = vmatprep.subr.bf16.mxu0 0
        %2802 = vmatpush1.bf16.msra.mxu0 %v2799
        %2803 = vmatprep.subr.bf16.mxu0 0
        %2804 = vmatpush1.bf16.msra.mxu0 0
        %2805 = vmatprep.subr.bf16.mxu0 0
        %2806 = vmatpush1.bf16.msra.mxu0 0
        %2807 = vmatprep.subr.bf16.mxu0 0
        %2808 = vmatpush1.bf16.msra.mxu0 0
        %2809 = vmatprep.subr.bf16.mxu0 0
        %2810 = vmatpush1.bf16.msra.mxu0 0
        %2811 = vmatprep.subr.bf16.mxu0 0
        %2812 = vmatpush1.bf16.msra.mxu0 0
        %2813 = vmatprep.subr.bf16.mxu0 0
        %2814 = vmatpush1.bf16.msra.mxu0 0
        %2815 = vmatprep.subr.bf16.mxu0 0
        %2816 = vmatpush1.bf16.msra.mxu0 0
        %2817 = vmatprep.subr.bf16.mxu0 0
        %2818 = vmatpush1.bf16.msra.mxu0 0
        %2819 = vmatprep.subr.bf16.mxu0 0
        %2820 = vmatpush1.bf16.msra.mxu0 0
        %2821 = vmatprep.subr.bf16.mxu0 0
        %2822 = vmatpush1.bf16.msra.mxu0 0
        %2823 = vmatprep.subr.bf16.mxu0 0
        %2824 = vmatpush1.bf16.msra.mxu0 0
        %2825 = vmatprep.subr.bf16.mxu0 0
        %2826 = vmatpush1.bf16.msra.mxu0 0
        %2827 = vmatprep.subr.bf16.mxu0 0
        %2828 = vmatpush1.bf16.msra.mxu0 0
        %2829 = vmatprep.subr.bf16.mxu0 0
        %2830 = vmatpush1.bf16.msra.mxu0 0
        %2831 = vmatprep.subr.bf16.mxu0 0
        %2832 = vmatpush1.bf16.msra.mxu0 0
        %2833 = vmatprep.mubr.bf16.mxu0 0
        %2834 = vmatmul.mubr.bf16.gmra.mrb[0].mxu0 %v2796
        %v2835 = vpop.f32.mrb[0].mxu0
        %v2836 = vadd.f32 0.0, %v2835
        %v2837 = vpop.f32.mrb[0].mxu0
        %v2838 = vpop.f32.mrb[0].mxu0
        %v2839 = vpop.f32.mrb[0].mxu0
        %2840 = vdwg.mxu0
        %2845 = vrot.lane.b32.xlu0 %v1793, 32
        %v2846 = vpop.permute.xlu0 %2845
        %2847 = vrot.lane.b32.xlu0 %v1842, 32
        %v2848 = vpop.permute.xlu0 %2847
        %2849 = vrot.lane.b32.xlu0 %v1891, 32
        %v2850 = vpop.permute.xlu0 %2849
        %2851 = vrot.lane.b32.xlu0 %v1940, 32
        %v2852 = vpop.permute.xlu0 %2851
        %2861 = vrot.lane.b32.xlu0 %v2244, 64
        %v2862 = vpop.permute.xlu0 %2861
        %2863 = vrot.lane.b32.xlu0 %v2292, 64
        %v2864 = vpop.permute.xlu0 %2863
        %2865 = vrot.lane.b32.xlu0 %v2340, 64
        %v2866 = vpop.permute.xlu0 %2865
        %2867 = vrot.lane.b32.xlu0 %v2388, 64
        %v2868 = vpop.permute.xlu0 %2867
        %2877 = vrot.lane.b32.xlu0 %v2692, 96
        %v2878 = vpop.permute.xlu0 %2877
        %2879 = vrot.lane.b32.xlu0 %v2740, 96
        %v2880 = vpop.permute.xlu0 %2879
        %2881 = vrot.lane.b32.xlu0 %v2788, 96
        %v2882 = vpop.permute.xlu0 %2881
        %2883 = vrot.lane.b32.xlu0 %v2836, 96
        %v2884 = vpop.permute.xlu0 %2883
        %v2889 = vsel %vm1030, %v1342, %v2846
        %v2890 = vsel %vm1030, %v1388, %v2848
        %v2891 = vsel %vm1030, %v1434, %v2850
        %v2892 = vsel %vm1030, %v1480, %v2852
        %vm2893 = vcmask 523264
        %v2894 = vsel %vm2893, %v2889, %v2862
        %v2895 = vsel %vm2893, %v2890, %v2864
        %v2896 = vsel %vm2893, %v2891, %v2866
        %v2897 = vsel %vm2893, %v2892, %v2868
        %vm2898 = vcmask 785408
        %v2899 = vsel %vm2898, %v2894, %v2878
        %v2900 = vsel %vm2898, %v2895, %v2880
        %v2901 = vsel %vm2898, %v2896, %v2882
        %v2902 = vsel %vm2898, %v2897, %v2884
        %v2903 = vld [vmem:[%s6] sm:$0xf]
        %v2904 = vld [vmem:[%s6 + $0x4] sm:$0xf]
        %v2905 = vld [vmem:[%s6 + $0x8] sm:$0xf]
        %v2906 = vld [vmem:[%s6 + $0xc] sm:$0xf]
        %v2907 = vld [vmem:[%s6 + $0x10] sm:$0xf]
        %v2908 = vld [vmem:[%s6 + $0x14] sm:$0xf]
        %v2909 = vld [vmem:[%s6 + $0x18] sm:$0xf]
        %v2910 = vld [vmem:[%s6 + $0x1c] sm:$0xf]
        %v2911 = vld [vmem:[%s6 + $0x20] sm:$0xf]
        %v2912 = vld [vmem:[%s6 + $0x24] sm:$0xf]
        %v2913 = vld [vmem:[%s6 + $0x28] sm:$0xf]
        %v2914 = vld [vmem:[%s6 + $0x2c] sm:$0xf]
        %v2915 = vld [vmem:[%s6 + $0x30] sm:$0xf]
        %v2916 = vld [vmem:[%s6 + $0x34] sm:$0xf]
        %v2917 = vld [vmem:[%s6 + $0x38] sm:$0xf]
        %v2918 = vld [vmem:[%s6 + $0x3c] sm:$0xf]
        %v2919 = vpack.c.bf16 %v2900, %v2899
        %v2920 = vpack.c.bf16 %v2902, %v2901
        %v2921 = vld [vmem:[%s7] sm:$0x1]
        %v2923 = vlaneseq
        %v2924 = vshrl.u32 %v2923, 7
        %v2925 = vsub.s32 0, %v2924
        %v2926 = vrot.slane %v2921, %v2925
        %v2944 = vunpack.c.l.b16 %v2903
        %v2945 = vunpack.c.l.b16 %v2904
        %v2946 = vunpack.c.l.b16 %v2905
        %v2947 = vunpack.c.l.b16 %v2906
        %v2948 = vunpack.c.l.b16 %v2907
        %v2949 = vunpack.c.l.b16 %v2908
        %v2950 = vunpack.c.l.b16 %v2909
        %v2951 = vunpack.c.l.b16 %v2910
        %v2952 = vunpack.c.l.b16 %v2911
        %v2953 = vunpack.c.l.b16 %v2912
        %v2954 = vunpack.c.l.b16 %v2913
        %v2955 = vunpack.c.l.b16 %v2914
        %v2956 = vunpack.c.l.b16 %v2915
        %v2957 = vunpack.c.l.b16 %v2916
        %v2958 = vunpack.c.l.b16 %v2917
        %v2959 = vunpack.c.l.b16 %v2918
        %v2960 = vpack.c.b16 %v2945, %v2944
        %v2961 = vpack.c.b16 %v2947, %v2946
        %v2962 = vpack.c.b16 %v2949, %v2948
        %v2963 = vpack.c.b16 %v2951, %v2950
        %v2964 = vpack.c.b16 %v2953, %v2952
        %v2965 = vpack.c.b16 %v2955, %v2954
        %v2966 = vpack.c.b16 %v2957, %v2956
        %v2967 = vpack.c.b16 %v2959, %v2958
        %2976 = vmatprep.subr.bf16.mxu0 0
        %2977 = vmatpush1.bf16.msra.mxu0 %v2960
        %2978 = vmatprep.subr.bf16.mxu0 0
        %2979 = vmatpush1.bf16.msra.mxu0 %v2961
        %2980 = vmatprep.subr.bf16.mxu0 0
        %2981 = vmatpush1.bf16.msra.mxu0 %v2962
        %2982 = vmatprep.subr.bf16.mxu0 0
        %2983 = vmatpush1.bf16.msra.mxu0 %v2963
        %2984 = vmatprep.subr.bf16.mxu0 0
        %2985 = vmatpush1.bf16.msra.mxu0 %v2964
        %2986 = vmatprep.subr.bf16.mxu0 0
        %2987 = vmatpush1.bf16.msra.mxu0 %v2965
        %2988 = vmatprep.subr.bf16.mxu0 0
        %2989 = vmatpush1.bf16.msra.mxu0 %v2966
        %2990 = vmatprep.subr.bf16.mxu0 0
        %2991 = vmatpush1.bf16.msra.mxu0 %v2967
        %2992 = vmatprep.subr.bf16.mxu0 0
        %2993 = vmatpush1.bf16.msra.mxu0 0
        %2994 = vmatprep.subr.bf16.mxu0 0
        %2995 = vmatpush1.bf16.msra.mxu0 0
        %2996 = vmatprep.subr.bf16.mxu0 0
        %2997 = vmatpush1.bf16.msra.mxu0 0
        %2998 = vmatprep.subr.bf16.mxu0 0
        %2999 = vmatpush1.bf16.msra.mxu0 0
        %3000 = vmatprep.subr.bf16.mxu0 0
        %3001 = vmatpush1.bf16.msra.mxu0 0
        %3002 = vmatprep.subr.bf16.mxu0 0
        %3003 = vmatpush1.bf16.msra.mxu0 0
        %3004 = vmatprep.subr.bf16.mxu0 0
        %3005 = vmatpush1.bf16.msra.mxu0 0
        %3006 = vmatprep.subr.bf16.mxu0 0
        %3007 = vmatpush1.bf16.msra.mxu0 0
        %3008 = vmatprep.mubr.bf16.mxu0 0
        %3009 = vmatmul.mubr.bf16.gmra.mrb[0].mxu0 %v2919
        %v3010 = vpop.f32.mrb[0].mxu0
        %v3011 = vadd.f32 %v2926, %v3010
        %v3012 = vpop.f32.mrb[0].mxu0
        %v3013 = vpop.f32.mrb[0].mxu0
        %v3014 = vadd.f32 %v2926, %v3013
        %v3015 = vpop.f32.mrb[0].mxu0
        %3016 = vmatprep.mubr.bf16.mxu0 0
        %3017 = vmatmul.mubr.bf16.gmra.mrb[0].mxu0 %v2920
        %v3018 = vpop.f32.mrb[0].mxu0
        %v3019 = vadd.f32 %v2926, %v3018
        %v3020 = vpop.f32.mrb[0].mxu0
        %v3021 = vpop.f32.mrb[0].mxu0
        %v3022 = vadd.f32 %v2926, %v3021
        %v3023 = vpop.f32.mrb[0].mxu0
        %3024 = vdwg.mxu0
        %v3025 = vadd.f32 %v3011, %v737
        %v3026 = vadd.f32 %v3014, %v738
        %v3027 = vadd.f32 %v3019, %v739
        %v3028 = vadd.f32 %v3022, %v740
        %v3029 = vld [vmem:[%s8] sm:$0x1]
        %v3030 = vld [vmem:[%s9] sm:$0x1]
        %3031 = vadd.xlane.f32.xlu0 %v3025
        %v3032 = vpop.xlane.xlu0 %3031
        %3033 = vadd.xlane.f32.xlu0 %v3026
        %v3034 = vpop.xlane.xlu0 %3033
        %3035 = vadd.xlane.f32.xlu0 %v3027
        %v3036 = vpop.xlane.xlu0 %3035
        %3037 = vadd.xlane.f32.xlu0 %v3028
        %v3038 = vpop.xlane.xlu0 %3037
        %v3039 = vmul.f32 %v3032, %v684
        %v3040 = vmul.f32 %v3034, %v684
        %v3041 = vmul.f32 %v3036, %v684
        %v3042 = vmul.f32 %v3038, %v684
        %v3043 = vsub.f32 %v3025, %v3039
        %v3044 = vsub.f32 %v3026, %v3040
        %v3045 = vsub.f32 %v3027, %v3041
        %v3046 = vsub.f32 %v3028, %v3042
        %v3047 = vmul.f32 %v3043, %v3043
        %v3048 = vmul.f32 %v3044, %v3044
        %v3049 = vmul.f32 %v3045, %v3045
        %v3050 = vmul.f32 %v3046, %v3046
        %3051 = vadd.xlane.f32.xlu0 %v3047
        %v3052 = vpop.xlane.xlu0 %3051
        %3053 = vadd.xlane.f32.xlu0 %v3048
        %v3054 = vpop.xlane.xlu0 %3053
        %3055 = vadd.xlane.f32.xlu0 %v3049
        %v3056 = vpop.xlane.xlu0 %3055
        %3057 = vadd.xlane.f32.xlu0 %v3050
        %v3058 = vpop.xlane.xlu0 %3057
        %v3059 = vmul.f32 %v3052, %v684
        %v3060 = vmul.f32 %v3054, %v684
        %v3061 = vmul.f32 %v3056, %v684
        %v3062 = vmul.f32 %v3058, %v684
        %v3063 = vadd.f32 %v3059, 1e-12
        %v3064 = vadd.f32 %v3060, 1e-12
        %v3065 = vadd.f32 %v3061, 1e-12
        %v3066 = vadd.f32 %v3062, 1e-12
        %v3067 = vrsqrt.pop %v3063
        %v3068 = vrsqrt.pop %v3064
        %v3069 = vrsqrt.pop %v3065
        %v3070 = vrsqrt.pop %v3066
        %v3071 = vmul.f32 %v3043, %v3067
        %v3072 = vmul.f32 %v3044, %v3068
        %v3073 = vmul.f32 %v3045, %v3069
        %v3074 = vmul.f32 %v3046, %v3070
        %v3076 = vlaneseq
        %v3077 = vshrl.u32 %v3076, 7
        %v3078 = vsub.s32 0, %v3077
        %v3079 = vrot.slane %v3029, %v3078
        %v3081 = vmul.f32 %v3071, %v3079
        %v3082 = vmul.f32 %v3072, %v3079
        %v3083 = vmul.f32 %v3073, %v3079
        %v3084 = vmul.f32 %v3074, %v3079
        %v3086 = vlaneseq
        %v3087 = vshrl.u32 %v3086, 7
        %v3088 = vsub.s32 0, %v3087
        %v3089 = vrot.slane %v3030, %v3088
        %v3091 = vadd.f32 %v3081, %v3089
        %v3092 = vadd.f32 %v3082, %v3089
        %v3093 = vadd.f32 %v3083, %v3089
        %v3094 = vadd.f32 %v3084, %v3089
        %v3095 = vld [vmem:[%s10] sm:$0xff]
        %v3096 = vld [vmem:[%s10 + $0x8] sm:$0xff]
        %v3097 = vld [vmem:[%s10 + $0x10] sm:$0xff]
        %v3098 = vld [vmem:[%s10 + $0x18] sm:$0xff]
        %v3099 = vld [vmem:[%s10 + $0x20] sm:$0xff]
        %v3100 = vld [vmem:[%s10 + $0x28] sm:$0xff]
        %v3101 = vld [vmem:[%s10 + $0x30] sm:$0xff]
        %v3102 = vld [vmem:[%s10 + $0x38] sm:$0xff]
        %v3103 = vld [vmem:[%s10 + $0x40] sm:$0xff]
        %v3104 = vld [vmem:[%s10 + $0x48] sm:$0xff]
        %v3105 = vld [vmem:[%s10 + $0x50] sm:$0xff]
        %v3106 = vld [vmem:[%s10 + $0x58] sm:$0xff]
        %v3107 = vld [vmem:[%s10 + $0x60] sm:$0xff]
        %v3108 = vld [vmem:[%s10 + $0x68] sm:$0xff]
        %v3109 = vld [vmem:[%s10 + $0x70] sm:$0xff]
        %v3110 = vld [vmem:[%s10 + $0x78] sm:$0xff]
        %v3111 = vpack.c.bf16 %v3092, %v3091
        %v3112 = vpack.c.bf16 %v3094, %v3093
        %v3113 = vld [vmem:[%s11] sm:$0x3]
        %v3115 = vlaneseq
        %v3116 = vshrl.u32 %v3115, 7
        %v3117 = vsub.s32 0, %v3116
        %v3118 = vrot.slane %v3113, %v3117
        %v3119 = vlaneseq
        %v3120 = vshrl.u32 %v3119, 7
        %v3121 = vsub.s32 1, %v3120
        %v3122 = vrot.slane %v3113, %v3121
        %v3141 = vunpack.c.l.b16 %v3095
        %v3142 = vunpack.c.h.b16 %v3095
        %v3143 = vunpack.c.l.b16 %v3096
        %v3144 = vunpack.c.h.b16 %v3096
        %v3145 = vunpack.c.l.b16 %v3097
        %v3146 = vunpack.c.h.b16 %v3097
        %v3147 = vunpack.c.l.b16 %v3098
        %v3148 = vunpack.c.h.b16 %v3098
        %v3149 = vunpack.c.l.b16 %v3099
        %v3150 = vunpack.c.h.b16 %v3099
        %v3151 = vunpack.c.l.b16 %v3100
        %v3152 = vunpack.c.h.b16 %v3100
        %v3153 = vunpack.c.l.b16 %v3101
        %v3154 = vunpack.c.h.b16 %v3101
        %v3155 = vunpack.c.l.b16 %v3102
        %v3156 = vunpack.c.h.b16 %v3102
        %v3157 = vunpack.c.l.b16 %v3103
        %v3158 = vunpack.c.h.b16 %v3103
        %v3159 = vunpack.c.l.b16 %v3104
        %v3160 = vunpack.c.h.b16 %v3104
        %v3161 = vunpack.c.l.b16 %v3105
        %v3162 = vunpack.c.h.b16 %v3105
        %v3163 = vunpack.c.l.b16 %v3106
        %v3164 = vunpack.c.h.b16 %v3106
        %v3165 = vunpack.c.l.b16 %v3107
        %v3166 = vunpack.c.h.b16 %v3107
        %v3167 = vunpack.c.l.b16 %v3108
        %v3168 = vunpack.c.h.b16 %v3108
        %v3169 = vunpack.c.l.b16 %v3109
        %v3170 = vunpack.c.h.b16 %v3109
        %v3171 = vunpack.c.l.b16 %v3110
        %v3172 = vunpack.c.h.b16 %v3110
        %v3173 = vpack.c.b16 %v3143, %v3141
        %v3174 = vpack.c.b16 %v3144, %v3142
        %v3175 = vpack.c.b16 %v3147, %v3145
        %v3176 = vpack.c.b16 %v3148, %v3146
        %v3177 = vpack.c.b16 %v3151, %v3149
        %v3178 = vpack.c.b16 %v3152, %v3150
        %v3179 = vpack.c.b16 %v3155, %v3153
        %v3180 = vpack.c.b16 %v3156, %v3154
        %v3181 = vpack.c.b16 %v3159, %v3157
        %v3182 = vpack.c.b16 %v3160, %v3158
        %v3183 = vpack.c.b16 %v3163, %v3161
        %v3184 = vpack.c.b16 %v3164, %v3162
        %v3185 = vpack.c.b16 %v3167, %v3165
        %v3186 = vpack.c.b16 %v3168, %v3166
        %v3187 = vpack.c.b16 %v3171, %v3169
        %v3188 = vpack.c.b16 %v3172, %v3170
        %3205 = vmatprep.subr.bf16.mxu0 %v3174
        %3206 = vmatpush1.bf16.msra.mxu0 %v3173
        %3207 = vmatprep.subr.bf16.mxu0 %v3176
        %3208 = vmatpush1.bf16.msra.mxu0 %v3175
        %3209 = vmatprep.subr.bf16.mxu0 %v3178
        %3210 = vmatpush1.bf16.msra.mxu0 %v3177
        %3211 = vmatprep.subr.bf16.mxu0 %v3180
        %3212 = vmatpush1.bf16.msra.mxu0 %v3179
        %3213 = vmatprep.subr.bf16.mxu0 %v3182
        %3214 = vmatpush1.bf16.msra.mxu0 %v3181
        %3215 = vmatprep.subr.bf16.mxu0 %v3184
        %3216 = vmatpush1.bf16.msra.mxu0 %v3183
        %3217 = vmatprep.subr.bf16.mxu0 %v3186
        %3218 = vmatpush1.bf16.msra.mxu0 %v3185
        %3219 = vmatprep.subr.bf16.mxu0 %v3188
        %3220 = vmatpush1.bf16.msra.mxu0 %v3187
        %3221 = vmatprep.subr.bf16.mxu0 0
        %3222 = vmatpush1.bf16.msra.mxu0 0
        %3223 = vmatprep.subr.bf16.mxu0 0
        %3224 = vmatpush1.bf16.msra.mxu0 0
        %3225 = vmatprep.subr.bf16.mxu0 0
        %3226 = vmatpush1.bf16.msra.mxu0 0
        %3227 = vmatprep.subr.bf16.mxu0 0
        %3228 = vmatpush1.bf16.msra.mxu0 0
        %3229 = vmatprep.subr.bf16.mxu0 0
        %3230 = vmatpush1.bf16.msra.mxu0 0
        %3231 = vmatprep.subr.bf16.mxu0 0
        %3232 = vmatpush1.bf16.msra.mxu0 0
        %3233 = vmatprep.subr.bf16.mxu0 0
        %3234 = vmatpush1.bf16.msra.mxu0 0
        %3235 = vmatprep.subr.bf16.mxu0 0
        %3236 = vmatpush1.bf16.msra.mxu0 0
        %3237 = vmatprep.mubr.bf16.mxu0 0
        %3238 = vmatmul.mubr.bf16.gmra.mrb[0].mxu0 %v3111
        %v3239 = vpop.f32.mrb[0].mxu0
        %v3240 = vadd.f32 %v3118, %v3239
        %v3241 = vpop.f32.mrb[0].mxu0
        %v3242 = vadd.f32 %v3122, %v3241
        %v3243 = vpop.f32.mrb[0].mxu0
        %v3244 = vadd.f32 %v3118, %v3243
        %v3245 = vpop.f32.mrb[0].mxu0
        %v3246 = vadd.f32 %v3122, %v3245
        %3247 = vmatprep.mubr.bf16.mxu0 0
        %3248 = vmatmul.mubr.bf16.gmra.mrb[0].mxu0 %v3112
        %v3249 = vpop.f32.mrb[0].mxu0
        %v3250 = vadd.f32 %v3118, %v3249
        %v3251 = vpop.f32.mrb[0].mxu0
        %v3252 = vadd.f32 %v3122, %v3251
        %v3253 = vpop.f32.mrb[0].mxu0
        %v3254 = vadd.f32 %v3118, %v3253
        %v3255 = vpop.f32.mrb[0].mxu0
        %v3256 = vadd.f32 %v3122, %v3255
        %3257 = vdwg.mxu0
        %v3258 = vmul.f32 %v3240, 0.5
        %v3259 = vmul.f32 %v3242, 0.5
        %v3260 = vmul.f32 %v3244, 0.5
        %v3261 = vmul.f32 %v3246, 0.5
        %v3262 = vmul.f32 %v3250, 0.5
        %v3263 = vmul.f32 %v3252, 0.5
        %v3264 = vmul.f32 %v3254, 0.5
        %v3265 = vmul.f32 %v3256, 0.5
        %v3266 = vmul.f32 %v3240, 0.044715
        %v3267 = vmul.f32 %v3242, 0.044715
        %v3268 = vmul.f32 %v3244, 0.044715
        %v3269 = vmul.f32 %v3246, 0.044715
        %v3270 = vmul.f32 %v3250, 0.044715
        %v3271 = vmul.f32 %v3252, 0.044715
        %v3272 = vmul.f32 %v3254, 0.044715
        %v3273 = vmul.f32 %v3256, 0.044715
        %v3274 = vmul.f32 %v3266, %v3240
        %v3275 = vmul.f32 %v3267, %v3242
        %v3276 = vmul.f32 %v3268, %v3244
        %v3277 = vmul.f32 %v3269, %v3246
        %v3278 = vmul.f32 %v3270, %v3250
        %v3279 = vmul.f32 %v3271, %v3252
        %v3280 = vmul.f32 %v3272, %v3254
        %v3281 = vmul.f32 %v3273, %v3256
        %v3282 = vmul.f32 %v3274, %v3240
        %v3283 = vmul.f32 %v3275, %v3242
        %v3284 = vmul.f32 %v3276, %v3244
        %v3285 = vmul.f32 %v3277, %v3246
        %v3286 = vmul.f32 %v3278, %v3250
        %v3287 = vmul.f32 %v3279, %v3252
        %v3288 = vmul.f32 %v3280, %v3254
        %v3289 = vmul.f32 %v3281, %v3256
        %v3290 = vadd.f32 %v3240, %v3282
        %v3291 = vadd.f32 %v3242, %v3283
        %v3292 = vadd.f32 %v3244, %v3284
        %v3293 = vadd.f32 %v3246, %v3285
        %v3294 = vadd.f32 %v3250, %v3286
        %v3295 = vadd.f32 %v3252, %v3287
        %v3296 = vadd.f32 %v3254, %v3288
        %v3297 = vadd.f32 %v3256, %v3289
        %v3298 = vmul.f32 %v3290, 0.7978846
        %v3299 = vmul.f32 %v3291, 0.7978846
        %v3300 = vmul.f32 %v3292, 0.7978846
        %v3301 = vmul.f32 %v3293, 0.7978846
        %v3302 = vmul.f32 %v3294, 0.7978846
        %v3303 = vmul.f32 %v3295, 0.7978846
        %v3304 = vmul.f32 %v3296, 0.7978846
        %v3305 = vmul.f32 %v3297, 0.7978846
        %v3306 = vtanh.pop %v3298
        %v3307 = vtanh.pop %v3299
        %v3308 = vtanh.pop %v3300
        %v3309 = vtanh.pop %v3301
        %v3310 = vtanh.pop %v3302
        %v3311 = vtanh.pop %v3303
        %v3312 = vtanh.pop %v3304
        %v3313 = vtanh.pop %v3305
        %v3314 = vadd.f32 %v3306, 1.0
        %v3315 = vadd.f32 %v3307, 1.0
        %v3316 = vadd.f32 %v3308, 1.0
        %v3317 = vadd.f32 %v3309, 1.0
        %v3318 = vadd.f32 %v3310, 1.0
        %v3319 = vadd.f32 %v3311, 1.0
        %v3320 = vadd.f32 %v3312, 1.0
        %v3321 = vadd.f32 %v3313, 1.0
        %v3322 = vmul.f32 %v3258, %v3314
        %v3323 = vmul.f32 %v3259, %v3315
        %v3324 = vmul.f32 %v3260, %v3316
        %v3325 = vmul.f32 %v3261, %v3317
        %v3326 = vmul.f32 %v3262, %v3318
        %v3327 = vmul.f32 %v3263, %v3319
        %v3328 = vmul.f32 %v3264, %v3320
        %v3329 = vmul.f32 %v3265, %v3321
        %v3330 = vld [vmem:[#allocation2] sm:$0xf]
        %v3331 = vld [vmem:[#allocation2 + $0x4] sm:$0xf]
        %v3332 = vld [vmem:[#allocation2 + $0x8] sm:$0xf]
        %v3333 = vld [vmem:[#allocation2 + $0xc] sm:$0xf]
        %v3334 = vld [vmem:[#allocation2 + $0x10] sm:$0xf]
        %v3335 = vld [vmem:[#allocation2 + $0x14] sm:$0xf]
        %v3336 = vld [vmem:[#allocation2 + $0x18] sm:$0xf]
        %v3337 = vld [vmem:[#allocation2 + $0x1c] sm:$0xf]
        %v3338 = vld [vmem:[#allocation2 + $0x20] sm:$0xf]
        %v3339 = vld [vmem:[#allocation2 + $0x24] sm:$0xf]
        %v3340 = vld [vmem:[#allocation2 + $0x28] sm:$0xf]
        %v3341 = vld [vmem:[#allocation2 + $0x2c] sm:$0xf]
        %v3342 = vld [vmem:[#allocation2 + $0x30] sm:$0xf]
        %v3343 = vld [vmem:[#allocation2 + $0x34] sm:$0xf]
        %v3344 = vld [vmem:[#allocation2 + $0x38] sm:$0xf]
        %v3345 = vld [vmem:[#allocation2 + $0x3c] sm:$0xf]
        %v3346 = vld [vmem:[#allocation2 + $0x40] sm:$0xf]
        %v3347 = vld [vmem:[#allocation2 + $0x44] sm:$0xf]
        %v3348 = vld [vmem:[#allocation2 + $0x48] sm:$0xf]
        %v3349 = vld [vmem:[#allocation2 + $0x4c] sm:$0xf]
        %v3350 = vld [vmem:[#allocation2 + $0x50] sm:$0xf]
        %v3351 = vld [vmem:[#allocation2 + $0x54] sm:$0xf]
        %v3352 = vld [vmem:[#allocation2 + $0x58] sm:$0xf]
        %v3353 = vld [vmem:[#allocation2 + $0x5c] sm:$0xf]
        %v3354 = vld [vmem:[#allocation2 + $0x60] sm:$0xf]
        %v3355 = vld [vmem:[#allocation2 + $0x64] sm:$0xf]
        %v3356 = vld [vmem:[#allocation2 + $0x68] sm:$0xf]
        %v3357 = vld [vmem:[#allocation2 + $0x6c] sm:$0xf]
        %v3358 = vld [vmem:[#allocation2 + $0x70] sm:$0xf]
        %v3359 = vld [vmem:[#allocation2 + $0x74] sm:$0xf]
        %v3360 = vld [vmem:[#allocation2 + $0x78] sm:$0xf]
        %v3361 = vld [vmem:[#allocation2 + $0x7c] sm:$0xf]
        %v3362 = vpack.c.bf16 %v3324, %v3322
        %v3363 = vpack.c.bf16 %v3325, %v3323
        %v3364 = vpack.c.bf16 %v3328, %v3326
        %v3365 = vpack.c.bf16 %v3329, %v3327
        %v3366 = vld [vmem:[%s13] sm:$0x1]
        %v3368 = vlaneseq
        %v3369 = vshrl.u32 %v3368, 7
        %v3370 = vsub.s32 0, %v3369
        %v3371 = vrot.slane %v3366, %v3370
        %v3405 = vunpack.c.l.b16 %v3330
        %v3406 = vunpack.c.l.b16 %v3331
        %v3407 = vunpack.c.l.b16 %v3332
        %v3408 = vunpack.c.l.b16 %v3333
        %v3409 = vunpack.c.l.b16 %v3334
        %v3410 = vunpack.c.l.b16 %v3335
        %v3411 = vunpack.c.l.b16 %v3336
        %v3412 = vunpack.c.l.b16 %v3337
        %v3413 = vunpack.c.l.b16 %v3338
        %v3414 = vunpack.c.l.b16 %v3339
        %v3415 = vunpack.c.l.b16 %v3340
        %v3416 = vunpack.c.l.b16 %v3341
        %v3417 = vunpack.c.l.b16 %v3342
        %v3418 = vunpack.c.l.b16 %v3343
        %v3419 = vunpack.c.l.b16 %v3344
        %v3420 = vunpack.c.l.b16 %v3345
        %v3421 = vunpack.c.l.b16 %v3346
        %v3422 = vunpack.c.l.b16 %v3347
        %v3423 = vunpack.c.l.b16 %v3348
        %v3424 = vunpack.c.l.b16 %v3349
        %v3425 = vunpack.c.l.b16 %v3350
        %v3426 = vunpack.c.l.b16 %v3351
        %v3427 = vunpack.c.l.b16 %v3352
        %v3428 = vunpack.c.l.b16 %v3353
        %v3429 = vunpack.c.l.b16 %v3354
        %v3430 = vunpack.c.l.b16 %v3355
        %v3431 = vunpack.c.l.b16 %v3356
        %v3432 = vunpack.c.l.b16 %v3357
        %v3433 = vunpack.c.l.b16 %v3358
        %v3434 = vunpack.c.l.b16 %v3359
        %v3435 = vunpack.c.l.b16 %v3360
        %v3436 = vunpack.c.l.b16 %v3361
        %v3437 = vpack.c.b16 %v3406, %v3405
        %v3438 = vpack.c.b16 %v3408, %v3407
        %v3439 = vpack.c.b16 %v3410, %v3409
        %v3440 = vpack.c.b16 %v3412, %v3411
        %v3441 = vpack.c.b16 %v3414, %v3413
        %v3442 = vpack.c.b16 %v3416, %v3415
        %v3443 = vpack.c.b16 %v3418, %v3417
        %v3444 = vpack.c.b16 %v3420, %v3419
        %v3445 = vpack.c.b16 %v3422, %v3421
        %v3446 = vpack.c.b16 %v3424, %v3423
        %v3447 = vpack.c.b16 %v3426, %v3425
        %v3448 = vpack.c.b16 %v3428, %v3427
        %v3449 = vpack.c.b16 %v3430, %v3429
        %v3450 = vpack.c.b16 %v3432, %v3431
        %v3451 = vpack.c.b16 %v3434, %v3433
        %v3452 = vpack.c.b16 %v3436, %v3435
        %3469 = vmatprep.subr.bf16.mxu0 0
        %3470 = vmatpush1.bf16.msra.mxu0 %v3437
        %3471 = vmatprep.subr.bf16.mxu0 0
        %3472 = vmatpush1.bf16.msra.mxu0 %v3438
        %3473 = vmatprep.subr.bf16.mxu0 0
        %3474 = vmatpush1.bf16.msra.mxu0 %v3439
        %3475 = vmatprep.subr.bf16.mxu0 0
        %3476 = vmatpush1.bf16.msra.mxu0 %v3440
        %3477 = vmatprep.subr.bf16.mxu0 0
        %3478 = vmatpush1.bf16.msra.mxu0 %v3441
        %3479 = vmatprep.subr.bf16.mxu0 0
        %3480 = vmatpush1.bf16.msra.mxu0 %v3442
        %3481 = vmatprep.subr.bf16.mxu0 0
        %3482 = vmatpush1.bf16.msra.mxu0 %v3443
        %3483 = vmatprep.subr.bf16.mxu0 0
        %3484 = vmatpush1.bf16.msra.mxu0 %v3444
        %3485 = vmatprep.subr.bf16.mxu0 0
        %3486 = vmatpush1.bf16.msra.mxu0 %v3445
        %3487 = vmatprep.subr.bf16.mxu0 0
        %3488 = vmatpush1.bf16.msra.mxu0 %v3446
        %3489 = vmatprep.subr.bf16.mxu0 0
        %3490 = vmatpush1.bf16.msra.mxu0 %v3447
        %3491 = vmatprep.subr.bf16.mxu0 0
        %3492 = vmatpush1.bf16.msra.mxu0 %v3448
        %3493 = vmatprep.subr.bf16.mxu0 0
        %3494 = vmatpush1.bf16.msra.mxu0 %v3449
        %3495 = vmatprep.subr.bf16.mxu0 0
        %3496 = vmatpush1.bf16.msra.mxu0 %v3450
        %3497 = vmatprep.subr.bf16.mxu0 0
        %3498 = vmatpush1.bf16.msra.mxu0 %v3451
        %3499 = vmatprep.subr.bf16.mxu0 0
        %3500 = vmatpush1.bf16.msra.mxu0 %v3452
        %3501 = vmatprep.mubr.bf16.mxu0 %v3363
        %3502 = vmatmul.mubr.bf16.gmra.mrb[0].mxu0 %v3362
        %v3503 = vpop.f32.mrb[0].mxu0
        %v3504 = vadd.f32 %v3371, %v3503
        %v3505 = vpop.f32.mrb[0].mxu0
        %v3506 = vpop.f32.mrb[0].mxu0
        %v3507 = vadd.f32 %v3371, %v3506
        %v3508 = vpop.f32.mrb[0].mxu0
        %3509 = vmatprep.mubr.bf16.mxu0 %v3365
        %3510 = vmatmul.mubr.bf16.gmra.mrb[0].mxu0 %v3364
        %v3511 = vpop.f32.mrb[0].mxu0
        %v3512 = vadd.f32 %v3371, %v3511
        %v3513 = vpop.f32.mrb[0].mxu0
        %v3514 = vpop.f32.mrb[0].mxu0
        %v3515 = vadd.f32 %v3371, %v3514
        %v3516 = vpop.f32.mrb[0].mxu0
        %3517 = vdwg.mxu0
        %v3518 = vadd.f32 %v3504, %v3091
        %v3519 = vadd.f32 %v3507, %v3092
        %v3520 = vadd.f32 %v3512, %v3093
        %v3521 = vadd.f32 %v3515, %v3094
        %v3522 = vld [vmem:[%s14] sm:$0x1]
        %v3523 = vld [vmem:[#allocation4] sm:$0x1]
        %3524 = vadd.xlane.f32.xlu0 %v3518
        %v3525 = vpop.xlane.xlu0 %3524
        %3526 = vadd.xlane.f32.xlu0 %v3519
        %v3527 = vpop.xlane.xlu0 %3526
        %3528 = vadd.xlane.f32.xlu0 %v3520
        %v3529 = vpop.xlane.xlu0 %3528
        %3530 = vadd.xlane.f32.xlu0 %v3521
        %v3531 = vpop.xlane.xlu0 %3530
        %v3532 = vmul.f32 %v3525, %v684
        %v3533 = vmul.f32 %v3527, %v684
        %v3534 = vmul.f32 %v3529, %v684
        %v3535 = vmul.f32 %v3531, %v684
        %v3536 = vsub.f32 %v3518, %v3532
        %v3537 = vsub.f32 %v3519, %v3533
        %v3538 = vsub.f32 %v3520, %v3534
        %v3539 = vsub.f32 %v3521, %v3535
        %v3540 = vmul.f32 %v3536, %v3536
        %v3541 = vmul.f32 %v3537, %v3537
        %v3542 = vmul.f32 %v3538, %v3538
        %v3543 = vmul.f32 %v3539, %v3539
        %3544 = vadd.xlane.f32.xlu0 %v3540
        %v3545 = vpop.xlane.xlu0 %3544
        %3546 = vadd.xlane.f32.xlu0 %v3541
        %v3547 = vpop.xlane.xlu0 %3546
        %3548 = vadd.xlane.f32.xlu0 %v3542
        %v3549 = vpop.xlane.xlu0 %3548
        %3550 = vadd.xlane.f32.xlu0 %v3543
        %v3551 = vpop.xlane.xlu0 %3550
        %v3552 = vmul.f32 %v3545, %v684
        %v3553 = vmul.f32 %v3547, %v684
        %v3554 = vmul.f32 %v3549, %v684
        %v3555 = vmul.f32 %v3551, %v684
        %v3556 = vadd.f32 %v3552, 1e-12
        %v3557 = vadd.f32 %v3553, 1e-12
        %v3558 = vadd.f32 %v3554, 1e-12
        %v3559 = vadd.f32 %v3555, 1e-12
        %v3560 = vrsqrt.pop %v3556
        %v3561 = vrsqrt.pop %v3557
        %v3562 = vrsqrt.pop %v3558
        %v3563 = vrsqrt.pop %v3559
        %v3564 = vmul.f32 %v3536, %v3560
        %v3565 = vmul.f32 %v3537, %v3561
        %v3566 = vmul.f32 %v3538, %v3562
        %v3567 = vmul.f32 %v3539, %v3563
        %v3569 = vlaneseq
        %v3570 = vshrl.u32 %v3569, 7
        %v3571 = vsub.s32 0, %v3570
        %v3572 = vrot.slane %v3522, %v3571
        %v3574 = vmul.f32 %v3564, %v3572
        %v3575 = vmul.f32 %v3565, %v3572
        %v3576 = vmul.f32 %v3566, %v3572
        %v3577 = vmul.f32 %v3567, %v3572
        %v3579 = vlaneseq
        %v3580 = vshrl.u32 %v3579, 7
        %v3581 = vsub.s32 0, %v3580
        %v3582 = vrot.slane %v3523, %v3581
        %v3584 = vadd.f32 %v3574, %v3582
        %v3585 = vadd.f32 %v3575, %v3582
        %v3586 = vadd.f32 %v3576, %v3582
        %v3587 = vadd.f32 %v3577, %v3582
        %s3588 = scalar_lea.vmem %s4, 192
        %v3589 = vld [vmem:[%s3588] sm:$0xff]
        %v3590 = vld [vmem:[%s3588 + $0x8] sm:$0xf]
        %v3591 = vld [vmem:[%s3588 + $0xc] sm:$0xff]
        %v3592 = vld [vmem:[%s3588 + $0x14] sm:$0xf]
        %v3593 = vld [vmem:[%s3588 + $0x18] sm:$0xff]
        %v3594 = vld [vmem:[%s3588 + $0x20] sm:$0xf]
        %v3595 = vld [vmem:[%s3588 + $0x24] sm:$0xff]
        %v3596 = vld [vmem:[%s3588 + $0x2c] sm:$0xf]
        %v3597 = vld [vmem:[%s3588 + $0x30] sm:$0xff]
        %v3598 = vld [vmem:[%s3588 + $0x38] sm:$0xf]
        %v3599 = vld [vmem:[%s3588 + $0x3c] sm:$0xff]
        %v3600 = vld [vmem:[%s3588 + $0x44] sm:$0xf]
        %v3601 = vld [vmem:[%s3588 + $0x48] sm:$0xff]
        %v3602 = vld [vmem:[%s3588 + $0x50] sm:$0xf]
        %v3603 = vld [vmem:[%s3588 + $0x54] sm:$0xff]
        %v3604 = vld [vmem:[%s3588 + $0x5c] sm:$0xf]
        %v3605 = vld [vmem:[%s3588 + $0x60] sm:$0xff]
        %v3606 = vld [vmem:[%s3588 + $0x68] sm:$0xf]
        %v3607 = vld [vmem:[%s3588 + $0x6c] sm:$0xff]
        %v3608 = vld [vmem:[%s3588 + $0x74] sm:$0xf]
        %v3609 = vld [vmem:[%s3588 + $0x78] sm:$0xff]
        %v3610 = vld [vmem:[%s3588 + $0x80] sm:$0xf]
        %v3611 = vld [vmem:[%s3588 + $0x84] sm:$0xff]
        %v3612 = vld [vmem:[%s3588 + $0x8c] sm:$0xf]
        %v3613 = vld [vmem:[%s3588 + $0x90] sm:$0xff]
        %v3614 = vld [vmem:[%s3588 + $0x98] sm:$0xf]
        %v3615 = vld [vmem:[%s3588 + $0x9c] sm:$0xff]
        %v3616 = vld [vmem:[%s3588 + $0xa4] sm:$0xf]
        %v3617 = vld [vmem:[%s3588 + $0xa8] sm:$0xff]
        %v3618 = vld [vmem:[%s3588 + $0xb0] sm:$0xf]
        %v3619 = vld [vmem:[%s3588 + $0xb4] sm:$0xff]
        %v3620 = vld [vmem:[%s3588 + $0xbc] sm:$0xf]
        %v3621 = vpack.c.bf16 %v3585, %v3584
        %v3622 = vpack.c.bf16 %v3587, %v3586
        %s3623 = scalar_lea.vmem %s5, 3
        %v3624 = vld [vmem:[%s3623] sm:$0x7]
        %v3626 = vlaneseq
        %v3627 = vshrl.u32 %v3626, 7
        %v3628 = vsub.s32 0, %v3627
        %v3629 = vrot.slane %v3624, %v3628
        %v3630 = vlaneseq
        %v3631 = vshrl.u32 %v3630, 7
        %v3632 = vsub.s32 1, %v3631
        %v3633 = vrot.slane %v3624, %v3632
        %v3634 = vlaneseq
        %v3635 = vshrl.u32 %v3634, 7
        %v3636 = vsub.s32 2, %v3635
        %v3637 = vrot.slane %v3624, %v3636
        %v3673 = vunpack.c.l.b16 %v3589
        %v3674 = vunpack.c.h.b16 %v3589
        %v3675 = vunpack.c.l.b16 %v3590
        %v3676 = vunpack.c.l.b16 %v3591
        %v3677 = vunpack.c.h.b16 %v3591
        %v3678 = vunpack.c.l.b16 %v3592
        %v3679 = vunpack.c.l.b16 %v3593
        %v3680 = vunpack.c.h.b16 %v3593
        %v3681 = vunpack.c.l.b16 %v3594
        %v3682 = vunpack.c.l.b16 %v3595
        %v3683 = vunpack.c.h.b16 %v3595
        %v3684 = vunpack.c.l.b16 %v3596
        %v3685 = vunpack.c.l.b16 %v3597
        %v3686 = vunpack.c.h.b16 %v3597
        %v3687 = vunpack.c.l.b16 %v3598
        %v3688 = vunpack.c.l.b16 %v3599
        %v3689 = vunpack.c.h.b16 %v3599
        %v3690 = vunpack.c.l.b16 %v3600
        %v3691 = vunpack.c.l.b16 %v3601
        %v3692 = vunpack.c.h.b16 %v3601
        %v3693 = vunpack.c.l.b16 %v3602
        %v3694 = vunpack.c.l.b16 %v3603
        %v3695 = vunpack.c.h.b16 %v3603
        %v3696 = vunpack.c.l.b16 %v3604
        %v3697 = vunpack.c.l.b16 %v3605
        %v3698 = vunpack.c.h.b16 %v3605
        %v3699 = vunpack.c.l.b16 %v3606
        %v3700 = vunpack.c.l.b16 %v3607
        %v3701 = vunpack.c.h.b16 %v3607
        %v3702 = vunpack.c.l.b16 %v3608
        %v3703 = vunpack.c.l.b16 %v3609
        %v3704 = vunpack.c.h.b16 %v3609
        %v3705 = vunpack.c.l.b16 %v3610
        %v3706 = vunpack.c.l.b16 %v3611
        %v3707 = vunpack.c.h.b16 %v3611
        %v3708 = vunpack.c.l.b16 %v3612
        %v3709 = vunpack.c.l.b16 %v3613
        %v3710 = vunpack.c.h.b16 %v3613
        %v3711 = vunpack.c.l.b16 %v3614
        %v3712 = vunpack.c.l.b16 %v3615
        %v3713 = vunpack.c.h.b16 %v3615
        %v3714 = vunpack.c.l.b16 %v3616
        %v3715 = vunpack.c.l.b16 %v3617
        %v3716 = vunpack.c.h.b16 %v3617
        %v3717 = vunpack.c.l.b16 %v3618
        %v3718 = vunpack.c.l.b16 %v3619
        %v3719 = vunpack.c.h.b16 %v3619
        %v3720 = vunpack.c.l.b16 %v3620
        %v3721 = vpack.c.b16 %v3676, %v3673
        %v3722 = vpack.c.b16 %v3677, %v3674
        %v3723 = vpack.c.b16 %v3678, %v3675
        %v3724 = vpack.c.b16 %v3682, %v3679
        %v3725 = vpack.c.b16 %v3683, %v3680
        %v3726 = vpack.c.b16 %v3684, %v3681
        %v3727 = vpack.c.b16 %v3688, %v3685
        %v3728 = vpack.c.b16 %v3689, %v3686
        %v3729 = vpack.c.b16 %v3690, %v3687
        %v3730 = vpack.c.b16 %v3694, %v3691
        %v3731 = vpack.c.b16 %v3695, %v3692
        %v3732 = vpack.c.b16 %v3696, %v3693
        %v3733 = vpack.c.b16 %v3700, %v3697
        %v3734 = vpack.c.b16 %v3701, %v3698
        %v3735 = vpack.c.b16 %v3702, %v3699
        %v3736 = vpack.c.b16 %v3706, %v3703
        %v3737 = vpack.c.b16 %v3707, %v3704
        %v3738 = vpack.c.b16 %v3708, %v3705
        %v3739 = vpack.c.b16 %v3712, %v3709
        %v3740 = vpack.c.b16 %v3713, %v3710
        %v3741 = vpack.c.b16 %v3714, %v3711
        %v3742 = vpack.c.b16 %v3718, %v3715
        %v3743 = vpack.c.b16 %v3719, %v3716
        %v3744 = vpack.c.b16 %v3720, %v3717
        %3769 = vmatprep.subr.bf16.mxu0 %v3722
        %3770 = vmatpush1.bf16.msra.mxu0 %v3721
        %3771 = vmatprep.subr.bf16.mxu0 %v3725
        %3772 = vmatpush1.bf16.msra.mxu0 %v3724
        %3773 = vmatprep.subr.bf16.mxu0 %v3728
        %3774 = vmatpush1.bf16.msra.mxu0 %v3727
        %3775 = vmatprep.subr.bf16.mxu0 %v3731
        %3776 = vmatpush1.bf16.msra.mxu0 %v3730
        %3777 = vmatprep.subr.bf16.mxu0 %v3734
        %3778 = vmatpush1.bf16.msra.mxu0 %v3733
        %3779 = vmatprep.subr.bf16.mxu0 %v3737
        %3780 = vmatpush1.bf16.msra.mxu0 %v3736
        %3781 = vmatprep.subr.bf16.mxu0 %v3740
        %3782 = vmatpush1.bf16.msra.mxu0 %v3739
        %3783 = vmatprep.subr.bf16.mxu0 %v3743
        %3784 = vmatpush1.bf16.msra.mxu0 %v3742
        %3785 = vmatprep.subr.bf16.mxu0 0
        %3786 = vmatpush1.bf16.msra.mxu0 0
        %3787 = vmatprep.subr.bf16.mxu0 0
        %3788 = vmatpush1.bf16.msra.mxu0 0
        %3789 = vmatprep.subr.bf16.mxu0 0
        %3790 = vmatpush1.bf16.msra.mxu0 0
        %3791 = vmatprep.subr.bf16.mxu0 0
        %3792 = vmatpush1.bf16.msra.mxu0 0
        %3793 = vmatprep.subr.bf16.mxu0 0
        %3794 = vmatpush1.bf16.msra.mxu0 0
        %3795 = vmatprep.subr.bf16.mxu0 0
        %3796 = vmatpush1.bf16.msra.mxu0 0
        %3797 = vmatprep.subr.bf16.mxu0 0
        %3798 = vmatpush1.bf16.msra.mxu0 0
        %3799 = vmatprep.subr.bf16.mxu0 0
        %3800 = vmatpush1.bf16.msra.mxu0 0
        %3801 = vmatprep.mubr.bf16.mxu0 0
        %3802 = vmatmul.mubr.bf16.gmra.mrb[0].mxu0 %v3621
        %v3803 = vpop.f32.mrb[0].mxu0
        %v3804 = vadd.f32 %v3629, %v3803
        %v3805 = vpop.f32.mrb[0].mxu0
        %v3806 = vadd.f32 %v3633, %v3805
        %v3807 = vpop.f32.mrb[0].mxu0
        %v3808 = vadd.f32 %v3629, %v3807
        %v3809 = vpop.f32.mrb[0].mxu0
        %v3810 = vadd.f32 %v3633, %v3809
        %3811 = vmatprep.mubr.bf16.mxu0 0
        %3812 = vmatmul.mubr.bf16.gmra.mrb[0].mxu0 %v3622
        %v3813 = vpop.f32.mrb[0].mxu0
        %v3814 = vadd.f32 %v3629, %v3813
        %v3815 = vpop.f32.mrb[0].mxu0
        %v3816 = vadd.f32 %v3633, %v3815
        %v3817 = vpop.f32.mrb[0].mxu0
        %v3818 = vadd.f32 %v3629, %v3817
        %v3819 = vpop.f32.mrb[0].mxu0
        %v3820 = vadd.f32 %v3633, %v3819
        %3821 = vdwg.mxu0
        %3822 = vmatprep.subr.bf16.mxu0 0
        %3823 = vmatpush1.bf16.msra.mxu0 %v3723
        %3824 = vmatprep.subr.bf16.mxu0 0
        %3825 = vmatpush1.bf16.msra.mxu0 %v3726
        %3826 = vmatprep.subr.bf16.mxu0 0
        %3827 = vmatpush1.bf16.msra.mxu0 %v3729
        %3828 = vmatprep.subr.bf16.mxu0 0
        %3829 = vmatpush1.bf16.msra.mxu0 %v3732
        %3830 = vmatprep.subr.bf16.mxu0 0
        %3831 = vmatpush1.bf16.msra.mxu0 %v3735
        %3832 = vmatprep.subr.bf16.mxu0 0
        %3833 = vmatpush1.bf16.msra.mxu0 %v3738
        %3834 = vmatprep.subr.bf16.mxu0 0
        %3835 = vmatpush1.bf16.msra.mxu0 %v3741
        %3836 = vmatprep.subr.bf16.mxu0 0
        %3837 = vmatpush1.bf16.msra.mxu0 %v3744
        %3838 = vmatprep.subr.bf16.mxu0 0
        %3839 = vmatpush1.bf16.msra.mxu0 0
        %3840 = vmatprep.subr.bf16.mxu0 0
        %3841 = vmatpush1.bf16.msra.mxu0 0
        %3842 = vmatprep.subr.bf16.mxu0 0
        %3843 = vmatpush1.bf16.msra.mxu0 0
        %3844 = vmatprep.subr.bf16.mxu0 0
        %3845 = vmatpush1.bf16.msra.mxu0 0
        %3846 = vmatprep.subr.bf16.mxu0 0
        %3847 = vmatpush1.bf16.msra.mxu0 0
        %3848 = vmatprep.subr.bf16.mxu0 0
        %3849 = vmatpush1.bf16.msra.mxu0 0
        %3850 = vmatprep.subr.bf16.mxu0 0
        %3851 = vmatpush1.bf16.msra.mxu0 0
        %3852 = vmatprep.subr.bf16.mxu0 0
        %3853 = vmatpush1.bf16.msra.mxu0 0
        %3854 = vmatprep.mubr.bf16.mxu0 0
        %3855 = vmatmul.mubr.bf16.gmra.mrb[0].mxu0 %v3621
        %v3856 = vpop.f32.mrb[0].mxu0
        %v3857 = vadd.f32 %v3637, %v3856
        %v3858 = vpop.f32.mrb[0].mxu0
        %v3859 = vpop.f32.mrb[0].mxu0
        %v3860 = vadd.f32 %v3637, %v3859
        %v3861 = vpop.f32.mrb[0].mxu0
        %3862 = vmatprep.mubr.bf16.mxu0 0
        %3863 = vmatmul.mubr.bf16.gmra.mrb[0].mxu0 %v3622
        %v3864 = vpop.f32.mrb[0].mxu0
        %v3865 = vadd.f32 %v3637, %v3864
        %v3866 = vpop.f32.mrb[0].mxu0
        %v3867 = vpop.f32.mrb[0].mxu0
        %v3868 = vadd.f32 %v3637, %v3867
        %v3869 = vpop.f32.mrb[0].mxu0
        %3870 = vdwg.mxu0
        %v3871 = vpack.c.bf16 %v3804, %v3804
        %v3872 = vpack.c.bf16 %v3808, %v3808
        %v3873 = vpack.c.bf16 %v3814, %v3814
        %v3874 = vpack.c.bf16 %v3818, %v3818
        %v3875 = vpack.c.bf16 %v3806, %v3806
        %v3876 = vpack.c.bf16 %v3810, %v3810
        %v3877 = vpack.c.bf16 %v3816, %v3816
        %v3878 = vpack.c.bf16 %v3820, %v3820
        %v3880 = vsel %vm1030, %v3871, 0
        %v3883 = vsel %vm1030, %v3875, 0
        %3885 = vmatprep.subr.bf16.mxu0 0
        %3886 = vmatpush1.bf16.xpose.msra.mxu0 %v3883
        %3887 = vmatprep.subr.bf16.mxu0 0
        %3888 = vmatpush1.bf16.xpose.msra.mxu0 0
        %3889 = vmatprep.subr.bf16.mxu0 0
        %3890 = vmatpush1.bf16.xpose.msra.mxu0 0
        %3891 = vmatprep.subr.bf16.mxu0 0
        %3892 = vmatpush1.bf16.xpose.msra.mxu0 0
        %3893 = vmatprep.subr.bf16.mxu0 0
        %3894 = vmatpush1.bf16.xpose.msra.mxu0 0
        %3895 = vmatprep.subr.bf16.mxu0 0
        %3896 = vmatpush1.bf16.xpose.msra.mxu0 0
        %3897 = vmatprep.subr.bf16.mxu0 0
        %3898 = vmatpush1.bf16.xpose.msra.mxu0 0
        %3899 = vmatprep.subr.bf16.mxu0 0
        %3900 = vmatpush1.bf16.xpose.msra.mxu0 0
        %3901 = vmatprep.subr.bf16.mxu0 0
        %3902 = vmatpush1.bf16.xpose.msra.mxu0 0
        %3903 = vmatprep.subr.bf16.mxu0 0
        %3904 = vmatpush1.bf16.xpose.msra.mxu0 0
        %3905 = vmatprep.subr.bf16.mxu0 0
        %3906 = vmatpush1.bf16.xpose.msra.mxu0 0
        %3907 = vmatprep.subr.bf16.mxu0 0
        %3908 = vmatpush1.bf16.xpose.msra.mxu0 0
        %3909 = vmatprep.subr.bf16.mxu0 0
        %3910 = vmatpush1.bf16.xpose.msra.mxu0 0
        %3911 = vmatprep.subr.bf16.mxu0 0
        %3912 = vmatpush1.bf16.xpose.msra.mxu0 0
        %3913 = vmatprep.subr.bf16.mxu0 0
        %3914 = vmatpush1.bf16.xpose.msra.mxu0 0
        %3915 = vmatprep.subr.bf16.mxu0 0
        %3916 = vmatpush1.bf16.xpose.msra.mxu0 0
        %3917 = vmatprep.mubr.bf16.mxu0 0
        %3918 = vmatmul.mubr.bf16.gmra.mrb[0].mxu0 %v3880
        %v3919 = vpop.f32.mrb[0].mxu0
        %v3920 = vadd.f32 0.0, %v3919
        %v3921 = vpop.f32.mrb[0].mxu0
        %v3922 = vpop.f32.mrb[0].mxu0
        %v3923 = vpop.f32.mrb[0].mxu0
        %3924 = vdwg.mxu0
        %v3926 = vsel %vm1030, %v3872, 0
        %v3929 = vsel %vm1030, %v3876, 0
        %3931 = vmatprep.subr.bf16.mxu0 0
        %3932 = vmatpush1.bf16.xpose.msra.mxu0 %v3929
        %3933 = vmatprep.subr.bf16.mxu0 0
        %3934 = vmatpush1.bf16.xpose.msra.mxu0 0
        %3935 = vmatprep.subr.bf16.mxu0 0
        %3936 = vmatpush1.bf16.xpose.msra.mxu0 0
        %3937 = vmatprep.subr.bf16.mxu0 0
        %3938 = vmatpush1.bf16.xpose.msra.mxu0 0
        %3939 = vmatprep.subr.bf16.mxu0 0
        %3940 = vmatpush1.bf16.xpose.msra.mxu0 0
        %3941 = vmatprep.subr.bf16.mxu0 0
        %3942 = vmatpush1.bf16.xpose.msra.mxu0 0
        %3943 = vmatprep.subr.bf16.mxu0 0
        %3944 = vmatpush1.bf16.xpose.msra.mxu0 0
        %3945 = vmatprep.subr.bf16.mxu0 0
        %3946 = vmatpush1.bf16.xpose.msra.mxu0 0
        %3947 = vmatprep.subr.bf16.mxu0 0
        %3948 = vmatpush1.bf16.xpose.msra.mxu0 0
        %3949 = vmatprep.subr.bf16.mxu0 0
        %3950 = vmatpush1.bf16.xpose.msra.mxu0 0
        %3951 = vmatprep.subr.bf16.mxu0 0
        %3952 = vmatpush1.bf16.xpose.msra.mxu0 0
        %3953 = vmatprep.subr.bf16.mxu0 0
        %3954 = vmatpush1.bf16.xpose.msra.mxu0 0
        %3955 = vmatprep.subr.bf16.mxu0 0
        %3956 = vmatpush1.bf16.xpose.msra.mxu0 0
        %3957 = vmatprep.subr.bf16.mxu0 0
        %3958 = vmatpush1.bf16.xpose.msra.mxu0 0
        %3959 = vmatprep.subr.bf16.mxu0 0
        %3960 = vmatpush1.bf16.xpose.msra.mxu0 0
        %3961 = vmatprep.subr.bf16.mxu0 0
        %3962 = vmatpush1.bf16.xpose.msra.mxu0 0
        %3963 = vmatprep.mubr.bf16.mxu0 0
        %3964 = vmatmul.mubr.bf16.gmra.mrb[0].mxu0 %v3926
        %v3965 = vpop.f32.mrb[0].mxu0
        %v3966 = vadd.f32 0.0, %v3965
        %v3967 = vpop.f32.mrb[0].mxu0
        %v3968 = vpop.f32.mrb[0].mxu0
        %v3969 = vpop.f32.mrb[0].mxu0
        %3970 = vdwg.mxu0
        %v3972 = vsel %vm1030, %v3873, 0
        %v3975 = vsel %vm1030, %v3877, 0
        %3977 = vmatprep.subr.bf16.mxu0 0
        %3978 = vmatpush1.bf16.xpose.msra.mxu0 %v3975
        %3979 = vmatprep.subr.bf16.mxu0 0
        %3980 = vmatpush1.bf16.xpose.msra.mxu0 0
        %3981 = vmatprep.subr.bf16.mxu0 0
        %3982 = vmatpush1.bf16.xpose.msra.mxu0 0
        %3983 = vmatprep.subr.bf16.mxu0 0
        %3984 = vmatpush1.bf16.xpose.msra.mxu0 0
        %3985 = vmatprep.subr.bf16.mxu0 0
        %3986 = vmatpush1.bf16.xpose.msra.mxu0 0
        %3987 = vmatprep.subr.bf16.mxu0 0
        %3988 = vmatpush1.bf16.xpose.msra.mxu0 0
        %3989 = vmatprep.subr.bf16.mxu0 0
        %3990 = vmatpush1.bf16.xpose.msra.mxu0 0
        %3991 = vmatprep.subr.bf16.mxu0 0
        %3992 = vmatpush1.bf16.xpose.msra.mxu0 0
        %3993 = vmatprep.subr.bf16.mxu0 0
        %3994 = vmatpush1.bf16.xpose.msra.mxu0 0
        %3995 = vmatprep.subr.bf16.mxu0 0
        %3996 = vmatpush1.bf16.xpose.msra.mxu0 0
        %3997 = vmatprep.subr.bf16.mxu0 0
        %3998 = vmatpush1.bf16.xpose.msra.mxu0 0
        %3999 = vmatprep.subr.bf16.mxu0 0
        %4000 = vmatpush1.bf16.xpose.msra.mxu0 0
        %4001 = vmatprep.subr.bf16.mxu0 0
        %4002 = vmatpush1.bf16.xpose.msra.mxu0 0
        %4003 = vmatprep.subr.bf16.mxu0 0
        %4004 = vmatpush1.bf16.xpose.msra.mxu0 0
        %4005 = vmatprep.subr.bf16.mxu0 0
        %4006 = vmatpush1.bf16.xpose.msra.mxu0 0
        %4007 = vmatprep.subr.bf16.mxu0 0
        %4008 = vmatpush1.bf16.xpose.msra.mxu0 0
        %4009 = vmatprep.mubr.bf16.mxu0 0
        %4010 = vmatmul.mubr.bf16.gmra.mrb[0].mxu0 %v3972
        %v4011 = vpop.f32.mrb[0].mxu0
        %v4012 = vadd.f32 0.0, %v4011
        %v4013 = vpop.f32.mrb[0].mxu0
        %v4014 = vpop.f32.mrb[0].mxu0
        %v4015 = vpop.f32.mrb[0].mxu0
        %4016 = vdwg.mxu0
        %v4018 = vsel %vm1030, %v3874, 0
        %v4021 = vsel %vm1030, %v3878, 0
        %4023 = vmatprep.subr.bf16.mxu0 0
        %4024 = vmatpush1.bf16.xpose.msra.mxu0 %v4021
        %4025 = vmatprep.subr.bf16.mxu0 0
        %4026 = vmatpush1.bf16.xpose.msra.mxu0 0
        %4027 = vmatprep.subr.bf16.mxu0 0
        %4028 = vmatpush1.bf16.xpose.msra.mxu0 0
        %4029 = vmatprep.subr.bf16.mxu0 0
        %4030 = vmatpush1.bf16.xpose.msra.mxu0 0
        %4031 = vmatprep.subr.bf16.mxu0 0
        %4032 = vmatpush1.bf16.xpose.msra.mxu0 0
        %4033 = vmatprep.subr.bf16.mxu0 0
        %4034 = vmatpush1.bf16.xpose.msra.mxu0 0
        %4035 = vmatprep.subr.bf16.mxu0 0
        %4036 = vmatpush1.bf16.xpose.msra.mxu0 0
        %4037 = vmatprep.subr.bf16.mxu0 0
        %4038 = vmatpush1.bf16.xpose.msra.mxu0 0
        %4039 = vmatprep.subr.bf16.mxu0 0
        %4040 = vmatpush1.bf16.xpose.msra.mxu0 0
        %4041 = vmatprep.subr.bf16.mxu0 0
        %4042 = vmatpush1.bf16.xpose.msra.mxu0 0
        %4043 = vmatprep.subr.bf16.mxu0 0
        %4044 = vmatpush1.bf16.xpose.msra.mxu0 0
        %4045 = vmatprep.subr.bf16.mxu0 0
        %4046 = vmatpush1.bf16.xpose.msra.mxu0 0
        %4047 = vmatprep.subr.bf16.mxu0 0
        %4048 = vmatpush1.bf16.xpose.msra.mxu0 0
        %4049 = vmatprep.subr.bf16.mxu0 0
        %4050 = vmatpush1.bf16.xpose.msra.mxu0 0
        %4051 = vmatprep.subr.bf16.mxu0 0
        %4052 = vmatpush1.bf16.xpose.msra.mxu0 0
        %4053 = vmatprep.subr.bf16.mxu0 0
        %4054 = vmatpush1.bf16.xpose.msra.mxu0 0
        %4055 = vmatprep.mubr.bf16.mxu0 0
        %4056 = vmatmul.mubr.bf16.gmra.mrb[0].mxu0 %v4018
        %v4057 = vpop.f32.mrb[0].mxu0
        %v4058 = vadd.f32 0.0, %v4057
        %v4059 = vpop.f32.mrb[0].mxu0
        %v4060 = vpop.f32.mrb[0].mxu0
        %v4061 = vpop.f32.mrb[0].mxu0
        %4062 = vdwg.mxu0
        %v4063 = vmul.f32 %v3920, 0.17677669
        %v4064 = vmul.f32 %v3966, 0.17677669
        %v4065 = vmul.f32 %v4012, 0.17677669
        %v4066 = vmul.f32 %v4058, 0.17677669
        %v4067 = vadd.f32 %v4063, %v1226
        %v4068 = vadd.f32 %v4064, %v1230
        %v4069 = vadd.f32 %v4065, %v1234
        %v4070 = vadd.f32 %v4066, %v1238
        %v4071 = vsel %vm1247, %v4067, -inf
        %4072 = vmax.xlane.f32.xlu0 %v4071
        %v4073 = vpop.xlane.xlu0 %4072
        %v4074 = vsel %vm1247, %v4068, -inf
        %4075 = vmax.xlane.f32.xlu0 %v4074
        %v4076 = vpop.xlane.xlu0 %4075
        %v4077 = vsel %vm1247, %v4069, -inf
        %4078 = vmax.xlane.f32.xlu0 %v4077
        %v4079 = vpop.xlane.xlu0 %4078
        %v4080 = vsel %vm1247, %v4070, -inf
        %4081 = vmax.xlane.f32.xlu0 %v4080
        %v4082 = vpop.xlane.xlu0 %4081
        %v4083 = vsub.f32 %v4067, %v4073
        %v4084 = vsub.f32 %v4068, %v4076
        %v4085 = vsub.f32 %v4069, %v4079
        %v4086 = vsub.f32 %v4070, %v4082
        %v4087 = vmul.f32 %v4083, 1.442695
        %v4088 = vpow.pop %v4087
        %v4089 = vmul.f32 %v4084, 1.442695
        %v4090 = vpow.pop %v4089
        %v4091 = vmul.f32 %v4085, 1.442695
        %v4092 = vpow.pop %v4091
        %v4093 = vmul.f32 %v4086, 1.442695
        %v4094 = vpow.pop %v4093
        %v4095 = vsel %vm1247, %v4088, 0.0
        %4096 = vadd.xlane.f32.xlu0 %v4095
        %v4097 = vpop.xlane.xlu0 %4096
        %v4098 = vsel %vm1247, %v4090, 0.0
        %4099 = vadd.xlane.f32.xlu0 %v4098
        %v4100 = vpop.xlane.xlu0 %4099
        %v4101 = vsel %vm1247, %v4092, 0.0
        %4102 = vadd.xlane.f32.xlu0 %v4101
        %v4103 = vpop.xlane.xlu0 %4102
        %v4104 = vsel %vm1247, %v4094, 0.0
        %4105 = vadd.xlane.f32.xlu0 %v4104
        %v4106 = vpop.xlane.xlu0 %4105
        %v4107 = vrcp.pop %v4097
        %v4108 = vrcp.pop %v4100
        %v4109 = vrcp.pop %v4103
        %v4110 = vrcp.pop %v4106
        %v4111 = vmul.f32 %v4088, %v4107
        %v4112 = vmul.f32 %v4090, %v4108
        %v4113 = vmul.f32 %v4092, %v4109
        %v4114 = vmul.f32 %v4094, %v4110
        %v4115 = vpack.c.bf16 %v4111, %v4111
        %v4116 = vpack.c.bf16 %v4112, %v4112
        %v4117 = vpack.c.bf16 %v4113, %v4113
        %v4118 = vpack.c.bf16 %v4114, %v4114
        %v4119 = vpack.c.bf16 %v3857, %v3857
        %v4120 = vpack.c.bf16 %v3860, %v3860
        %v4121 = vpack.c.bf16 %v3865, %v3865
        %v4122 = vpack.c.bf16 %v3868, %v3868
        %v4124 = vsel %vm1247, %v4115, 0
        %v4127 = vsel %vm1303, %v4119, 0
        %4129 = vmatprep.subr.bf16.mxu0 0
        %4130 = vmatpush1.bf16.msra.mxu0 %v4127
        %4131 = vmatprep.subr.bf16.mxu0 0
        %4132 = vmatpush1.bf16.msra.mxu0 0
        %4133 = vmatprep.subr.bf16.mxu0 0
        %4134 = vmatpush1.bf16.msra.mxu0 0
        %4135 = vmatprep.subr.bf16.mxu0 0
        %4136 = vmatpush1.bf16.msra.mxu0 0
        %4137 = vmatprep.subr.bf16.mxu0 0
        %4138 = vmatpush1.bf16.msra.mxu0 0
        %4139 = vmatprep.subr.bf16.mxu0 0
        %4140 = vmatpush1.bf16.msra.mxu0 0
        %4141 = vmatprep.subr.bf16.mxu0 0
        %4142 = vmatpush1.bf16.msra.mxu0 0
        %4143 = vmatprep.subr.bf16.mxu0 0
        %4144 = vmatpush1.bf16.msra.mxu0 0
        %4145 = vmatprep.subr.bf16.mxu0 0
        %4146 = vmatpush1.bf16.msra.mxu0 0
        %4147 = vmatprep.subr.bf16.mxu0 0
        %4148 = vmatpush1.bf16.msra.mxu0 0
        %4149 = vmatprep.subr.bf16.mxu0 0
        %4150 = vmatpush1.bf16.msra.mxu0 0
        %4151 = vmatprep.subr.bf16.mxu0 0
        %4152 = vmatpush1.bf16.msra.mxu0 0
        %4153 = vmatprep.subr.bf16.mxu0 0
        %4154 = vmatpush1.bf16.msra.mxu0 0
        %4155 = vmatprep.subr.bf16.mxu0 0
        %4156 = vmatpush1.bf16.msra.mxu0 0
        %4157 = vmatprep.subr.bf16.mxu0 0
        %4158 = vmatpush1.bf16.msra.mxu0 0
        %4159 = vmatprep.subr.bf16.mxu0 0
        %4160 = vmatpush1.bf16.msra.mxu0 0
        %4161 = vmatprep.mubr.bf16.mxu0 0
        %4162 = vmatmul.mubr.bf16.gmra.mrb[0].mxu0 %v4124
        %v4163 = vpop.f32.mrb[0].mxu0
        %v4164 = vadd.f32 0.0, %v4163
        %v4165 = vpop.f32.mrb[0].mxu0
        %v4166 = vpop.f32.mrb[0].mxu0
        %v4167 = vpop.f32.mrb[0].mxu0
        %4168 = vdwg.mxu0
        %v4170 = vsel %vm1247, %v4116, 0
        %v4173 = vsel %vm1303, %v4120, 0
        %4175 = vmatprep.subr.bf16.mxu0 0
        %4176 = vmatpush1.bf16.msra.mxu0 %v4173
        %4177 = vmatprep.subr.bf16.mxu0 0
        %4178 = vmatpush1.bf16.msra.mxu0 0
        %4179 = vmatprep.subr.bf16.mxu0 0
        %4180 = vmatpush1.bf16.msra.mxu0 0
        %4181 = vmatprep.subr.bf16.mxu0 0
        %4182 = vmatpush1.bf16.msra.mxu0 0
        %4183 = vmatprep.subr.bf16.mxu0 0
        %4184 = vmatpush1.bf16.msra.mxu0 0
        %4185 = vmatprep.subr.bf16.mxu0 0
        %4186 = vmatpush1.bf16.msra.mxu0 0
        %4187 = vmatprep.subr.bf16.mxu0 0
        %4188 = vmatpush1.bf16.msra.mxu0 0
        %4189 = vmatprep.subr.bf16.mxu0 0
        %4190 = vmatpush1.bf16.msra.mxu0 0
        %4191 = vmatprep.subr.bf16.mxu0 0
        %4192 = vmatpush1.bf16.msra.mxu0 0
        %4193 = vmatprep.subr.bf16.mxu0 0
        %4194 = vmatpush1.bf16.msra.mxu0 0
        %4195 = vmatprep.subr.bf16.mxu0 0
        %4196 = vmatpush1.bf16.msra.mxu0 0
        %4197 = vmatprep.subr.bf16.mxu0 0
        %4198 = vmatpush1.bf16.msra.mxu0 0
        %4199 = vmatprep.subr.bf16.mxu0 0
        %4200 = vmatpush1.bf16.msra.mxu0 0
        %4201 = vmatprep.subr.bf16.mxu0 0
        %4202 = vmatpush1.bf16.msra.mxu0 0
        %4203 = vmatprep.subr.bf16.mxu0 0
        %4204 = vmatpush1.bf16.msra.mxu0 0
        %4205 = vmatprep.subr.bf16.mxu0 0
        %4206 = vmatpush1.bf16.msra.mxu0 0
        %4207 = vmatprep.mubr.bf16.mxu0 0
        %4208 = vmatmul.mubr.bf16.gmra.mrb[0].mxu0 %v4170
        %v4209 = vpop.f32.mrb[0].mxu0
        %v4210 = vadd.f32 0.0, %v4209
        %v4211 = vpop.f32.mrb[0].mxu0
        %v4212 = vpop.f32.mrb[0].mxu0
        %v4213 = vpop.f32.mrb[0].mxu0
        %4214 = vdwg.mxu0
        %v4216 = vsel %vm1247, %v4117, 0
        %v4219 = vsel %vm1303, %v4121, 0
        %4221 = vmatprep.subr.bf16.mxu0 0
        %4222 = vmatpush1.bf16.msra.mxu0 %v4219
        %4223 = vmatprep.subr.bf16.mxu0 0
        %4224 = vmatpush1.bf16.msra.mxu0 0
        %4225 = vmatprep.subr.bf16.mxu0 0
        %4226 = vmatpush1.bf16.msra.mxu0 0
        %4227 = vmatprep.subr.bf16.mxu0 0
        %4228 = vmatpush1.bf16.msra.mxu0 0
        %4229 = vmatprep.subr.bf16.mxu0 0
        %4230 = vmatpush1.bf16.msra.mxu0 0
        %4231 = vmatprep.subr.bf16.mxu0 0
        %4232 = vmatpush1.bf16.msra.mxu0 0
        %4233 = vmatprep.subr.bf16.mxu0 0
        %4234 = vmatpush1.bf16.msra.mxu0 0
        %4235 = vmatprep.subr.bf16.mxu0 0
        %4236 = vmatpush1.bf16.msra.mxu0 0
        %4237 = vmatprep.subr.bf16.mxu0 0
        %4238 = vmatpush1.bf16.msra.mxu0 0
        %4239 = vmatprep.subr.bf16.mxu0 0
        %4240 = vmatpush1.bf16.msra.mxu0 0
        %4241 = vmatprep.subr.bf16.mxu0 0
        %4242 = vmatpush1.bf16.msra.mxu0 0
        %4243 = vmatprep.subr.bf16.mxu0 0
        %4244 = vmatpush1.bf16.msra.mxu0 0
        %4245 = vmatprep.subr.bf16.mxu0 0
        %4246 = vmatpush1.bf16.msra.mxu0 0
        %4247 = vmatprep.subr.bf16.mxu0 0
        %4248 = vmatpush1.bf16.msra.mxu0 0
        %4249 = vmatprep.subr.bf16.mxu0 0
        %4250 = vmatpush1.bf16.msra.mxu0 0
        %4251 = vmatprep.subr.bf16.mxu0 0
        %4252 = vmatpush1.bf16.msra.mxu0 0
        %4253 = vmatprep.mubr.bf16.mxu0 0
        %4254 = vmatmul.mubr.bf16.gmra.mrb[0].mxu0 %v4216
        %v4255 = vpop.f32.mrb[0].mxu0
        %v4256 = vadd.f32 0.0, %v4255
        %v4257 = vpop.f32.mrb[0].mxu0
        %v4258 = vpop.f32.mrb[0].mxu0
        %v4259 = vpop.f32.mrb[0].mxu0
        %4260 = vdwg.mxu0
        %v4262 = vsel %vm1247, %v4118, 0
        %v4265 = vsel %vm1303, %v4122, 0
        %4267 = vmatprep.subr.bf16.mxu0 0
        %4268 = vmatpush1.bf16.msra.mxu0 %v4265
        %4269 = vmatprep.subr.bf16.mxu0 0
        %4270 = vmatpush1.bf16.msra.mxu0 0
        %4271 = vmatprep.subr.bf16.mxu0 0
        %4272 = vmatpush1.bf16.msra.mxu0 0
        %4273 = vmatprep.subr.bf16.mxu0 0
        %4274 = vmatpush1.bf16.msra.mxu0 0
        %4275 = vmatprep.subr.bf16.mxu0 0
        %4276 = vmatpush1.bf16.msra.mxu0 0
        %4277 = vmatprep.subr.bf16.mxu0 0
        %4278 = vmatpush1.bf16.msra.mxu0 0
        %4279 = vmatprep.subr.bf16.mxu0 0
        %4280 = vmatpush1.bf16.msra.mxu0 0
        %4281 = vmatprep.subr.bf16.mxu0 0
        %4282 = vmatpush1.bf16.msra.mxu0 0
        %4283 = vmatprep.subr.bf16.mxu0 0
        %4284 = vmatpush1.bf16.msra.mxu0 0
        %4285 = vmatprep.subr.bf16.mxu0 0
        %4286 = vmatpush1.bf16.msra.mxu0 0
        %4287 = vmatprep.subr.bf16.mxu0 0
        %4288 = vmatpush1.bf16.msra.mxu0 0
        %4289 = vmatprep.subr.bf16.mxu0 0
        %4290 = vmatpush1.bf16.msra.mxu0 0
        %4291 = vmatprep.subr.bf16.mxu0 0
        %4292 = vmatpush1.bf16.msra.mxu0 0
        %4293 = vmatprep.subr.bf16.mxu0 0
        %4294 = vmatpush1.bf16.msra.mxu0 0
        %4295 = vmatprep.subr.bf16.mxu0 0
        %4296 = vmatpush1.bf16.msra.mxu0 0
        %4297 = vmatprep.subr.bf16.mxu0 0
        %4298 = vmatpush1.bf16.msra.mxu0 0
        %4299 = vmatprep.mubr.bf16.mxu0 0
        %4300 = vmatmul.mubr.bf16.gmra.mrb[0].mxu0 %v4262
        %v4301 = vpop.f32.mrb[0].mxu0
        %v4302 = vadd.f32 0.0, %v4301
        %v4303 = vpop.f32.mrb[0].mxu0
        %v4304 = vpop.f32.mrb[0].mxu0
        %v4305 = vpop.f32.mrb[0].mxu0
        %4306 = vdwg.mxu0
        %4308 = vrot.lane.b32.xlu0 %v3871, 96
        %v4309 = vpop.permute.xlu0 %4308
        %4311 = vrot.lane.b32.xlu0 %v3875, 96
        %v4312 = vpop.permute.xlu0 %4311
        %v4314 = vsel %vm1030, %v4309, 0
        %v4317 = vsel %vm1030, %v4312, 0
        %4319 = vmatprep.subr.bf16.mxu0 0
        %4320 = vmatpush1.bf16.xpose.msra.mxu0 %v4317
        %4321 = vmatprep.subr.bf16.mxu0 0
        %4322 = vmatpush1.bf16.xpose.msra.mxu0 0
        %4323 = vmatprep.subr.bf16.mxu0 0
        %4324 = vmatpush1.bf16.xpose.msra.mxu0 0
        %4325 = vmatprep.subr.bf16.mxu0 0
        %4326 = vmatpush1.bf16.xpose.msra.mxu0 0
        %4327 = vmatprep.subr.bf16.mxu0 0
        %4328 = vmatpush1.bf16.xpose.msra.mxu0 0
        %4329 = vmatprep.subr.bf16.mxu0 0
        %4330 = vmatpush1.bf16.xpose.msra.mxu0 0
        %4331 = vmatprep.subr.bf16.mxu0 0
        %4332 = vmatpush1.bf16.xpose.msra.mxu0 0
        %4333 = vmatprep.subr.bf16.mxu0 0
        %4334 = vmatpush1.bf16.xpose.msra.mxu0 0
        %4335 = vmatprep.subr.bf16.mxu0 0
        %4336 = vmatpush1.bf16.xpose.msra.mxu0 0
        %4337 = vmatprep.subr.bf16.mxu0 0
        %4338 = vmatpush1.bf16.xpose.msra.mxu0 0
        %4339 = vmatprep.subr.bf16.mxu0 0
        %4340 = vmatpush1.bf16.xpose.msra.mxu0 0
        %4341 = vmatprep.subr.bf16.mxu0 0
        %4342 = vmatpush1.bf16.xpose.msra.mxu0 0
        %4343 = vmatprep.subr.bf16.mxu0 0
        %4344 = vmatpush1.bf16.xpose.msra.mxu0 0
        %4345 = vmatprep.subr.bf16.mxu0 0
        %4346 = vmatpush1.bf16.xpose.msra.mxu0 0
        %4347 = vmatprep.subr.bf16.mxu0 0
        %4348 = vmatpush1.bf16.xpose.msra.mxu0 0
        %4349 = vmatprep.subr.bf16.mxu0 0
        %4350 = vmatpush1.bf16.xpose.msra.mxu0 0
        %4351 = vmatprep.mubr.bf16.mxu0 0
        %4352 = vmatmul.mubr.bf16.gmra.mrb[0].mxu0 %v4314
        %v4353 = vpop.f32.mrb[0].mxu0
        %v4354 = vadd.f32 0.0, %v4353
        %v4355 = vpop.f32.mrb[0].mxu0
        %v4356 = vpop.f32.mrb[0].mxu0
        %v4357 = vpop.f32.mrb[0].mxu0
        %4358 = vdwg.mxu0
        %4360 = vrot.lane.b32.xlu0 %v3872, 96
        %v4361 = vpop.permute.xlu0 %4360
        %4363 = vrot.lane.b32.xlu0 %v3876, 96
        %v4364 = vpop.permute.xlu0 %4363
        %v4366 = vsel %vm1030, %v4361, 0
        %v4369 = vsel %vm1030, %v4364, 0
        %4371 = vmatprep.subr.bf16.mxu0 0
        %4372 = vmatpush1.bf16.xpose.msra.mxu0 %v4369
        %4373 = vmatprep.subr.bf16.mxu0 0
        %4374 = vmatpush1.bf16.xpose.msra.mxu0 0
        %4375 = vmatprep.subr.bf16.mxu0 0
        %4376 = vmatpush1.bf16.xpose.msra.mxu0 0
        %4377 = vmatprep.subr.bf16.mxu0 0
        %4378 = vmatpush1.bf16.xpose.msra.mxu0 0
        %4379 = vmatprep.subr.bf16.mxu0 0
        %4380 = vmatpush1.bf16.xpose.msra.mxu0 0
        %4381 = vmatprep.subr.bf16.mxu0 0
        %4382 = vmatpush1.bf16.xpose.msra.mxu0 0
        %4383 = vmatprep.subr.bf16.mxu0 0
        %4384 = vmatpush1.bf16.xpose.msra.mxu0 0
        %4385 = vmatprep.subr.bf16.mxu0 0
        %4386 = vmatpush1.bf16.xpose.msra.mxu0 0
        %4387 = vmatprep.subr.bf16.mxu0 0
        %4388 = vmatpush1.bf16.xpose.msra.mxu0 0
        %4389 = vmatprep.subr.bf16.mxu0 0
        %4390 = vmatpush1.bf16.xpose.msra.mxu0 0
        %4391 = vmatprep.subr.bf16.mxu0 0
        %4392 = vmatpush1.bf16.xpose.msra.mxu0 0
        %4393 = vmatprep.subr.bf16.mxu0 0
        %4394 = vmatpush1.bf16.xpose.msra.mxu0 0
        %4395 = vmatprep.subr.bf16.mxu0 0
        %4396 = vmatpush1.bf16.xpose.msra.mxu0 0
        %4397 = vmatprep.subr.bf16.mxu0 0
        %4398 = vmatpush1.bf16.xpose.msra.mxu0 0
        %4399 = vmatprep.subr.bf16.mxu0 0
        %4400 = vmatpush1.bf16.xpose.msra.mxu0 0
        %4401 = vmatprep.subr.bf16.mxu0 0
        %4402 = vmatpush1.bf16.xpose.msra.mxu0 0
        %4403 = vmatprep.mubr.bf16.mxu0 0
        %4404 = vmatmul.mubr.bf16.gmra.mrb[0].mxu0 %v4366
        %v4405 = vpop.f32.mrb[0].mxu0
        %v4406 = vadd.f32 0.0, %v4405
        %v4407 = vpop.f32.mrb[0].mxu0
        %v4408 = vpop.f32.mrb[0].mxu0
        %v4409 = vpop.f32.mrb[0].mxu0
        %4410 = vdwg.mxu0
        %4412 = vrot.lane.b32.xlu0 %v3873, 96
        %v4413 = vpop.permute.xlu0 %4412
        %4415 = vrot.lane.b32.xlu0 %v3877, 96
        %v4416 = vpop.permute.xlu0 %4415
        %v4418 = vsel %vm1030, %v4413, 0
        %v4421 = vsel %vm1030, %v4416, 0
        %4423 = vmatprep.subr.bf16.mxu0 0
        %4424 = vmatpush1.bf16.xpose.msra.mxu0 %v4421
        %4425 = vmatprep.subr.bf16.mxu0 0
        %4426 = vmatpush1.bf16.xpose.msra.mxu0 0
        %4427 = vmatprep.subr.bf16.mxu0 0
        %4428 = vmatpush1.bf16.xpose.msra.mxu0 0
        %4429 = vmatprep.subr.bf16.mxu0 0
        %4430 = vmatpush1.bf16.xpose.msra.mxu0 0
        %4431 = vmatprep.subr.bf16.mxu0 0
        %4432 = vmatpush1.bf16.xpose.msra.mxu0 0
        %4433 = vmatprep.subr.bf16.mxu0 0
        %4434 = vmatpush1.bf16.xpose.msra.mxu0 0
        %4435 = vmatprep.subr.bf16.mxu0 0
        %4436 = vmatpush1.bf16.xpose.msra.mxu0 0
        %4437 = vmatprep.subr.bf16.mxu0 0
        %4438 = vmatpush1.bf16.xpose.msra.mxu0 0
        %4439 = vmatprep.subr.bf16.mxu0 0
        %4440 = vmatpush1.bf16.xpose.msra.mxu0 0
        %4441 = vmatprep.subr.bf16.mxu0 0
        %4442 = vmatpush1.bf16.xpose.msra.mxu0 0
        %4443 = vmatprep.subr.bf16.mxu0 0
        %4444 = vmatpush1.bf16.xpose.msra.mxu0 0
        %4445 = vmatprep.subr.bf16.mxu0 0
        %4446 = vmatpush1.bf16.xpose.msra.mxu0 0
        %4447 = vmatprep.subr.bf16.mxu0 0
        %4448 = vmatpush1.bf16.xpose.msra.mxu0 0
        %4449 = vmatprep.subr.bf16.mxu0 0
        %4450 = vmatpush1.bf16.xpose.msra.mxu0 0
        %4451 = vmatprep.subr.bf16.mxu0 0
        %4452 = vmatpush1.bf16.xpose.msra.mxu0 0
        %4453 = vmatprep.subr.bf16.mxu0 0
        %4454 = vmatpush1.bf16.xpose.msra.mxu0 0
        %4455 = vmatprep.mubr.bf16.mxu0 0
        %4456 = vmatmul.mubr.bf16.gmra.mrb[0].mxu0 %v4418
        %v4457 = vpop.f32.mrb[0].mxu0
        %v4458 = vadd.f32 0.0, %v4457
        %v4459 = vpop.f32.mrb[0].mxu0
        %v4460 = vpop.f32.mrb[0].mxu0
        %v4461 = vpop.f32.mrb[0].mxu0
        %4462 = vdwg.mxu0
        %4464 = vrot.lane.b32.xlu0 %v3874, 96
        %v4465 = vpop.permute.xlu0 %4464
        %4467 = vrot.lane.b32.xlu0 %v3878, 96
        %v4468 = vpop.permute.xlu0 %4467
        %v4470 = vsel %vm1030, %v4465, 0
        %v4473 = vsel %vm1030, %v4468, 0
        %4475 = vmatprep.subr.bf16.mxu0 0
        %4476 = vmatpush1.bf16.xpose.msra.mxu0 %v4473
        %4477 = vmatprep.subr.bf16.mxu0 0
        %4478 = vmatpush1.bf16.xpose.msra.mxu0 0
        %4479 = vmatprep.subr.bf16.mxu0 0
        %4480 = vmatpush1.bf16.xpose.msra.mxu0 0
        %4481 = vmatprep.subr.bf16.mxu0 0
        %4482 = vmatpush1.bf16.xpose.msra.mxu0 0
        %4483 = vmatprep.subr.bf16.mxu0 0
        %4484 = vmatpush1.bf16.xpose.msra.mxu0 0
        %4485 = vmatprep.subr.bf16.mxu0 0
        %4486 = vmatpush1.bf16.xpose.msra.mxu0 0
        %4487 = vmatprep.subr.bf16.mxu0 0
        %4488 = vmatpush1.bf16.xpose.msra.mxu0 0
        %4489 = vmatprep.subr.bf16.mxu0 0
        %4490 = vmatpush1.bf16.xpose.msra.mxu0 0
        %4491 = vmatprep.subr.bf16.mxu0 0
        %4492 = vmatpush1.bf16.xpose.msra.mxu0 0
        %4493 = vmatprep.subr.bf16.mxu0 0
        %4494 = vmatpush1.bf16.xpose.msra.mxu0 0
        %4495 = vmatprep.subr.bf16.mxu0 0
        %4496 = vmatpush1.bf16.xpose.msra.mxu0 0
        %4497 = vmatprep.subr.bf16.mxu0 0
        %4498 = vmatpush1.bf16.xpose.msra.mxu0 0
        %4499 = vmatprep.subr.bf16.mxu0 0
        %4500 = vmatpush1.bf16.xpose.msra.mxu0 0
        %4501 = vmatprep.subr.bf16.mxu0 0
        %4502 = vmatpush1.bf16.xpose.msra.mxu0 0
        %4503 = vmatprep.subr.bf16.mxu0 0
        %4504 = vmatpush1.bf16.xpose.msra.mxu0 0
        %4505 = vmatprep.subr.bf16.mxu0 0
        %4506 = vmatpush1.bf16.xpose.msra.mxu0 0
        %4507 = vmatprep.mubr.bf16.mxu0 0
        %4508 = vmatmul.mubr.bf16.gmra.mrb[0].mxu0 %v4470
        %v4509 = vpop.f32.mrb[0].mxu0
        %v4510 = vadd.f32 0.0, %v4509
        %v4511 = vpop.f32.mrb[0].mxu0
        %v4512 = vpop.f32.mrb[0].mxu0
        %v4513 = vpop.f32.mrb[0].mxu0
        %4514 = vdwg.mxu0
        %v4515 = vmul.f32 %v4354, 0.17677669
        %v4516 = vmul.f32 %v4406, 0.17677669
        %v4517 = vmul.f32 %v4458, 0.17677669
        %v4518 = vmul.f32 %v4510, 0.17677669
        %v4519 = vadd.f32 %v4515, %v1226
        %v4520 = vadd.f32 %v4516, %v1230
        %v4521 = vadd.f32 %v4517, %v1234
        %v4522 = vadd.f32 %v4518, %v1238
        %v4523 = vsel %vm1247, %v4519, -inf
        %4524 = vmax.xlane.f32.xlu0 %v4523
        %v4525 = vpop.xlane.xlu0 %4524
        %v4526 = vsel %vm1247, %v4520, -inf
        %4527 = vmax.xlane.f32.xlu0 %v4526
        %v4528 = vpop.xlane.xlu0 %4527
        %v4529 = vsel %vm1247, %v4521, -inf
        %4530 = vmax.xlane.f32.xlu0 %v4529
        %v4531 = vpop.xlane.xlu0 %4530
        %v4532 = vsel %vm1247, %v4522, -inf
        %4533 = vmax.xlane.f32.xlu0 %v4532
        %v4534 = vpop.xlane.xlu0 %4533
        %v4535 = vsub.f32 %v4519, %v4525
        %v4536 = vsub.f32 %v4520, %v4528
        %v4537 = vsub.f32 %v4521, %v4531
        %v4538 = vsub.f32 %v4522, %v4534
        %v4539 = vmul.f32 %v4535, 1.442695
        %v4540 = vpow.pop %v4539
        %v4541 = vmul.f32 %v4536, 1.442695
        %v4542 = vpow.pop %v4541
        %v4543 = vmul.f32 %v4537, 1.442695
        %v4544 = vpow.pop %v4543
        %v4545 = vmul.f32 %v4538, 1.442695
        %v4546 = vpow.pop %v4545
        %v4547 = vsel %vm1247, %v4540, 0.0
        %4548 = vadd.xlane.f32.xlu0 %v4547
        %v4549 = vpop.xlane.xlu0 %4548
        %v4550 = vsel %vm1247, %v4542, 0.0
        %4551 = vadd.xlane.f32.xlu0 %v4550
        %v4552 = vpop.xlane.xlu0 %4551
        %v4553 = vsel %vm1247, %v4544, 0.0
        %4554 = vadd.xlane.f32.xlu0 %v4553
        %v4555 = vpop.xlane.xlu0 %4554
        %v4556 = vsel %vm1247, %v4546, 0.0
        %4557 = vadd.xlane.f32.xlu0 %v4556
        %v4558 = vpop.xlane.xlu0 %4557
        %v4559 = vrcp.pop %v4549
        %v4560 = vrcp.pop %v4552
        %v4561 = vrcp.pop %v4555
        %v4562 = vrcp.pop %v4558
        %v4563 = vmul.f32 %v4540, %v4559
        %v4564 = vmul.f32 %v4542, %v4560
        %v4565 = vmul.f32 %v4544, %v4561
        %v4566 = vmul.f32 %v4546, %v4562
        %v4567 = vpack.c.bf16 %v4563, %v4563
        %v4568 = vpack.c.bf16 %v4564, %v4564
        %v4569 = vpack.c.bf16 %v4565, %v4565
        %v4570 = vpack.c.bf16 %v4566, %v4566
        %4572 = vrot.lane.b32.xlu0 %v4119, 96
        %v4573 = vpop.permute.xlu0 %4572
        %v4575 = vsel %vm1247, %v4567, 0
        %v4578 = vsel %vm1303, %v4573, 0
        %4580 = vmatprep.subr.bf16.mxu0 0
        %4581 = vmatpush1.bf16.msra.mxu0 %v4578
        %4582 = vmatprep.subr.bf16.mxu0 0
        %4583 = vmatpush1.bf16.msra.mxu0 0
        %4584 = vmatprep.subr.bf16.mxu0 0
        %4585 = vmatpush1.bf16.msra.mxu0 0
        %4586 = vmatprep.subr.bf16.mxu0 0
        %4587 = vmatpush1.bf16.msra.mxu0 0
        %4588 = vmatprep.subr.bf16.mxu0 0
        %4589 = vmatpush1.bf16.msra.mxu0 0
        %4590 = vmatprep.subr.bf16.mxu0 0
        %4591 = vmatpush1.bf16.msra.mxu0 0
        %4592 = vmatprep.subr.bf16.mxu0 0
        %4593 = vmatpush1.bf16.msra.mxu0 0
        %4594 = vmatprep.subr.bf16.mxu0 0
        %4595 = vmatpush1.bf16.msra.mxu0 0
        %4596 = vmatprep.subr.bf16.mxu0 0
        %4597 = vmatpush1.bf16.msra.mxu0 0
        %4598 = vmatprep.subr.bf16.mxu0 0
        %4599 = vmatpush1.bf16.msra.mxu0 0
        %4600 = vmatprep.subr.bf16.mxu0 0
        %4601 = vmatpush1.bf16.msra.mxu0 0
        %4602 = vmatprep.subr.bf16.mxu0 0
        %4603 = vmatpush1.bf16.msra.mxu0 0
        %4604 = vmatprep.subr.bf16.mxu0 0
        %4605 = vmatpush1.bf16.msra.mxu0 0
        %4606 = vmatprep.subr.bf16.mxu0 0
        %4607 = vmatpush1.bf16.msra.mxu0 0
        %4608 = vmatprep.subr.bf16.mxu0 0
        %4609 = vmatpush1.bf16.msra.mxu0 0
        %4610 = vmatprep.subr.bf16.mxu0 0
        %4611 = vmatpush1.bf16.msra.mxu0 0
        %4612 = vmatprep.mubr.bf16.mxu0 0
        %4613 = vmatmul.mubr.bf16.gmra.mrb[0].mxu0 %v4575
        %v4614 = vpop.f32.mrb[0].mxu0
        %v4615 = vadd.f32 0.0, %v4614
        %v4616 = vpop.f32.mrb[0].mxu0
        %v4617 = vpop.f32.mrb[0].mxu0
        %v4618 = vpop.f32.mrb[0].mxu0
        %4619 = vdwg.mxu0
        %4621 = vrot.lane.b32.xlu0 %v4120, 96
        %v4622 = vpop.permute.xlu0 %4621
        %v4624 = vsel %vm1247, %v4568, 0
        %v4627 = vsel %vm1303, %v4622, 0
        %4629 = vmatprep.subr.bf16.mxu0 0
        %4630 = vmatpush1.bf16.msra.mxu0 %v4627
        %4631 = vmatprep.subr.bf16.mxu0 0
        %4632 = vmatpush1.bf16.msra.mxu0 0
        %4633 = vmatprep.subr.bf16.mxu0 0
        %4634 = vmatpush1.bf16.msra.mxu0 0
        %4635 = vmatprep.subr.bf16.mxu0 0
        %4636 = vmatpush1.bf16.msra.mxu0 0
        %4637 = vmatprep.subr.bf16.mxu0 0
        %4638 = vmatpush1.bf16.msra.mxu0 0
        %4639 = vmatprep.subr.bf16.mxu0 0
        %4640 = vmatpush1.bf16.msra.mxu0 0
        %4641 = vmatprep.subr.bf16.mxu0 0
        %4642 = vmatpush1.bf16.msra.mxu0 0
        %4643 = vmatprep.subr.bf16.mxu0 0
        %4644 = vmatpush1.bf16.msra.mxu0 0
        %4645 = vmatprep.subr.bf16.mxu0 0
        %4646 = vmatpush1.bf16.msra.mxu0 0
        %4647 = vmatprep.subr.bf16.mxu0 0
        %4648 = vmatpush1.bf16.msra.mxu0 0
        %4649 = vmatprep.subr.bf16.mxu0 0
        %4650 = vmatpush1.bf16.msra.mxu0 0
        %4651 = vmatprep.subr.bf16.mxu0 0
        %4652 = vmatpush1.bf16.msra.mxu0 0
        %4653 = vmatprep.subr.bf16.mxu0 0
        %4654 = vmatpush1.bf16.msra.mxu0 0
        %4655 = vmatprep.subr.bf16.mxu0 0
        %4656 = vmatpush1.bf16.msra.mxu0 0
        %4657 = vmatprep.subr.bf16.mxu0 0
        %4658 = vmatpush1.bf16.msra.mxu0 0
        %4659 = vmatprep.subr.bf16.mxu0 0
        %4660 = vmatpush1.bf16.msra.mxu0 0
        %4661 = vmatprep.mubr.bf16.mxu0 0
        %4662 = vmatmul.mubr.bf16.gmra.mrb[0].mxu0 %v4624
        %v4663 = vpop.f32.mrb[0].mxu0
        %v4664 = vadd.f32 0.0, %v4663
        %v4665 = vpop.f32.mrb[0].mxu0
        %v4666 = vpop.f32.mrb[0].mxu0
        %v4667 = vpop.f32.mrb[0].mxu0
        %4668 = vdwg.mxu0
        %4670 = vrot.lane.b32.xlu0 %v4121, 96
        %v4671 = vpop.permute.xlu0 %4670
        %v4673 = vsel %vm1247, %v4569, 0
        %v4676 = vsel %vm1303, %v4671, 0
        %4678 = vmatprep.subr.bf16.mxu0 0
        %4679 = vmatpush1.bf16.msra.mxu0 %v4676
        %4680 = vmatprep.subr.bf16.mxu0 0
        %4681 = vmatpush1.bf16.msra.mxu0 0
        %4682 = vmatprep.subr.bf16.mxu0 0
        %4683 = vmatpush1.bf16.msra.mxu0 0
        %4684 = vmatprep.subr.bf16.mxu0 0
        %4685 = vmatpush1.bf16.msra.mxu0 0
        %4686 = vmatprep.subr.bf16.mxu0 0
        %4687 = vmatpush1.bf16.msra.mxu0 0
        %4688 = vmatprep.subr.bf16.mxu0 0
        %4689 = vmatpush1.bf16.msra.mxu0 0
        %4690 = vmatprep.subr.bf16.mxu0 0
        %4691 = vmatpush1.bf16.msra.mxu0 0
        %4692 = vmatprep.subr.bf16.mxu0 0
        %4693 = vmatpush1.bf16.msra.mxu0 0
        %4694 = vmatprep.subr.bf16.mxu0 0
        %4695 = vmatpush1.bf16.msra.mxu0 0
        %4696 = vmatprep.subr.bf16.mxu0 0
        %4697 = vmatpush1.bf16.msra.mxu0 0
        %4698 = vmatprep.subr.bf16.mxu0 0
        %4699 = vmatpush1.bf16.msra.mxu0 0
        %4700 = vmatprep.subr.bf16.mxu0 0
        %4701 = vmatpush1.bf16.msra.mxu0 0
        %4702 = vmatprep.subr.bf16.mxu0 0
        %4703 = vmatpush1.bf16.msra.mxu0 0
        %4704 = vmatprep.subr.bf16.mxu0 0
        %4705 = vmatpush1.bf16.msra.mxu0 0
        %4706 = vmatprep.subr.bf16.mxu0 0
        %4707 = vmatpush1.bf16.msra.mxu0 0
        %4708 = vmatprep.subr.bf16.mxu0 0
        %4709 = vmatpush1.bf16.msra.mxu0 0
        %4710 = vmatprep.mubr.bf16.mxu0 0
        %4711 = vmatmul.mubr.bf16.gmra.mrb[0].mxu0 %v4673
        %v4712 = vpop.f32.mrb[0].mxu0
        %v4713 = vadd.f32 0.0, %v4712
        %v4714 = vpop.f32.mrb[0].mxu0
        %v4715 = vpop.f32.mrb[0].mxu0
        %v4716 = vpop.f32.mrb[0].mxu0
        %4717 = vdwg.mxu0
        %4719 = vrot.lane.b32.xlu0 %v4122, 96
        %v4720 = vpop.permute.xlu0 %4719
        %v4722 = vsel %vm1247, %v4570, 0
        %v4725 = vsel %vm1303, %v4720, 0
        %4727 = vmatprep.subr.bf16.mxu0 0
        %4728 = vmatpush1.bf16.msra.mxu0 %v4725
        %4729 = vmatprep.subr.bf16.mxu0 0
        %4730 = vmatpush1.bf16.msra.mxu0 0
        %4731 = vmatprep.subr.bf16.mxu0 0
        %4732 = vmatpush1.bf16.msra.mxu0 0
        %4733 = vmatprep.subr.bf16.mxu0 0
        %4734 = vmatpush1.bf16.msra.mxu0 0
        %4735 = vmatprep.subr.bf16.mxu0 0
        %4736 = vmatpush1.bf16.msra.mxu0 0
        %4737 = vmatprep.subr.bf16.mxu0 0
        %4738 = vmatpush1.bf16.msra.mxu0 0
        %4739 = vmatprep.subr.bf16.mxu0 0
        %4740 = vmatpush1.bf16.msra.mxu0 0
        %4741 = vmatprep.subr.bf16.mxu0 0
        %4742 = vmatpush1.bf16.msra.mxu0 0
        %4743 = vmatprep.subr.bf16.mxu0 0
        %4744 = vmatpush1.bf16.msra.mxu0 0
        %4745 = vmatprep.subr.bf16.mxu0 0
        %4746 = vmatpush1.bf16.msra.mxu0 0
        %4747 = vmatprep.subr.bf16.mxu0 0
        %4748 = vmatpush1.bf16.msra.mxu0 0
        %4749 = vmatprep.subr.bf16.mxu0 0
        %4750 = vmatpush1.bf16.msra.mxu0 0
        %4751 = vmatprep.subr.bf16.mxu0 0
        %4752 = vmatpush1.bf16.msra.mxu0 0
        %4753 = vmatprep.subr.bf16.mxu0 0
        %4754 = vmatpush1.bf16.msra.mxu0 0
        %4755 = vmatprep.subr.bf16.mxu0 0
        %4756 = vmatpush1.bf16.msra.mxu0 0
        %4757 = vmatprep.subr.bf16.mxu0 0
        %4758 = vmatpush1.bf16.msra.mxu0 0
        %4759 = vmatprep.mubr.bf16.mxu0 0
        %4760 = vmatmul.mubr.bf16.gmra.mrb[0].mxu0 %v4722
        %v4761 = vpop.f32.mrb[0].mxu0
        %v4762 = vadd.f32 0.0, %v4761
        %v4763 = vpop.f32.mrb[0].mxu0
        %v4764 = vpop.f32.mrb[0].mxu0
        %v4765 = vpop.f32.mrb[0].mxu0
        %4766 = vdwg.mxu0
        %4767 = vrot.lane.b32.xlu0 %v3871, 64
        %v4768 = vpop.permute.xlu0 %4767
        %4769 = vrot.lane.b32.xlu0 %v3875, 64
        %v4770 = vpop.permute.xlu0 %4769
        %v4772 = vsel %vm1030, %v4768, 0
        %v4775 = vsel %vm1030, %v4770, 0
        %4777 = vmatprep.subr.bf16.mxu0 0
        %4778 = vmatpush1.bf16.xpose.msra.mxu0 %v4775
        %4779 = vmatprep.subr.bf16.mxu0 0
        %4780 = vmatpush1.bf16.xpose.msra.mxu0 0
        %4781 = vmatprep.subr.bf16.mxu0 0
        %4782 = vmatpush1.bf16.xpose.msra.mxu0 0
        %4783 = vmatprep.subr.bf16.mxu0 0
        %4784 = vmatpush1.bf16.xpose.msra.mxu0 0
        %4785 = vmatprep.subr.bf16.mxu0 0
        %4786 = vmatpush1.bf16.xpose.msra.mxu0 0
        %4787 = vmatprep.subr.bf16.mxu0 0
        %4788 = vmatpush1.bf16.xpose.msra.mxu0 0
        %4789 = vmatprep.subr.bf16.mxu0 0
        %4790 = vmatpush1.bf16.xpose.msra.mxu0 0
        %4791 = vmatprep.subr.bf16.mxu0 0
        %4792 = vmatpush1.bf16.xpose.msra.mxu0 0
        %4793 = vmatprep.subr.bf16.mxu0 0
        %4794 = vmatpush1.bf16.xpose.msra.mxu0 0
        %4795 = vmatprep.subr.bf16.mxu0 0
        %4796 = vmatpush1.bf16.xpose.msra.mxu0 0
        %4797 = vmatprep.subr.bf16.mxu0 0
        %4798 = vmatpush1.bf16.xpose.msra.mxu0 0
        %4799 = vmatprep.subr.bf16.mxu0 0
        %4800 = vmatpush1.bf16.xpose.msra.mxu0 0
        %4801 = vmatprep.subr.bf16.mxu0 0
        %4802 = vmatpush1.bf16.xpose.msra.mxu0 0
        %4803 = vmatprep.subr.bf16.mxu0 0
        %4804 = vmatpush1.bf16.xpose.msra.mxu0 0
        %4805 = vmatprep.subr.bf16.mxu0 0
        %4806 = vmatpush1.bf16.xpose.msra.mxu0 0
        %4807 = vmatprep.subr.bf16.mxu0 0
        %4808 = vmatpush1.bf16.xpose.msra.mxu0 0
        %4809 = vmatprep.mubr.bf16.mxu0 0
        %4810 = vmatmul.mubr.bf16.gmra.mrb[0].mxu0 %v4772
        %v4811 = vpop.f32.mrb[0].mxu0
        %v4812 = vadd.f32 0.0, %v4811
        %v4813 = vpop.f32.mrb[0].mxu0
        %v4814 = vpop.f32.mrb[0].mxu0
        %v4815 = vpop.f32.mrb[0].mxu0
        %4816 = vdwg.mxu0
        %4817 = vrot.lane.b32.xlu0 %v3872, 64
        %v4818 = vpop.permute.xlu0 %4817
        %4819 = vrot.lane.b32.xlu0 %v3876, 64
        %v4820 = vpop.permute.xlu0 %4819
        %v4822 = vsel %vm1030, %v4818, 0
        %v4825 = vsel %vm1030, %v4820, 0
        %4827 = vmatprep.subr.bf16.mxu0 0
        %4828 = vmatpush1.bf16.xpose.msra.mxu0 %v4825
        %4829 = vmatprep.subr.bf16.mxu0 0
        %4830 = vmatpush1.bf16.xpose.msra.mxu0 0
        %4831 = vmatprep.subr.bf16.mxu0 0
        %4832 = vmatpush1.bf16.xpose.msra.mxu0 0
        %4833 = vmatprep.subr.bf16.mxu0 0
        %4834 = vmatpush1.bf16.xpose.msra.mxu0 0
        %4835 = vmatprep.subr.bf16.mxu0 0
        %4836 = vmatpush1.bf16.xpose.msra.mxu0 0
        %4837 = vmatprep.subr.bf16.mxu0 0
        %4838 = vmatpush1.bf16.xpose.msra.mxu0 0
        %4839 = vmatprep.subr.bf16.mxu0 0
        %4840 = vmatpush1.bf16.xpose.msra.mxu0 0
        %4841 = vmatprep.subr.bf16.mxu0 0
        %4842 = vmatpush1.bf16.xpose.msra.mxu0 0
        %4843 = vmatprep.subr.bf16.mxu0 0
        %4844 = vmatpush1.bf16.xpose.msra.mxu0 0
        %4845 = vmatprep.subr.bf16.mxu0 0
        %4846 = vmatpush1.bf16.xpose.msra.mxu0 0
        %4847 = vmatprep.subr.bf16.mxu0 0
        %4848 = vmatpush1.bf16.xpose.msra.mxu0 0
        %4849 = vmatprep.subr.bf16.mxu0 0
        %4850 = vmatpush1.bf16.xpose.msra.mxu0 0
        %4851 = vmatprep.subr.bf16.mxu0 0
        %4852 = vmatpush1.bf16.xpose.msra.mxu0 0
        %4853 = vmatprep.subr.bf16.mxu0 0
        %4854 = vmatpush1.bf16.xpose.msra.mxu0 0
        %4855 = vmatprep.subr.bf16.mxu0 0
        %4856 = vmatpush1.bf16.xpose.msra.mxu0 0
        %4857 = vmatprep.subr.bf16.mxu0 0
        %4858 = vmatpush1.bf16.xpose.msra.mxu0 0
        %4859 = vmatprep.mubr.bf16.mxu0 0
        %4860 = vmatmul.mubr.bf16.gmra.mrb[0].mxu0 %v4822
        %v4861 = vpop.f32.mrb[0].mxu0
        %v4862 = vadd.f32 0.0, %v4861
        %v4863 = vpop.f32.mrb[0].mxu0
        %v4864 = vpop.f32.mrb[0].mxu0
        %v4865 = vpop.f32.mrb[0].mxu0
        %4866 = vdwg.mxu0
        %4867 = vrot.lane.b32.xlu0 %v3873, 64
        %v4868 = vpop.permute.xlu0 %4867
        %4869 = vrot.lane.b32.xlu0 %v3877, 64
        %v4870 = vpop.permute.xlu0 %4869
        %v4872 = vsel %vm1030, %v4868, 0
        %v4875 = vsel %vm1030, %v4870, 0
        %4877 = vmatprep.subr.bf16.mxu0 0
        %4878 = vmatpush1.bf16.xpose.msra.mxu0 %v4875
        %4879 = vmatprep.subr.bf16.mxu0 0
        %4880 = vmatpush1.bf16.xpose.msra.mxu0 0
        %4881 = vmatprep.subr.bf16.mxu0 0
        %4882 = vmatpush1.bf16.xpose.msra.mxu0 0
        %4883 = vmatprep.subr.bf16.mxu0 0
        %4884 = vmatpush1.bf16.xpose.msra.mxu0 0
        %4885 = vmatprep.subr.bf16.mxu0 0
        %4886 = vmatpush1.bf16.xpose.msra.mxu0 0
        %4887 = vmatprep.subr.bf16.mxu0 0
        %4888 = vmatpush1.bf16.xpose.msra.mxu0 0
        %4889 = vmatprep.subr.bf16.mxu0 0
        %4890 = vmatpush1.bf16.xpose.msra.mxu0 0
        %4891 = vmatprep.subr.bf16.mxu0 0
        %4892 = vmatpush1.bf16.xpose.msra.mxu0 0
        %4893 = vmatprep.subr.bf16.mxu0 0
        %4894 = vmatpush1.bf16.xpose.msra.mxu0 0
        %4895 = vmatprep.subr.bf16.mxu0 0
        %4896 = vmatpush1.bf16.xpose.msra.mxu0 0
        %4897 = vmatprep.subr.bf16.mxu0 0
        %4898 = vmatpush1.bf16.xpose.msra.mxu0 0
        %4899 = vmatprep.subr.bf16.mxu0 0
        %4900 = vmatpush1.bf16.xpose.msra.mxu0 0
        %4901 = vmatprep.subr.bf16.mxu0 0
        %4902 = vmatpush1.bf16.xpose.msra.mxu0 0
        %4903 = vmatprep.subr.bf16.mxu0 0
        %4904 = vmatpush1.bf16.xpose.msra.mxu0 0
        %4905 = vmatprep.subr.bf16.mxu0 0
        %4906 = vmatpush1.bf16.xpose.msra.mxu0 0
        %4907 = vmatprep.subr.bf16.mxu0 0
        %4908 = vmatpush1.bf16.xpose.msra.mxu0 0
        %4909 = vmatprep.mubr.bf16.mxu0 0
        %4910 = vmatmul.mubr.bf16.gmra.mrb[0].mxu0 %v4872
        %v4911 = vpop.f32.mrb[0].mxu0
        %v4912 = vadd.f32 0.0, %v4911
        %v4913 = vpop.f32.mrb[0].mxu0
        %v4914 = vpop.f32.mrb[0].mxu0
        %v4915 = vpop.f32.mrb[0].mxu0
        %4916 = vdwg.mxu0
        %4917 = vrot.lane.b32.xlu0 %v3874, 64
        %v4918 = vpop.permute.xlu0 %4917
        %4919 = vrot.lane.b32.xlu0 %v3878, 64
        %v4920 = vpop.permute.xlu0 %4919
        %v4922 = vsel %vm1030, %v4918, 0
        %v4925 = vsel %vm1030, %v4920, 0
        %4927 = vmatprep.subr.bf16.mxu0 0
        %4928 = vmatpush1.bf16.xpose.msra.mxu0 %v4925
        %4929 = vmatprep.subr.bf16.mxu0 0
        %4930 = vmatpush1.bf16.xpose.msra.mxu0 0
        %4931 = vmatprep.subr.bf16.mxu0 0
        %4932 = vmatpush1.bf16.xpose.msra.mxu0 0
        %4933 = vmatprep.subr.bf16.mxu0 0
        %4934 = vmatpush1.bf16.xpose.msra.mxu0 0
        %4935 = vmatprep.subr.bf16.mxu0 0
        %4936 = vmatpush1.bf16.xpose.msra.mxu0 0
        %4937 = vmatprep.subr.bf16.mxu0 0
        %4938 = vmatpush1.bf16.xpose.msra.mxu0 0
        %4939 = vmatprep.subr.bf16.mxu0 0
        %4940 = vmatpush1.bf16.xpose.msra.mxu0 0
        %4941 = vmatprep.subr.bf16.mxu0 0
        %4942 = vmatpush1.bf16.xpose.msra.mxu0 0
        %4943 = vmatprep.subr.bf16.mxu0 0
        %4944 = vmatpush1.bf16.xpose.msra.mxu0 0
        %4945 = vmatprep.subr.bf16.mxu0 0
        %4946 = vmatpush1.bf16.xpose.msra.mxu0 0
        %4947 = vmatprep.subr.bf16.mxu0 0
        %4948 = vmatpush1.bf16.xpose.msra.mxu0 0
        %4949 = vmatprep.subr.bf16.mxu0 0
        %4950 = vmatpush1.bf16.xpose.msra.mxu0 0
        %4951 = vmatprep.subr.bf16.mxu0 0
        %4952 = vmatpush1.bf16.xpose.msra.mxu0 0
        %4953 = vmatprep.subr.bf16.mxu0 0
        %4954 = vmatpush1.bf16.xpose.msra.mxu0 0
        %4955 = vmatprep.subr.bf16.mxu0 0
        %4956 = vmatpush1.bf16.xpose.msra.mxu0 0
        %4957 = vmatprep.subr.bf16.mxu0 0
        %4958 = vmatpush1.bf16.xpose.msra.mxu0 0
        %4959 = vmatprep.mubr.bf16.mxu0 0
        %4960 = vmatmul.mubr.bf16.gmra.mrb[0].mxu0 %v4922
        %v4961 = vpop.f32.mrb[0].mxu0
        %v4962 = vadd.f32 0.0, %v4961
        %v4963 = vpop.f32.mrb[0].mxu0
        %v4964 = vpop.f32.mrb[0].mxu0
        %v4965 = vpop.f32.mrb[0].mxu0
        %4966 = vdwg.mxu0
        %v4967 = vmul.f32 %v4812, 0.17677669
        %v4968 = vmul.f32 %v4862, 0.17677669
        %v4969 = vmul.f32 %v4912, 0.17677669
        %v4970 = vmul.f32 %v4962, 0.17677669
        %v4971 = vadd.f32 %v4967, %v1226
        %v4972 = vadd.f32 %v4968, %v1230
        %v4973 = vadd.f32 %v4969, %v1234
        %v4974 = vadd.f32 %v4970, %v1238
        %v4975 = vsel %vm1247, %v4971, -inf
        %4976 = vmax.xlane.f32.xlu0 %v4975
        %v4977 = vpop.xlane.xlu0 %4976
        %v4978 = vsel %vm1247, %v4972, -inf
        %4979 = vmax.xlane.f32.xlu0 %v4978
        %v4980 = vpop.xlane.xlu0 %4979
        %v4981 = vsel %vm1247, %v4973, -inf
        %4982 = vmax.xlane.f32.xlu0 %v4981
        %v4983 = vpop.xlane.xlu0 %4982
        %v4984 = vsel %vm1247, %v4974, -inf
        %4985 = vmax.xlane.f32.xlu0 %v4984
        %v4986 = vpop.xlane.xlu0 %4985
        %v4987 = vsub.f32 %v4971, %v4977
        %v4988 = vsub.f32 %v4972, %v4980
        %v4989 = vsub.f32 %v4973, %v4983
        %v4990 = vsub.f32 %v4974, %v4986
        %v4991 = vmul.f32 %v4987, 1.442695
        %v4992 = vpow.pop %v4991
        %v4993 = vmul.f32 %v4988, 1.442695
        %v4994 = vpow.pop %v4993
        %v4995 = vmul.f32 %v4989, 1.442695
        %v4996 = vpow.pop %v4995
        %v4997 = vmul.f32 %v4990, 1.442695
        %v4998 = vpow.pop %v4997
        %v4999 = vsel %vm1247, %v4992, 0.0
        %5000 = vadd.xlane.f32.xlu0 %v4999
        %v5001 = vpop.xlane.xlu0 %5000
        %v5002 = vsel %vm1247, %v4994, 0.0
        %5003 = vadd.xlane.f32.xlu0 %v5002
        %v5004 = vpop.xlane.xlu0 %5003
        %v5005 = vsel %vm1247, %v4996, 0.0
        %5006 = vadd.xlane.f32.xlu0 %v5005
        %v5007 = vpop.xlane.xlu0 %5006
        %v5008 = vsel %vm1247, %v4998, 0.0
        %5009 = vadd.xlane.f32.xlu0 %v5008
        %v5010 = vpop.xlane.xlu0 %5009
        %v5011 = vrcp.pop %v5001
        %v5012 = vrcp.pop %v5004
        %v5013 = vrcp.pop %v5007
        %v5014 = vrcp.pop %v5010
        %v5015 = vmul.f32 %v4992, %v5011
        %v5016 = vmul.f32 %v4994, %v5012
        %v5017 = vmul.f32 %v4996, %v5013
        %v5018 = vmul.f32 %v4998, %v5014
        %v5019 = vpack.c.bf16 %v5015, %v5015
        %v5020 = vpack.c.bf16 %v5016, %v5016
        %v5021 = vpack.c.bf16 %v5017, %v5017
        %v5022 = vpack.c.bf16 %v5018, %v5018
        %5023 = vrot.lane.b32.xlu0 %v4119, 64
        %v5024 = vpop.permute.xlu0 %5023
        %v5026 = vsel %vm1247, %v5019, 0
        %v5029 = vsel %vm1303, %v5024, 0
        %5031 = vmatprep.subr.bf16.mxu0 0
        %5032 = vmatpush1.bf16.msra.mxu0 %v5029
        %5033 = vmatprep.subr.bf16.mxu0 0
        %5034 = vmatpush1.bf16.msra.mxu0 0
        %5035 = vmatprep.subr.bf16.mxu0 0
        %5036 = vmatpush1.bf16.msra.mxu0 0
        %5037 = vmatprep.subr.bf16.mxu0 0
        %5038 = vmatpush1.bf16.msra.mxu0 0
        %5039 = vmatprep.subr.bf16.mxu0 0
        %5040 = vmatpush1.bf16.msra.mxu0 0
        %5041 = vmatprep.subr.bf16.mxu0 0
        %5042 = vmatpush1.bf16.msra.mxu0 0
        %5043 = vmatprep.subr.bf16.mxu0 0
        %5044 = vmatpush1.bf16.msra.mxu0 0
        %5045 = vmatprep.subr.bf16.mxu0 0
        %5046 = vmatpush1.bf16.msra.mxu0 0
        %5047 = vmatprep.subr.bf16.mxu0 0
        %5048 = vmatpush1.bf16.msra.mxu0 0
        %5049 = vmatprep.subr.bf16.mxu0 0
        %5050 = vmatpush1.bf16.msra.mxu0 0
        %5051 = vmatprep.subr.bf16.mxu0 0
        %5052 = vmatpush1.bf16.msra.mxu0 0
        %5053 = vmatprep.subr.bf16.mxu0 0
        %5054 = vmatpush1.bf16.msra.mxu0 0
        %5055 = vmatprep.subr.bf16.mxu0 0
        %5056 = vmatpush1.bf16.msra.mxu0 0
        %5057 = vmatprep.subr.bf16.mxu0 0
        %5058 = vmatpush1.bf16.msra.mxu0 0
        %5059 = vmatprep.subr.bf16.mxu0 0
        %5060 = vmatpush1.bf16.msra.mxu0 0
        %5061 = vmatprep.subr.bf16.mxu0 0
        %5062 = vmatpush1.bf16.msra.mxu0 0
        %5063 = vmatprep.mubr.bf16.mxu0 0
        %5064 = vmatmul.mubr.bf16.gmra.mrb[0].mxu0 %v5026
        %v5065 = vpop.f32.mrb[0].mxu0
        %v5066 = vadd.f32 0.0, %v5065
        %v5067 = vpop.f32.mrb[0].mxu0
        %v5068 = vpop.f32.mrb[0].mxu0
        %v5069 = vpop.f32.mrb[0].mxu0
        %5070 = vdwg.mxu0
        %5071 = vrot.lane.b32.xlu0 %v4120, 64
        %v5072 = vpop.permute.xlu0 %5071
        %v5074 = vsel %vm1247, %v5020, 0
        %v5077 = vsel %vm1303, %v5072, 0
        %5079 = vmatprep.subr.bf16.mxu0 0
        %5080 = vmatpush1.bf16.msra.mxu0 %v5077
        %5081 = vmatprep.subr.bf16.mxu0 0
        %5082 = vmatpush1.bf16.msra.mxu0 0
        %5083 = vmatprep.subr.bf16.mxu0 0
        %5084 = vmatpush1.bf16.msra.mxu0 0
        %5085 = vmatprep.subr.bf16.mxu0 0
        %5086 = vmatpush1.bf16.msra.mxu0 0
        %5087 = vmatprep.subr.bf16.mxu0 0
        %5088 = vmatpush1.bf16.msra.mxu0 0
        %5089 = vmatprep.subr.bf16.mxu0 0
        %5090 = vmatpush1.bf16.msra.mxu0 0
        %5091 = vmatprep.subr.bf16.mxu0 0
        %5092 = vmatpush1.bf16.msra.mxu0 0
        %5093 = vmatprep.subr.bf16.mxu0 0
        %5094 = vmatpush1.bf16.msra.mxu0 0
        %5095 = vmatprep.subr.bf16.mxu0 0
        %5096 = vmatpush1.bf16.msra.mxu0 0
        %5097 = vmatprep.subr.bf16.mxu0 0
        %5098 = vmatpush1.bf16.msra.mxu0 0
        %5099 = vmatprep.subr.bf16.mxu0 0
        %5100 = vmatpush1.bf16.msra.mxu0 0
        %5101 = vmatprep.subr.bf16.mxu0 0
        %5102 = vmatpush1.bf16.msra.mxu0 0
        %5103 = vmatprep.subr.bf16.mxu0 0
        %5104 = vmatpush1.bf16.msra.mxu0 0
        %5105 = vmatprep.subr.bf16.mxu0 0
        %5106 = vmatpush1.bf16.msra.mxu0 0
        %5107 = vmatprep.subr.bf16.mxu0 0
        %5108 = vmatpush1.bf16.msra.mxu0 0
        %5109 = vmatprep.subr.bf16.mxu0 0
        %5110 = vmatpush1.bf16.msra.mxu0 0
        %5111 = vmatprep.mubr.bf16.mxu0 0
        %5112 = vmatmul.mubr.bf16.gmra.mrb[0].mxu0 %v5074
        %v5113 = vpop.f32.mrb[0].mxu0
        %v5114 = vadd.f32 0.0, %v5113
        %v5115 = vpop.f32.mrb[0].mxu0
        %v5116 = vpop.f32.mrb[0].mxu0
        %v5117 = vpop.f32.mrb[0].mxu0
        %5118 = vdwg.mxu0
        %5119 = vrot.lane.b32.xlu0 %v4121, 64
        %v5120 = vpop.permute.xlu0 %5119
        %v5122 = vsel %vm1247, %v5021, 0
        %v5125 = vsel %vm1303, %v5120, 0
        %5127 = vmatprep.subr.bf16.mxu0 0
        %5128 = vmatpush1.bf16.msra.mxu0 %v5125
        %5129 = vmatprep.subr.bf16.mxu0 0
        %5130 = vmatpush1.bf16.msra.mxu0 0
        %5131 = vmatprep.subr.bf16.mxu0 0
        %5132 = vmatpush1.bf16.msra.mxu0 0
        %5133 = vmatprep.subr.bf16.mxu0 0
        %5134 = vmatpush1.bf16.msra.mxu0 0
        %5135 = vmatprep.subr.bf16.mxu0 0
        %5136 = vmatpush1.bf16.msra.mxu0 0
        %5137 = vmatprep.subr.bf16.mxu0 0
        %5138 = vmatpush1.bf16.msra.mxu0 0
        %5139 = vmatprep.subr.bf16.mxu0 0
        %5140 = vmatpush1.bf16.msra.mxu0 0
        %5141 = vmatprep.subr.bf16.mxu0 0
        %5142 = vmatpush1.bf16.msra.mxu0 0
        %5143 = vmatprep.subr.bf16.mxu0 0
        %5144 = vmatpush1.bf16.msra.mxu0 0
        %5145 = vmatprep.subr.bf16.mxu0 0
        %5146 = vmatpush1.bf16.msra.mxu0 0
        %5147 = vmatprep.subr.bf16.mxu0 0
        %5148 = vmatpush1.bf16.msra.mxu0 0
        %5149 = vmatprep.subr.bf16.mxu0 0
        %5150 = vmatpush1.bf16.msra.mxu0 0
        %5151 = vmatprep.subr.bf16.mxu0 0
        %5152 = vmatpush1.bf16.msra.mxu0 0
        %5153 = vmatprep.subr.bf16.mxu0 0
        %5154 = vmatpush1.bf16.msra.mxu0 0
        %5155 = vmatprep.subr.bf16.mxu0 0
        %5156 = vmatpush1.bf16.msra.mxu0 0
        %5157 = vmatprep.subr.bf16.mxu0 0
        %5158 = vmatpush1.bf16.msra.mxu0 0
        %5159 = vmatprep.mubr.bf16.mxu0 0
        %5160 = vmatmul.mubr.bf16.gmra.mrb[0].mxu0 %v5122
        %v5161 = vpop.f32.mrb[0].mxu0
        %v5162 = vadd.f32 0.0, %v5161
        %v5163 = vpop.f32.mrb[0].mxu0
        %v5164 = vpop.f32.mrb[0].mxu0
        %v5165 = vpop.f32.mrb[0].mxu0
        %5166 = vdwg.mxu0
        %5167 = vrot.lane.b32.xlu0 %v4122, 64
        %v5168 = vpop.permute.xlu0 %5167
        %v5170 = vsel %vm1247, %v5022, 0
        %v5173 = vsel %vm1303, %v5168, 0
        %5175 = vmatprep.subr.bf16.mxu0 0
        %5176 = vmatpush1.bf16.msra.mxu0 %v5173
        %5177 = vmatprep.subr.bf16.mxu0 0
        %5178 = vmatpush1.bf16.msra.mxu0 0
        %5179 = vmatprep.subr.bf16.mxu0 0
        %5180 = vmatpush1.bf16.msra.mxu0 0
        %5181 = vmatprep.subr.bf16.mxu0 0
        %5182 = vmatpush1.bf16.msra.mxu0 0
        %5183 = vmatprep.subr.bf16.mxu0 0
        %5184 = vmatpush1.bf16.msra.mxu0 0
        %5185 = vmatprep.subr.bf16.mxu0 0
        %5186 = vmatpush1.bf16.msra.mxu0 0
        %5187 = vmatprep.subr.bf16.mxu0 0
        %5188 = vmatpush1.bf16.msra.mxu0 0
        %5189 = vmatprep.subr.bf16.mxu0 0
        %5190 = vmatpush1.bf16.msra.mxu0 0
        %5191 = vmatprep.subr.bf16.mxu0 0
        %5192 = vmatpush1.bf16.msra.mxu0 0
        %5193 = vmatprep.subr.bf16.mxu0 0
        %5194 = vmatpush1.bf16.msra.mxu0 0
        %5195 = vmatprep.subr.bf16.mxu0 0
        %5196 = vmatpush1.bf16.msra.mxu0 0
        %5197 = vmatprep.subr.bf16.mxu0 0
        %5198 = vmatpush1.bf16.msra.mxu0 0
        %5199 = vmatprep.subr.bf16.mxu0 0
        %5200 = vmatpush1.bf16.msra.mxu0 0
        %5201 = vmatprep.subr.bf16.mxu0 0
        %5202 = vmatpush1.bf16.msra.mxu0 0
        %5203 = vmatprep.subr.bf16.mxu0 0
        %5204 = vmatpush1.bf16.msra.mxu0 0
        %5205 = vmatprep.subr.bf16.mxu0 0
        %5206 = vmatpush1.bf16.msra.mxu0 0
        %5207 = vmatprep.mubr.bf16.mxu0 0
        %5208 = vmatmul.mubr.bf16.gmra.mrb[0].mxu0 %v5170
        %v5209 = vpop.f32.mrb[0].mxu0
        %v5210 = vadd.f32 0.0, %v5209
        %v5211 = vpop.f32.mrb[0].mxu0
        %v5212 = vpop.f32.mrb[0].mxu0
        %v5213 = vpop.f32.mrb[0].mxu0
        %5214 = vdwg.mxu0
        %5215 = vrot.lane.b32.xlu0 %v3871, 32
        %v5216 = vpop.permute.xlu0 %5215
        %5217 = vrot.lane.b32.xlu0 %v3875, 32
        %v5218 = vpop.permute.xlu0 %5217
        %v5220 = vsel %vm1030, %v5216, 0
        %v5223 = vsel %vm1030, %v5218, 0
        %5225 = vmatprep.subr.bf16.mxu0 0
        %5226 = vmatpush1.bf16.xpose.msra.mxu0 %v5223
        %5227 = vmatprep.subr.bf16.mxu0 0
        %5228 = vmatpush1.bf16.xpose.msra.mxu0 0
        %5229 = vmatprep.subr.bf16.mxu0 0
        %5230 = vmatpush1.bf16.xpose.msra.mxu0 0
        %5231 = vmatprep.subr.bf16.mxu0 0
        %5232 = vmatpush1.bf16.xpose.msra.mxu0 0
        %5233 = vmatprep.subr.bf16.mxu0 0
        %5234 = vmatpush1.bf16.xpose.msra.mxu0 0
        %5235 = vmatprep.subr.bf16.mxu0 0
        %5236 = vmatpush1.bf16.xpose.msra.mxu0 0
        %5237 = vmatprep.subr.bf16.mxu0 0
        %5238 = vmatpush1.bf16.xpose.msra.mxu0 0
        %5239 = vmatprep.subr.bf16.mxu0 0
        %5240 = vmatpush1.bf16.xpose.msra.mxu0 0
        %5241 = vmatprep.subr.bf16.mxu0 0
        %5242 = vmatpush1.bf16.xpose.msra.mxu0 0
        %5243 = vmatprep.subr.bf16.mxu0 0
        %5244 = vmatpush1.bf16.xpose.msra.mxu0 0
        %5245 = vmatprep.subr.bf16.mxu0 0
        %5246 = vmatpush1.bf16.xpose.msra.mxu0 0
        %5247 = vmatprep.subr.bf16.mxu0 0
        %5248 = vmatpush1.bf16.xpose.msra.mxu0 0
        %5249 = vmatprep.subr.bf16.mxu0 0
        %5250 = vmatpush1.bf16.xpose.msra.mxu0 0
        %5251 = vmatprep.subr.bf16.mxu0 0
        %5252 = vmatpush1.bf16.xpose.msra.mxu0 0
        %5253 = vmatprep.subr.bf16.mxu0 0
        %5254 = vmatpush1.bf16.xpose.msra.mxu0 0
        %5255 = vmatprep.subr.bf16.mxu0 0
        %5256 = vmatpush1.bf16.xpose.msra.mxu0 0
        %5257 = vmatprep.mubr.bf16.mxu0 0
        %5258 = vmatmul.mubr.bf16.gmra.mrb[0].mxu0 %v5220
        %v5259 = vpop.f32.mrb[0].mxu0
        %v5260 = vadd.f32 0.0, %v5259
        %v5261 = vpop.f32.mrb[0].mxu0
        %v5262 = vpop.f32.mrb[0].mxu0
        %v5263 = vpop.f32.mrb[0].mxu0
        %5264 = vdwg.mxu0
        %5265 = vrot.lane.b32.xlu0 %v3872, 32
        %v5266 = vpop.permute.xlu0 %5265
        %5267 = vrot.lane.b32.xlu0 %v3876, 32
        %v5268 = vpop.permute.xlu0 %5267
        %v5270 = vsel %vm1030, %v5266, 0
        %v5273 = vsel %vm1030, %v5268, 0
        %5275 = vmatprep.subr.bf16.mxu0 0
        %5276 = vmatpush1.bf16.xpose.msra.mxu0 %v5273
        %5277 = vmatprep.subr.bf16.mxu0 0
        %5278 = vmatpush1.bf16.xpose.msra.mxu0 0
        %5279 = vmatprep.subr.bf16.mxu0 0
        %5280 = vmatpush1.bf16.xpose.msra.mxu0 0
        %5281 = vmatprep.subr.bf16.mxu0 0
        %5282 = vmatpush1.bf16.xpose.msra.mxu0 0
        %5283 = vmatprep.subr.bf16.mxu0 0
        %5284 = vmatpush1.bf16.xpose.msra.mxu0 0
        %5285 = vmatprep.subr.bf16.mxu0 0
        %5286 = vmatpush1.bf16.xpose.msra.mxu0 0
        %5287 = vmatprep.subr.bf16.mxu0 0
        %5288 = vmatpush1.bf16.xpose.msra.mxu0 0
        %5289 = vmatprep.subr.bf16.mxu0 0
        %5290 = vmatpush1.bf16.xpose.msra.mxu0 0
        %5291 = vmatprep.subr.bf16.mxu0 0
        %5292 = vmatpush1.bf16.xpose.msra.mxu0 0
        %5293 = vmatprep.subr.bf16.mxu0 0
        %5294 = vmatpush1.bf16.xpose.msra.mxu0 0
        %5295 = vmatprep.subr.bf16.mxu0 0
        %5296 = vmatpush1.bf16.xpose.msra.mxu0 0
        %5297 = vmatprep.subr.bf16.mxu0 0
        %5298 = vmatpush1.bf16.xpose.msra.mxu0 0
        %5299 = vmatprep.subr.bf16.mxu0 0
        %5300 = vmatpush1.bf16.xpose.msra.mxu0 0
        %5301 = vmatprep.subr.bf16.mxu0 0
        %5302 = vmatpush1.bf16.xpose.msra.mxu0 0
        %5303 = vmatprep.subr.bf16.mxu0 0
        %5304 = vmatpush1.bf16.xpose.msra.mxu0 0
        %5305 = vmatprep.subr.bf16.mxu0 0
        %5306 = vmatpush1.bf16.xpose.msra.mxu0 0
        %5307 = vmatprep.mubr.bf16.mxu0 0
        %5308 = vmatmul.mubr.bf16.gmra.mrb[0].mxu0 %v5270
        %v5309 = vpop.f32.mrb[0].mxu0
        %v5310 = vadd.f32 0.0, %v5309
        %v5311 = vpop.f32.mrb[0].mxu0
        %v5312 = vpop.f32.mrb[0].mxu0
        %v5313 = vpop.f32.mrb[0].mxu0
        %5314 = vdwg.mxu0
        %5315 = vrot.lane.b32.xlu0 %v3873, 32
        %v5316 = vpop.permute.xlu0 %5315
        %5317 = vrot.lane.b32.xlu0 %v3877, 32
        %v5318 = vpop.permute.xlu0 %5317
        %v5320 = vsel %vm1030, %v5316, 0
        %v5323 = vsel %vm1030, %v5318, 0
        %5325 = vmatprep.subr.bf16.mxu0 0
        %5326 = vmatpush1.bf16.xpose.msra.mxu0 %v5323
        %5327 = vmatprep.subr.bf16.mxu0 0
        %5328 = vmatpush1.bf16.xpose.msra.mxu0 0
        %5329 = vmatprep.subr.bf16.mxu0 0
        %5330 = vmatpush1.bf16.xpose.msra.mxu0 0
        %5331 = vmatprep.subr.bf16.mxu0 0
        %5332 = vmatpush1.bf16.xpose.msra.mxu0 0
        %5333 = vmatprep.subr.bf16.mxu0 0
        %5334 = vmatpush1.bf16.xpose.msra.mxu0 0
        %5335 = vmatprep.subr.bf16.mxu0 0
        %5336 = vmatpush1.bf16.xpose.msra.mxu0 0
        %5337 = vmatprep.subr.bf16.mxu0 0
        %5338 = vmatpush1.bf16.xpose.msra.mxu0 0
        %5339 = vmatprep.subr.bf16.mxu0 0
        %5340 = vmatpush1.bf16.xpose.msra.mxu0 0
        %5341 = vmatprep.subr.bf16.mxu0 0
        %5342 = vmatpush1.bf16.xpose.msra.mxu0 0
        %5343 = vmatprep.subr.bf16.mxu0 0
        %5344 = vmatpush1.bf16.xpose.msra.mxu0 0
        %5345 = vmatprep.subr.bf16.mxu0 0
        %5346 = vmatpush1.bf16.xpose.msra.mxu0 0
        %5347 = vmatprep.subr.bf16.mxu0 0
        %5348 = vmatpush1.bf16.xpose.msra.mxu0 0
        %5349 = vmatprep.subr.bf16.mxu0 0
        %5350 = vmatpush1.bf16.xpose.msra.mxu0 0
        %5351 = vmatprep.subr.bf16.mxu0 0
        %5352 = vmatpush1.bf16.xpose.msra.mxu0 0
        %5353 = vmatprep.subr.bf16.mxu0 0
        %5354 = vmatpush1.bf16.xpose.msra.mxu0 0
        %5355 = vmatprep.subr.bf16.mxu0 0
        %5356 = vmatpush1.bf16.xpose.msra.mxu0 0
        %5357 = vmatprep.mubr.bf16.mxu0 0
        %5358 = vmatmul.mubr.bf16.gmra.mrb[0].mxu0 %v5320
        %v5359 = vpop.f32.mrb[0].mxu0
        %v5360 = vadd.f32 0.0, %v5359
        %v5361 = vpop.f32.mrb[0].mxu0
        %v5362 = vpop.f32.mrb[0].mxu0
        %v5363 = vpop.f32.mrb[0].mxu0
        %5364 = vdwg.mxu0
        %5365 = vrot.lane.b32.xlu0 %v3874, 32
        %v5366 = vpop.permute.xlu0 %5365
        %5367 = vrot.lane.b32.xlu0 %v3878, 32
        %v5368 = vpop.permute.xlu0 %5367
        %v5370 = vsel %vm1030, %v5366, 0
        %v5373 = vsel %vm1030, %v5368, 0
        %5375 = vmatprep.subr.bf16.mxu0 0
        %5376 = vmatpush1.bf16.xpose.msra.mxu0 %v5373
        %5377 = vmatprep.subr.bf16.mxu0 0
        %5378 = vmatpush1.bf16.xpose.msra.mxu0 0
        %5379 = vmatprep.subr.bf16.mxu0 0
        %5380 = vmatpush1.bf16.xpose.msra.mxu0 0
        %5381 = vmatprep.subr.bf16.mxu0 0
        %5382 = vmatpush1.bf16.xpose.msra.mxu0 0
        %5383 = vmatprep.subr.bf16.mxu0 0
        %5384 = vmatpush1.bf16.xpose.msra.mxu0 0
        %5385 = vmatprep.subr.bf16.mxu0 0
        %5386 = vmatpush1.bf16.xpose.msra.mxu0 0
        %5387 = vmatprep.subr.bf16.mxu0 0
        %5388 = vmatpush1.bf16.xpose.msra.mxu0 0
        %5389 = vmatprep.subr.bf16.mxu0 0
        %5390 = vmatpush1.bf16.xpose.msra.mxu0 0
        %5391 = vmatprep.subr.bf16.mxu0 0
        %5392 = vmatpush1.bf16.xpose.msra.mxu0 0
        %5393 = vmatprep.subr.bf16.mxu0 0
        %5394 = vmatpush1.bf16.xpose.msra.mxu0 0
        %5395 = vmatprep.subr.bf16.mxu0 0
        %5396 = vmatpush1.bf16.xpose.msra.mxu0 0
        %5397 = vmatprep.subr.bf16.mxu0 0
        %5398 = vmatpush1.bf16.xpose.msra.mxu0 0
        %5399 = vmatprep.subr.bf16.mxu0 0
        %5400 = vmatpush1.bf16.xpose.msra.mxu0 0
        %5401 = vmatprep.subr.bf16.mxu0 0
        %5402 = vmatpush1.bf16.xpose.msra.mxu0 0
        %5403 = vmatprep.subr.bf16.mxu0 0
        %5404 = vmatpush1.bf16.xpose.msra.mxu0 0
        %5405 = vmatprep.subr.bf16.mxu0 0
        %5406 = vmatpush1.bf16.xpose.msra.mxu0 0
        %5407 = vmatprep.mubr.bf16.mxu0 0
        %5408 = vmatmul.mubr.bf16.gmra.mrb[0].mxu0 %v5370
        %v5409 = vpop.f32.mrb[0].mxu0
        %v5410 = vadd.f32 0.0, %v5409
        %v5411 = vpop.f32.mrb[0].mxu0
        %v5412 = vpop.f32.mrb[0].mxu0
        %v5413 = vpop.f32.mrb[0].mxu0
        %5414 = vdwg.mxu0
        %v5415 = vmul.f32 %v5260, 0.17677669
        %v5416 = vmul.f32 %v5310, 0.17677669
        %v5417 = vmul.f32 %v5360, 0.17677669
        %v5418 = vmul.f32 %v5410, 0.17677669
        %v5419 = vadd.f32 %v5415, %v1226
        %v5420 = vadd.f32 %v5416, %v1230
        %v5421 = vadd.f32 %v5417, %v1234
        %v5422 = vadd.f32 %v5418, %v1238
        %v5423 = vsel %vm1247, %v5419, -inf
        %5424 = vmax.xlane.f32.xlu0 %v5423
        %v5425 = vpop.xlane.xlu0 %5424
        %v5426 = vsel %vm1247, %v5420, -inf
        %5427 = vmax.xlane.f32.xlu0 %v5426
        %v5428 = vpop.xlane.xlu0 %5427
        %v5429 = vsel %vm1247, %v5421, -inf
        %5430 = vmax.xlane.f32.xlu0 %v5429
        %v5431 = vpop.xlane.xlu0 %5430
        %v5432 = vsel %vm1247, %v5422, -inf
        %5433 = vmax.xlane.f32.xlu0 %v5432
        %v5434 = vpop.xlane.xlu0 %5433
        %v5435 = vsub.f32 %v5419, %v5425
        %v5436 = vsub.f32 %v5420, %v5428
        %v5437 = vsub.f32 %v5421, %v5431
        %v5438 = vsub.f32 %v5422, %v5434
        %v5439 = vmul.f32 %v5435, 1.442695
        %v5440 = vpow.pop %v5439
        %v5441 = vmul.f32 %v5436, 1.442695
        %v5442 = vpow.pop %v5441
        %v5443 = vmul.f32 %v5437, 1.442695
        %v5444 = vpow.pop %v5443
        %v5445 = vmul.f32 %v5438, 1.442695
        %v5446 = vpow.pop %v5445
        %v5447 = vsel %vm1247, %v5440, 0.0
        %5448 = vadd.xlane.f32.xlu0 %v5447
        %v5449 = vpop.xlane.xlu0 %5448
        %v5450 = vsel %vm1247, %v5442, 0.0
        %5451 = vadd.xlane.f32.xlu0 %v5450
        %v5452 = vpop.xlane.xlu0 %5451
        %v5453 = vsel %vm1247, %v5444, 0.0
        %5454 = vadd.xlane.f32.xlu0 %v5453
        %v5455 = vpop.xlane.xlu0 %5454
        %v5456 = vsel %vm1247, %v5446, 0.0
        %5457 = vadd.xlane.f32.xlu0 %v5456
        %v5458 = vpop.xlane.xlu0 %5457
        %v5459 = vrcp.pop %v5449
        %v5460 = vrcp.pop %v5452
        %v5461 = vrcp.pop %v5455
        %v5462 = vrcp.pop %v5458
        %v5463 = vmul.f32 %v5440, %v5459
        %v5464 = vmul.f32 %v5442, %v5460
        %v5465 = vmul.f32 %v5444, %v5461
        %v5466 = vmul.f32 %v5446, %v5462
        %v5467 = vpack.c.bf16 %v5463, %v5463
        %v5468 = vpack.c.bf16 %v5464, %v5464
        %v5469 = vpack.c.bf16 %v5465, %v5465
        %v5470 = vpack.c.bf16 %v5466, %v5466
        %5471 = vrot.lane.b32.xlu0 %v4119, 32
        %v5472 = vpop.permute.xlu0 %5471
        %v5474 = vsel %vm1247, %v5467, 0
        %v5477 = vsel %vm1303, %v5472, 0
        %5479 = vmatprep.subr.bf16.mxu0 0
        %5480 = vmatpush1.bf16.msra.mxu0 %v5477
        %5481 = vmatprep.subr.bf16.mxu0 0
        %5482 = vmatpush1.bf16.msra.mxu0 0
        %5483 = vmatprep.subr.bf16.mxu0 0
        %5484 = vmatpush1.bf16.msra.mxu0 0
        %5485 = vmatprep.subr.bf16.mxu0 0
        %5486 = vmatpush1.bf16.msra.mxu0 0
        %5487 = vmatprep.subr.bf16.mxu0 0
        %5488 = vmatpush1.bf16.msra.mxu0 0
        %5489 = vmatprep.subr.bf16.mxu0 0
        %5490 = vmatpush1.bf16.msra.mxu0 0
        %5491 = vmatprep.subr.bf16.mxu0 0
        %5492 = vmatpush1.bf16.msra.mxu0 0
        %5493 = vmatprep.subr.bf16.mxu0 0
        %5494 = vmatpush1.bf16.msra.mxu0 0
        %5495 = vmatprep.subr.bf16.mxu0 0
        %5496 = vmatpush1.bf16.msra.mxu0 0
        %5497 = vmatprep.subr.bf16.mxu0 0
        %5498 = vmatpush1.bf16.msra.mxu0 0
        %5499 = vmatprep.subr.bf16.mxu0 0
        %5500 = vmatpush1.bf16.msra.mxu0 0
        %5501 = vmatprep.subr.bf16.mxu0 0
        %5502 = vmatpush1.bf16.msra.mxu0 0
        %5503 = vmatprep.subr.bf16.mxu0 0
        %5504 = vmatpush1.bf16.msra.mxu0 0
        %5505 = vmatprep.subr.bf16.mxu0 0
        %5506 = vmatpush1.bf16.msra.mxu0 0
        %5507 = vmatprep.subr.bf16.mxu0 0
        %5508 = vmatpush1.bf16.msra.mxu0 0
        %5509 = vmatprep.subr.bf16.mxu0 0
        %5510 = vmatpush1.bf16.msra.mxu0 0
        %5511 = vmatprep.mubr.bf16.mxu0 0
        %5512 = vmatmul.mubr.bf16.gmra.mrb[0].mxu0 %v5474
        %v5513 = vpop.f32.mrb[0].mxu0
        %v5514 = vadd.f32 0.0, %v5513
        %v5515 = vpop.f32.mrb[0].mxu0
        %v5516 = vpop.f32.mrb[0].mxu0
        %v5517 = vpop.f32.mrb[0].mxu0
        %5518 = vdwg.mxu0
        %5519 = vrot.lane.b32.xlu0 %v4120, 32
        %v5520 = vpop.permute.xlu0 %5519
        %v5522 = vsel %vm1247, %v5468, 0
        %v5525 = vsel %vm1303, %v5520, 0
        %5527 = vmatprep.subr.bf16.mxu0 0
        %5528 = vmatpush1.bf16.msra.mxu0 %v5525
        %5529 = vmatprep.subr.bf16.mxu0 0
        %5530 = vmatpush1.bf16.msra.mxu0 0
        %5531 = vmatprep.subr.bf16.mxu0 0
        %5532 = vmatpush1.bf16.msra.mxu0 0
        %5533 = vmatprep.subr.bf16.mxu0 0
        %5534 = vmatpush1.bf16.msra.mxu0 0
        %5535 = vmatprep.subr.bf16.mxu0 0
        %5536 = vmatpush1.bf16.msra.mxu0 0
        %5537 = vmatprep.subr.bf16.mxu0 0
        %5538 = vmatpush1.bf16.msra.mxu0 0
        %5539 = vmatprep.subr.bf16.mxu0 0
        %5540 = vmatpush1.bf16.msra.mxu0 0
        %5541 = vmatprep.subr.bf16.mxu0 0
        %5542 = vmatpush1.bf16.msra.mxu0 0
        %5543 = vmatprep.subr.bf16.mxu0 0
        %5544 = vmatpush1.bf16.msra.mxu0 0
        %5545 = vmatprep.subr.bf16.mxu0 0
        %5546 = vmatpush1.bf16.msra.mxu0 0
        %5547 = vmatprep.subr.bf16.mxu0 0
        %5548 = vmatpush1.bf16.msra.mxu0 0
        %5549 = vmatprep.subr.bf16.mxu0 0
        %5550 = vmatpush1.bf16.msra.mxu0 0
        %5551 = vmatprep.subr.bf16.mxu0 0
        %5552 = vmatpush1.bf16.msra.mxu0 0
        %5553 = vmatprep.subr.bf16.mxu0 0
        %5554 = vmatpush1.bf16.msra.mxu0 0
        %5555 = vmatprep.subr.bf16.mxu0 0
        %5556 = vmatpush1.bf16.msra.mxu0 0
        %5557 = vmatprep.subr.bf16.mxu0 0
        %5558 = vmatpush1.bf16.msra.mxu0 0
        %5559 = vmatprep.mubr.bf16.mxu0 0
        %5560 = vmatmul.mubr.bf16.gmra.mrb[0].mxu0 %v5522
        %v5561 = vpop.f32.mrb[0].mxu0
        %v5562 = vadd.f32 0.0, %v5561
        %v5563 = vpop.f32.mrb[0].mxu0
        %v5564 = vpop.f32.mrb[0].mxu0
        %v5565 = vpop.f32.mrb[0].mxu0
        %5566 = vdwg.mxu0
        %5567 = vrot.lane.b32.xlu0 %v4121, 32
        %v5568 = vpop.permute.xlu0 %5567
        %v5570 = vsel %vm1247, %v5469, 0
        %v5573 = vsel %vm1303, %v5568, 0
        %5575 = vmatprep.subr.bf16.mxu0 0
        %5576 = vmatpush1.bf16.msra.mxu0 %v5573
        %5577 = vmatprep.subr.bf16.mxu0 0
        %5578 = vmatpush1.bf16.msra.mxu0 0
        %5579 = vmatprep.subr.bf16.mxu0 0
        %5580 = vmatpush1.bf16.msra.mxu0 0
        %5581 = vmatprep.subr.bf16.mxu0 0
        %5582 = vmatpush1.bf16.msra.mxu0 0
        %5583 = vmatprep.subr.bf16.mxu0 0
        %5584 = vmatpush1.bf16.msra.mxu0 0
        %5585 = vmatprep.subr.bf16.mxu0 0
        %5586 = vmatpush1.bf16.msra.mxu0 0
        %5587 = vmatprep.subr.bf16.mxu0 0
        %5588 = vmatpush1.bf16.msra.mxu0 0
        %5589 = vmatprep.subr.bf16.mxu0 0
        %5590 = vmatpush1.bf16.msra.mxu0 0
        %5591 = vmatprep.subr.bf16.mxu0 0
        %5592 = vmatpush1.bf16.msra.mxu0 0
        %5593 = vmatprep.subr.bf16.mxu0 0
        %5594 = vmatpush1.bf16.msra.mxu0 0
        %5595 = vmatprep.subr.bf16.mxu0 0
        %5596 = vmatpush1.bf16.msra.mxu0 0
        %5597 = vmatprep.subr.bf16.mxu0 0
        %5598 = vmatpush1.bf16.msra.mxu0 0
        %5599 = vmatprep.subr.bf16.mxu0 0
        %5600 = vmatpush1.bf16.msra.mxu0 0
        %5601 = vmatprep.subr.bf16.mxu0 0
        %5602 = vmatpush1.bf16.msra.mxu0 0
        %5603 = vmatprep.subr.bf16.mxu0 0
        %5604 = vmatpush1.bf16.msra.mxu0 0
        %5605 = vmatprep.subr.bf16.mxu0 0
        %5606 = vmatpush1.bf16.msra.mxu0 0
        %5607 = vmatprep.mubr.bf16.mxu0 0
        %5608 = vmatmul.mubr.bf16.gmra.mrb[0].mxu0 %v5570
        %v5609 = vpop.f32.mrb[0].mxu0
        %v5610 = vadd.f32 0.0, %v5609
        %v5611 = vpop.f32.mrb[0].mxu0
        %v5612 = vpop.f32.mrb[0].mxu0
        %v5613 = vpop.f32.mrb[0].mxu0
        %5614 = vdwg.mxu0
        %5615 = vrot.lane.b32.xlu0 %v4122, 32
        %v5616 = vpop.permute.xlu0 %5615
        %v5618 = vsel %vm1247, %v5470, 0
        %v5621 = vsel %vm1303, %v5616, 0
        %5623 = vmatprep.subr.bf16.mxu0 0
        %5624 = vmatpush1.bf16.msra.mxu0 %v5621
        %5625 = vmatprep.subr.bf16.mxu0 0
        %5626 = vmatpush1.bf16.msra.mxu0 0
        %5627 = vmatprep.subr.bf16.mxu0 0
        %5628 = vmatpush1.bf16.msra.mxu0 0
        %5629 = vmatprep.subr.bf16.mxu0 0
        %5630 = vmatpush1.bf16.msra.mxu0 0
        %5631 = vmatprep.subr.bf16.mxu0 0
        %5632 = vmatpush1.bf16.msra.mxu0 0
        %5633 = vmatprep.subr.bf16.mxu0 0
        %5634 = vmatpush1.bf16.msra.mxu0 0
        %5635 = vmatprep.subr.bf16.mxu0 0
        %5636 = vmatpush1.bf16.msra.mxu0 0
        %5637 = vmatprep.subr.bf16.mxu0 0
        %5638 = vmatpush1.bf16.msra.mxu0 0
        %5639 = vmatprep.subr.bf16.mxu0 0
        %5640 = vmatpush1.bf16.msra.mxu0 0
        %5641 = vmatprep.subr.bf16.mxu0 0
        %5642 = vmatpush1.bf16.msra.mxu0 0
        %5643 = vmatprep.subr.bf16.mxu0 0
        %5644 = vmatpush1.bf16.msra.mxu0 0
        %5645 = vmatprep.subr.bf16.mxu0 0
        %5646 = vmatpush1.bf16.msra.mxu0 0
        %5647 = vmatprep.subr.bf16.mxu0 0
        %5648 = vmatpush1.bf16.msra.mxu0 0
        %5649 = vmatprep.subr.bf16.mxu0 0
        %5650 = vmatpush1.bf16.msra.mxu0 0
        %5651 = vmatprep.subr.bf16.mxu0 0
        %5652 = vmatpush1.bf16.msra.mxu0 0
        %5653 = vmatprep.subr.bf16.mxu0 0
        %5654 = vmatpush1.bf16.msra.mxu0 0
        %5655 = vmatprep.mubr.bf16.mxu0 0
        %5656 = vmatmul.mubr.bf16.gmra.mrb[0].mxu0 %v5618
        %v5657 = vpop.f32.mrb[0].mxu0
        %v5658 = vadd.f32 0.0, %v5657
        %v5659 = vpop.f32.mrb[0].mxu0
        %v5660 = vpop.f32.mrb[0].mxu0
        %v5661 = vpop.f32.mrb[0].mxu0
        %5662 = vdwg.mxu0
        %5667 = vrot.lane.b32.xlu0 %v4615, 32
        %v5668 = vpop.permute.xlu0 %5667
        %5669 = vrot.lane.b32.xlu0 %v4664, 32
        %v5670 = vpop.permute.xlu0 %5669
        %5671 = vrot.lane.b32.xlu0 %v4713, 32
        %v5672 = vpop.permute.xlu0 %5671
        %5673 = vrot.lane.b32.xlu0 %v4762, 32
        %v5674 = vpop.permute.xlu0 %5673
        %5683 = vrot.lane.b32.xlu0 %v5066, 64
        %v5684 = vpop.permute.xlu0 %5683
        %5685 = vrot.lane.b32.xlu0 %v5114, 64
        %v5686 = vpop.permute.xlu0 %5685
        %5687 = vrot.lane.b32.xlu0 %v5162, 64
        %v5688 = vpop.permute.xlu0 %5687
        %5689 = vrot.lane.b32.xlu0 %v5210, 64
        %v5690 = vpop.permute.xlu0 %5689
        %5699 = vrot.lane.b32.xlu0 %v5514, 96
        %v5700 = vpop.permute.xlu0 %5699
        %5701 = vrot.lane.b32.xlu0 %v5562, 96
        %v5702 = vpop.permute.xlu0 %5701
        %5703 = vrot.lane.b32.xlu0 %v5610, 96
        %v5704 = vpop.permute.xlu0 %5703
        %5705 = vrot.lane.b32.xlu0 %v5658, 96
        %v5706 = vpop.permute.xlu0 %5705
        %v5711 = vsel %vm1030, %v4164, %v5668
        %v5712 = vsel %vm1030, %v4210, %v5670
        %v5713 = vsel %vm1030, %v4256, %v5672
        %v5714 = vsel %vm1030, %v4302, %v5674
        %v5715 = vsel %vm2893, %v5711, %v5684
        %v5716 = vsel %vm2893, %v5712, %v5686
        %v5717 = vsel %vm2893, %v5713, %v5688
        %v5718 = vsel %vm2893, %v5714, %v5690
        %v5719 = vsel %vm2898, %v5715, %v5700
        %v5720 = vsel %vm2898, %v5716, %v5702
        %v5721 = vsel %vm2898, %v5717, %v5704
        %v5722 = vsel %vm2898, %v5718, %v5706
        %s5723 = scalar_lea.vmem %s6, 64
        %v5724 = vld [vmem:[%s5723] sm:$0xf]
        %v5725 = vld [vmem:[%s5723 + $0x4] sm:$0xf]
        %v5726 = vld [vmem:[%s5723 + $0x8] sm:$0xf]
        %v5727 = vld [vmem:[%s5723 + $0xc] sm:$0xf]
        %v5728 = vld [vmem:[%s5723 + $0x10] sm:$0xf]
        %v5729 = vld [vmem:[%s5723 + $0x14] sm:$0xf]
        %v5730 = vld [vmem:[%s5723 + $0x18] sm:$0xf]
        %v5731 = vld [vmem:[%s5723 + $0x1c] sm:$0xf]
        %v5732 = vld [vmem:[%s5723 + $0x20] sm:$0xf]
        %v5733 = vld [vmem:[%s5723 + $0x24] sm:$0xf]
        %v5734 = vld [vmem:[%s5723 + $0x28] sm:$0xf]
        %v5735 = vld [vmem:[%s5723 + $0x2c] sm:$0xf]
        %v5736 = vld [vmem:[%s5723 + $0x30] sm:$0xf]
        %v5737 = vld [vmem:[%s5723 + $0x34] sm:$0xf]
        %v5738 = vld [vmem:[%s5723 + $0x38] sm:$0xf]
        %v5739 = vld [vmem:[%s5723 + $0x3c] sm:$0xf]
        %v5740 = vpack.c.bf16 %v5720, %v5719
        %v5741 = vpack.c.bf16 %v5722, %v5721
        %s5742 = scalar_lea.vmem %s7, 1
        %v5743 = vld [vmem:[%s5742] sm:$0x1]
        %v5745 = vlaneseq
        %v5746 = vshrl.u32 %v5745, 7
        %v5747 = vsub.s32 0, %v5746
        %v5748 = vrot.slane %v5743, %v5747
        %v5766 = vunpack.c.l.b16 %v5724
        %v5767 = vunpack.c.l.b16 %v5725
        %v5768 = vunpack.c.l.b16 %v5726
        %v5769 = vunpack.c.l.b16 %v5727
        %v5770 = vunpack.c.l.b16 %v5728
        %v5771 = vunpack.c.l.b16 %v5729
        %v5772 = vunpack.c.l.b16 %v5730
        %v5773 = vunpack.c.l.b16 %v5731
        %v5774 = vunpack.c.l.b16 %v5732
        %v5775 = vunpack.c.l.b16 %v5733
        %v5776 = vunpack.c.l.b16 %v5734
        %v5777 = vunpack.c.l.b16 %v5735
        %v5778 = vunpack.c.l.b16 %v5736
        %v5779 = vunpack.c.l.b16 %v5737
        %v5780 = vunpack.c.l.b16 %v5738
        %v5781 = vunpack.c.l.b16 %v5739
        %v5782 = vpack.c.b16 %v5767, %v5766
        %v5783 = vpack.c.b16 %v5769, %v5768
        %v5784 = vpack.c.b16 %v5771, %v5770
        %v5785 = vpack.c.b16 %v5773, %v5772
        %v5786 = vpack.c.b16 %v5775, %v5774
        %v5787 = vpack.c.b16 %v5777, %v5776
        %v5788 = vpack.c.b16 %v5779, %v5778
        %v5789 = vpack.c.b16 %v5781, %v5780
        %5798 = vmatprep.subr.bf16.mxu0 0
        %5799 = vmatpush1.bf16.msra.mxu0 %v5782
        %5800 = vmatprep.subr.bf16.mxu0 0
        %5801 = vmatpush1.bf16.msra.mxu0 %v5783
        %5802 = vmatprep.subr.bf16.mxu0 0
        %5803 = vmatpush1.bf16.msra.mxu0 %v5784
        %5804 = vmatprep.subr.bf16.mxu0 0
        %5805 = vmatpush1.bf16.msra.mxu0 %v5785
        %5806 = vmatprep.subr.bf16.mxu0 0
        %5807 = vmatpush1.bf16.msra.mxu0 %v5786
        %5808 = vmatprep.subr.bf16.mxu0 0
        %5809 = vmatpush1.bf16.msra.mxu0 %v5787
        %5810 = vmatprep.subr.bf16.mxu0 0
        %5811 = vmatpush1.bf16.msra.mxu0 %v5788
        %5812 = vmatprep.subr.bf16.mxu0 0
        %5813 = vmatpush1.bf16.msra.mxu0 %v5789
        %5814 = vmatprep.subr.bf16.mxu0 0
        %5815 = vmatpush1.bf16.msra.mxu0 0
        %5816 = vmatprep.subr.bf16.mxu0 0
        %5817 = vmatpush1.bf16.msra.mxu0 0
        %5818 = vmatprep.subr.bf16.mxu0 0
        %5819 = vmatpush1.bf16.msra.mxu0 0
        %5820 = vmatprep.subr.bf16.mxu0 0
        %5821 = vmatpush1.bf16.msra.mxu0 0
        %5822 = vmatprep.subr.bf16.mxu0 0
        %5823 = vmatpush1.bf16.msra.mxu0 0
        %5824 = vmatprep.subr.bf16.mxu0 0
        %5825 = vmatpush1.bf16.msra.mxu0 0
        %5826 = vmatprep.subr.bf16.mxu0 0
        %5827 = vmatpush1.bf16.msra.mxu0 0
        %5828 = vmatprep.subr.bf16.mxu0 0
        %5829 = vmatpush1.bf16.msra.mxu0 0
        %5830 = vmatprep.mubr.bf16.mxu0 0
        %5831 = vmatmul.mubr.bf16.gmra.mrb[0].mxu0 %v5740
        %v5832 = vpop.f32.mrb[0].mxu0
        %v5833 = vadd.f32 %v5748, %v5832
        %v5834 = vpop.f32.mrb[0].mxu0
        %v5835 = vpop.f32.mrb[0].mxu0
        %v5836 = vadd.f32 %v5748, %v5835
        %v5837 = vpop.f32.mrb[0].mxu0
        %5838 = vmatprep.mubr.bf16.mxu0 0
        %5839 = vmatmul.mubr.bf16.gmra.mrb[0].mxu0 %v5741
        %v5840 = vpop.f32.mrb[0].mxu0
        %v5841 = vadd.f32 %v5748, %v5840
        %v5842 = vpop.f32.mrb[0].mxu0
        %v5843 = vpop.f32.mrb[0].mxu0
        %v5844 = vadd.f32 %v5748, %v5843
        %v5845 = vpop.f32.mrb[0].mxu0
        %5846 = vdwg.mxu0
        %v5847 = vadd.f32 %v5833, %v3584
        %v5848 = vadd.f32 %v5836, %v3585
        %v5849 = vadd.f32 %v5841, %v3586
        %v5850 = vadd.f32 %v5844, %v3587
        %s5851 = scalar_lea.vmem %s8, 1
        %v5852 = vld [vmem:[%s5851] sm:$0x1]
        %s5853 = scalar_lea.vmem %s9, 1
        %v5854 = vld [vmem:[%s5853] sm:$0x1]
        %5855 = vadd.xlane.f32.xlu0 %v5847
        %v5856 = vpop.xlane.xlu0 %5855
        %5857 = vadd.xlane.f32.xlu0 %v5848
        %v5858 = vpop.xlane.xlu0 %5857
        %5859 = vadd.xlane.f32.xlu0 %v5849
        %v5860 = vpop.xlane.xlu0 %5859
        %5861 = vadd.xlane.f32.xlu0 %v5850
        %v5862 = vpop.xlane.xlu0 %5861
        %v5863 = vmul.f32 %v5856, %v684
        %v5864 = vmul.f32 %v5858, %v684
        %v5865 = vmul.f32 %v5860, %v684
        %v5866 = vmul.f32 %v5862, %v684
        %v5867 = vsub.f32 %v5847, %v5863
        %v5868 = vsub.f32 %v5848, %v5864
        %v5869 = vsub.f32 %v5849, %v5865
        %v5870 = vsub.f32 %v5850, %v5866
        %v5871 = vmul.f32 %v5867, %v5867
        %v5872 = vmul.f32 %v5868, %v5868
        %v5873 = vmul.f32 %v5869, %v5869
        %v5874 = vmul.f32 %v5870, %v5870
        %5875 = vadd.xlane.f32.xlu0 %v5871
        %v5876 = vpop.xlane.xlu0 %5875
        %5877 = vadd.xlane.f32.xlu0 %v5872
        %v5878 = vpop.xlane.xlu0 %5877
        %5879 = vadd.xlane.f32.xlu0 %v5873
        %v5880 = vpop.xlane.xlu0 %5879
        %5881 = vadd.xlane.f32.xlu0 %v5874
        %v5882 = vpop.xlane.xlu0 %5881
        %v5883 = vmul.f32 %v5876, %v684
        %v5884 = vmul.f32 %v5878, %v684
        %v5885 = vmul.f32 %v5880, %v684
        %v5886 = vmul.f32 %v5882, %v684
        %v5887 = vadd.f32 %v5883, 1e-12
        %v5888 = vadd.f32 %v5884, 1e-12
        %v5889 = vadd.f32 %v5885, 1e-12
        %v5890 = vadd.f32 %v5886, 1e-12
        %v5891 = vrsqrt.pop %v5887
        %v5892 = vrsqrt.pop %v5888
        %v5893 = vrsqrt.pop %v5889
        %v5894 = vrsqrt.pop %v5890
        %v5895 = vmul.f32 %v5867, %v5891
        %v5896 = vmul.f32 %v5868, %v5892
        %v5897 = vmul.f32 %v5869, %v5893
        %v5898 = vmul.f32 %v5870, %v5894
        %v5900 = vlaneseq
        %v5901 = vshrl.u32 %v5900, 7
        %v5902 = vsub.s32 0, %v5901
        %v5903 = vrot.slane %v5852, %v5902
        %v5905 = vmul.f32 %v5895, %v5903
        %v5906 = vmul.f32 %v5896, %v5903
        %v5907 = vmul.f32 %v5897, %v5903
        %v5908 = vmul.f32 %v5898, %v5903
        %v5910 = vlaneseq
        %v5911 = vshrl.u32 %v5910, 7
        %v5912 = vsub.s32 0, %v5911
        %v5913 = vrot.slane %v5854, %v5912
        %v5915 = vadd.f32 %v5905, %v5913
        %v5916 = vadd.f32 %v5906, %v5913
        %v5917 = vadd.f32 %v5907, %v5913
        %v5918 = vadd.f32 %v5908, %v5913
        %s5919 = scalar_lea.vmem %s10, 128
        %v5920 = vld [vmem:[%s5919] sm:$0xff]
        %v5921 = vld [vmem:[%s5919 + $0x8] sm:$0xff]
        %v5922 = vld [vmem:[%s5919 + $0x10] sm:$0xff]
        %v5923 = vld [vmem:[%s5919 + $0x18] sm:$0xff]
        %v5924 = vld [vmem:[%s5919 + $0x20] sm:$0xff]
        %v5925 = vld [vmem:[%s5919 + $0x28] sm:$0xff]
        %v5926 = vld [vmem:[%s5919 + $0x30] sm:$0xff]
        %v5927 = vld [vmem:[%s5919 + $0x38] sm:$0xff]
        %v5928 = vld [vmem:[%s5919 + $0x40] sm:$0xff]
        %v5929 = vld [vmem:[%s5919 + $0x48] sm:$0xff]
        %v5930 = vld [vmem:[%s5919 + $0x50] sm:$0xff]
        %v5931 = vld [vmem:[%s5919 + $0x58] sm:$0xff]
        %v5932 = vld [vmem:[%s5919 + $0x60] sm:$0xff]
        %v5933 = vld [vmem:[%s5919 + $0x68] sm:$0xff]
        %v5934 = vld [vmem:[%s5919 + $0x70] sm:$0xff]
        %v5935 = vld [vmem:[%s5919 + $0x78] sm:$0xff]
        %v5936 = vpack.c.bf16 %v5916, %v5915
        %v5937 = vpack.c.bf16 %v5918, %v5917
        %s5938 = scalar_lea.vmem %s11, 2
        %v5939 = vld [vmem:[%s5938] sm:$0x3]
        %v5941 = vlaneseq
        %v5942 = vshrl.u32 %v5941, 7
        %v5943 = vsub.s32 0, %v5942
        %v5944 = vrot.slane %v5939, %v5943
        %v5945 = vlaneseq
        %v5946 = vshrl.u32 %v5945, 7
        %v5947 = vsub.s32 1, %v5946
        %v5948 = vrot.slane %v5939, %v5947
        %v5967 = vunpack.c.l.b16 %v5920
        %v5968 = vunpack.c.h.b16 %v5920
        %v5969 = vunpack.c.l.b16 %v5921
        %v5970 = vunpack.c.h.b16 %v5921
        %v5971 = vunpack.c.l.b16 %v5922
        %v5972 = vunpack.c.h.b16 %v5922
        %v5973 = vunpack.c.l.b16 %v5923
        %v5974 = vunpack.c.h.b16 %v5923
        %v5975 = vunpack.c.l.b16 %v5924
        %v5976 = vunpack.c.h.b16 %v5924
        %v5977 = vunpack.c.l.b16 %v5925
        %v5978 = vunpack.c.h.b16 %v5925
        %v5979 = vunpack.c.l.b16 %v5926
        %v5980 = vunpack.c.h.b16 %v5926
        %v5981 = vunpack.c.l.b16 %v5927
        %v5982 = vunpack.c.h.b16 %v5927
        %v5983 = vunpack.c.l.b16 %v5928
        %v5984 = vunpack.c.h.b16 %v5928
        %v5985 = vunpack.c.l.b16 %v5929
        %v5986 = vunpack.c.h.b16 %v5929
        %v5987 = vunpack.c.l.b16 %v5930
        %v5988 = vunpack.c.h.b16 %v5930
        %v5989 = vunpack.c.l.b16 %v5931
        %v5990 = vunpack.c.h.b16 %v5931
        %v5991 = vunpack.c.l.b16 %v5932
        %v5992 = vunpack.c.h.b16 %v5932
        %v5993 = vunpack.c.l.b16 %v5933
        %v5994 = vunpack.c.h.b16 %v5933
        %v5995 = vunpack.c.l.b16 %v5934
        %v5996 = vunpack.c.h.b16 %v5934
        %v5997 = vunpack.c.l.b16 %v5935
        %v5998 = vunpack.c.h.b16 %v5935
        %v5999 = vpack.c.b16 %v5969, %v5967
        %v6000 = vpack.c.b16 %v5970, %v5968
        %v6001 = vpack.c.b16 %v5973, %v5971
        %v6002 = vpack.c.b16 %v5974, %v5972
        %v6003 = vpack.c.b16 %v5977, %v5975
        %v6004 = vpack.c.b16 %v5978, %v5976
        %v6005 = vpack.c.b16 %v5981, %v5979
        %v6006 = vpack.c.b16 %v5982, %v5980
        %v6007 = vpack.c.b16 %v5985, %v5983
        %v6008 = vpack.c.b16 %v5986, %v5984
        %v6009 = vpack.c.b16 %v5989, %v5987
        %v6010 = vpack.c.b16 %v5990, %v5988
        %v6011 = vpack.c.b16 %v5993, %v5991
        %v6012 = vpack.c.b16 %v5994, %v5992
        %v6013 = vpack.c.b16 %v5997, %v5995
        %v6014 = vpack.c.b16 %v5998, %v5996
        %6031 = vmatprep.subr.bf16.mxu0 %v6000
        %6032 = vmatpush1.bf16.msra.mxu0 %v5999
        %6033 = vmatprep.subr.bf16.mxu0 %v6002
        %6034 = vmatpush1.bf16.msra.mxu0 %v6001
        %6035 = vmatprep.subr.bf16.mxu0 %v6004
        %6036 = vmatpush1.bf16.msra.mxu0 %v6003
        %6037 = vmatprep.subr.bf16.mxu0 %v6006
        %6038 = vmatpush1.bf16.msra.mxu0 %v6005
        %6039 = vmatprep.subr.bf16.mxu0 %v6008
        %6040 = vmatpush1.bf16.msra.mxu0 %v6007
        %6041 = vmatprep.subr.bf16.mxu0 %v6010
        %6042 = vmatpush1.bf16.msra.mxu0 %v6009
        %6043 = vmatprep.subr.bf16.mxu0 %v6012
        %6044 = vmatpush1.bf16.msra.mxu0 %v6011
        %6045 = vmatprep.subr.bf16.mxu0 %v6014
        %6046 = vmatpush1.bf16.msra.mxu0 %v6013
        %6047 = vmatprep.subr.bf16.mxu0 0
        %6048 = vmatpush1.bf16.msra.mxu0 0
        %6049 = vmatprep.subr.bf16.mxu0 0
        %6050 = vmatpush1.bf16.msra.mxu0 0
        %6051 = vmatprep.subr.bf16.mxu0 0
        %6052 = vmatpush1.bf16.msra.mxu0 0
        %6053 = vmatprep.subr.bf16.mxu0 0
        %6054 = vmatpush1.bf16.msra.mxu0 0
        %6055 = vmatprep.subr.bf16.mxu0 0
        %6056 = vmatpush1.bf16.msra.mxu0 0
        %6057 = vmatprep.subr.bf16.mxu0 0
        %6058 = vmatpush1.bf16.msra.mxu0 0
        %6059 = vmatprep.subr.bf16.mxu0 0
        %6060 = vmatpush1.bf16.msra.mxu0 0
        %6061 = vmatprep.subr.bf16.mxu0 0
        %6062 = vmatpush1.bf16.msra.mxu0 0
        %6063 = vmatprep.mubr.bf16.mxu0 0
        %6064 = vmatmul.mubr.bf16.gmra.mrb[0].mxu0 %v5936
        %v6065 = vpop.f32.mrb[0].mxu0
        %v6066 = vadd.f32 %v5944, %v6065
        %v6067 = vpop.f32.mrb[0].mxu0
        %v6068 = vadd.f32 %v5948, %v6067
        %v6069 = vpop.f32.mrb[0].mxu0
        %v6070 = vadd.f32 %v5944, %v6069
        %v6071 = vpop.f32.mrb[0].mxu0
        %v6072 = vadd.f32 %v5948, %v6071
        %6073 = vmatprep.mubr.bf16.mxu0 0
        %6074 = vmatmul.mubr.bf16.gmra.mrb[0].mxu0 %v5937
        %v6075 = vpop.f32.mrb[0].mxu0
        %v6076 = vadd.f32 %v5944, %v6075
        %v6077 = vpop.f32.mrb[0].mxu0
        %v6078 = vadd.f32 %v5948, %v6077
        %v6079 = vpop.f32.mrb[0].mxu0
        %v6080 = vadd.f32 %v5944, %v6079
        %v6081 = vpop.f32.mrb[0].mxu0
        %v6082 = vadd.f32 %v5948, %v6081
        %6083 = vdwg.mxu0
        %v6084 = vmul.f32 %v6066, 0.5
        %v6085 = vmul.f32 %v6068, 0.5
        %v6086 = vmul.f32 %v6070, 0.5
        %v6087 = vmul.f32 %v6072, 0.5
        %v6088 = vmul.f32 %v6076, 0.5
        %v6089 = vmul.f32 %v6078, 0.5
        %v6090 = vmul.f32 %v6080, 0.5
        %v6091 = vmul.f32 %v6082, 0.5
        %v6092 = vmul.f32 %v6066, 0.044715
        %v6093 = vmul.f32 %v6068, 0.044715
        %v6094 = vmul.f32 %v6070, 0.044715
        %v6095 = vmul.f32 %v6072, 0.044715
        %v6096 = vmul.f32 %v6076, 0.044715
        %v6097 = vmul.f32 %v6078, 0.044715
        %v6098 = vmul.f32 %v6080, 0.044715
        %v6099 = vmul.f32 %v6082, 0.044715
        %v6100 = vmul.f32 %v6092, %v6066
        %v6101 = vmul.f32 %v6093, %v6068
        %v6102 = vmul.f32 %v6094, %v6070
        %v6103 = vmul.f32 %v6095, %v6072
        %v6104 = vmul.f32 %v6096, %v6076
        %v6105 = vmul.f32 %v6097, %v6078
        %v6106 = vmul.f32 %v6098, %v6080
        %v6107 = vmul.f32 %v6099, %v6082
        %v6108 = vmul.f32 %v6100, %v6066
        %v6109 = vmul.f32 %v6101, %v6068
        %v6110 = vmul.f32 %v6102, %v6070
        %v6111 = vmul.f32 %v6103, %v6072
        %v6112 = vmul.f32 %v6104, %v6076
        %v6113 = vmul.f32 %v6105, %v6078
        %v6114 = vmul.f32 %v6106, %v6080
        %v6115 = vmul.f32 %v6107, %v6082
        %v6116 = vadd.f32 %v6066, %v6108
        %v6117 = vadd.f32 %v6068, %v6109
        %v6118 = vadd.f32 %v6070, %v6110
        %v6119 = vadd.f32 %v6072, %v6111
        %v6120 = vadd.f32 %v6076, %v6112
        %v6121 = vadd.f32 %v6078, %v6113
        %v6122 = vadd.f32 %v6080, %v6114
        %v6123 = vadd.f32 %v6082, %v6115
        %v6124 = vmul.f32 %v6116, 0.7978846
        %v6125 = vmul.f32 %v6117, 0.7978846
        %v6126 = vmul.f32 %v6118, 0.7978846
        %v6127 = vmul.f32 %v6119, 0.7978846
        %v6128 = vmul.f32 %v6120, 0.7978846
        %v6129 = vmul.f32 %v6121, 0.7978846
        %v6130 = vmul.f32 %v6122, 0.7978846
        %v6131 = vmul.f32 %v6123, 0.7978846
        %v6132 = vtanh.pop %v6124
        %v6133 = vtanh.pop %v6125
        %v6134 = vtanh.pop %v6126
        %v6135 = vtanh.pop %v6127
        %v6136 = vtanh.pop %v6128
        %v6137 = vtanh.pop %v6129
        %v6138 = vtanh.pop %v6130
        %v6139 = vtanh.pop %v6131
        %v6140 = vadd.f32 %v6132, 1.0
        %v6141 = vadd.f32 %v6133, 1.0
        %v6142 = vadd.f32 %v6134, 1.0
        %v6143 = vadd.f32 %v6135, 1.0
        %v6144 = vadd.f32 %v6136, 1.0
        %v6145 = vadd.f32 %v6137, 1.0
        %v6146 = vadd.f32 %v6138, 1.0
        %v6147 = vadd.f32 %v6139, 1.0
        %v6148 = vmul.f32 %v6084, %v6140
        %v6149 = vmul.f32 %v6085, %v6141
        %v6150 = vmul.f32 %v6086, %v6142
        %v6151 = vmul.f32 %v6087, %v6143
        %v6152 = vmul.f32 %v6088, %v6144
        %v6153 = vmul.f32 %v6089, %v6145
        %v6154 = vmul.f32 %v6090, %v6146
        %v6155 = vmul.f32 %v6091, %v6147
        %s6156 = scalar_lea.vmem [#allocation2], 128
        %v6157 = vld [vmem:[%s6156] sm:$0xf]
        %v6158 = vld [vmem:[%s6156 + $0x4] sm:$0xf]
        %v6159 = vld [vmem:[%s6156 + $0x8] sm:$0xf]
        %v6160 = vld [vmem:[%s6156 + $0xc] sm:$0xf]
        %v6161 = vld [vmem:[%s6156 + $0x10] sm:$0xf]
        %v6162 = vld [vmem:[%s6156 + $0x14] sm:$0xf]
        %v6163 = vld [vmem:[%s6156 + $0x18] sm:$0xf]
        %v6164 = vld [vmem:[%s6156 + $0x1c] sm:$0xf]
        %v6165 = vld [vmem:[%s6156 + $0x20] sm:$0xf]
        %v6166 = vld [vmem:[%s6156 + $0x24] sm:$0xf]
        %v6167 = vld [vmem:[%s6156 + $0x28] sm:$0xf]
        %v6168 = vld [vmem:[%s6156 + $0x2c] sm:$0xf]
        %v6169 = vld [vmem:[%s6156 + $0x30] sm:$0xf]
        %v6170 = vld [vmem:[%s6156 + $0x34] sm:$0xf]
        %v6171 = vld [vmem:[%s6156 + $0x38] sm:$0xf]
        %v6172 = vld [vmem:[%s6156 + $0x3c] sm:$0xf]
        %v6173 = vld [vmem:[%s6156 + $0x40] sm:$0xf]
        %v6174 = vld [vmem:[%s6156 + $0x44] sm:$0xf]
        %v6175 = vld [vmem:[%s6156 + $0x48] sm:$0xf]
        %v6176 = vld [vmem:[%s6156 + $0x4c] sm:$0xf]
        %v6177 = vld [vmem:[%s6156 + $0x50] sm:$0xf]
        %v6178 = vld [vmem:[%s6156 + $0x54] sm:$0xf]
        %v6179 = vld [vmem:[%s6156 + $0x58] sm:$0xf]
        %v6180 = vld [vmem:[%s6156 + $0x5c] sm:$0xf]
        %v6181 = vld [vmem:[%s6156 + $0x60] sm:$0xf]
        %v6182 = vld [vmem:[%s6156 + $0x64] sm:$0xf]
        %v6183 = vld [vmem:[%s6156 + $0x68] sm:$0xf]
        %v6184 = vld [vmem:[%s6156 + $0x6c] sm:$0xf]
        %v6185 = vld [vmem:[%s6156 + $0x70] sm:$0xf]
        %v6186 = vld [vmem:[%s6156 + $0x74] sm:$0xf]
        %v6187 = vld [vmem:[%s6156 + $0x78] sm:$0xf]
        %v6188 = vld [vmem:[%s6156 + $0x7c] sm:$0xf]
        %v6189 = vpack.c.bf16 %v6150, %v6148
        %v6190 = vpack.c.bf16 %v6151, %v6149
        %v6191 = vpack.c.bf16 %v6154, %v6152
        %v6192 = vpack.c.bf16 %v6155, %v6153
        %s6193 = scalar_lea.vmem %s13, 1
        %v6194 = vld [vmem:[%s6193] sm:$0x1]
        %v6196 = vlaneseq
        %v6197 = vshrl.u32 %v6196, 7
        %v6198 = vsub.s32 0, %v6197
        %v6199 = vrot.slane %v6194, %v6198
        %v6233 = vunpack.c.l.b16 %v6157
        %v6234 = vunpack.c.l.b16 %v6158
        %v6235 = vunpack.c.l.b16 %v6159
        %v6236 = vunpack.c.l.b16 %v6160
        %v6237 = vunpack.c.l.b16 %v6161
        %v6238 = vunpack.c.l.b16 %v6162
        %v6239 = vunpack.c.l.b16 %v6163
        %v6240 = vunpack.c.l.b16 %v6164
        %v6241 = vunpack.c.l.b16 %v6165
        %v6242 = vunpack.c.l.b16 %v6166
        %v6243 = vunpack.c.l.b16 %v6167
        %v6244 = vunpack.c.l.b16 %v6168
        %v6245 = vunpack.c.l.b16 %v6169
        %v6246 = vunpack.c.l.b16 %v6170
        %v6247 = vunpack.c.l.b16 %v6171
        %v6248 = vunpack.c.l.b16 %v6172
        %v6249 = vunpack.c.l.b16 %v6173
        %v6250 = vunpack.c.l.b16 %v6174
        %v6251 = vunpack.c.l.b16 %v6175
        %v6252 = vunpack.c.l.b16 %v6176
        %v6253 = vunpack.c.l.b16 %v6177
        %v6254 = vunpack.c.l.b16 %v6178
        %v6255 = vunpack.c.l.b16 %v6179
        %v6256 = vunpack.c.l.b16 %v6180
        %v6257 = vunpack.c.l.b16 %v6181
        %v6258 = vunpack.c.l.b16 %v6182
        %v6259 = vunpack.c.l.b16 %v6183
        %v6260 = vunpack.c.l.b16 %v6184
        %v6261 = vunpack.c.l.b16 %v6185
        %v6262 = vunpack.c.l.b16 %v6186
        %v6263 = vunpack.c.l.b16 %v6187
        %v6264 = vunpack.c.l.b16 %v6188
        %v6265 = vpack.c.b16 %v6234, %v6233
        %v6266 = vpack.c.b16 %v6236, %v6235
        %v6267 = vpack.c.b16 %v6238, %v6237
        %v6268 = vpack.c.b16 %v6240, %v6239
        %v6269 = vpack.c.b16 %v6242, %v6241
        %v6270 = vpack.c.b16 %v6244, %v6243
        %v6271 = vpack.c.b16 %v6246, %v6245
        %v6272 = vpack.c.b16 %v6248, %v6247
        %v6273 = vpack.c.b16 %v6250, %v6249
        %v6274 = vpack.c.b16 %v6252, %v6251
        %v6275 = vpack.c.b16 %v6254, %v6253
        %v6276 = vpack.c.b16 %v6256, %v6255
        %v6277 = vpack.c.b16 %v6258, %v6257
        %v6278 = vpack.c.b16 %v6260, %v6259
        %v6279 = vpack.c.b16 %v6262, %v6261
        %v6280 = vpack.c.b16 %v6264, %v6263
        %6297 = vmatprep.subr.bf16.mxu0 0
        %6298 = vmatpush1.bf16.msra.mxu0 %v6265
        %6299 = vmatprep.subr.bf16.mxu0 0
        %6300 = vmatpush1.bf16.msra.mxu0 %v6266
        %6301 = vmatprep.subr.bf16.mxu0 0
        %6302 = vmatpush1.bf16.msra.mxu0 %v6267
        %6303 = vmatprep.subr.bf16.mxu0 0
        %6304 = vmatpush1.bf16.msra.mxu0 %v6268
        %6305 = vmatprep.subr.bf16.mxu0 0
        %6306 = vmatpush1.bf16.msra.mxu0 %v6269
        %6307 = vmatprep.subr.bf16.mxu0 0
        %6308 = vmatpush1.bf16.msra.mxu0 %v6270
        %6309 = vmatprep.subr.bf16.mxu0 0
        %6310 = vmatpush1.bf16.msra.mxu0 %v6271
        %6311 = vmatprep.subr.bf16.mxu0 0
        %6312 = vmatpush1.bf16.msra.mxu0 %v6272
        %6313 = vmatprep.subr.bf16.mxu0 0
        %6314 = vmatpush1.bf16.msra.mxu0 %v6273
        %6315 = vmatprep.subr.bf16.mxu0 0
        %6316 = vmatpush1.bf16.msra.mxu0 %v6274
        %6317 = vmatprep.subr.bf16.mxu0 0
        %6318 = vmatpush1.bf16.msra.mxu0 %v6275
        %6319 = vmatprep.subr.bf16.mxu0 0
        %6320 = vmatpush1.bf16.msra.mxu0 %v6276
        %6321 = vmatprep.subr.bf16.mxu0 0
        %6322 = vmatpush1.bf16.msra.mxu0 %v6277
        %6323 = vmatprep.subr.bf16.mxu0 0
        %6324 = vmatpush1.bf16.msra.mxu0 %v6278
        %6325 = vmatprep.subr.bf16.mxu0 0
        %6326 = vmatpush1.bf16.msra.mxu0 %v6279
        %6327 = vmatprep.subr.bf16.mxu0 0
        %6328 = vmatpush1.bf16.msra.mxu0 %v6280
        %6329 = vmatprep.mubr.bf16.mxu0 %v6190
        %6330 = vmatmul.mubr.bf16.gmra.mrb[0].mxu0 %v6189
        %v6331 = vpop.f32.mrb[0].mxu0
        %v6332 = vadd.f32 %v6199, %v6331
        %v6333 = vpop.f32.mrb[0].mxu0
        %v6334 = vpop.f32.mrb[0].mxu0
        %v6335 = vadd.f32 %v6199, %v6334
        %v6336 = vpop.f32.mrb[0].mxu0
        %6337 = vmatprep.mubr.bf16.mxu0 %v6192
        %6338 = vmatmul.mubr.bf16.gmra.mrb[0].mxu0 %v6191
        %v6339 = vpop.f32.mrb[0].mxu0
        %v6340 = vadd.f32 %v6199, %v6339
        %v6341 = vpop.f32.mrb[0].mxu0
        %v6342 = vpop.f32.mrb[0].mxu0
        %v6343 = vadd.f32 %v6199, %v6342
        %v6344 = vpop.f32.mrb[0].mxu0
        %6345 = vdwg.mxu0
        %v6346 = vadd.f32 %v6332, %v5915
        %v6347 = vadd.f32 %v6335, %v5916
        %v6348 = vadd.f32 %v6340, %v5917
        %v6349 = vadd.f32 %v6343, %v5918
        %s6350 = scalar_lea.vmem %s14, 1
        %v6351 = vld [vmem:[%s6350] sm:$0x1]
        %s6352 = scalar_lea.vmem [#allocation4], 1
        %v6353 = vld [vmem:[%s6352] sm:$0x1]
        %6354 = vadd.xlane.f32.xlu0 %v6346
        %v6355 = vpop.xlane.xlu0 %6354
        %6356 = vadd.xlane.f32.xlu0 %v6347
        %v6357 = vpop.xlane.xlu0 %6356
        %6358 = vadd.xlane.f32.xlu0 %v6348
        %v6359 = vpop.xlane.xlu0 %6358
        %6360 = vadd.xlane.f32.xlu0 %v6349
        %v6361 = vpop.xlane.xlu0 %6360
        %v6362 = vmul.f32 %v6355, %v684
        %v6363 = vmul.f32 %v6357, %v684
        %v6364 = vmul.f32 %v6359, %v684
        %v6365 = vmul.f32 %v6361, %v684
        %v6366 = vsub.f32 %v6346, %v6362
        %v6367 = vsub.f32 %v6347, %v6363
        %v6368 = vsub.f32 %v6348, %v6364
        %v6369 = vsub.f32 %v6349, %v6365
        %v6370 = vmul.f32 %v6366, %v6366
        %v6371 = vmul.f32 %v6367, %v6367
        %v6372 = vmul.f32 %v6368, %v6368
        %v6373 = vmul.f32 %v6369, %v6369
        %6374 = vadd.xlane.f32.xlu0 %v6370
        %v6375 = vpop.xlane.xlu0 %6374
        %6376 = vadd.xlane.f32.xlu0 %v6371
        %v6377 = vpop.xlane.xlu0 %6376
        %6378 = vadd.xlane.f32.xlu0 %v6372
        %v6379 = vpop.xlane.xlu0 %6378
        %6380 = vadd.xlane.f32.xlu0 %v6373
        %v6381 = vpop.xlane.xlu0 %6380
        %v6382 = vmul.f32 %v6375, %v684
        %v6383 = vmul.f32 %v6377, %v684
        %v6384 = vmul.f32 %v6379, %v684
        %v6385 = vmul.f32 %v6381, %v684
        %v6386 = vadd.f32 %v6382, 1e-12
        %v6387 = vadd.f32 %v6383, 1e-12
        %v6388 = vadd.f32 %v6384, 1e-12
        %v6389 = vadd.f32 %v6385, 1e-12
        %v6390 = vrsqrt.pop %v6386
        %v6391 = vrsqrt.pop %v6387
        %v6392 = vrsqrt.pop %v6388
        %v6393 = vrsqrt.pop %v6389
        %v6394 = vmul.f32 %v6366, %v6390
        %v6395 = vmul.f32 %v6367, %v6391
        %v6396 = vmul.f32 %v6368, %v6392
        %v6397 = vmul.f32 %v6369, %v6393
        %v6399 = vlaneseq
        %v6400 = vshrl.u32 %v6399, 7
        %v6401 = vsub.s32 0, %v6400
        %v6402 = vrot.slane %v6351, %v6401
        %v6404 = vmul.f32 %v6394, %v6402
        %v6405 = vmul.f32 %v6395, %v6402
        %v6406 = vmul.f32 %v6396, %v6402
        %v6407 = vmul.f32 %v6397, %v6402
        %v6409 = vlaneseq
        %v6410 = vshrl.u32 %v6409, 7
        %v6411 = vsub.s32 0, %v6410
        %v6412 = vrot.slane %v6353, %v6411
        %v6414 = vadd.f32 %v6404, %v6412
        %v6415 = vadd.f32 %v6405, %v6412
        %v6416 = vadd.f32 %v6406, %v6412
        %v6417 = vadd.f32 %v6407, %v6412
        %v6418 = vld [vmem:[#allocation6] sm:$0xf]
        %v6419 = vld [vmem:[#allocation6 + $0x4] sm:$0xf]
        %v6420 = vld [vmem:[#allocation6 + $0x8] sm:$0xf]
        %v6421 = vld [vmem:[#allocation6 + $0xc] sm:$0xf]
        %v6422 = vld [vmem:[#allocation6 + $0x10] sm:$0xf]
        %v6423 = vld [vmem:[#allocation6 + $0x14] sm:$0xf]
        %v6424 = vld [vmem:[#allocation6 + $0x18] sm:$0xf]
        %v6425 = vld [vmem:[#allocation6 + $0x1c] sm:$0xf]
        %v6426 = vld [vmem:[#allocation6 + $0x20] sm:$0xf]
        %v6427 = vld [vmem:[#allocation6 + $0x24] sm:$0xf]
        %v6428 = vld [vmem:[#allocation6 + $0x28] sm:$0xf]
        %v6429 = vld [vmem:[#allocation6 + $0x2c] sm:$0xf]
        %v6430 = vld [vmem:[#allocation6 + $0x30] sm:$0xf]
        %v6431 = vld [vmem:[#allocation6 + $0x34] sm:$0xf]
        %v6432 = vld [vmem:[#allocation6 + $0x38] sm:$0xf]
        %v6433 = vld [vmem:[#allocation6 + $0x3c] sm:$0xf]
        %v6434 = vpack.c.bf16 %v6414, %v6414
        %v6435 = vpack.c.bf16 %v6415, %v6415
        %v6436 = vpack.c.bf16 %v6416, %v6416
        %v6437 = vpack.c.bf16 %v6417, %v6417
        %v6438 = vld [vmem:[#allocation7] sm:$0x1]
        %v6440 = vlaneseq
        %v6441 = vshrl.u32 %v6440, 7
        %v6442 = vsub.s32 0, %v6441
        %v6443 = vrot.slane %v6438, %v6442
        %v6449 = vunpack.c.l.b16 %v6434
        %v6450 = vunpack.c.l.b16 %v6435
        %v6451 = vunpack.c.l.b16 %v6436
        %v6452 = vunpack.c.l.b16 %v6437
        %v6453 = vrot.slane %v6450, 7
        %vm6454 = vcmask 1041409
        %v6455 = vsel %vm6454, %v6453, %v6449
        %v6456 = vrot.slane %v6451, 6
        %vm6457 = vcmask 1042434
        %v6458 = vsel %vm6457, %v6456, %v6455
        %v6459 = vrot.slane %v6452, 5
        %vm6460 = vcmask 1043459
        %v6461 = vsel %vm6460, %v6459, %v6458
        %v6462 = vpack.c.b16 %v6461, %v6461
        %v6480 = vunpack.c.l.b16 %v6418
        %v6481 = vunpack.c.l.b16 %v6419
        %v6482 = vunpack.c.l.b16 %v6420
        %v6483 = vunpack.c.l.b16 %v6421
        %v6484 = vunpack.c.l.b16 %v6422
        %v6485 = vunpack.c.l.b16 %v6423
        %v6486 = vunpack.c.l.b16 %v6424
        %v6487 = vunpack.c.l.b16 %v6425
        %v6488 = vunpack.c.l.b16 %v6426
        %v6489 = vunpack.c.l.b16 %v6427
        %v6490 = vunpack.c.l.b16 %v6428
        %v6491 = vunpack.c.l.b16 %v6429
        %v6492 = vunpack.c.l.b16 %v6430
        %v6493 = vunpack.c.l.b16 %v6431
        %v6494 = vunpack.c.l.b16 %v6432
        %v6495 = vunpack.c.l.b16 %v6433
        %v6496 = vpack.c.b16 %v6481, %v6480
        %v6497 = vpack.c.b16 %v6483, %v6482
        %v6498 = vpack.c.b16 %v6485, %v6484
        %v6499 = vpack.c.b16 %v6487, %v6486
        %v6500 = vpack.c.b16 %v6489, %v6488
        %v6501 = vpack.c.b16 %v6491, %v6490
        %v6502 = vpack.c.b16 %v6493, %v6492
        %v6503 = vpack.c.b16 %v6495, %v6494
        %6512 = vmatprep.subr.bf16.mxu0 0
        %6513 = vmatpush1.bf16.msra.mxu0 %v6496
        %6514 = vmatprep.subr.bf16.mxu0 0
        %6515 = vmatpush1.bf16.msra.mxu0 %v6497
        %6516 = vmatprep.subr.bf16.mxu0 0
        %6517 = vmatpush1.bf16.msra.mxu0 %v6498
        %6518 = vmatprep.subr.bf16.mxu0 0
        %6519 = vmatpush1.bf16.msra.mxu0 %v6499
        %6520 = vmatprep.subr.bf16.mxu0 0
        %6521 = vmatpush1.bf16.msra.mxu0 %v6500
        %6522 = vmatprep.subr.bf16.mxu0 0
        %6523 = vmatpush1.bf16.msra.mxu0 %v6501
        %6524 = vmatprep.subr.bf16.mxu0 0
        %6525 = vmatpush1.bf16.msra.mxu0 %v6502
        %6526 = vmatprep.subr.bf16.mxu0 0
        %6527 = vmatpush1.bf16.msra.mxu0 %v6503
        %6528 = vmatprep.subr.bf16.mxu0 0
        %6529 = vmatpush1.bf16.msra.mxu0 0
        %6530 = vmatprep.subr.bf16.mxu0 0
        %6531 = vmatpush1.bf16.msra.mxu0 0
        %6532 = vmatprep.subr.bf16.mxu0 0
        %6533 = vmatpush1.bf16.msra.mxu0 0
        %6534 = vmatprep.subr.bf16.mxu0 0
        %6535 = vmatpush1.bf16.msra.mxu0 0
        %6536 = vmatprep.subr.bf16.mxu0 0
        %6537 = vmatpush1.bf16.msra.mxu0 0
        %6538 = vmatprep.subr.bf16.mxu0 0
        %6539 = vmatpush1.bf16.msra.mxu0 0
        %6540 = vmatprep.subr.bf16.mxu0 0
        %6541 = vmatpush1.bf16.msra.mxu0 0
        %6542 = vmatprep.subr.bf16.mxu0 0
        %6543 = vmatpush1.bf16.msra.mxu0 0
        %6544 = vmatprep.mubr.bf16.mxu0 0
        %6545 = vmatmul.mubr.bf16.gmra.mrb[0].mxu0 %v6462
        %v6546 = vpop.f32.mrb[0].mxu0
        %v6547 = vadd.f32 %v6443, %v6546
        %v6548 = vpop.f32.mrb[0].mxu0
        %v6549 = vpop.f32.mrb[0].mxu0
        %v6550 = vpop.f32.mrb[0].mxu0
        %6551 = vdwg.mxu0
        %v6552 = vtanh.pop %v6547
        %v6555 = vunpack.c.l.s4 1966171168
        %v6556 = vunpack.c.0.s8 %v6555
        %v6557 = vlaneseq
        %v6558 = vshrl.u32 %v6557, 7
        %v6559 = vsub.s32 %v6556, %v6558
        %v6560 = vrot.slane %v6552, %v6559
        %v6561 = vcombine.high %v6560, %v6560
        %v6563 = vunpack.c.l.s4 1966171168
        %v6564 = vunpack.c.0.s8 %v6563
        %v6565 = vlaneseq
        %v6566 = vshrl.u32 %v6565, 7
        %v6567 = vsub.s32 %v6564, %v6566
        %v6568 = vrot.slane %v6560, %v6567
        %v6570 = vunpack.c.l.s4 1966171168
        %v6571 = vunpack.c.0.s8 %v6570
        %v6572 = vlaneseq
        %v6573 = vshrl.u32 %v6572, 7
        %v6574 = vsub.s32 %v6571, %v6573
        %v6575 = vrot.slane %v6561, %v6574
        %v6576 = vcombine.high %v6568, %v6568
        %v6577 = vcombine.high %v6575, %v6575
        %6582 = vst [vmem:[%s651] sm:$0x1] %v6568
        %6583 = vst [vmem:[%s651 + $0x1] sm:$0x1] %v6575
        %6584 = vst [vmem:[%s651 + $0x2] sm:$0x1] %v6576
        %6585 = vst [vmem:[%s651 + $0x3] sm:$0x1] %v6577
        %s6586 = smul.u32 4, %s32
        %p6587 = scmp.lt.s32.totalorder %s6586, 7
        %s6588 = scalar_select %p6587, %s6586, 7
        %s6589 = scalar_lea.vmem %s18, %s6588
        // Predicated region
        $region109: #{bert_arch_forward.2} parent=91 // pred_check
          %p6590 = pneg %p438
        $region110: #{bert_arch_forward.2} parent=91 // pred_check_branch
          %6592 = sbr.rel (%p6590) target = $region112
        $region111: #{bert_arch_forward.2} parent=91 // pred_region
          %s6593 = smul.u32 4, %s32
        $region112: #{bert_arch_forward.2} parent=91 // pred_fallthru
          _
      $region92: #{bert_arch_forward.2} parent=5 // pred_fallthru
        _
      %p6594 = scmp.le.s32.totalorder 2, %s27
      // Predicated region
      $region113: #{bert_arch_forward.2} parent=5 // pred_check
        %p6595 = pneg %p6594
      $region114: #{bert_arch_forward.2} parent=5 // pred_check_branch
        %6597 = sbr.rel (%p6595) target = $region116
      $region115: #{bert_arch_forward.2} parent=5 // pred_region
        %s6598 = ssub.s32 %s27, 2
        // Predicated region
        $region117: #{bert_arch_forward.2} parent=115 // pred_check
          %p6599 = pneg %p444
        $region118: #{bert_arch_forward.2} parent=115 // pred_check_branch
          %6601 = sbr.rel (%p6599) target = $region120
        $region119: #{bert_arch_forward.2} parent=115 // pred_region
          %s6602 = smul.u32 4, %s33
          %p6603 = scmp.lt.s32.totalorder %s6602, 7
          %s6604 = scalar_select %p6603, %s6602, 7
          %s6605 = scalar_lea.vmem %s18, %s6604
        $region120: #{bert_arch_forward.2} parent=115 // pred_fallthru
          _
      $region116: #{bert_arch_forward.2} parent=5 // pred_fallthru
        _
    $region6: #{bert_arch_forward.2} parent=1 // loop_footer
      %s31 = sadd.s32 1, %s27
    $region7: #{bert_arch_forward.2} parent=1 // loop_footer_branch
      %26 = sbr.rel target = $region3
    $region8: #{bert_arch_forward.2} parent=1 // loop_exit
      _
    %6606 = vsyncpa [#allocation3], 1
    %s6607 = scalar_lea.sflag [#allocation3], 1
    %6608 = vsyncpa %s6607, 1
    %6609 = vsyncpa [#allocation5], 1
    %6610 = vsyncpa [#allocation8], 1

</llo_original>
